<compile_context>
chip_gen: v7x
topology: tpu7x:2x2x1
jax: 0.10.0
libtpu: 0.0.40
codegen_flags: <defaults>
</compile_context>

<pallas_src>
import jax
import jax.numpy as jnp
from jax.experimental import pallas as pl
from jax.experimental.pallas import tpu as pltpu

EPS = 1e-5

# True ('3x3' model) feature sizes and their lane-padded (multiple-of-128) sizes.
D_IN,  P_IN  = 400, 512
D_H1,  P_H1  = 600, 640
D_H2,  P_H2  = 300, 384
D_OUT, P_OUT = 8,   128


def mlp_bn_kernel(x_ref,
                  w1_ref, b1_ref, g1_ref, be1_ref,
                  w2_hbm, b2_hbm, g2_hbm, be2_hbm,
                  w3_hbm, b3_hbm,
                  o_ref,
                  xp_ref, w2_ref, b2_ref, g2_ref, be2_ref, w3_ref, b3_ref,
                  dma_sem):
    """Fused MLP + training-mode BatchNorm forward, single grid-less invocation."""
    # ---- Kick off layer-2/3 parameter DMAs (HBM -> VMEM scratch) so they ----
    # ---- stream in behind the layer-1 matmul + BN instead of up front.   ----
    copies = (
        pltpu.make_async_copy(w2_hbm,  w2_ref,  dma_sem.at[0]),
        pltpu.make_async_copy(b2_hbm,  b2_ref,  dma_sem.at[1]),
        pltpu.make_async_copy(g2_hbm,  g2_ref,  dma_sem.at[2]),
        pltpu.make_async_copy(be2_hbm, be2_ref, dma_sem.at[3]),
        pltpu.make_async_copy(w3_hbm,  w3_ref,  dma_sem.at[4]),
        pltpu.make_async_copy(b3_hbm,  b3_ref,  dma_sem.at[5]),
    )
    for cp in copies:
        cp.start()

    bsz = x_ref.shape[0]
    inv_b = jnp.float32(1.0 / bsz)

    # ---- In-kernel cast + lane-pad of x: (B,400) f32 -> (B,512) bf16 --------
    # Zero the tail lanes (NaN-safe even though w1 pad rows are 0), then write
    # the real 400 features with a masked store.
    xp_ref[:, D_IN:] = jnp.zeros((bsz, P_IN - D_IN), jnp.bfloat16)
    xp_ref[:, :D_IN] = x_ref[...].astype(jnp.bfloat16)

    # ---- Linear(400->600) [512->640] + ReLU (bf16 MXU, f32 acc) -------------
    h = jnp.dot(xp_ref[...], w1_ref[...],
                preferred_element_type=jnp.float32) + b1_ref[...]
    h = jnp.maximum(h, 0.0)

    # ---- BatchNorm1d(600): one-pass stats + scale/shift fused with bf16 cast
    m1 = jnp.sum(h, axis=0, keepdims=True) * inv_b             # E[h]
    q1 = jnp.sum(h * h, axis=0, keepdims=True) * inv_b         # E[h^2]
    var1 = jnp.maximum(q1 - m1 * m1, 0.0)                      # biased batch var
    scale1 = g1_ref[...] * jax.lax.rsqrt(var1 + EPS)           # rsqrt -> EUP
    shift1 = be1_ref[...] - m1 * scale1
    h1b = (h * scale1 + shift1).astype(jnp.bfloat16)           # single traversal

    # Layer-2 parameters must be resident before the next matmul.
    for cp in copies[:4]:
        cp.wait()

    # ---- Linear(600->300) [640->384] + ReLU ----------------------------------
    h = jnp.dot(h1b, w2_ref[...],
                preferred_element_type=jnp.float32) + b2_ref[...]
    h = jnp.maximum(h, 0.0)

    # ---- BatchNorm1d(300) -----------------------------------------------------
    m2 = jnp.sum(h, axis=0, keepdims=True) * inv_b
    q2 = jnp.sum(h * h, axis=0, keepdims=True) * inv_b
    var2 = jnp.maximum(q2 - m2 * m2, 0.0)
    scale2 = g2_ref[...] * jax.lax.rsqrt(var2 + EPS)
    shift2 = be2_ref[...] - m2 * scale2
    h2b = (h * scale2 + shift2).astype(jnp.bfloat16)

    # Layer-3 parameters must be resident before the final matmul.
    for cp in copies[4:]:
        cp.wait()

    # ---- Linear(300->8) [384->128]; store only the 8 real logit lanes -------
    logits = jnp.dot(h2b, w3_ref[...],
                     preferred_element_type=jnp.float32) + b3_ref[...]
    o_ref[...] = logits[:, :D_OUT]


@jax.jit
def network_forward(x, p):
    """x: (B, ...) with prod(...) == 400; p: lane-padded params. Returns (B, 8) f32."""
    B = x.shape[0]
    x_flat = x.reshape(B, -1).astype(jnp.float32)               # nn.Flatten (metadata-only)
    assert x_flat.shape[1] == D_IN

    operands = (x_flat,
                p["w1"], p["b1"], p["g1"], p["be1"],
                p["w2"], p["b2"], p["g2"], p["be2"],
                p["w3"], p["b3"])

    vmem = pl.BlockSpec(memory_space=pltpu.MemorySpace.VMEM)
    hbm = pl.BlockSpec(memory_space=pl.ANY)
    # x + layer-1 params auto-DMA'd; layer-2/3 params stay in HBM and are
    # manually copied (overlapped with layer-1 compute) inside the kernel.
    in_specs = [vmem] * 5 + [hbm] * 6

    param_bytes = sum(int(v.size) * v.dtype.itemsize for v in p.values())
    # Rough live-activation footprint (x f32 + padded bf16 x + f32/bf16 hidden
    # temporaries + logits); x2 headroom for compiler temporaries.
    act_bytes = B * (P_IN * 4 + P_IN * 2
                     + 3 * P_H1 * 4 + P_H1 * 2
                     + 3 * P_H2 * 4 + P_H2 * 2
                     + 2 * P_OUT * 4)
    vmem_limit = int(min(max(2 * (param_bytes + act_bytes), 8 * 2**20), 64 * 2**20))

    flops = 2 * B * (P_IN * P_H1 + P_H1 * P_H2 + P_H2 * P_OUT)
    bytes_accessed = B * D_IN * 4 + param_bytes + B * D_OUT * 4

    return pl.pallas_call(
        mlp_bn_kernel,
        out_shape=jax.ShapeDtypeStruct((B, D_OUT), jnp.float32),
        in_specs=in_specs,
        out_specs=vmem,
        scratch_shapes=[
            pltpu.VMEM((B, P_IN), jnp.bfloat16),       # xp: cast+padded input
            pltpu.VMEM((P_H1, P_H2), jnp.bfloat16),    # w2
            pltpu.VMEM((1, P_H2), jnp.float32),        # b2
            pltpu.VMEM((1, P_H2), jnp.float32),        # g2
            pltpu.VMEM((1, P_H2), jnp.float32),        # be2
            pltpu.VMEM((P_H2, P_OUT), jnp.bfloat16),   # w3
            pltpu.VMEM((1, P_OUT), jnp.float32),       # b3
            pltpu.SemaphoreType.DMA((6,)),
        ],
        compiler_params=pltpu.CompilerParams(vmem_limit_bytes=vmem_limit),
        cost_estimate=pl.CostEstimate(flops=flops,
                                      transcendentals=P_H1 + P_H2,
                                      bytes_accessed=bytes_accessed),
    )(*operands)


def init_params(key):
    """PyTorch-like init at true shapes; weights stored (in_features, out_features)."""
    ks = jax.random.split(key, 10)

    def lin(kw, kb, fan_in, fan_out):
        bound = 1.0 / jnp.sqrt(float(fan_in))
        w = jax.random.uniform(kw, (fan_in, fan_out), jnp.float32, -bound, bound)
        b = jax.random.uniform(kb, (1, fan_out), jnp.float32, -bound, bound)
        return w, b

    w1, b1 = lin(ks[0], ks[1], D_IN, D_H1)
    w2, b2 = lin(ks[2], ks[3], D_H1, D_H2)
    w3, b3 = lin(ks[4], ks[5], D_H2, D_OUT)

    g1 = 1.0 + 0.01 * jax.random.normal(ks[6], (1, D_H1), jnp.float32)
    be1 = 0.01 * jax.random.normal(ks[7], (1, D_H1), jnp.float32)
    g2 = 1.0 + 0.01 * jax.random.normal(ks[8], (1, D_H2), jnp.float32)
    be2 = 0.01 * jax.random.normal(ks[9], (1, D_H2), jnp.float32)

    return dict(w1=w1, b1=b1, g1=g1, be1=be1,
                w2=w2, b2=b2, g2=g2, be2=be2,
                w3=w3, b3=b3)


def prepare_params(p):
    """Zero-pad feature dims to multiples of 128 and cast weights to bf16.

    Padding convention (load-bearing for correctness): gamma pads to 1,
    beta / bias / weight pad to 0, so padded lanes stay exactly 0 through
    matmul + ReLU + BN and never leak into downstream K-lanes.
    """
    def pad_w(w, rows, cols):
        return jnp.pad(w, ((0, rows - w.shape[0]),
                           (0, cols - w.shape[1]))).astype(jnp.bfloat16)

    def pad_row(v, cols, fill=0.0):
        return jnp.pad(v, ((0, 0), (0, cols - v.shape[1])),
                       constant_values=fill).astype(jnp.float32)

    return dict(
        w1=pad_w(p["w1"], P_IN, P_H1),
        b1=pad_row(p["b1"], P_H1),
        g1=pad_row(p["g1"], P_H1, fill=1.0),
        be1=pad_row(p["be1"], P_H1),
        w2=pad_w(p["w2"], P_H1, P_H2),
        b2=pad_row(p["b2"], P_H2),
        g2=pad_row(p["g2"], P_H2, fill=1.0),
        be2=pad_row(p["be2"], P_H2),
        w3=pad_w(p["w3"], P_H2, P_OUT),
        b3=pad_row(p["b3"], P_OUT),
    )


def reference_forward(x, p):
    """Pure-JAX reference mirroring the kernel's bf16-matmul / f32-BN numerics."""
    B = x.shape[0]
    h = x.reshape(B, -1).astype(jnp.float32)

    def mm(a, w):
        return jnp.dot(a.astype(jnp.bfloat16), w.astype(jnp.bfloat16),
                       preferred_element_type=jnp.float32)

    h = jnp.maximum(mm(h, p["w1"]) + p["b1"], 0.0)
    m = h.mean(0, keepdims=True); v = ((h - m) ** 2).mean(0, keepdims=True)
    h = (h - m) * jax.lax.rsqrt(v + EPS) * p["g1"] + p["be1"]
    h = jnp.maximum(mm(h, p["w2"]) + p["b2"], 0.0)
    m = h.mean(0, keepdims=True); v = ((h - m) ** 2).mean(0, keepdims=True)
    h = (h - m) * jax.lax.rsqrt(v + EPS) * p["g2"] + p["be2"]
    return mm(h, p["w3"]) + p["b3"]


if __name__ == "__main__":
    key = jax.random.PRNGKey(0)
    k_x, k_p = jax.random.split(key)

    # (B, 20, 20) -> flatten -> 400 features.  B=256 fills the 256-row MXU tile
    # on v6e/v7x (v5e's 128-row tiles are full either way); still tiny in VMEM.
    B = 256
    x = jax.random.normal(k_x, (B, 20, 20), jnp.float32)

    params = init_params(k_p)
    padded_params = prepare_params(params)

    # Guard the padding convention the kernel relies on (padded lanes stay 0).
    assert float(jnp.abs(padded_params["w1"][D_IN:, :]).max()) == 0.0
    assert float(jnp.abs(padded_params["b1"][:, D_H1:]).max()) == 0.0
    assert float(jnp.abs(padded_params["g1"][:, D_H1:] - 1.0).max()) == 0.0
    assert float(jnp.abs(padded_params["g2"][:, D_H2:] - 1.0).max()) == 0.0
    assert float(jnp.abs(padded_params["w3"][:, D_OUT:]).max()) == 0.0

    out = network_forward(x, padded_params)
    out = jax.block_until_ready(out)

    ref = reference_forward(x, params)
    assert out.shape == (B, D_OUT)
    assert jnp.allclose(out, ref, atol=3e-2, rtol=3e-2), "mismatch vs JAX reference"

    print("KERNEL_OK")
</pallas_src>

<mosaic_0001>
module attributes {stable_mosaic.version = 11 : i64} {
  func.func @mlp_bn_kernel(%arg0: memref<256x400xf32, #tpu.memory_space<vmem>>, %arg1: memref<512x640xbf16, #tpu.memory_space<vmem>>, %arg2: memref<1x640xf32, #tpu.memory_space<vmem>>, %arg3: memref<1x640xf32, #tpu.memory_space<vmem>>, %arg4: memref<1x640xf32, #tpu.memory_space<vmem>>, %arg5: memref<640x384xbf16, #tpu.memory_space<any>>, %arg6: memref<1x384xf32, #tpu.memory_space<any>>, %arg7: memref<1x384xf32, #tpu.memory_space<any>>, %arg8: memref<1x384xf32, #tpu.memory_space<any>>, %arg9: memref<384x128xbf16, #tpu.memory_space<any>>, %arg10: memref<1x128xf32, #tpu.memory_space<any>>, %arg11: memref<256x8xf32, #tpu.memory_space<vmem>>, %arg12: memref<256x512xbf16, #tpu.memory_space<vmem>>, %arg13: memref<640x384xbf16, #tpu.memory_space<vmem>>, %arg14: memref<1x384xf32, #tpu.memory_space<vmem>>, %arg15: memref<1x384xf32, #tpu.memory_space<vmem>>, %arg16: memref<1x384xf32, #tpu.memory_space<vmem>>, %arg17: memref<384x128xbf16, #tpu.memory_space<vmem>>, %arg18: memref<1x128xf32, #tpu.memory_space<vmem>>, %arg19: memref<6x!tpu.dma_semaphore, #tpu.memory_space<semaphore_mem>>) attributes {dimension_semantics = [], scalar_prefetch = 0 : i64, scratch_operands = 8 : i64, tpu.core_type = #tpu.core_type<tc>} {
    %c0_i32 = arith.constant 0 : i32
    %0 = tpu.memref_slice %arg19[%c0_i32] : memref<6x!tpu.dma_semaphore, #tpu.memory_space<semaphore_mem>> -> memref<1x!tpu.dma_semaphore, #tpu.memory_space<semaphore_mem>>
    %1 = tpu.memref_squeeze %0 : memref<1x!tpu.dma_semaphore, #tpu.memory_space<semaphore_mem>> -> memref<!tpu.dma_semaphore, #tpu.memory_space<semaphore_mem>>
    tpu.enqueue_dma source(%arg5 : memref<640x384xbf16, #tpu.memory_space<any>>) target(%arg13 : memref<640x384xbf16, #tpu.memory_space<vmem>>) target_semaphore(%1 : memref<!tpu.dma_semaphore, #tpu.memory_space<semaphore_mem>>)
    %c1_i32 = arith.constant 1 : i32
    %2 = tpu.memref_slice %arg19[%c1_i32] : memref<6x!tpu.dma_semaphore, #tpu.memory_space<semaphore_mem>> -> memref<1x!tpu.dma_semaphore, #tpu.memory_space<semaphore_mem>>
    %3 = tpu.memref_squeeze %2 : memref<1x!tpu.dma_semaphore, #tpu.memory_space<semaphore_mem>> -> memref<!tpu.dma_semaphore, #tpu.memory_space<semaphore_mem>>
    tpu.enqueue_dma source(%arg6 : memref<1x384xf32, #tpu.memory_space<any>>) target(%arg14 : memref<1x384xf32, #tpu.memory_space<vmem>>) target_semaphore(%3 : memref<!tpu.dma_semaphore, #tpu.memory_space<semaphore_mem>>)
    %c2_i32 = arith.constant 2 : i32
    %4 = tpu.memref_slice %arg19[%c2_i32] : memref<6x!tpu.dma_semaphore, #tpu.memory_space<semaphore_mem>> -> memref<1x!tpu.dma_semaphore, #tpu.memory_space<semaphore_mem>>
    %5 = tpu.memref_squeeze %4 : memref<1x!tpu.dma_semaphore, #tpu.memory_space<semaphore_mem>> -> memref<!tpu.dma_semaphore, #tpu.memory_space<semaphore_mem>>
    tpu.enqueue_dma source(%arg7 : memref<1x384xf32, #tpu.memory_space<any>>) target(%arg15 : memref<1x384xf32, #tpu.memory_space<vmem>>) target_semaphore(%5 : memref<!tpu.dma_semaphore, #tpu.memory_space<semaphore_mem>>)
    %c3_i32 = arith.constant 3 : i32
    %6 = tpu.memref_slice %arg19[%c3_i32] : memref<6x!tpu.dma_semaphore, #tpu.memory_space<semaphore_mem>> -> memref<1x!tpu.dma_semaphore, #tpu.memory_space<semaphore_mem>>
    %7 = tpu.memref_squeeze %6 : memref<1x!tpu.dma_semaphore, #tpu.memory_space<semaphore_mem>> -> memref<!tpu.dma_semaphore, #tpu.memory_space<semaphore_mem>>
    tpu.enqueue_dma source(%arg8 : memref<1x384xf32, #tpu.memory_space<any>>) target(%arg16 : memref<1x384xf32, #tpu.memory_space<vmem>>) target_semaphore(%7 : memref<!tpu.dma_semaphore, #tpu.memory_space<semaphore_mem>>)
    %c4_i32 = arith.constant 4 : i32
    %8 = tpu.memref_slice %arg19[%c4_i32] : memref<6x!tpu.dma_semaphore, #tpu.memory_space<semaphore_mem>> -> memref<1x!tpu.dma_semaphore, #tpu.memory_space<semaphore_mem>>
    %9 = tpu.memref_squeeze %8 : memref<1x!tpu.dma_semaphore, #tpu.memory_space<semaphore_mem>> -> memref<!tpu.dma_semaphore, #tpu.memory_space<semaphore_mem>>
    tpu.enqueue_dma source(%arg9 : memref<384x128xbf16, #tpu.memory_space<any>>) target(%arg17 : memref<384x128xbf16, #tpu.memory_space<vmem>>) target_semaphore(%9 : memref<!tpu.dma_semaphore, #tpu.memory_space<semaphore_mem>>)
    %c5_i32 = arith.constant 5 : i32
    %10 = tpu.memref_slice %arg19[%c5_i32] : memref<6x!tpu.dma_semaphore, #tpu.memory_space<semaphore_mem>> -> memref<1x!tpu.dma_semaphore, #tpu.memory_space<semaphore_mem>>
    %11 = tpu.memref_squeeze %10 : memref<1x!tpu.dma_semaphore, #tpu.memory_space<semaphore_mem>> -> memref<!tpu.dma_semaphore, #tpu.memory_space<semaphore_mem>>
    tpu.enqueue_dma source(%arg10 : memref<1x128xf32, #tpu.memory_space<any>>) target(%arg18 : memref<1x128xf32, #tpu.memory_space<vmem>>) target_semaphore(%11 : memref<!tpu.dma_semaphore, #tpu.memory_space<semaphore_mem>>)
    %cst = arith.constant 0.000000e+00 : bf16
    %12 = vector.broadcast %cst : bf16 to vector<256x112xbf16>
    %c0 = arith.constant 0 : index
    %c400 = arith.constant 400 : index
    %13 = vector.load %arg12[%c0, %c400] : memref<256x512xbf16, #tpu.memory_space<vmem>>, vector<256x112xbf16>
    tpu.vector_store %arg12[%c0, %c400], %12 {strides = array<i32>} : memref<256x512xbf16, #tpu.memory_space<vmem>>, vector<256x112xbf16>,
    %c0_0 = arith.constant 0 : index
    %c0_1 = arith.constant 0 : index
    %14 = vector.load %arg0[%c0_0, %c0_1] : memref<256x400xf32, #tpu.memory_space<vmem>>, vector<256x400xf32>
    %15 = arith.truncf %14 : vector<256x400xf32> to vector<256x400xbf16>
    %c0_2 = arith.constant 0 : index
    %c0_3 = arith.constant 0 : index
    %16 = vector.load %arg12[%c0_2, %c0_3] : memref<256x512xbf16, #tpu.memory_space<vmem>>, vector<256x400xbf16>
    tpu.vector_store %arg12[%c0_2, %c0_3], %15 {strides = array<i32>} : memref<256x512xbf16, #tpu.memory_space<vmem>>, vector<256x400xbf16>,
    %c0_4 = arith.constant 0 : index
    %c0_5 = arith.constant 0 : index
    %17 = vector.load %arg12[%c0_4, %c0_5] : memref<256x512xbf16, #tpu.memory_space<vmem>>, vector<256x512xbf16>
    %c0_6 = arith.constant 0 : index
    %c0_7 = arith.constant 0 : index
    %18 = vector.load %arg1[%c0_6, %c0_7] : memref<512x640xbf16, #tpu.memory_space<vmem>>, vector<512x640xbf16>
    %cst_8 = arith.constant dense<0.000000e+00> : vector<256x640xf32>
    %19 = tpu.matmul %17, %18, %cst_8 {dimension_numbers = #tpu.dot_dimension_numbers<[1], [0], [0], [1], [0, 0, 1, 1], [], []>} : vector<256x512xbf16>, vector<512x640xbf16>, vector<256x640xf32> -> vector<256x640xf32>
    %c0_9 = arith.constant 0 : index
    %c0_10 = arith.constant 0 : index
    %20 = vector.load %arg2[%c0_9, %c0_10] : memref<1x640xf32, #tpu.memory_space<vmem>>, vector<1x640xf32>
    %21 = vector.broadcast %20 : vector<1x640xf32> to vector<256x640xf32>
    %22 = arith.addf %19, %21 : vector<256x640xf32>
    %cst_11 = arith.constant 0.000000e+00 : f32
    %23 = vector.broadcast %cst_11 : f32 to vector<256x640xf32>
    %24 = arith.maximumf %22, %23 : vector<256x640xf32>
    %cst_12 = arith.constant dense<0.000000e+00> : vector<640xf32>
    %25 = vector.multi_reduction <add>, %24, %cst_12 [0] : vector<256x640xf32> to vector<640xf32>
    %26 = vector.shape_cast %25 : vector<640xf32> to vector<1x640xf32>
    %cst_13 = arith.constant 3.906250e-03 : f32
    %27 = vector.broadcast %cst_13 : f32 to vector<1x640xf32>
    %28 = arith.mulf %26, %27 : vector<1x640xf32>
    %29 = arith.mulf %24, %24 : vector<256x640xf32>
    %cst_14 = arith.constant dense<0.000000e+00> : vector<640xf32>
    %30 = vector.multi_reduction <add>, %29, %cst_14 [0] : vector<256x640xf32> to vector<640xf32>
    %31 = vector.shape_cast %30 : vector<640xf32> to vector<1x640xf32>
    %cst_15 = arith.constant 3.906250e-03 : f32
    %32 = vector.broadcast %cst_15 : f32 to vector<1x640xf32>
    %33 = arith.mulf %31, %32 : vector<1x640xf32>
    %34 = arith.mulf %28, %28 : vector<1x640xf32>
    %35 = arith.subf %33, %34 : vector<1x640xf32>
    %cst_16 = arith.constant 0.000000e+00 : f32
    %36 = vector.broadcast %cst_16 : f32 to vector<1x640xf32>
    %37 = arith.maximumf %35, %36 : vector<1x640xf32>
    %c0_17 = arith.constant 0 : index
    %c0_18 = arith.constant 0 : index
    %38 = vector.load %arg3[%c0_17, %c0_18] : memref<1x640xf32, #tpu.memory_space<vmem>>, vector<1x640xf32>
    %cst_19 = arith.constant 9.99999974E-6 : f32
    %39 = vector.broadcast %cst_19 : f32 to vector<1x640xf32>
    %40 = arith.addf %37, %39 : vector<1x640xf32>
    %41 = math.rsqrt %40 : vector<1x640xf32>
    %42 = arith.mulf %38, %41 : vector<1x640xf32>
    %c0_20 = arith.constant 0 : index
    %c0_21 = arith.constant 0 : index
    %43 = vector.load %arg4[%c0_20, %c0_21] : memref<1x640xf32, #tpu.memory_space<vmem>>, vector<1x640xf32>
    %44 = arith.mulf %28, %42 : vector<1x640xf32>
    %45 = arith.subf %43, %44 : vector<1x640xf32>
    %46 = vector.broadcast %42 : vector<1x640xf32> to vector<256x640xf32>
    %47 = arith.mulf %24, %46 : vector<256x640xf32>
    %48 = vector.broadcast %45 : vector<1x640xf32> to vector<256x640xf32>
    %49 = arith.addf %47, %48 : vector<256x640xf32>
    %50 = arith.truncf %49 : vector<256x640xf32> to vector<256x640xbf16>
    %c0_i32_22 = arith.constant 0 : i32
    %51 = tpu.memref_slice %arg19[%c0_i32_22] : memref<6x!tpu.dma_semaphore, #tpu.memory_space<semaphore_mem>> -> memref<1x!tpu.dma_semaphore, #tpu.memory_space<semaphore_mem>>
    %52 = tpu.memref_squeeze %51 : memref<1x!tpu.dma_semaphore, #tpu.memory_space<semaphore_mem>> -> memref<!tpu.dma_semaphore, #tpu.memory_space<semaphore_mem>>
    tpu.wait_dma2 semaphore(%52 : memref<!tpu.dma_semaphore, #tpu.memory_space<semaphore_mem>>) src(%arg5 : memref<640x384xbf16, #tpu.memory_space<any>>) dst(%arg13 : memref<640x384xbf16, #tpu.memory_space<vmem>>)
    %c1_i32_23 = arith.constant 1 : i32
    %53 = tpu.memref_slice %arg19[%c1_i32_23] : memref<6x!tpu.dma_semaphore, #tpu.memory_space<semaphore_mem>> -> memref<1x!tpu.dma_semaphore, #tpu.memory_space<semaphore_mem>>
    %54 = tpu.memref_squeeze %53 : memref<1x!tpu.dma_semaphore, #tpu.memory_space<semaphore_mem>> -> memref<!tpu.dma_semaphore, #tpu.memory_space<semaphore_mem>>
    tpu.wait_dma2 semaphore(%54 : memref<!tpu.dma_semaphore, #tpu.memory_space<semaphore_mem>>) src(%arg6 : memref<1x384xf32, #tpu.memory_space<any>>) dst(%arg14 : memref<1x384xf32, #tpu.memory_space<vmem>>)
    %c2_i32_24 = arith.constant 2 : i32
    %55 = tpu.memref_slice %arg19[%c2_i32_24] : memref<6x!tpu.dma_semaphore, #tpu.memory_space<semaphore_mem>> -> memref<1x!tpu.dma_semaphore, #tpu.memory_space<semaphore_mem>>
    %56 = tpu.memref_squeeze %55 : memref<1x!tpu.dma_semaphore, #tpu.memory_space<semaphore_mem>> -> memref<!tpu.dma_semaphore, #tpu.memory_space<semaphore_mem>>
    tpu.wait_dma2 semaphore(%56 : memref<!tpu.dma_semaphore, #tpu.memory_space<semaphore_mem>>) src(%arg7 : memref<1x384xf32, #tpu.memory_space<any>>) dst(%arg15 : memref<1x384xf32, #tpu.memory_space<vmem>>)
    %c3_i32_25 = arith.constant 3 : i32
    %57 = tpu.memref_slice %arg19[%c3_i32_25] : memref<6x!tpu.dma_semaphore, #tpu.memory_space<semaphore_mem>> -> memref<1x!tpu.dma_semaphore, #tpu.memory_space<semaphore_mem>>
    %58 = tpu.memref_squeeze %57 : memref<1x!tpu.dma_semaphore, #tpu.memory_space<semaphore_mem>> -> memref<!tpu.dma_semaphore, #tpu.memory_space<semaphore_mem>>
    tpu.wait_dma2 semaphore(%58 : memref<!tpu.dma_semaphore, #tpu.memory_space<semaphore_mem>>) src(%arg8 : memref<1x384xf32, #tpu.memory_space<any>>) dst(%arg16 : memref<1x384xf32, #tpu.memory_space<vmem>>)
    %c0_26 = arith.constant 0 : index
    %c0_27 = arith.constant 0 : index
    %59 = vector.load %arg13[%c0_26, %c0_27] : memref<640x384xbf16, #tpu.memory_space<vmem>>, vector<640x384xbf16>
    %cst_28 = arith.constant dense<0.000000e+00> : vector<256x384xf32>
    %60 = tpu.matmul %50, %59, %cst_28 {dimension_numbers = #tpu.dot_dimension_numbers<[1], [0], [0], [1], [0, 0, 1, 1], [], []>} : vector<256x640xbf16>, vector<640x384xbf16>, vector<256x384xf32> -> vector<256x384xf32>
    %c0_29 = arith.constant 0 : index
    %c0_30 = arith.constant 0 : index
    %61 = vector.load %arg14[%c0_29, %c0_30] : memref<1x384xf32, #tpu.memory_space<vmem>>, vector<1x384xf32>
    %62 = vector.broadcast %61 : vector<1x384xf32> to vector<256x384xf32>
    %63 = arith.addf %60, %62 : vector<256x384xf32>
    %cst_31 = arith.constant 0.000000e+00 : f32
    %64 = vector.broadcast %cst_31 : f32 to vector<256x384xf32>
    %65 = arith.maximumf %63, %64 : vector<256x384xf32>
    %cst_32 = arith.constant dense<0.000000e+00> : vector<384xf32>
    %66 = vector.multi_reduction <add>, %65, %cst_32 [0] : vector<256x384xf32> to vector<384xf32>
    %67 = vector.shape_cast %66 : vector<384xf32> to vector<1x384xf32>
    %cst_33 = arith.constant 3.906250e-03 : f32
    %68 = vector.broadcast %cst_33 : f32 to vector<1x384xf32>
    %69 = arith.mulf %67, %68 : vector<1x384xf32>
    %70 = arith.mulf %65, %65 : vector<256x384xf32>
    %cst_34 = arith.constant dense<0.000000e+00> : vector<384xf32>
    %71 = vector.multi_reduction <add>, %70, %cst_34 [0] : vector<256x384xf32> to vector<384xf32>
    %72 = vector.shape_cast %71 : vector<384xf32> to vector<1x384xf32>
    %cst_35 = arith.constant 3.906250e-03 : f32
    %73 = vector.broadcast %cst_35 : f32 to vector<1x384xf32>
    %74 = arith.mulf %72, %73 : vector<1x384xf32>
    %75 = arith.mulf %69, %69 : vector<1x384xf32>
    %76 = arith.subf %74, %75 : vector<1x384xf32>
    %cst_36 = arith.constant 0.000000e+00 : f32
    %77 = vector.broadcast %cst_36 : f32 to vector<1x384xf32>
    %78 = arith.maximumf %76, %77 : vector<1x384xf32>
    %c0_37 = arith.constant 0 : index
    %c0_38 = arith.constant 0 : index
    %79 = vector.load %arg15[%c0_37, %c0_38] : memref<1x384xf32, #tpu.memory_space<vmem>>, vector<1x384xf32>
    %cst_39 = arith.constant 9.99999974E-6 : f32
    %80 = vector.broadcast %cst_39 : f32 to vector<1x384xf32>
    %81 = arith.addf %78, %80 : vector<1x384xf32>
    %82 = math.rsqrt %81 : vector<1x384xf32>
    %83 = arith.mulf %79, %82 : vector<1x384xf32>
    %c0_40 = arith.constant 0 : index
    %c0_41 = arith.constant 0 : index
    %84 = vector.load %arg16[%c0_40, %c0_41] : memref<1x384xf32, #tpu.memory_space<vmem>>, vector<1x384xf32>
    %85 = arith.mulf %69, %83 : vector<1x384xf32>
    %86 = arith.subf %84, %85 : vector<1x384xf32>
    %87 = vector.broadcast %83 : vector<1x384xf32> to vector<256x384xf32>
    %88 = arith.mulf %65, %87 : vector<256x384xf32>
    %89 = vector.broadcast %86 : vector<1x384xf32> to vector<256x384xf32>
    %90 = arith.addf %88, %89 : vector<256x384xf32>
    %91 = arith.truncf %90 : vector<256x384xf32> to vector<256x384xbf16>
    %c4_i32_42 = arith.constant 4 : i32
    %92 = tpu.memref_slice %arg19[%c4_i32_42] : memref<6x!tpu.dma_semaphore, #tpu.memory_space<semaphore_mem>> -> memref<1x!tpu.dma_semaphore, #tpu.memory_space<semaphore_mem>>
    %93 = tpu.memref_squeeze %92 : memref<1x!tpu.dma_semaphore, #tpu.memory_space<semaphore_mem>> -> memref<!tpu.dma_semaphore, #tpu.memory_space<semaphore_mem>>
    tpu.wait_dma2 semaphore(%93 : memref<!tpu.dma_semaphore, #tpu.memory_space<semaphore_mem>>) src(%arg9 : memref<384x128xbf16, #tpu.memory_space<any>>) dst(%arg17 : memref<384x128xbf16, #tpu.memory_space<vmem>>)
    %c5_i32_43 = arith.constant 5 : i32
    %94 = tpu.memref_slice %arg19[%c5_i32_43] : memref<6x!tpu.dma_semaphore, #tpu.memory_space<semaphore_mem>> -> memref<1x!tpu.dma_semaphore, #tpu.memory_space<semaphore_mem>>
    %95 = tpu.memref_squeeze %94 : memref<1x!tpu.dma_semaphore, #tpu.memory_space<semaphore_mem>> -> memref<!tpu.dma_semaphore, #tpu.memory_space<semaphore_mem>>
    tpu.wait_dma2 semaphore(%95 : memref<!tpu.dma_semaphore, #tpu.memory_space<semaphore_mem>>) src(%arg10 : memref<1x128xf32, #tpu.memory_space<any>>) dst(%arg18 : memref<1x128xf32, #tpu.memory_space<vmem>>)
    %c0_44 = arith.constant 0 : index
    %c0_45 = arith.constant 0 : index
    %96 = vector.load %arg17[%c0_44, %c0_45] : memref<384x128xbf16, #tpu.memory_space<vmem>>, vector<384x128xbf16>
    %cst_46 = arith.constant dense<0.000000e+00> : vector<256x128xf32>
    %97 = tpu.matmul %91, %96, %cst_46 {dimension_numbers = #tpu.dot_dimension_numbers<[1], [0], [0], [1], [0, 0, 1, 1], [], []>} : vector<256x384xbf16>, vector<384x128xbf16>, vector<256x128xf32> -> vector<256x128xf32>
    %c0_47 = arith.constant 0 : index
    %c0_48 = arith.constant 0 : index
    %98 = vector.load %arg18[%c0_47, %c0_48] : memref<1x128xf32, #tpu.memory_space<vmem>>, vector<1x128xf32>
    %99 = vector.broadcast %98 : vector<1x128xf32> to vector<256x128xf32>
    %100 = arith.addf %97, %99 : vector<256x128xf32>
    %101 = vector.extract_strided_slice %100 {offsets = [0, 0], sizes = [256, 8], strides = [1, 1]} : vector<256x128xf32> to vector<256x8xf32>
    %c0_49 = arith.constant 0 : index
    %c0_50 = arith.constant 0 : index
    %102 = vector.load %arg11[%c0_49, %c0_50] : memref<256x8xf32, #tpu.memory_space<vmem>>, vector<256x8xf32>
    tpu.vector_store %arg11[%c0_49, %c0_50], %101 {strides = array<i32>} : memref<256x8xf32, #tpu.memory_space<vmem>>, vector<256x8xf32>,
    return
  }
}

</mosaic_0001>

<llo_original>
// kernel: network_forward.1
$region0: #{network_forward.1}
  #allocation0 [shape = 'u32[]', space=smem, size = 0x4, offset = 0x4, fixed_abs, tag = 'smem constant byte address 0x4 - core index']
  #allocation1 [shape = 'u32[144,128]{1,0:T(1,128)}', space=vmem, size = 0x12000, scoped, tag = 'internal scratch']
  #allocation2 [shape = 'bf16[256,512]{1,0:T(16,128)(2,1)}', space=vmem, size = 0x40000, scoped, tag = 'scratch operand']
  #allocation3 [shape = 'bf16[640,384]{1,0:T(16,128)(2,1)}', space=vmem, size = 0x78000, scoped, tag = 'scratch operand']
  #allocation4 [shape = 'f32[1,384]{1,0:T(1,128)}', space=vmem, size = 0x600, scoped, tag = 'scratch operand']
  #allocation5 [shape = 'f32[1,384]{1,0:T(1,128)}', space=vmem, size = 0x600, scoped, tag = 'scratch operand']
  #allocation6 [shape = 'f32[1,384]{1,0:T(1,128)}', space=vmem, size = 0x600, scoped, tag = 'scratch operand']
  #allocation7 [shape = 'bf16[384,128]{1,0:T(16,128)(2,1)}', space=vmem, size = 0x18000, scoped, tag = 'scratch operand']
  #allocation8 [shape = 'f32[1,128]{1,0:T(1,128)}', space=vmem, size = 0x200, scoped, tag = 'scratch operand']
  #allocation9 [shape = 's32[6]{0}', space=sflag, size = 0x18, scoped, tag = 'scratch operand']
  #allocation10 [shape = 's32[]', space=sflag, size = 0x4, offset = 0, fixed_abs, tag = 'sflag constant byte address 0x0 - dummy sync flag']
  #allocation11 [shape = 's32[]', space=sflag, size = 0x4, offset = 0, fixed_abs, tag = 'sflag constant byte address 0x0 - dummy sync flag']
  #allocation12 [shape = 's32[]', space=sflag, size = 0x4, offset = 0, fixed_abs, tag = 'sflag constant byte address 0x0 - dummy sync flag']
  #allocation13 [shape = 's32[]', space=sflag, size = 0x4, offset = 0, fixed_abs, tag = 'sflag constant byte address 0x0 - dummy sync flag']
  #allocation14 [shape = 's32[]', space=sflag, size = 0x4, offset = 0, fixed_abs, tag = 'sflag constant byte address 0x0 - dummy sync flag']
  #allocation15 [shape = 's32[]', space=sflag, size = 0x4, offset = 0, fixed_abs, tag = 'sflag constant byte address 0x0 - dummy sync flag']
  %s0 = inlined_call_operand.vmem [shape: f32[256,400], index: 0, kind: input, shape index: {}]
  %s1 = inlined_call_operand.vmem [shape: bf16[512,640], index: 1, kind: input, shape index: {}]
  %s2 = inlined_call_operand.vmem [shape: f32[1,640], index: 2, kind: input, shape index: {}]
  %s3 = inlined_call_operand.vmem [shape: f32[1,640], index: 3, kind: input, shape index: {}]
  %s4 = inlined_call_operand.vmem [shape: f32[1,640], index: 4, kind: input, shape index: {}]
  %s5 = inlined_call_operand.vmem [shape: bf16[640,384], index: 5, kind: input, shape index: {}]
  %s6 = inlined_call_operand.vmem [shape: f32[1,384], index: 6, kind: input, shape index: {}]
  %s7 = inlined_call_operand.vmem [shape: f32[1,384], index: 7, kind: input, shape index: {}]
  %s8 = inlined_call_operand.vmem [shape: f32[1,384], index: 8, kind: input, shape index: {}]
  %s9 = inlined_call_operand.vmem [shape: bf16[384,128], index: 9, kind: input, shape index: {}]
  %s10 = inlined_call_operand.vmem [shape: f32[1,128], index: 10, kind: input, shape index: {}]
  %s11 = inlined_call_operand.vmem [shape: f32[256,8], index: 11, kind: output, shape index: {}]
  %s12 = sld [smem:[#allocation0]]
  $region221: #{network_forward.1} parent=0
    _
  %s14 = ssub.s32 1, %s12
  %s15 = scalar_select 0, %s14, %s12
  // Predicated region
  $region2: #{network_forward.1} parent=0 // pred_check
    _
  $region3: #{network_forward.1} parent=0 // pred_check_branch
    %17 = sbr.rel (0) target = $region5
  $region4: #{network_forward.1} parent=0 // pred_region
    _
  $region5: #{network_forward.1} parent=0 // pred_fallthru
    _
  // Predicated region
  $region6: #{network_forward.1} parent=0 // pred_check
    _
  $region7: #{network_forward.1} parent=0 // pred_check_branch
    %19 = sbr.rel (0) target = $region9
  $region8: #{network_forward.1} parent=0 // pred_region
    _
  $region9: #{network_forward.1} parent=0 // pred_fallthru
    _
  // Predicated region
  $region10: #{network_forward.1} parent=0 // pred_check
    _
  $region11: #{network_forward.1} parent=0 // pred_check_branch
    %21 = sbr.rel (0) target = $region13
  $region12: #{network_forward.1} parent=0 // pred_region
    _
  $region13: #{network_forward.1} parent=0 // pred_fallthru
    _
  // Predicated region
  $region14: #{network_forward.1} parent=0 // pred_check
    _
  $region15: #{network_forward.1} parent=0 // pred_check_branch
    %23 = sbr.rel (0) target = $region17
  $region16: #{network_forward.1} parent=0 // pred_region
    _
  $region17: #{network_forward.1} parent=0 // pred_fallthru
    _
  // Predicated region
  $region18: #{network_forward.1} parent=0 // pred_check
    _
  $region19: #{network_forward.1} parent=0 // pred_check_branch
    %25 = sbr.rel (0) target = $region21
  $region20: #{network_forward.1} parent=0 // pred_region
    _
  $region21: #{network_forward.1} parent=0 // pred_fallthru
    _
  %p28 = scmp.lt.u32.totalorder 4, 8
  %p29 = pneg %p28
  // Predicated region
  $region22: #{network_forward.1} parent=0 // pred_check
    _
  $region23: #{network_forward.1} parent=0 // pred_check_branch
    %31 = sbr.rel (%p28) target = $region25
  $region24: #{network_forward.1} parent=0 // pred_region
    %s524 = sand.u32 4, 7
    %p525 = scmp.eq.s32.totalorder %s524, 0
    %p526 = pneg %p525
    // Predicated region
    $region37: #{network_forward.1} parent=24 // pred_check
      _
    $region38: #{network_forward.1} parent=24 // pred_check_branch
      %528 = sbr.rel (%p525) target = $region40
    $region39: #{network_forward.1} parent=24 // pred_region
      %s529 = sand.u32 4, 7
      %s530 = ssub.s32 4, %s529
      %s531 = scalar_lea.vmem %s5, %s530
      %s532 = ssub.s32 4, %s529
      %s533 = scalar_lea.vmem [#allocation3], %s532
      loop: start=0, step=1, limit=1
      $region41: #{network_forward.1} parent=39 // loop_pre_header
        _
      $region42: #{network_forward.1} parent=39 // loop_header
        %s535 = sphi 0, %s539
        %p536 = scmp.ge.s32.totalorder %s535, 1
        %s540 = sphi %s5, %s5
        %s541 = sphi [#allocation3], [#allocation3]
      $region43: #{network_forward.1} parent=39 // loop_header_branch
        %538 = sbr.rel (%p536) target = $region47
      $region44: #{network_forward.1} parent=39 // loop_body
        _
      $region45: #{network_forward.1} parent=39 // loop_footer
        %s539 = sadd.s32 1, %s535
      $region46: #{network_forward.1} parent=39 // loop_footer_branch
        %534 = sbr.rel target = $region42
      $region47: #{network_forward.1} parent=39 // loop_exit
        _
      %s542 = sshllo.u32 0, %s529
      loop: start=0, step=1, limit=1
      $region48: #{network_forward.1} parent=39 // loop_pre_header
        _
      $region49: #{network_forward.1} parent=39 // loop_header
        %s544 = sphi 0, %s548
        %p545 = scmp.ge.s32.totalorder %s544, 1
        %s549 = sphi %s531, %s531
        %s550 = sphi %s533, %s533
      $region50: #{network_forward.1} parent=39 // loop_header_branch
        %547 = sbr.rel (%p545) target = $region54
      $region51: #{network_forward.1} parent=39 // loop_body
        %v551 = vld [vmem:[%s549] sm:%s542]
        %552 = vst [vmem:[%s550] sm:%s542] %v551
        %v553 = vld [vmem:[%s549 + $0xc] sm:%s542]
        %554 = vst [vmem:[%s550 + $0x4] sm:%s542] %v553
        %v555 = vld [vmem:[%s549 + $0x4] sm:%s542]
        %556 = vst [vmem:[%s550 + $0x8] sm:%s542] %v555
        %v557 = vld [vmem:[%s549 + $0x10] sm:%s542]
        %558 = vst [vmem:[%s550 + $0xc] sm:%s542] %v557
        %v559 = vld [vmem:[%s549 + $0x8] sm:%s542]
        %560 = vst [vmem:[%s550 + $0x10] sm:%s542] %v559
        %v561 = vld [vmem:[%s549 + $0x14] sm:%s542]
        %562 = vst [vmem:[%s550 + $0x14] sm:%s542] %v561
        %v563 = vld [vmem:[%s549 + $0x18] sm:%s542]
        %564 = vst [vmem:[%s550 + $0x18] sm:%s542] %v563
        %v565 = vld [vmem:[%s549 + $0x24] sm:%s542]
        %566 = vst [vmem:[%s550 + $0x1c] sm:%s542] %v565
        %v567 = vld [vmem:[%s549 + $0x1c] sm:%s542]
        %568 = vst [vmem:[%s550 + $0x20] sm:%s542] %v567
        %v569 = vld [vmem:[%s549 + $0x28] sm:%s542]
        %570 = vst [vmem:[%s550 + $0x24] sm:%s542] %v569
        %v571 = vld [vmem:[%s549 + $0x20] sm:%s542]
        %572 = vst [vmem:[%s550 + $0x28] sm:%s542] %v571
        %v573 = vld [vmem:[%s549 + $0x2c] sm:%s542]
        %574 = vst [vmem:[%s550 + $0x2c] sm:%s542] %v573
        %v575 = vld [vmem:[%s549 + $0x30] sm:%s542]
        %576 = vst [vmem:[%s550 + $0x30] sm:%s542] %v575
        %v577 = vld [vmem:[%s549 + $0x3c] sm:%s542]
        %578 = vst [vmem:[%s550 + $0x34] sm:%s542] %v577
        %v579 = vld [vmem:[%s549 + $0x34] sm:%s542]
        %580 = vst [vmem:[%s550 + $0x38] sm:%s542] %v579
        %v581 = vld [vmem:[%s549 + $0x40] sm:%s542]
        %582 = vst [vmem:[%s550 + $0x3c] sm:%s542] %v581
        %v583 = vld [vmem:[%s549 + $0x38] sm:%s542]
        %584 = vst [vmem:[%s550 + $0x40] sm:%s542] %v583
        %v585 = vld [vmem:[%s549 + $0x44] sm:%s542]
        %586 = vst [vmem:[%s550 + $0x44] sm:%s542] %v585
        %v587 = vld [vmem:[%s549 + $0x48] sm:%s542]
        %588 = vst [vmem:[%s550 + $0x48] sm:%s542] %v587
        %v589 = vld [vmem:[%s549 + $0x54] sm:%s542]
        %590 = vst [vmem:[%s550 + $0x4c] sm:%s542] %v589
        %v591 = vld [vmem:[%s549 + $0x4c] sm:%s542]
        %592 = vst [vmem:[%s550 + $0x50] sm:%s542] %v591
        %v593 = vld [vmem:[%s549 + $0x58] sm:%s542]
        %594 = vst [vmem:[%s550 + $0x54] sm:%s542] %v593
        %v595 = vld [vmem:[%s549 + $0x50] sm:%s542]
        %596 = vst [vmem:[%s550 + $0x58] sm:%s542] %v595
        %v597 = vld [vmem:[%s549 + $0x5c] sm:%s542]
        %598 = vst [vmem:[%s550 + $0x5c] sm:%s542] %v597
        %v599 = vld [vmem:[%s549 + $0x60] sm:%s542]
        %600 = vst [vmem:[%s550 + $0x60] sm:%s542] %v599
        %v601 = vld [vmem:[%s549 + $0x6c] sm:%s542]
        %602 = vst [vmem:[%s550 + $0x64] sm:%s542] %v601
        %v603 = vld [vmem:[%s549 + $0x64] sm:%s542]
        %604 = vst [vmem:[%s550 + $0x68] sm:%s542] %v603
        %v605 = vld [vmem:[%s549 + $0x70] sm:%s542]
        %606 = vst [vmem:[%s550 + $0x6c] sm:%s542] %v605
        %v607 = vld [vmem:[%s549 + $0x68] sm:%s542]
        %608 = vst [vmem:[%s550 + $0x70] sm:%s542] %v607
        %v609 = vld [vmem:[%s549 + $0x74] sm:%s542]
        %610 = vst [vmem:[%s550 + $0x74] sm:%s542] %v609
        %v611 = vld [vmem:[%s549 + $0x78] sm:%s542]
        %612 = vst [vmem:[%s550 + $0x78] sm:%s542] %v611
        %v613 = vld [vmem:[%s549 + $0x84] sm:%s542]
        %614 = vst [vmem:[%s550 + $0x7c] sm:%s542] %v613
        %v615 = vld [vmem:[%s549 + $0x7c] sm:%s542]
        %616 = vst [vmem:[%s550 + $0x80] sm:%s542] %v615
        %v617 = vld [vmem:[%s549 + $0x88] sm:%s542]
        %618 = vst [vmem:[%s550 + $0x84] sm:%s542] %v617
        %v619 = vld [vmem:[%s549 + $0x80] sm:%s542]
        %620 = vst [vmem:[%s550 + $0x88] sm:%s542] %v619
        %v621 = vld [vmem:[%s549 + $0x8c] sm:%s542]
        %622 = vst [vmem:[%s550 + $0x8c] sm:%s542] %v621
        %v623 = vld [vmem:[%s549 + $0x90] sm:%s542]
        %624 = vst [vmem:[%s550 + $0x90] sm:%s542] %v623
        %v625 = vld [vmem:[%s549 + $0x9c] sm:%s542]
        %626 = vst [vmem:[%s550 + $0x94] sm:%s542] %v625
        %v627 = vld [vmem:[%s549 + $0x94] sm:%s542]
        %628 = vst [vmem:[%s550 + $0x98] sm:%s542] %v627
        %v629 = vld [vmem:[%s549 + $0xa0] sm:%s542]
        %630 = vst [vmem:[%s550 + $0x9c] sm:%s542] %v629
        %v631 = vld [vmem:[%s549 + $0x98] sm:%s542]
        %632 = vst [vmem:[%s550 + $0xa0] sm:%s542] %v631
        %v633 = vld [vmem:[%s549 + $0xa4] sm:%s542]
        %634 = vst [vmem:[%s550 + $0xa4] sm:%s542] %v633
        %v635 = vld [vmem:[%s549 + $0xa8] sm:%s542]
        %636 = vst [vmem:[%s550 + $0xa8] sm:%s542] %v635
        %v637 = vld [vmem:[%s549 + $0xb4] sm:%s542]
        %638 = vst [vmem:[%s550 + $0xac] sm:%s542] %v637
        %v639 = vld [vmem:[%s549 + $0xac] sm:%s542]
        %640 = vst [vmem:[%s550 + $0xb0] sm:%s542] %v639
        %v641 = vld [vmem:[%s549 + $0xb8] sm:%s542]
        %642 = vst [vmem:[%s550 + $0xb4] sm:%s542] %v641
        %v643 = vld [vmem:[%s549 + $0xb0] sm:%s542]
        %644 = vst [vmem:[%s550 + $0xb8] sm:%s542] %v643
        %v645 = vld [vmem:[%s549 + $0xbc] sm:%s542]
        %646 = vst [vmem:[%s550 + $0xbc] sm:%s542] %v645
        %v647 = vld [vmem:[%s549 + $0xc0] sm:%s542]
        %648 = vst [vmem:[%s550 + $0xc0] sm:%s542] %v647
        %v649 = vld [vmem:[%s549 + $0xcc] sm:%s542]
        %650 = vst [vmem:[%s550 + $0xc4] sm:%s542] %v649
        %v651 = vld [vmem:[%s549 + $0xc4] sm:%s542]
        %652 = vst [vmem:[%s550 + $0xc8] sm:%s542] %v651
        %v653 = vld [vmem:[%s549 + $0xd0] sm:%s542]
        %654 = vst [vmem:[%s550 + $0xcc] sm:%s542] %v653
        %v655 = vld [vmem:[%s549 + $0xc8] sm:%s542]
        %656 = vst [vmem:[%s550 + $0xd0] sm:%s542] %v655
        %v657 = vld [vmem:[%s549 + $0xd4] sm:%s542]
        %658 = vst [vmem:[%s550 + $0xd4] sm:%s542] %v657
        %v659 = vld [vmem:[%s549 + $0xd8] sm:%s542]
        %660 = vst [vmem:[%s550 + $0xd8] sm:%s542] %v659
        %v661 = vld [vmem:[%s549 + $0xe4] sm:%s542]
        %662 = vst [vmem:[%s550 + $0xdc] sm:%s542] %v661
        %v663 = vld [vmem:[%s549 + $0xdc] sm:%s542]
        %664 = vst [vmem:[%s550 + $0xe0] sm:%s542] %v663
        %v665 = vld [vmem:[%s549 + $0xe8] sm:%s542]
        %666 = vst [vmem:[%s550 + $0xe4] sm:%s542] %v665
        %v667 = vld [vmem:[%s549 + $0xe0] sm:%s542]
        %668 = vst [vmem:[%s550 + $0xe8] sm:%s542] %v667
        %v669 = vld [vmem:[%s549 + $0xec] sm:%s542]
        %670 = vst [vmem:[%s550 + $0xec] sm:%s542] %v669
        %v671 = vld [vmem:[%s549 + $0xf0] sm:%s542]
        %672 = vst [vmem:[%s550 + $0xf0] sm:%s542] %v671
        %v673 = vld [vmem:[%s549 + $0xfc] sm:%s542]
        %674 = vst [vmem:[%s550 + $0xf4] sm:%s542] %v673
        %v675 = vld [vmem:[%s549 + $0xf4] sm:%s542]
        %676 = vst [vmem:[%s550 + $0xf8] sm:%s542] %v675
        %v677 = vld [vmem:[%s549 + $0x100] sm:%s542]
        %678 = vst [vmem:[%s550 + $0xfc] sm:%s542] %v677
        %v679 = vld [vmem:[%s549 + $0xf8] sm:%s542]
        %680 = vst [vmem:[%s550 + $0x100] sm:%s542] %v679
        %v681 = vld [vmem:[%s549 + $0x104] sm:%s542]
        %682 = vst [vmem:[%s550 + $0x104] sm:%s542] %v681
        %v683 = vld [vmem:[%s549 + $0x108] sm:%s542]
        %684 = vst [vmem:[%s550 + $0x108] sm:%s542] %v683
        %v685 = vld [vmem:[%s549 + $0x114] sm:%s542]
        %686 = vst [vmem:[%s550 + $0x10c] sm:%s542] %v685
        %v687 = vld [vmem:[%s549 + $0x10c] sm:%s542]
        %688 = vst [vmem:[%s550 + $0x110] sm:%s542] %v687
        %v689 = vld [vmem:[%s549 + $0x118] sm:%s542]
        %690 = vst [vmem:[%s550 + $0x114] sm:%s542] %v689
        %v691 = vld [vmem:[%s549 + $0x110] sm:%s542]
        %692 = vst [vmem:[%s550 + $0x118] sm:%s542] %v691
        %v693 = vld [vmem:[%s549 + $0x11c] sm:%s542]
        %694 = vst [vmem:[%s550 + $0x11c] sm:%s542] %v693
        %v695 = vld [vmem:[%s549 + $0x120] sm:%s542]
        %696 = vst [vmem:[%s550 + $0x120] sm:%s542] %v695
        %v697 = vld [vmem:[%s549 + $0x12c] sm:%s542]
        %698 = vst [vmem:[%s550 + $0x124] sm:%s542] %v697
        %v699 = vld [vmem:[%s549 + $0x124] sm:%s542]
        %700 = vst [vmem:[%s550 + $0x128] sm:%s542] %v699
        %v701 = vld [vmem:[%s549 + $0x130] sm:%s542]
        %702 = vst [vmem:[%s550 + $0x12c] sm:%s542] %v701
        %v703 = vld [vmem:[%s549 + $0x128] sm:%s542]
        %704 = vst [vmem:[%s550 + $0x130] sm:%s542] %v703
        %v705 = vld [vmem:[%s549 + $0x134] sm:%s542]
        %706 = vst [vmem:[%s550 + $0x134] sm:%s542] %v705
        %v707 = vld [vmem:[%s549 + $0x138] sm:%s542]
        %708 = vst [vmem:[%s550 + $0x138] sm:%s542] %v707
        %v709 = vld [vmem:[%s549 + $0x144] sm:%s542]
        %710 = vst [vmem:[%s550 + $0x13c] sm:%s542] %v709
        %v711 = vld [vmem:[%s549 + $0x13c] sm:%s542]
        %712 = vst [vmem:[%s550 + $0x140] sm:%s542] %v711
        %v713 = vld [vmem:[%s549 + $0x148] sm:%s542]
        %714 = vst [vmem:[%s550 + $0x144] sm:%s542] %v713
        %v715 = vld [vmem:[%s549 + $0x140] sm:%s542]
        %716 = vst [vmem:[%s550 + $0x148] sm:%s542] %v715
        %v717 = vld [vmem:[%s549 + $0x14c] sm:%s542]
        %718 = vst [vmem:[%s550 + $0x14c] sm:%s542] %v717
        %v719 = vld [vmem:[%s549 + $0x150] sm:%s542]
        %720 = vst [vmem:[%s550 + $0x150] sm:%s542] %v719
        %v721 = vld [vmem:[%s549 + $0x15c] sm:%s542]
        %722 = vst [vmem:[%s550 + $0x154] sm:%s542] %v721
        %v723 = vld [vmem:[%s549 + $0x154] sm:%s542]
        %724 = vst [vmem:[%s550 + $0x158] sm:%s542] %v723
        %v725 = vld [vmem:[%s549 + $0x160] sm:%s542]
        %726 = vst [vmem:[%s550 + $0x15c] sm:%s542] %v725
        %v727 = vld [vmem:[%s549 + $0x158] sm:%s542]
        %728 = vst [vmem:[%s550 + $0x160] sm:%s542] %v727
        %v729 = vld [vmem:[%s549 + $0x164] sm:%s542]
        %730 = vst [vmem:[%s550 + $0x164] sm:%s542] %v729
        %v731 = vld [vmem:[%s549 + $0x168] sm:%s542]
        %732 = vst [vmem:[%s550 + $0x168] sm:%s542] %v731
        %v733 = vld [vmem:[%s549 + $0x174] sm:%s542]
        %734 = vst [vmem:[%s550 + $0x16c] sm:%s542] %v733
        %v735 = vld [vmem:[%s549 + $0x16c] sm:%s542]
        %736 = vst [vmem:[%s550 + $0x170] sm:%s542] %v735
        %v737 = vld [vmem:[%s549 + $0x178] sm:%s542]
        %738 = vst [vmem:[%s550 + $0x174] sm:%s542] %v737
        %v739 = vld [vmem:[%s549 + $0x170] sm:%s542]
        %740 = vst [vmem:[%s550 + $0x178] sm:%s542] %v739
        %v741 = vld [vmem:[%s549 + $0x17c] sm:%s542]
        %742 = vst [vmem:[%s550 + $0x17c] sm:%s542] %v741
        %v743 = vld [vmem:[%s549 + $0x180] sm:%s542]
        %744 = vst [vmem:[%s550 + $0x180] sm:%s542] %v743
        %v745 = vld [vmem:[%s549 + $0x18c] sm:%s542]
        %746 = vst [vmem:[%s550 + $0x184] sm:%s542] %v745
        %v747 = vld [vmem:[%s549 + $0x184] sm:%s542]
        %748 = vst [vmem:[%s550 + $0x188] sm:%s542] %v747
        %v749 = vld [vmem:[%s549 + $0x190] sm:%s542]
        %750 = vst [vmem:[%s550 + $0x18c] sm:%s542] %v749
        %v751 = vld [vmem:[%s549 + $0x188] sm:%s542]
        %752 = vst [vmem:[%s550 + $0x190] sm:%s542] %v751
        %v753 = vld [vmem:[%s549 + $0x194] sm:%s542]
        %754 = vst [vmem:[%s550 + $0x194] sm:%s542] %v753
        %v755 = vld [vmem:[%s549 + $0x198] sm:%s542]
        %756 = vst [vmem:[%s550 + $0x198] sm:%s542] %v755
        %v757 = vld [vmem:[%s549 + $0x1a4] sm:%s542]
        %758 = vst [vmem:[%s550 + $0x19c] sm:%s542] %v757
        %v759 = vld [vmem:[%s549 + $0x19c] sm:%s542]
        %760 = vst [vmem:[%s550 + $0x1a0] sm:%s542] %v759
        %v761 = vld [vmem:[%s549 + $0x1a8] sm:%s542]
        %762 = vst [vmem:[%s550 + $0x1a4] sm:%s542] %v761
        %v763 = vld [vmem:[%s549 + $0x1a0] sm:%s542]
        %764 = vst [vmem:[%s550 + $0x1a8] sm:%s542] %v763
        %v765 = vld [vmem:[%s549 + $0x1ac] sm:%s542]
        %766 = vst [vmem:[%s550 + $0x1ac] sm:%s542] %v765
        %v767 = vld [vmem:[%s549 + $0x1b0] sm:%s542]
        %768 = vst [vmem:[%s550 + $0x1b0] sm:%s542] %v767
        %v769 = vld [vmem:[%s549 + $0x1bc] sm:%s542]
        %770 = vst [vmem:[%s550 + $0x1b4] sm:%s542] %v769
        %v771 = vld [vmem:[%s549 + $0x1b4] sm:%s542]
        %772 = vst [vmem:[%s550 + $0x1b8] sm:%s542] %v771
        %v773 = vld [vmem:[%s549 + $0x1c0] sm:%s542]
        %774 = vst [vmem:[%s550 + $0x1bc] sm:%s542] %v773
        %v775 = vld [vmem:[%s549 + $0x1b8] sm:%s542]
        %776 = vst [vmem:[%s550 + $0x1c0] sm:%s542] %v775
        %v777 = vld [vmem:[%s549 + $0x1c4] sm:%s542]
        %778 = vst [vmem:[%s550 + $0x1c4] sm:%s542] %v777
        %v779 = vld [vmem:[%s549 + $0x1c8] sm:%s542]
        %780 = vst [vmem:[%s550 + $0x1c8] sm:%s542] %v779
        %v781 = vld [vmem:[%s549 + $0x1d4] sm:%s542]
        %782 = vst [vmem:[%s550 + $0x1cc] sm:%s542] %v781
        %v783 = vld [vmem:[%s549 + $0x1cc] sm:%s542]
        %784 = vst [vmem:[%s550 + $0x1d0] sm:%s542] %v783
        %v785 = vld [vmem:[%s549 + $0x1d8] sm:%s542]
        %786 = vst [vmem:[%s550 + $0x1d4] sm:%s542] %v785
        %v787 = vld [vmem:[%s549 + $0x1d0] sm:%s542]
        %788 = vst [vmem:[%s550 + $0x1d8] sm:%s542] %v787
        %v789 = vld [vmem:[%s549 + $0x1dc] sm:%s542]
        %790 = vst [vmem:[%s550 + $0x1dc] sm:%s542] %v789
        %v791 = vld [vmem:[%s549 + $0x1e0] sm:%s542]
        %792 = vst [vmem:[%s550 + $0x1e0] sm:%s542] %v791
        %v793 = vld [vmem:[%s549 + $0x1ec] sm:%s542]
        %794 = vst [vmem:[%s550 + $0x1e4] sm:%s542] %v793
        %v795 = vld [vmem:[%s549 + $0x1e4] sm:%s542]
        %796 = vst [vmem:[%s550 + $0x1e8] sm:%s542] %v795
        %v797 = vld [vmem:[%s549 + $0x1f0] sm:%s542]
        %798 = vst [vmem:[%s550 + $0x1ec] sm:%s542] %v797
        %v799 = vld [vmem:[%s549 + $0x1e8] sm:%s542]
        %800 = vst [vmem:[%s550 + $0x1f0] sm:%s542] %v799
        %v801 = vld [vmem:[%s549 + $0x1f4] sm:%s542]
        %802 = vst [vmem:[%s550 + $0x1f4] sm:%s542] %v801
        %v803 = vld [vmem:[%s549 + $0x1f8] sm:%s542]
        %804 = vst [vmem:[%s550 + $0x1f8] sm:%s542] %v803
        %v805 = vld [vmem:[%s549 + $0x204] sm:%s542]
        %806 = vst [vmem:[%s550 + $0x1fc] sm:%s542] %v805
        %v807 = vld [vmem:[%s549 + $0x1fc] sm:%s542]
        %808 = vst [vmem:[%s550 + $0x200] sm:%s542] %v807
        %v809 = vld [vmem:[%s549 + $0x208] sm:%s542]
        %810 = vst [vmem:[%s550 + $0x204] sm:%s542] %v809
        %v811 = vld [vmem:[%s549 + $0x200] sm:%s542]
        %812 = vst [vmem:[%s550 + $0x208] sm:%s542] %v811
        %v813 = vld [vmem:[%s549 + $0x20c] sm:%s542]
        %814 = vst [vmem:[%s550 + $0x20c] sm:%s542] %v813
        %v815 = vld [vmem:[%s549 + $0x210] sm:%s542]
        %816 = vst [vmem:[%s550 + $0x210] sm:%s542] %v815
        %v817 = vld [vmem:[%s549 + $0x21c] sm:%s542]
        %818 = vst [vmem:[%s550 + $0x214] sm:%s542] %v817
        %v819 = vld [vmem:[%s549 + $0x214] sm:%s542]
        %820 = vst [vmem:[%s550 + $0x218] sm:%s542] %v819
        %v821 = vld [vmem:[%s549 + $0x220] sm:%s542]
        %822 = vst [vmem:[%s550 + $0x21c] sm:%s542] %v821
        %v823 = vld [vmem:[%s549 + $0x218] sm:%s542]
        %824 = vst [vmem:[%s550 + $0x220] sm:%s542] %v823
        %v825 = vld [vmem:[%s549 + $0x224] sm:%s542]
        %826 = vst [vmem:[%s550 + $0x224] sm:%s542] %v825
        %v827 = vld [vmem:[%s549 + $0x228] sm:%s542]
        %828 = vst [vmem:[%s550 + $0x228] sm:%s542] %v827
        %v829 = vld [vmem:[%s549 + $0x234] sm:%s542]
        %830 = vst [vmem:[%s550 + $0x22c] sm:%s542] %v829
        %v831 = vld [vmem:[%s549 + $0x22c] sm:%s542]
        %832 = vst [vmem:[%s550 + $0x230] sm:%s542] %v831
        %v833 = vld [vmem:[%s549 + $0x238] sm:%s542]
        %834 = vst [vmem:[%s550 + $0x234] sm:%s542] %v833
        %v835 = vld [vmem:[%s549 + $0x230] sm:%s542]
        %836 = vst [vmem:[%s550 + $0x238] sm:%s542] %v835
        %v837 = vld [vmem:[%s549 + $0x23c] sm:%s542]
        %838 = vst [vmem:[%s550 + $0x23c] sm:%s542] %v837
        %v839 = vld [vmem:[%s549 + $0x240] sm:%s542]
        %840 = vst [vmem:[%s550 + $0x240] sm:%s542] %v839
        %v841 = vld [vmem:[%s549 + $0x24c] sm:%s542]
        %842 = vst [vmem:[%s550 + $0x244] sm:%s542] %v841
        %v843 = vld [vmem:[%s549 + $0x244] sm:%s542]
        %844 = vst [vmem:[%s550 + $0x248] sm:%s542] %v843
        %v845 = vld [vmem:[%s549 + $0x250] sm:%s542]
        %846 = vst [vmem:[%s550 + $0x24c] sm:%s542] %v845
        %v847 = vld [vmem:[%s549 + $0x248] sm:%s542]
        %848 = vst [vmem:[%s550 + $0x250] sm:%s542] %v847
        %v849 = vld [vmem:[%s549 + $0x254] sm:%s542]
        %850 = vst [vmem:[%s550 + $0x254] sm:%s542] %v849
        %v851 = vld [vmem:[%s549 + $0x258] sm:%s542]
        %852 = vst [vmem:[%s550 + $0x258] sm:%s542] %v851
        %v853 = vld [vmem:[%s549 + $0x264] sm:%s542]
        %854 = vst [vmem:[%s550 + $0x25c] sm:%s542] %v853
        %v855 = vld [vmem:[%s549 + $0x25c] sm:%s542]
        %856 = vst [vmem:[%s550 + $0x260] sm:%s542] %v855
        %v857 = vld [vmem:[%s549 + $0x268] sm:%s542]
        %858 = vst [vmem:[%s550 + $0x264] sm:%s542] %v857
        %v859 = vld [vmem:[%s549 + $0x260] sm:%s542]
        %860 = vst [vmem:[%s550 + $0x268] sm:%s542] %v859
        %v861 = vld [vmem:[%s549 + $0x26c] sm:%s542]
        %862 = vst [vmem:[%s550 + $0x26c] sm:%s542] %v861
        %v863 = vld [vmem:[%s549 + $0x270] sm:%s542]
        %864 = vst [vmem:[%s550 + $0x270] sm:%s542] %v863
        %v865 = vld [vmem:[%s549 + $0x27c] sm:%s542]
        %866 = vst [vmem:[%s550 + $0x274] sm:%s542] %v865
        %v867 = vld [vmem:[%s549 + $0x274] sm:%s542]
        %868 = vst [vmem:[%s550 + $0x278] sm:%s542] %v867
        %v869 = vld [vmem:[%s549 + $0x280] sm:%s542]
        %870 = vst [vmem:[%s550 + $0x27c] sm:%s542] %v869
        %v871 = vld [vmem:[%s549 + $0x278] sm:%s542]
        %872 = vst [vmem:[%s550 + $0x280] sm:%s542] %v871
        %v873 = vld [vmem:[%s549 + $0x284] sm:%s542]
        %874 = vst [vmem:[%s550 + $0x284] sm:%s542] %v873
        %v875 = vld [vmem:[%s549 + $0x288] sm:%s542]
        %876 = vst [vmem:[%s550 + $0x288] sm:%s542] %v875
        %v877 = vld [vmem:[%s549 + $0x294] sm:%s542]
        %878 = vst [vmem:[%s550 + $0x28c] sm:%s542] %v877
        %v879 = vld [vmem:[%s549 + $0x28c] sm:%s542]
        %880 = vst [vmem:[%s550 + $0x290] sm:%s542] %v879
        %v881 = vld [vmem:[%s549 + $0x298] sm:%s542]
        %882 = vst [vmem:[%s550 + $0x294] sm:%s542] %v881
        %v883 = vld [vmem:[%s549 + $0x290] sm:%s542]
        %884 = vst [vmem:[%s550 + $0x298] sm:%s542] %v883
        %v885 = vld [vmem:[%s549 + $0x29c] sm:%s542]
        %886 = vst [vmem:[%s550 + $0x29c] sm:%s542] %v885
        %v887 = vld [vmem:[%s549 + $0x2a0] sm:%s542]
        %888 = vst [vmem:[%s550 + $0x2a0] sm:%s542] %v887
        %v889 = vld [vmem:[%s549 + $0x2ac] sm:%s542]
        %890 = vst [vmem:[%s550 + $0x2a4] sm:%s542] %v889
        %v891 = vld [vmem:[%s549 + $0x2a4] sm:%s542]
        %892 = vst [vmem:[%s550 + $0x2a8] sm:%s542] %v891
        %v893 = vld [vmem:[%s549 + $0x2b0] sm:%s542]
        %894 = vst [vmem:[%s550 + $0x2ac] sm:%s542] %v893
        %v895 = vld [vmem:[%s549 + $0x2a8] sm:%s542]
        %896 = vst [vmem:[%s550 + $0x2b0] sm:%s542] %v895
        %v897 = vld [vmem:[%s549 + $0x2b4] sm:%s542]
        %898 = vst [vmem:[%s550 + $0x2b4] sm:%s542] %v897
        %v899 = vld [vmem:[%s549 + $0x2b8] sm:%s542]
        %900 = vst [vmem:[%s550 + $0x2b8] sm:%s542] %v899
        %v901 = vld [vmem:[%s549 + $0x2c4] sm:%s542]
        %902 = vst [vmem:[%s550 + $0x2bc] sm:%s542] %v901
        %v903 = vld [vmem:[%s549 + $0x2bc] sm:%s542]
        %904 = vst [vmem:[%s550 + $0x2c0] sm:%s542] %v903
        %v905 = vld [vmem:[%s549 + $0x2c8] sm:%s542]
        %906 = vst [vmem:[%s550 + $0x2c4] sm:%s542] %v905
        %v907 = vld [vmem:[%s549 + $0x2c0] sm:%s542]
        %908 = vst [vmem:[%s550 + $0x2c8] sm:%s542] %v907
        %v909 = vld [vmem:[%s549 + $0x2cc] sm:%s542]
        %910 = vst [vmem:[%s550 + $0x2cc] sm:%s542] %v909
        %v911 = vld [vmem:[%s549 + $0x2d0] sm:%s542]
        %912 = vst [vmem:[%s550 + $0x2d0] sm:%s542] %v911
        %v913 = vld [vmem:[%s549 + $0x2dc] sm:%s542]
        %914 = vst [vmem:[%s550 + $0x2d4] sm:%s542] %v913
        %v915 = vld [vmem:[%s549 + $0x2d4] sm:%s542]
        %916 = vst [vmem:[%s550 + $0x2d8] sm:%s542] %v915
        %v917 = vld [vmem:[%s549 + $0x2e0] sm:%s542]
        %918 = vst [vmem:[%s550 + $0x2dc] sm:%s542] %v917
        %v919 = vld [vmem:[%s549 + $0x2d8] sm:%s542]
        %920 = vst [vmem:[%s550 + $0x2e0] sm:%s542] %v919
        %v921 = vld [vmem:[%s549 + $0x2e4] sm:%s542]
        %922 = vst [vmem:[%s550 + $0x2e4] sm:%s542] %v921
        %v923 = vld [vmem:[%s549 + $0x2e8] sm:%s542]
        %924 = vst [vmem:[%s550 + $0x2e8] sm:%s542] %v923
        %v925 = vld [vmem:[%s549 + $0x2f4] sm:%s542]
        %926 = vst [vmem:[%s550 + $0x2ec] sm:%s542] %v925
        %v927 = vld [vmem:[%s549 + $0x2ec] sm:%s542]
        %928 = vst [vmem:[%s550 + $0x2f0] sm:%s542] %v927
        %v929 = vld [vmem:[%s549 + $0x2f8] sm:%s542]
        %930 = vst [vmem:[%s550 + $0x2f4] sm:%s542] %v929
        %v931 = vld [vmem:[%s549 + $0x2f0] sm:%s542]
        %932 = vst [vmem:[%s550 + $0x2f8] sm:%s542] %v931
        %v933 = vld [vmem:[%s549 + $0x2fc] sm:%s542]
        %934 = vst [vmem:[%s550 + $0x2fc] sm:%s542] %v933
        %v935 = vld [vmem:[%s549 + $0x300] sm:%s542]
        %936 = vst [vmem:[%s550 + $0x300] sm:%s542] %v935
        %v937 = vld [vmem:[%s549 + $0x30c] sm:%s542]
        %938 = vst [vmem:[%s550 + $0x304] sm:%s542] %v937
        %v939 = vld [vmem:[%s549 + $0x304] sm:%s542]
        %940 = vst [vmem:[%s550 + $0x308] sm:%s542] %v939
        %v941 = vld [vmem:[%s549 + $0x310] sm:%s542]
        %942 = vst [vmem:[%s550 + $0x30c] sm:%s542] %v941
        %v943 = vld [vmem:[%s549 + $0x308] sm:%s542]
        %944 = vst [vmem:[%s550 + $0x310] sm:%s542] %v943
        %v945 = vld [vmem:[%s549 + $0x314] sm:%s542]
        %946 = vst [vmem:[%s550 + $0x314] sm:%s542] %v945
        %v947 = vld [vmem:[%s549 + $0x318] sm:%s542]
        %948 = vst [vmem:[%s550 + $0x318] sm:%s542] %v947
        %v949 = vld [vmem:[%s549 + $0x324] sm:%s542]
        %950 = vst [vmem:[%s550 + $0x31c] sm:%s542] %v949
        %v951 = vld [vmem:[%s549 + $0x31c] sm:%s542]
        %952 = vst [vmem:[%s550 + $0x320] sm:%s542] %v951
        %v953 = vld [vmem:[%s549 + $0x328] sm:%s542]
        %954 = vst [vmem:[%s550 + $0x324] sm:%s542] %v953
        %v955 = vld [vmem:[%s549 + $0x320] sm:%s542]
        %956 = vst [vmem:[%s550 + $0x328] sm:%s542] %v955
        %v957 = vld [vmem:[%s549 + $0x32c] sm:%s542]
        %958 = vst [vmem:[%s550 + $0x32c] sm:%s542] %v957
        %v959 = vld [vmem:[%s549 + $0x330] sm:%s542]
        %960 = vst [vmem:[%s550 + $0x330] sm:%s542] %v959
        %v961 = vld [vmem:[%s549 + $0x33c] sm:%s542]
        %962 = vst [vmem:[%s550 + $0x334] sm:%s542] %v961
        %v963 = vld [vmem:[%s549 + $0x334] sm:%s542]
        %964 = vst [vmem:[%s550 + $0x338] sm:%s542] %v963
        %v965 = vld [vmem:[%s549 + $0x340] sm:%s542]
        %966 = vst [vmem:[%s550 + $0x33c] sm:%s542] %v965
        %v967 = vld [vmem:[%s549 + $0x338] sm:%s542]
        %968 = vst [vmem:[%s550 + $0x340] sm:%s542] %v967
        %v969 = vld [vmem:[%s549 + $0x344] sm:%s542]
        %970 = vst [vmem:[%s550 + $0x344] sm:%s542] %v969
        %v971 = vld [vmem:[%s549 + $0x348] sm:%s542]
        %972 = vst [vmem:[%s550 + $0x348] sm:%s542] %v971
        %v973 = vld [vmem:[%s549 + $0x354] sm:%s542]
        %974 = vst [vmem:[%s550 + $0x34c] sm:%s542] %v973
        %v975 = vld [vmem:[%s549 + $0x34c] sm:%s542]
        %976 = vst [vmem:[%s550 + $0x350] sm:%s542] %v975
        %v977 = vld [vmem:[%s549 + $0x358] sm:%s542]
        %978 = vst [vmem:[%s550 + $0x354] sm:%s542] %v977
        %v979 = vld [vmem:[%s549 + $0x350] sm:%s542]
        %980 = vst [vmem:[%s550 + $0x358] sm:%s542] %v979
        %v981 = vld [vmem:[%s549 + $0x35c] sm:%s542]
        %982 = vst [vmem:[%s550 + $0x35c] sm:%s542] %v981
        %v983 = vld [vmem:[%s549 + $0x360] sm:%s542]
        %984 = vst [vmem:[%s550 + $0x360] sm:%s542] %v983
        %v985 = vld [vmem:[%s549 + $0x36c] sm:%s542]
        %986 = vst [vmem:[%s550 + $0x364] sm:%s542] %v985
        %v987 = vld [vmem:[%s549 + $0x364] sm:%s542]
        %988 = vst [vmem:[%s550 + $0x368] sm:%s542] %v987
        %v989 = vld [vmem:[%s549 + $0x370] sm:%s542]
        %990 = vst [vmem:[%s550 + $0x36c] sm:%s542] %v989
        %v991 = vld [vmem:[%s549 + $0x368] sm:%s542]
        %992 = vst [vmem:[%s550 + $0x370] sm:%s542] %v991
        %v993 = vld [vmem:[%s549 + $0x374] sm:%s542]
        %994 = vst [vmem:[%s550 + $0x374] sm:%s542] %v993
        %v995 = vld [vmem:[%s549 + $0x378] sm:%s542]
        %996 = vst [vmem:[%s550 + $0x378] sm:%s542] %v995
        %v997 = vld [vmem:[%s549 + $0x384] sm:%s542]
        %998 = vst [vmem:[%s550 + $0x37c] sm:%s542] %v997
        %v999 = vld [vmem:[%s549 + $0x37c] sm:%s542]
        %1000 = vst [vmem:[%s550 + $0x380] sm:%s542] %v999
        %v1001 = vld [vmem:[%s549 + $0x388] sm:%s542]
        %1002 = vst [vmem:[%s550 + $0x384] sm:%s542] %v1001
        %v1003 = vld [vmem:[%s549 + $0x380] sm:%s542]
        %1004 = vst [vmem:[%s550 + $0x388] sm:%s542] %v1003
        %v1005 = vld [vmem:[%s549 + $0x38c] sm:%s542]
        %1006 = vst [vmem:[%s550 + $0x38c] sm:%s542] %v1005
        %v1007 = vld [vmem:[%s549 + $0x390] sm:%s542]
        %1008 = vst [vmem:[%s550 + $0x390] sm:%s542] %v1007
        %v1009 = vld [vmem:[%s549 + $0x39c] sm:%s542]
        %1010 = vst [vmem:[%s550 + $0x394] sm:%s542] %v1009
        %v1011 = vld [vmem:[%s549 + $0x394] sm:%s542]
        %1012 = vst [vmem:[%s550 + $0x398] sm:%s542] %v1011
        %v1013 = vld [vmem:[%s549 + $0x3a0] sm:%s542]
        %1014 = vst [vmem:[%s550 + $0x39c] sm:%s542] %v1013
        %v1015 = vld [vmem:[%s549 + $0x398] sm:%s542]
        %1016 = vst [vmem:[%s550 + $0x3a0] sm:%s542] %v1015
        %v1017 = vld [vmem:[%s549 + $0x3a4] sm:%s542]
        %1018 = vst [vmem:[%s550 + $0x3a4] sm:%s542] %v1017
        %v1019 = vld [vmem:[%s549 + $0x3a8] sm:%s542]
        %1020 = vst [vmem:[%s550 + $0x3a8] sm:%s542] %v1019
        %v1021 = vld [vmem:[%s549 + $0x3b4] sm:%s542]
        %1022 = vst [vmem:[%s550 + $0x3ac] sm:%s542] %v1021
        %v1023 = vld [vmem:[%s549 + $0x3ac] sm:%s542]
        %1024 = vst [vmem:[%s550 + $0x3b0] sm:%s542] %v1023
        %v1025 = vld [vmem:[%s549 + $0x3b8] sm:%s542]
        %1026 = vst [vmem:[%s550 + $0x3b4] sm:%s542] %v1025
        %v1027 = vld [vmem:[%s549 + $0x3b0] sm:%s542]
        %1028 = vst [vmem:[%s550 + $0x3b8] sm:%s542] %v1027
        %v1029 = vld [vmem:[%s549 + $0x3bc] sm:%s542]
        %1030 = vst [vmem:[%s550 + $0x3bc] sm:%s542] %v1029
      $region52: #{network_forward.1} parent=39 // loop_footer
        %s548 = sadd.s32 1, %s544
      $region53: #{network_forward.1} parent=39 // loop_footer_branch
        %543 = sbr.rel target = $region49
      $region54: #{network_forward.1} parent=39 // loop_exit
        _
    $region40: #{network_forward.1} parent=24 // pred_fallthru
      _
  $region25: #{network_forward.1} parent=0 // pred_fallthru
    _
  // Predicated region
  $region26: #{network_forward.1} parent=0 // pred_check
    %p32 = pneg %p28
  $region27: #{network_forward.1} parent=0 // pred_check_branch
    %34 = sbr.rel (%p32) target = $region29
  $region28: #{network_forward.1} parent=0 // pred_region
    %s35 = sshllo.u32 0, 4
    loop: start=0, step=1, limit=1
    $region30: #{network_forward.1} parent=28 // loop_pre_header
      _
    $region31: #{network_forward.1} parent=28 // loop_header
      %s37 = sphi 0, %s41
      %p38 = scmp.ge.s32.totalorder %s37, 1
      %s42 = sphi %s5, %s5
      %s43 = sphi [#allocation3], [#allocation3]
    $region32: #{network_forward.1} parent=28 // loop_header_branch
      %40 = sbr.rel (%p38) target = $region36
    $region33: #{network_forward.1} parent=28 // loop_body
      %v44 = vld [vmem:[%s42] sm:%s35]
      %45 = vst [vmem:[%s43] sm:%s35] %v44
      %v46 = vld [vmem:[%s42 + $0xc] sm:%s35]
      %47 = vst [vmem:[%s43 + $0x4] sm:%s35] %v46
      %v48 = vld [vmem:[%s42 + $0x4] sm:%s35]
      %49 = vst [vmem:[%s43 + $0x8] sm:%s35] %v48
      %v50 = vld [vmem:[%s42 + $0x10] sm:%s35]
      %51 = vst [vmem:[%s43 + $0xc] sm:%s35] %v50
      %v52 = vld [vmem:[%s42 + $0x8] sm:%s35]
      %53 = vst [vmem:[%s43 + $0x10] sm:%s35] %v52
      %v54 = vld [vmem:[%s42 + $0x14] sm:%s35]
      %55 = vst [vmem:[%s43 + $0x14] sm:%s35] %v54
      %v56 = vld [vmem:[%s42 + $0x18] sm:%s35]
      %57 = vst [vmem:[%s43 + $0x18] sm:%s35] %v56
      %v58 = vld [vmem:[%s42 + $0x24] sm:%s35]
      %59 = vst [vmem:[%s43 + $0x1c] sm:%s35] %v58
      %v60 = vld [vmem:[%s42 + $0x1c] sm:%s35]
      %61 = vst [vmem:[%s43 + $0x20] sm:%s35] %v60
      %v62 = vld [vmem:[%s42 + $0x28] sm:%s35]
      %63 = vst [vmem:[%s43 + $0x24] sm:%s35] %v62
      %v64 = vld [vmem:[%s42 + $0x20] sm:%s35]
      %65 = vst [vmem:[%s43 + $0x28] sm:%s35] %v64
      %v66 = vld [vmem:[%s42 + $0x2c] sm:%s35]
      %67 = vst [vmem:[%s43 + $0x2c] sm:%s35] %v66
      %v68 = vld [vmem:[%s42 + $0x30] sm:%s35]
      %69 = vst [vmem:[%s43 + $0x30] sm:%s35] %v68
      %v70 = vld [vmem:[%s42 + $0x3c] sm:%s35]
      %71 = vst [vmem:[%s43 + $0x34] sm:%s35] %v70
      %v72 = vld [vmem:[%s42 + $0x34] sm:%s35]
      %73 = vst [vmem:[%s43 + $0x38] sm:%s35] %v72
      %v74 = vld [vmem:[%s42 + $0x40] sm:%s35]
      %75 = vst [vmem:[%s43 + $0x3c] sm:%s35] %v74
      %v76 = vld [vmem:[%s42 + $0x38] sm:%s35]
      %77 = vst [vmem:[%s43 + $0x40] sm:%s35] %v76
      %v78 = vld [vmem:[%s42 + $0x44] sm:%s35]
      %79 = vst [vmem:[%s43 + $0x44] sm:%s35] %v78
      %v80 = vld [vmem:[%s42 + $0x48] sm:%s35]
      %81 = vst [vmem:[%s43 + $0x48] sm:%s35] %v80
      %v82 = vld [vmem:[%s42 + $0x54] sm:%s35]
      %83 = vst [vmem:[%s43 + $0x4c] sm:%s35] %v82
      %v84 = vld [vmem:[%s42 + $0x4c] sm:%s35]
      %85 = vst [vmem:[%s43 + $0x50] sm:%s35] %v84
      %v86 = vld [vmem:[%s42 + $0x58] sm:%s35]
      %87 = vst [vmem:[%s43 + $0x54] sm:%s35] %v86
      %v88 = vld [vmem:[%s42 + $0x50] sm:%s35]
      %89 = vst [vmem:[%s43 + $0x58] sm:%s35] %v88
      %v90 = vld [vmem:[%s42 + $0x5c] sm:%s35]
      %91 = vst [vmem:[%s43 + $0x5c] sm:%s35] %v90
      %v92 = vld [vmem:[%s42 + $0x60] sm:%s35]
      %93 = vst [vmem:[%s43 + $0x60] sm:%s35] %v92
      %v94 = vld [vmem:[%s42 + $0x6c] sm:%s35]
      %95 = vst [vmem:[%s43 + $0x64] sm:%s35] %v94
      %v96 = vld [vmem:[%s42 + $0x64] sm:%s35]
      %97 = vst [vmem:[%s43 + $0x68] sm:%s35] %v96
      %v98 = vld [vmem:[%s42 + $0x70] sm:%s35]
      %99 = vst [vmem:[%s43 + $0x6c] sm:%s35] %v98
      %v100 = vld [vmem:[%s42 + $0x68] sm:%s35]
      %101 = vst [vmem:[%s43 + $0x70] sm:%s35] %v100
      %v102 = vld [vmem:[%s42 + $0x74] sm:%s35]
      %103 = vst [vmem:[%s43 + $0x74] sm:%s35] %v102
      %v104 = vld [vmem:[%s42 + $0x78] sm:%s35]
      %105 = vst [vmem:[%s43 + $0x78] sm:%s35] %v104
      %v106 = vld [vmem:[%s42 + $0x84] sm:%s35]
      %107 = vst [vmem:[%s43 + $0x7c] sm:%s35] %v106
      %v108 = vld [vmem:[%s42 + $0x7c] sm:%s35]
      %109 = vst [vmem:[%s43 + $0x80] sm:%s35] %v108
      %v110 = vld [vmem:[%s42 + $0x88] sm:%s35]
      %111 = vst [vmem:[%s43 + $0x84] sm:%s35] %v110
      %v112 = vld [vmem:[%s42 + $0x80] sm:%s35]
      %113 = vst [vmem:[%s43 + $0x88] sm:%s35] %v112
      %v114 = vld [vmem:[%s42 + $0x8c] sm:%s35]
      %115 = vst [vmem:[%s43 + $0x8c] sm:%s35] %v114
      %v116 = vld [vmem:[%s42 + $0x90] sm:%s35]
      %117 = vst [vmem:[%s43 + $0x90] sm:%s35] %v116
      %v118 = vld [vmem:[%s42 + $0x9c] sm:%s35]
      %119 = vst [vmem:[%s43 + $0x94] sm:%s35] %v118
      %v120 = vld [vmem:[%s42 + $0x94] sm:%s35]
      %121 = vst [vmem:[%s43 + $0x98] sm:%s35] %v120
      %v122 = vld [vmem:[%s42 + $0xa0] sm:%s35]
      %123 = vst [vmem:[%s43 + $0x9c] sm:%s35] %v122
      %v124 = vld [vmem:[%s42 + $0x98] sm:%s35]
      %125 = vst [vmem:[%s43 + $0xa0] sm:%s35] %v124
      %v126 = vld [vmem:[%s42 + $0xa4] sm:%s35]
      %127 = vst [vmem:[%s43 + $0xa4] sm:%s35] %v126
      %v128 = vld [vmem:[%s42 + $0xa8] sm:%s35]
      %129 = vst [vmem:[%s43 + $0xa8] sm:%s35] %v128
      %v130 = vld [vmem:[%s42 + $0xb4] sm:%s35]
      %131 = vst [vmem:[%s43 + $0xac] sm:%s35] %v130
      %v132 = vld [vmem:[%s42 + $0xac] sm:%s35]
      %133 = vst [vmem:[%s43 + $0xb0] sm:%s35] %v132
      %v134 = vld [vmem:[%s42 + $0xb8] sm:%s35]
      %135 = vst [vmem:[%s43 + $0xb4] sm:%s35] %v134
      %v136 = vld [vmem:[%s42 + $0xb0] sm:%s35]
      %137 = vst [vmem:[%s43 + $0xb8] sm:%s35] %v136
      %v138 = vld [vmem:[%s42 + $0xbc] sm:%s35]
      %139 = vst [vmem:[%s43 + $0xbc] sm:%s35] %v138
      %v140 = vld [vmem:[%s42 + $0xc0] sm:%s35]
      %141 = vst [vmem:[%s43 + $0xc0] sm:%s35] %v140
      %v142 = vld [vmem:[%s42 + $0xcc] sm:%s35]
      %143 = vst [vmem:[%s43 + $0xc4] sm:%s35] %v142
      %v144 = vld [vmem:[%s42 + $0xc4] sm:%s35]
      %145 = vst [vmem:[%s43 + $0xc8] sm:%s35] %v144
      %v146 = vld [vmem:[%s42 + $0xd0] sm:%s35]
      %147 = vst [vmem:[%s43 + $0xcc] sm:%s35] %v146
      %v148 = vld [vmem:[%s42 + $0xc8] sm:%s35]
      %149 = vst [vmem:[%s43 + $0xd0] sm:%s35] %v148
      %v150 = vld [vmem:[%s42 + $0xd4] sm:%s35]
      %151 = vst [vmem:[%s43 + $0xd4] sm:%s35] %v150
      %v152 = vld [vmem:[%s42 + $0xd8] sm:%s35]
      %153 = vst [vmem:[%s43 + $0xd8] sm:%s35] %v152
      %v154 = vld [vmem:[%s42 + $0xe4] sm:%s35]
      %155 = vst [vmem:[%s43 + $0xdc] sm:%s35] %v154
      %v156 = vld [vmem:[%s42 + $0xdc] sm:%s35]
      %157 = vst [vmem:[%s43 + $0xe0] sm:%s35] %v156
      %v158 = vld [vmem:[%s42 + $0xe8] sm:%s35]
      %159 = vst [vmem:[%s43 + $0xe4] sm:%s35] %v158
      %v160 = vld [vmem:[%s42 + $0xe0] sm:%s35]
      %161 = vst [vmem:[%s43 + $0xe8] sm:%s35] %v160
      %v162 = vld [vmem:[%s42 + $0xec] sm:%s35]
      %163 = vst [vmem:[%s43 + $0xec] sm:%s35] %v162
      %v164 = vld [vmem:[%s42 + $0xf0] sm:%s35]
      %165 = vst [vmem:[%s43 + $0xf0] sm:%s35] %v164
      %v166 = vld [vmem:[%s42 + $0xfc] sm:%s35]
      %167 = vst [vmem:[%s43 + $0xf4] sm:%s35] %v166
      %v168 = vld [vmem:[%s42 + $0xf4] sm:%s35]
      %169 = vst [vmem:[%s43 + $0xf8] sm:%s35] %v168
      %v170 = vld [vmem:[%s42 + $0x100] sm:%s35]
      %171 = vst [vmem:[%s43 + $0xfc] sm:%s35] %v170
      %v172 = vld [vmem:[%s42 + $0xf8] sm:%s35]
      %173 = vst [vmem:[%s43 + $0x100] sm:%s35] %v172
      %v174 = vld [vmem:[%s42 + $0x104] sm:%s35]
      %175 = vst [vmem:[%s43 + $0x104] sm:%s35] %v174
      %v176 = vld [vmem:[%s42 + $0x108] sm:%s35]
      %177 = vst [vmem:[%s43 + $0x108] sm:%s35] %v176
      %v178 = vld [vmem:[%s42 + $0x114] sm:%s35]
      %179 = vst [vmem:[%s43 + $0x10c] sm:%s35] %v178
      %v180 = vld [vmem:[%s42 + $0x10c] sm:%s35]
      %181 = vst [vmem:[%s43 + $0x110] sm:%s35] %v180
      %v182 = vld [vmem:[%s42 + $0x118] sm:%s35]
      %183 = vst [vmem:[%s43 + $0x114] sm:%s35] %v182
      %v184 = vld [vmem:[%s42 + $0x110] sm:%s35]
      %185 = vst [vmem:[%s43 + $0x118] sm:%s35] %v184
      %v186 = vld [vmem:[%s42 + $0x11c] sm:%s35]
      %187 = vst [vmem:[%s43 + $0x11c] sm:%s35] %v186
      %v188 = vld [vmem:[%s42 + $0x120] sm:%s35]
      %189 = vst [vmem:[%s43 + $0x120] sm:%s35] %v188
      %v190 = vld [vmem:[%s42 + $0x12c] sm:%s35]
      %191 = vst [vmem:[%s43 + $0x124] sm:%s35] %v190
      %v192 = vld [vmem:[%s42 + $0x124] sm:%s35]
      %193 = vst [vmem:[%s43 + $0x128] sm:%s35] %v192
      %v194 = vld [vmem:[%s42 + $0x130] sm:%s35]
      %195 = vst [vmem:[%s43 + $0x12c] sm:%s35] %v194
      %v196 = vld [vmem:[%s42 + $0x128] sm:%s35]
      %197 = vst [vmem:[%s43 + $0x130] sm:%s35] %v196
      %v198 = vld [vmem:[%s42 + $0x134] sm:%s35]
      %199 = vst [vmem:[%s43 + $0x134] sm:%s35] %v198
      %v200 = vld [vmem:[%s42 + $0x138] sm:%s35]
      %201 = vst [vmem:[%s43 + $0x138] sm:%s35] %v200
      %v202 = vld [vmem:[%s42 + $0x144] sm:%s35]
      %203 = vst [vmem:[%s43 + $0x13c] sm:%s35] %v202
      %v204 = vld [vmem:[%s42 + $0x13c] sm:%s35]
      %205 = vst [vmem:[%s43 + $0x140] sm:%s35] %v204
      %v206 = vld [vmem:[%s42 + $0x148] sm:%s35]
      %207 = vst [vmem:[%s43 + $0x144] sm:%s35] %v206
      %v208 = vld [vmem:[%s42 + $0x140] sm:%s35]
      %209 = vst [vmem:[%s43 + $0x148] sm:%s35] %v208
      %v210 = vld [vmem:[%s42 + $0x14c] sm:%s35]
      %211 = vst [vmem:[%s43 + $0x14c] sm:%s35] %v210
      %v212 = vld [vmem:[%s42 + $0x150] sm:%s35]
      %213 = vst [vmem:[%s43 + $0x150] sm:%s35] %v212
      %v214 = vld [vmem:[%s42 + $0x15c] sm:%s35]
      %215 = vst [vmem:[%s43 + $0x154] sm:%s35] %v214
      %v216 = vld [vmem:[%s42 + $0x154] sm:%s35]
      %217 = vst [vmem:[%s43 + $0x158] sm:%s35] %v216
      %v218 = vld [vmem:[%s42 + $0x160] sm:%s35]
      %219 = vst [vmem:[%s43 + $0x15c] sm:%s35] %v218
      %v220 = vld [vmem:[%s42 + $0x158] sm:%s35]
      %221 = vst [vmem:[%s43 + $0x160] sm:%s35] %v220
      %v222 = vld [vmem:[%s42 + $0x164] sm:%s35]
      %223 = vst [vmem:[%s43 + $0x164] sm:%s35] %v222
      %v224 = vld [vmem:[%s42 + $0x168] sm:%s35]
      %225 = vst [vmem:[%s43 + $0x168] sm:%s35] %v224
      %v226 = vld [vmem:[%s42 + $0x174] sm:%s35]
      %227 = vst [vmem:[%s43 + $0x16c] sm:%s35] %v226
      %v228 = vld [vmem:[%s42 + $0x16c] sm:%s35]
      %229 = vst [vmem:[%s43 + $0x170] sm:%s35] %v228
      %v230 = vld [vmem:[%s42 + $0x178] sm:%s35]
      %231 = vst [vmem:[%s43 + $0x174] sm:%s35] %v230
      %v232 = vld [vmem:[%s42 + $0x170] sm:%s35]
      %233 = vst [vmem:[%s43 + $0x178] sm:%s35] %v232
      %v234 = vld [vmem:[%s42 + $0x17c] sm:%s35]
      %235 = vst [vmem:[%s43 + $0x17c] sm:%s35] %v234
      %v236 = vld [vmem:[%s42 + $0x180] sm:%s35]
      %237 = vst [vmem:[%s43 + $0x180] sm:%s35] %v236
      %v238 = vld [vmem:[%s42 + $0x18c] sm:%s35]
      %239 = vst [vmem:[%s43 + $0x184] sm:%s35] %v238
      %v240 = vld [vmem:[%s42 + $0x184] sm:%s35]
      %241 = vst [vmem:[%s43 + $0x188] sm:%s35] %v240
      %v242 = vld [vmem:[%s42 + $0x190] sm:%s35]
      %243 = vst [vmem:[%s43 + $0x18c] sm:%s35] %v242
      %v244 = vld [vmem:[%s42 + $0x188] sm:%s35]
      %245 = vst [vmem:[%s43 + $0x190] sm:%s35] %v244
      %v246 = vld [vmem:[%s42 + $0x194] sm:%s35]
      %247 = vst [vmem:[%s43 + $0x194] sm:%s35] %v246
      %v248 = vld [vmem:[%s42 + $0x198] sm:%s35]
      %249 = vst [vmem:[%s43 + $0x198] sm:%s35] %v248
      %v250 = vld [vmem:[%s42 + $0x1a4] sm:%s35]
      %251 = vst [vmem:[%s43 + $0x19c] sm:%s35] %v250
      %v252 = vld [vmem:[%s42 + $0x19c] sm:%s35]
      %253 = vst [vmem:[%s43 + $0x1a0] sm:%s35] %v252
      %v254 = vld [vmem:[%s42 + $0x1a8] sm:%s35]
      %255 = vst [vmem:[%s43 + $0x1a4] sm:%s35] %v254
      %v256 = vld [vmem:[%s42 + $0x1a0] sm:%s35]
      %257 = vst [vmem:[%s43 + $0x1a8] sm:%s35] %v256
      %v258 = vld [vmem:[%s42 + $0x1ac] sm:%s35]
      %259 = vst [vmem:[%s43 + $0x1ac] sm:%s35] %v258
      %v260 = vld [vmem:[%s42 + $0x1b0] sm:%s35]
      %261 = vst [vmem:[%s43 + $0x1b0] sm:%s35] %v260
      %v262 = vld [vmem:[%s42 + $0x1bc] sm:%s35]
      %263 = vst [vmem:[%s43 + $0x1b4] sm:%s35] %v262
      %v264 = vld [vmem:[%s42 + $0x1b4] sm:%s35]
      %265 = vst [vmem:[%s43 + $0x1b8] sm:%s35] %v264
      %v266 = vld [vmem:[%s42 + $0x1c0] sm:%s35]
      %267 = vst [vmem:[%s43 + $0x1bc] sm:%s35] %v266
      %v268 = vld [vmem:[%s42 + $0x1b8] sm:%s35]
      %269 = vst [vmem:[%s43 + $0x1c0] sm:%s35] %v268
      %v270 = vld [vmem:[%s42 + $0x1c4] sm:%s35]
      %271 = vst [vmem:[%s43 + $0x1c4] sm:%s35] %v270
      %v272 = vld [vmem:[%s42 + $0x1c8] sm:%s35]
      %273 = vst [vmem:[%s43 + $0x1c8] sm:%s35] %v272
      %v274 = vld [vmem:[%s42 + $0x1d4] sm:%s35]
      %275 = vst [vmem:[%s43 + $0x1cc] sm:%s35] %v274
      %v276 = vld [vmem:[%s42 + $0x1cc] sm:%s35]
      %277 = vst [vmem:[%s43 + $0x1d0] sm:%s35] %v276
      %v278 = vld [vmem:[%s42 + $0x1d8] sm:%s35]
      %279 = vst [vmem:[%s43 + $0x1d4] sm:%s35] %v278
      %v280 = vld [vmem:[%s42 + $0x1d0] sm:%s35]
      %281 = vst [vmem:[%s43 + $0x1d8] sm:%s35] %v280
      %v282 = vld [vmem:[%s42 + $0x1dc] sm:%s35]
      %283 = vst [vmem:[%s43 + $0x1dc] sm:%s35] %v282
      %v284 = vld [vmem:[%s42 + $0x1e0] sm:%s35]
      %285 = vst [vmem:[%s43 + $0x1e0] sm:%s35] %v284
      %v286 = vld [vmem:[%s42 + $0x1ec] sm:%s35]
      %287 = vst [vmem:[%s43 + $0x1e4] sm:%s35] %v286
      %v288 = vld [vmem:[%s42 + $0x1e4] sm:%s35]
      %289 = vst [vmem:[%s43 + $0x1e8] sm:%s35] %v288
      %v290 = vld [vmem:[%s42 + $0x1f0] sm:%s35]
      %291 = vst [vmem:[%s43 + $0x1ec] sm:%s35] %v290
      %v292 = vld [vmem:[%s42 + $0x1e8] sm:%s35]
      %293 = vst [vmem:[%s43 + $0x1f0] sm:%s35] %v292
      %v294 = vld [vmem:[%s42 + $0x1f4] sm:%s35]
      %295 = vst [vmem:[%s43 + $0x1f4] sm:%s35] %v294
      %v296 = vld [vmem:[%s42 + $0x1f8] sm:%s35]
      %297 = vst [vmem:[%s43 + $0x1f8] sm:%s35] %v296
      %v298 = vld [vmem:[%s42 + $0x204] sm:%s35]
      %299 = vst [vmem:[%s43 + $0x1fc] sm:%s35] %v298
      %v300 = vld [vmem:[%s42 + $0x1fc] sm:%s35]
      %301 = vst [vmem:[%s43 + $0x200] sm:%s35] %v300
      %v302 = vld [vmem:[%s42 + $0x208] sm:%s35]
      %303 = vst [vmem:[%s43 + $0x204] sm:%s35] %v302
      %v304 = vld [vmem:[%s42 + $0x200] sm:%s35]
      %305 = vst [vmem:[%s43 + $0x208] sm:%s35] %v304
      %v306 = vld [vmem:[%s42 + $0x20c] sm:%s35]
      %307 = vst [vmem:[%s43 + $0x20c] sm:%s35] %v306
      %v308 = vld [vmem:[%s42 + $0x210] sm:%s35]
      %309 = vst [vmem:[%s43 + $0x210] sm:%s35] %v308
      %v310 = vld [vmem:[%s42 + $0x21c] sm:%s35]
      %311 = vst [vmem:[%s43 + $0x214] sm:%s35] %v310
      %v312 = vld [vmem:[%s42 + $0x214] sm:%s35]
      %313 = vst [vmem:[%s43 + $0x218] sm:%s35] %v312
      %v314 = vld [vmem:[%s42 + $0x220] sm:%s35]
      %315 = vst [vmem:[%s43 + $0x21c] sm:%s35] %v314
      %v316 = vld [vmem:[%s42 + $0x218] sm:%s35]
      %317 = vst [vmem:[%s43 + $0x220] sm:%s35] %v316
      %v318 = vld [vmem:[%s42 + $0x224] sm:%s35]
      %319 = vst [vmem:[%s43 + $0x224] sm:%s35] %v318
      %v320 = vld [vmem:[%s42 + $0x228] sm:%s35]
      %321 = vst [vmem:[%s43 + $0x228] sm:%s35] %v320
      %v322 = vld [vmem:[%s42 + $0x234] sm:%s35]
      %323 = vst [vmem:[%s43 + $0x22c] sm:%s35] %v322
      %v324 = vld [vmem:[%s42 + $0x22c] sm:%s35]
      %325 = vst [vmem:[%s43 + $0x230] sm:%s35] %v324
      %v326 = vld [vmem:[%s42 + $0x238] sm:%s35]
      %327 = vst [vmem:[%s43 + $0x234] sm:%s35] %v326
      %v328 = vld [vmem:[%s42 + $0x230] sm:%s35]
      %329 = vst [vmem:[%s43 + $0x238] sm:%s35] %v328
      %v330 = vld [vmem:[%s42 + $0x23c] sm:%s35]
      %331 = vst [vmem:[%s43 + $0x23c] sm:%s35] %v330
      %v332 = vld [vmem:[%s42 + $0x240] sm:%s35]
      %333 = vst [vmem:[%s43 + $0x240] sm:%s35] %v332
      %v334 = vld [vmem:[%s42 + $0x24c] sm:%s35]
      %335 = vst [vmem:[%s43 + $0x244] sm:%s35] %v334
      %v336 = vld [vmem:[%s42 + $0x244] sm:%s35]
      %337 = vst [vmem:[%s43 + $0x248] sm:%s35] %v336
      %v338 = vld [vmem:[%s42 + $0x250] sm:%s35]
      %339 = vst [vmem:[%s43 + $0x24c] sm:%s35] %v338
      %v340 = vld [vmem:[%s42 + $0x248] sm:%s35]
      %341 = vst [vmem:[%s43 + $0x250] sm:%s35] %v340
      %v342 = vld [vmem:[%s42 + $0x254] sm:%s35]
      %343 = vst [vmem:[%s43 + $0x254] sm:%s35] %v342
      %v344 = vld [vmem:[%s42 + $0x258] sm:%s35]
      %345 = vst [vmem:[%s43 + $0x258] sm:%s35] %v344
      %v346 = vld [vmem:[%s42 + $0x264] sm:%s35]
      %347 = vst [vmem:[%s43 + $0x25c] sm:%s35] %v346
      %v348 = vld [vmem:[%s42 + $0x25c] sm:%s35]
      %349 = vst [vmem:[%s43 + $0x260] sm:%s35] %v348
      %v350 = vld [vmem:[%s42 + $0x268] sm:%s35]
      %351 = vst [vmem:[%s43 + $0x264] sm:%s35] %v350
      %v352 = vld [vmem:[%s42 + $0x260] sm:%s35]
      %353 = vst [vmem:[%s43 + $0x268] sm:%s35] %v352
      %v354 = vld [vmem:[%s42 + $0x26c] sm:%s35]
      %355 = vst [vmem:[%s43 + $0x26c] sm:%s35] %v354
      %v356 = vld [vmem:[%s42 + $0x270] sm:%s35]
      %357 = vst [vmem:[%s43 + $0x270] sm:%s35] %v356
      %v358 = vld [vmem:[%s42 + $0x27c] sm:%s35]
      %359 = vst [vmem:[%s43 + $0x274] sm:%s35] %v358
      %v360 = vld [vmem:[%s42 + $0x274] sm:%s35]
      %361 = vst [vmem:[%s43 + $0x278] sm:%s35] %v360
      %v362 = vld [vmem:[%s42 + $0x280] sm:%s35]
      %363 = vst [vmem:[%s43 + $0x27c] sm:%s35] %v362
      %v364 = vld [vmem:[%s42 + $0x278] sm:%s35]
      %365 = vst [vmem:[%s43 + $0x280] sm:%s35] %v364
      %v366 = vld [vmem:[%s42 + $0x284] sm:%s35]
      %367 = vst [vmem:[%s43 + $0x284] sm:%s35] %v366
      %v368 = vld [vmem:[%s42 + $0x288] sm:%s35]
      %369 = vst [vmem:[%s43 + $0x288] sm:%s35] %v368
      %v370 = vld [vmem:[%s42 + $0x294] sm:%s35]
      %371 = vst [vmem:[%s43 + $0x28c] sm:%s35] %v370
      %v372 = vld [vmem:[%s42 + $0x28c] sm:%s35]
      %373 = vst [vmem:[%s43 + $0x290] sm:%s35] %v372
      %v374 = vld [vmem:[%s42 + $0x298] sm:%s35]
      %375 = vst [vmem:[%s43 + $0x294] sm:%s35] %v374
      %v376 = vld [vmem:[%s42 + $0x290] sm:%s35]
      %377 = vst [vmem:[%s43 + $0x298] sm:%s35] %v376
      %v378 = vld [vmem:[%s42 + $0x29c] sm:%s35]
      %379 = vst [vmem:[%s43 + $0x29c] sm:%s35] %v378
      %v380 = vld [vmem:[%s42 + $0x2a0] sm:%s35]
      %381 = vst [vmem:[%s43 + $0x2a0] sm:%s35] %v380
      %v382 = vld [vmem:[%s42 + $0x2ac] sm:%s35]
      %383 = vst [vmem:[%s43 + $0x2a4] sm:%s35] %v382
      %v384 = vld [vmem:[%s42 + $0x2a4] sm:%s35]
      %385 = vst [vmem:[%s43 + $0x2a8] sm:%s35] %v384
      %v386 = vld [vmem:[%s42 + $0x2b0] sm:%s35]
      %387 = vst [vmem:[%s43 + $0x2ac] sm:%s35] %v386
      %v388 = vld [vmem:[%s42 + $0x2a8] sm:%s35]
      %389 = vst [vmem:[%s43 + $0x2b0] sm:%s35] %v388
      %v390 = vld [vmem:[%s42 + $0x2b4] sm:%s35]
      %391 = vst [vmem:[%s43 + $0x2b4] sm:%s35] %v390
      %v392 = vld [vmem:[%s42 + $0x2b8] sm:%s35]
      %393 = vst [vmem:[%s43 + $0x2b8] sm:%s35] %v392
      %v394 = vld [vmem:[%s42 + $0x2c4] sm:%s35]
      %395 = vst [vmem:[%s43 + $0x2bc] sm:%s35] %v394
      %v396 = vld [vmem:[%s42 + $0x2bc] sm:%s35]
      %397 = vst [vmem:[%s43 + $0x2c0] sm:%s35] %v396
      %v398 = vld [vmem:[%s42 + $0x2c8] sm:%s35]
      %399 = vst [vmem:[%s43 + $0x2c4] sm:%s35] %v398
      %v400 = vld [vmem:[%s42 + $0x2c0] sm:%s35]
      %401 = vst [vmem:[%s43 + $0x2c8] sm:%s35] %v400
      %v402 = vld [vmem:[%s42 + $0x2cc] sm:%s35]
      %403 = vst [vmem:[%s43 + $0x2cc] sm:%s35] %v402
      %v404 = vld [vmem:[%s42 + $0x2d0] sm:%s35]
      %405 = vst [vmem:[%s43 + $0x2d0] sm:%s35] %v404
      %v406 = vld [vmem:[%s42 + $0x2dc] sm:%s35]
      %407 = vst [vmem:[%s43 + $0x2d4] sm:%s35] %v406
      %v408 = vld [vmem:[%s42 + $0x2d4] sm:%s35]
      %409 = vst [vmem:[%s43 + $0x2d8] sm:%s35] %v408
      %v410 = vld [vmem:[%s42 + $0x2e0] sm:%s35]
      %411 = vst [vmem:[%s43 + $0x2dc] sm:%s35] %v410
      %v412 = vld [vmem:[%s42 + $0x2d8] sm:%s35]
      %413 = vst [vmem:[%s43 + $0x2e0] sm:%s35] %v412
      %v414 = vld [vmem:[%s42 + $0x2e4] sm:%s35]
      %415 = vst [vmem:[%s43 + $0x2e4] sm:%s35] %v414
      %v416 = vld [vmem:[%s42 + $0x2e8] sm:%s35]
      %417 = vst [vmem:[%s43 + $0x2e8] sm:%s35] %v416
      %v418 = vld [vmem:[%s42 + $0x2f4] sm:%s35]
      %419 = vst [vmem:[%s43 + $0x2ec] sm:%s35] %v418
      %v420 = vld [vmem:[%s42 + $0x2ec] sm:%s35]
      %421 = vst [vmem:[%s43 + $0x2f0] sm:%s35] %v420
      %v422 = vld [vmem:[%s42 + $0x2f8] sm:%s35]
      %423 = vst [vmem:[%s43 + $0x2f4] sm:%s35] %v422
      %v424 = vld [vmem:[%s42 + $0x2f0] sm:%s35]
      %425 = vst [vmem:[%s43 + $0x2f8] sm:%s35] %v424
      %v426 = vld [vmem:[%s42 + $0x2fc] sm:%s35]
      %427 = vst [vmem:[%s43 + $0x2fc] sm:%s35] %v426
      %v428 = vld [vmem:[%s42 + $0x300] sm:%s35]
      %429 = vst [vmem:[%s43 + $0x300] sm:%s35] %v428
      %v430 = vld [vmem:[%s42 + $0x30c] sm:%s35]
      %431 = vst [vmem:[%s43 + $0x304] sm:%s35] %v430
      %v432 = vld [vmem:[%s42 + $0x304] sm:%s35]
      %433 = vst [vmem:[%s43 + $0x308] sm:%s35] %v432
      %v434 = vld [vmem:[%s42 + $0x310] sm:%s35]
      %435 = vst [vmem:[%s43 + $0x30c] sm:%s35] %v434
      %v436 = vld [vmem:[%s42 + $0x308] sm:%s35]
      %437 = vst [vmem:[%s43 + $0x310] sm:%s35] %v436
      %v438 = vld [vmem:[%s42 + $0x314] sm:%s35]
      %439 = vst [vmem:[%s43 + $0x314] sm:%s35] %v438
      %v440 = vld [vmem:[%s42 + $0x318] sm:%s35]
      %441 = vst [vmem:[%s43 + $0x318] sm:%s35] %v440
      %v442 = vld [vmem:[%s42 + $0x324] sm:%s35]
      %443 = vst [vmem:[%s43 + $0x31c] sm:%s35] %v442
      %v444 = vld [vmem:[%s42 + $0x31c] sm:%s35]
      %445 = vst [vmem:[%s43 + $0x320] sm:%s35] %v444
      %v446 = vld [vmem:[%s42 + $0x328] sm:%s35]
      %447 = vst [vmem:[%s43 + $0x324] sm:%s35] %v446
      %v448 = vld [vmem:[%s42 + $0x320] sm:%s35]
      %449 = vst [vmem:[%s43 + $0x328] sm:%s35] %v448
      %v450 = vld [vmem:[%s42 + $0x32c] sm:%s35]
      %451 = vst [vmem:[%s43 + $0x32c] sm:%s35] %v450
      %v452 = vld [vmem:[%s42 + $0x330] sm:%s35]
      %453 = vst [vmem:[%s43 + $0x330] sm:%s35] %v452
      %v454 = vld [vmem:[%s42 + $0x33c] sm:%s35]
      %455 = vst [vmem:[%s43 + $0x334] sm:%s35] %v454
      %v456 = vld [vmem:[%s42 + $0x334] sm:%s35]
      %457 = vst [vmem:[%s43 + $0x338] sm:%s35] %v456
      %v458 = vld [vmem:[%s42 + $0x340] sm:%s35]
      %459 = vst [vmem:[%s43 + $0x33c] sm:%s35] %v458
      %v460 = vld [vmem:[%s42 + $0x338] sm:%s35]
      %461 = vst [vmem:[%s43 + $0x340] sm:%s35] %v460
      %v462 = vld [vmem:[%s42 + $0x344] sm:%s35]
      %463 = vst [vmem:[%s43 + $0x344] sm:%s35] %v462
      %v464 = vld [vmem:[%s42 + $0x348] sm:%s35]
      %465 = vst [vmem:[%s43 + $0x348] sm:%s35] %v464
      %v466 = vld [vmem:[%s42 + $0x354] sm:%s35]
      %467 = vst [vmem:[%s43 + $0x34c] sm:%s35] %v466
      %v468 = vld [vmem:[%s42 + $0x34c] sm:%s35]
      %469 = vst [vmem:[%s43 + $0x350] sm:%s35] %v468
      %v470 = vld [vmem:[%s42 + $0x358] sm:%s35]
      %471 = vst [vmem:[%s43 + $0x354] sm:%s35] %v470
      %v472 = vld [vmem:[%s42 + $0x350] sm:%s35]
      %473 = vst [vmem:[%s43 + $0x358] sm:%s35] %v472
      %v474 = vld [vmem:[%s42 + $0x35c] sm:%s35]
      %475 = vst [vmem:[%s43 + $0x35c] sm:%s35] %v474
      %v476 = vld [vmem:[%s42 + $0x360] sm:%s35]
      %477 = vst [vmem:[%s43 + $0x360] sm:%s35] %v476
      %v478 = vld [vmem:[%s42 + $0x36c] sm:%s35]
      %479 = vst [vmem:[%s43 + $0x364] sm:%s35] %v478
      %v480 = vld [vmem:[%s42 + $0x364] sm:%s35]
      %481 = vst [vmem:[%s43 + $0x368] sm:%s35] %v480
      %v482 = vld [vmem:[%s42 + $0x370] sm:%s35]
      %483 = vst [vmem:[%s43 + $0x36c] sm:%s35] %v482
      %v484 = vld [vmem:[%s42 + $0x368] sm:%s35]
      %485 = vst [vmem:[%s43 + $0x370] sm:%s35] %v484
      %v486 = vld [vmem:[%s42 + $0x374] sm:%s35]
      %487 = vst [vmem:[%s43 + $0x374] sm:%s35] %v486
      %v488 = vld [vmem:[%s42 + $0x378] sm:%s35]
      %489 = vst [vmem:[%s43 + $0x378] sm:%s35] %v488
      %v490 = vld [vmem:[%s42 + $0x384] sm:%s35]
      %491 = vst [vmem:[%s43 + $0x37c] sm:%s35] %v490
      %v492 = vld [vmem:[%s42 + $0x37c] sm:%s35]
      %493 = vst [vmem:[%s43 + $0x380] sm:%s35] %v492
      %v494 = vld [vmem:[%s42 + $0x388] sm:%s35]
      %495 = vst [vmem:[%s43 + $0x384] sm:%s35] %v494
      %v496 = vld [vmem:[%s42 + $0x380] sm:%s35]
      %497 = vst [vmem:[%s43 + $0x388] sm:%s35] %v496
      %v498 = vld [vmem:[%s42 + $0x38c] sm:%s35]
      %499 = vst [vmem:[%s43 + $0x38c] sm:%s35] %v498
      %v500 = vld [vmem:[%s42 + $0x390] sm:%s35]
      %501 = vst [vmem:[%s43 + $0x390] sm:%s35] %v500
      %v502 = vld [vmem:[%s42 + $0x39c] sm:%s35]
      %503 = vst [vmem:[%s43 + $0x394] sm:%s35] %v502
      %v504 = vld [vmem:[%s42 + $0x394] sm:%s35]
      %505 = vst [vmem:[%s43 + $0x398] sm:%s35] %v504
      %v506 = vld [vmem:[%s42 + $0x3a0] sm:%s35]
      %507 = vst [vmem:[%s43 + $0x39c] sm:%s35] %v506
      %v508 = vld [vmem:[%s42 + $0x398] sm:%s35]
      %509 = vst [vmem:[%s43 + $0x3a0] sm:%s35] %v508
      %v510 = vld [vmem:[%s42 + $0x3a4] sm:%s35]
      %511 = vst [vmem:[%s43 + $0x3a4] sm:%s35] %v510
      %v512 = vld [vmem:[%s42 + $0x3a8] sm:%s35]
      %513 = vst [vmem:[%s43 + $0x3a8] sm:%s35] %v512
      %v514 = vld [vmem:[%s42 + $0x3b4] sm:%s35]
      %515 = vst [vmem:[%s43 + $0x3ac] sm:%s35] %v514
      %v516 = vld [vmem:[%s42 + $0x3ac] sm:%s35]
      %517 = vst [vmem:[%s43 + $0x3b0] sm:%s35] %v516
      %v518 = vld [vmem:[%s42 + $0x3b8] sm:%s35]
      %519 = vst [vmem:[%s43 + $0x3b4] sm:%s35] %v518
      %v520 = vld [vmem:[%s42 + $0x3b0] sm:%s35]
      %521 = vst [vmem:[%s43 + $0x3b8] sm:%s35] %v520
      %v522 = vld [vmem:[%s42 + $0x3bc] sm:%s35]
      %523 = vst [vmem:[%s43 + $0x3bc] sm:%s35] %v522
    $region34: #{network_forward.1} parent=28 // loop_footer
      %s41 = sadd.s32 1, %s37
    $region35: #{network_forward.1} parent=28 // loop_footer_branch
      %36 = sbr.rel target = $region31
    $region36: #{network_forward.1} parent=28 // loop_exit
      _
  $region29: #{network_forward.1} parent=0 // pred_fallthru
    _
  // Predicated region
  $region55: #{network_forward.1} parent=0 // pred_check
    _
  $region56: #{network_forward.1} parent=0 // pred_check_branch
    %1033 = sbr.rel (0) target = $region58
  $region57: #{network_forward.1} parent=0 // pred_region
    %1034 = vsyncadd [#allocation9], 15360
  $region58: #{network_forward.1} parent=0 // pred_fallthru
    _
  %s1035 = scalar_lea.sflag [#allocation9], 1
  %p1037 = scmp.lt.u32.totalorder 3, 8
  %p1038 = pneg %p1037
  // Predicated region
  $region59: #{network_forward.1} parent=0 // pred_check
    _
  $region60: #{network_forward.1} parent=0 // pred_check_branch
    %1040 = sbr.rel (%p1037) target = $region62
  $region61: #{network_forward.1} parent=0 // pred_region
    %s1055 = sand.u32 3, 7
    %p1056 = scmp.eq.s32.totalorder %s1055, 0
    %p1057 = pneg %p1056
    // Predicated region
    $region74: #{network_forward.1} parent=61 // pred_check
      _
    $region75: #{network_forward.1} parent=61 // pred_check_branch
      %1059 = sbr.rel (%p1056) target = $region77
    $region76: #{network_forward.1} parent=61 // pred_region
      %s1060 = sand.u32 3, 7
      %s1061 = ssub.s32 3, %s1060
      %s1062 = scalar_lea.vmem %s6, %s1061
      %s1063 = ssub.s32 3, %s1060
      %s1064 = scalar_lea.vmem [#allocation4], %s1063
      %s1065 = sshllo.u32 0, %s1060
      loop: start=0, step=1, limit=1
      $region78: #{network_forward.1} parent=76 // loop_pre_header
        _
      $region79: #{network_forward.1} parent=76 // loop_header
        %s1067 = sphi 0, %s1071
        %p1068 = scmp.ge.s32.totalorder %s1067, 1
        %s1072 = sphi %s1062, %s1062
        %s1073 = sphi %s1064, %s1064
      $region80: #{network_forward.1} parent=76 // loop_header_branch
        %1070 = sbr.rel (%p1068) target = $region84
      $region81: #{network_forward.1} parent=76 // loop_body
        %v1074 = vld [vmem:[%s1072] sm:%s1065]
        %1075 = vst [vmem:[%s1073] sm:%s1065] %v1074
      $region82: #{network_forward.1} parent=76 // loop_footer
        %s1071 = sadd.s32 1, %s1067
      $region83: #{network_forward.1} parent=76 // loop_footer_branch
        %1066 = sbr.rel target = $region79
      $region84: #{network_forward.1} parent=76 // loop_exit
        _
    $region77: #{network_forward.1} parent=61 // pred_fallthru
      _
  $region62: #{network_forward.1} parent=0 // pred_fallthru
    _
  // Predicated region
  $region63: #{network_forward.1} parent=0 // pred_check
    %p1041 = pneg %p1037
  $region64: #{network_forward.1} parent=0 // pred_check_branch
    %1043 = sbr.rel (%p1041) target = $region66
  $region65: #{network_forward.1} parent=0 // pred_region
    %s1044 = sshllo.u32 0, 3
    loop: start=0, step=1, limit=1
    $region67: #{network_forward.1} parent=65 // loop_pre_header
      _
    $region68: #{network_forward.1} parent=65 // loop_header
      %s1046 = sphi 0, %s1050
      %p1047 = scmp.ge.s32.totalorder %s1046, 1
      %s1051 = sphi %s6, %s6
      %s1052 = sphi [#allocation4], [#allocation4]
    $region69: #{network_forward.1} parent=65 // loop_header_branch
      %1049 = sbr.rel (%p1047) target = $region73
    $region70: #{network_forward.1} parent=65 // loop_body
      %v1053 = vld [vmem:[%s1051] sm:%s1044]
      %1054 = vst [vmem:[%s1052] sm:%s1044] %v1053
    $region71: #{network_forward.1} parent=65 // loop_footer
      %s1050 = sadd.s32 1, %s1046
    $region72: #{network_forward.1} parent=65 // loop_footer_branch
      %1045 = sbr.rel target = $region68
    $region73: #{network_forward.1} parent=65 // loop_exit
      _
  $region66: #{network_forward.1} parent=0 // pred_fallthru
    _
  // Predicated region
  $region85: #{network_forward.1} parent=0 // pred_check
    _
  $region86: #{network_forward.1} parent=0 // pred_check_branch
    %1078 = sbr.rel (0) target = $region88
  $region87: #{network_forward.1} parent=0 // pred_region
    %1079 = vsyncadd %s1035, 48
  $region88: #{network_forward.1} parent=0 // pred_fallthru
    _
  %s1080 = scalar_lea.sflag [#allocation9], 2
  %p1082 = scmp.lt.u32.totalorder 3, 8
  %p1083 = pneg %p1082
  // Predicated region
  $region89: #{network_forward.1} parent=0 // pred_check
    _
  $region90: #{network_forward.1} parent=0 // pred_check_branch
    %1085 = sbr.rel (%p1082) target = $region92
  $region91: #{network_forward.1} parent=0 // pred_region
    %s1100 = sand.u32 3, 7
    %p1101 = scmp.eq.s32.totalorder %s1100, 0
    %p1102 = pneg %p1101
    // Predicated region
    $region104: #{network_forward.1} parent=91 // pred_check
      _
    $region105: #{network_forward.1} parent=91 // pred_check_branch
      %1104 = sbr.rel (%p1101) target = $region107
    $region106: #{network_forward.1} parent=91 // pred_region
      %s1105 = sand.u32 3, 7
      %s1106 = ssub.s32 3, %s1105
      %s1107 = scalar_lea.vmem %s7, %s1106
      %s1108 = ssub.s32 3, %s1105
      %s1109 = scalar_lea.vmem [#allocation5], %s1108
      %s1110 = sshllo.u32 0, %s1105
      loop: start=0, step=1, limit=1
      $region108: #{network_forward.1} parent=106 // loop_pre_header
        _
      $region109: #{network_forward.1} parent=106 // loop_header
        %s1112 = sphi 0, %s1116
        %p1113 = scmp.ge.s32.totalorder %s1112, 1
        %s1117 = sphi %s1107, %s1107
        %s1118 = sphi %s1109, %s1109
      $region110: #{network_forward.1} parent=106 // loop_header_branch
        %1115 = sbr.rel (%p1113) target = $region114
      $region111: #{network_forward.1} parent=106 // loop_body
        %v1119 = vld [vmem:[%s1117] sm:%s1110]
        %1120 = vst [vmem:[%s1118] sm:%s1110] %v1119
      $region112: #{network_forward.1} parent=106 // loop_footer
        %s1116 = sadd.s32 1, %s1112
      $region113: #{network_forward.1} parent=106 // loop_footer_branch
        %1111 = sbr.rel target = $region109
      $region114: #{network_forward.1} parent=106 // loop_exit
        _
    $region107: #{network_forward.1} parent=91 // pred_fallthru
      _
  $region92: #{network_forward.1} parent=0 // pred_fallthru
    _
  // Predicated region
  $region93: #{network_forward.1} parent=0 // pred_check
    %p1086 = pneg %p1082
  $region94: #{network_forward.1} parent=0 // pred_check_branch
    %1088 = sbr.rel (%p1086) target = $region96
  $region95: #{network_forward.1} parent=0 // pred_region
    %s1089 = sshllo.u32 0, 3
    loop: start=0, step=1, limit=1
    $region97: #{network_forward.1} parent=95 // loop_pre_header
      _
    $region98: #{network_forward.1} parent=95 // loop_header
      %s1091 = sphi 0, %s1095
      %p1092 = scmp.ge.s32.totalorder %s1091, 1
      %s1096 = sphi %s7, %s7
      %s1097 = sphi [#allocation5], [#allocation5]
    $region99: #{network_forward.1} parent=95 // loop_header_branch
      %1094 = sbr.rel (%p1092) target = $region103
    $region100: #{network_forward.1} parent=95 // loop_body
      %v1098 = vld [vmem:[%s1096] sm:%s1089]
      %1099 = vst [vmem:[%s1097] sm:%s1089] %v1098
    $region101: #{network_forward.1} parent=95 // loop_footer
      %s1095 = sadd.s32 1, %s1091
    $region102: #{network_forward.1} parent=95 // loop_footer_branch
      %1090 = sbr.rel target = $region98
    $region103: #{network_forward.1} parent=95 // loop_exit
      _
  $region96: #{network_forward.1} parent=0 // pred_fallthru
    _
  // Predicated region
  $region115: #{network_forward.1} parent=0 // pred_check
    _
  $region116: #{network_forward.1} parent=0 // pred_check_branch
    %1123 = sbr.rel (0) target = $region118
  $region117: #{network_forward.1} parent=0 // pred_region
    %1124 = vsyncadd %s1080, 48
  $region118: #{network_forward.1} parent=0 // pred_fallthru
    _
  %s1125 = scalar_lea.sflag [#allocation9], 3
  %p1127 = scmp.lt.u32.totalorder 3, 8
  %p1128 = pneg %p1127
  // Predicated region
  $region119: #{network_forward.1} parent=0 // pred_check
    _
  $region120: #{network_forward.1} parent=0 // pred_check_branch
    %1130 = sbr.rel (%p1127) target = $region122
  $region121: #{network_forward.1} parent=0 // pred_region
    %s1145 = sand.u32 3, 7
    %p1146 = scmp.eq.s32.totalorder %s1145, 0
    %p1147 = pneg %p1146
    // Predicated region
    $region134: #{network_forward.1} parent=121 // pred_check
      _
    $region135: #{network_forward.1} parent=121 // pred_check_branch
      %1149 = sbr.rel (%p1146) target = $region137
    $region136: #{network_forward.1} parent=121 // pred_region
      %s1150 = sand.u32 3, 7
      %s1151 = ssub.s32 3, %s1150
      %s1152 = scalar_lea.vmem %s8, %s1151
      %s1153 = ssub.s32 3, %s1150
      %s1154 = scalar_lea.vmem [#allocation6], %s1153
      %s1155 = sshllo.u32 0, %s1150
      loop: start=0, step=1, limit=1
      $region138: #{network_forward.1} parent=136 // loop_pre_header
        _
      $region139: #{network_forward.1} parent=136 // loop_header
        %s1157 = sphi 0, %s1161
        %p1158 = scmp.ge.s32.totalorder %s1157, 1
        %s1162 = sphi %s1152, %s1152
        %s1163 = sphi %s1154, %s1154
      $region140: #{network_forward.1} parent=136 // loop_header_branch
        %1160 = sbr.rel (%p1158) target = $region144
      $region141: #{network_forward.1} parent=136 // loop_body
        %v1164 = vld [vmem:[%s1162] sm:%s1155]
        %1165 = vst [vmem:[%s1163] sm:%s1155] %v1164
      $region142: #{network_forward.1} parent=136 // loop_footer
        %s1161 = sadd.s32 1, %s1157
      $region143: #{network_forward.1} parent=136 // loop_footer_branch
        %1156 = sbr.rel target = $region139
      $region144: #{network_forward.1} parent=136 // loop_exit
        _
    $region137: #{network_forward.1} parent=121 // pred_fallthru
      _
  $region122: #{network_forward.1} parent=0 // pred_fallthru
    _
  // Predicated region
  $region123: #{network_forward.1} parent=0 // pred_check
    %p1131 = pneg %p1127
  $region124: #{network_forward.1} parent=0 // pred_check_branch
    %1133 = sbr.rel (%p1131) target = $region126
  $region125: #{network_forward.1} parent=0 // pred_region
    %s1134 = sshllo.u32 0, 3
    loop: start=0, step=1, limit=1
    $region127: #{network_forward.1} parent=125 // loop_pre_header
      _
    $region128: #{network_forward.1} parent=125 // loop_header
      %s1136 = sphi 0, %s1140
      %p1137 = scmp.ge.s32.totalorder %s1136, 1
      %s1141 = sphi %s8, %s8
      %s1142 = sphi [#allocation6], [#allocation6]
    $region129: #{network_forward.1} parent=125 // loop_header_branch
      %1139 = sbr.rel (%p1137) target = $region133
    $region130: #{network_forward.1} parent=125 // loop_body
      %v1143 = vld [vmem:[%s1141] sm:%s1134]
      %1144 = vst [vmem:[%s1142] sm:%s1134] %v1143
    $region131: #{network_forward.1} parent=125 // loop_footer
      %s1140 = sadd.s32 1, %s1136
    $region132: #{network_forward.1} parent=125 // loop_footer_branch
      %1135 = sbr.rel target = $region128
    $region133: #{network_forward.1} parent=125 // loop_exit
      _
  $region126: #{network_forward.1} parent=0 // pred_fallthru
    _
  // Predicated region
  $region145: #{network_forward.1} parent=0 // pred_check
    _
  $region146: #{network_forward.1} parent=0 // pred_check_branch
    %1168 = sbr.rel (0) target = $region148
  $region147: #{network_forward.1} parent=0 // pred_region
    %1169 = vsyncadd %s1125, 48
  $region148: #{network_forward.1} parent=0 // pred_fallthru
    _
  %s1170 = scalar_lea.sflag [#allocation9], 4
  %p1172 = scmp.lt.u32.totalorder 192, 8
  %p1173 = pneg %p1172
  // Predicated region
  $region149: #{network_forward.1} parent=0 // pred_check
    _
  $region150: #{network_forward.1} parent=0 // pred_check_branch
    %1175 = sbr.rel (%p1172) target = $region152
  $region151: #{network_forward.1} parent=0 // pred_region
    %s1190 = sand.u32 192, 7
    %p1191 = scmp.eq.s32.totalorder %s1190, 0
    // Predicated region
    $region164: #{network_forward.1} parent=151 // pred_check
      %p1192 = pneg %p1191
    $region165: #{network_forward.1} parent=151 // pred_check_branch
      %1194 = sbr.rel (%p1192) target = $region167
    $region166: #{network_forward.1} parent=151 // pred_region
      loop: start=0, step=1, limit=1
      $region168: #{network_forward.1} parent=166 // loop_pre_header
        _
      $region169: #{network_forward.1} parent=166 // loop_header
        %s1196 = sphi 0, %s1200
        %p1197 = scmp.ge.s32.totalorder %s1196, 1
        %s1201 = sphi %s9, %s9
        %s1202 = sphi [#allocation7], [#allocation7]
      $region170: #{network_forward.1} parent=166 // loop_header_branch
        %1199 = sbr.rel (%p1197) target = $region174
      $region171: #{network_forward.1} parent=166 // loop_body
        %v1203 = vld [vmem:[%s1201] sm:$0xff]
        %1204 = vst [vmem:[%s1202] sm:$0xff] %v1203
        %v1205 = vld [vmem:[%s1201 + $0x8] sm:$0xff]
        %1206 = vst [vmem:[%s1202 + $0x8] sm:$0xff] %v1205
        %v1207 = vld [vmem:[%s1201 + $0x10] sm:$0xff]
        %1208 = vst [vmem:[%s1202 + $0x10] sm:$0xff] %v1207
        %v1209 = vld [vmem:[%s1201 + $0x18] sm:$0xff]
        %1210 = vst [vmem:[%s1202 + $0x18] sm:$0xff] %v1209
        %v1211 = vld [vmem:[%s1201 + $0x20] sm:$0xff]
        %1212 = vst [vmem:[%s1202 + $0x20] sm:$0xff] %v1211
        %v1213 = vld [vmem:[%s1201 + $0x28] sm:$0xff]
        %1214 = vst [vmem:[%s1202 + $0x28] sm:$0xff] %v1213
        %v1215 = vld [vmem:[%s1201 + $0x30] sm:$0xff]
        %1216 = vst [vmem:[%s1202 + $0x30] sm:$0xff] %v1215
        %v1217 = vld [vmem:[%s1201 + $0x38] sm:$0xff]
        %1218 = vst [vmem:[%s1202 + $0x38] sm:$0xff] %v1217
        %v1219 = vld [vmem:[%s1201 + $0x40] sm:$0xff]
        %1220 = vst [vmem:[%s1202 + $0x40] sm:$0xff] %v1219
        %v1221 = vld [vmem:[%s1201 + $0x48] sm:$0xff]
        %1222 = vst [vmem:[%s1202 + $0x48] sm:$0xff] %v1221
        %v1223 = vld [vmem:[%s1201 + $0x50] sm:$0xff]
        %1224 = vst [vmem:[%s1202 + $0x50] sm:$0xff] %v1223
        %v1225 = vld [vmem:[%s1201 + $0x58] sm:$0xff]
        %1226 = vst [vmem:[%s1202 + $0x58] sm:$0xff] %v1225
        %v1227 = vld [vmem:[%s1201 + $0x60] sm:$0xff]
        %1228 = vst [vmem:[%s1202 + $0x60] sm:$0xff] %v1227
        %v1229 = vld [vmem:[%s1201 + $0x68] sm:$0xff]
        %1230 = vst [vmem:[%s1202 + $0x68] sm:$0xff] %v1229
        %v1231 = vld [vmem:[%s1201 + $0x70] sm:$0xff]
        %1232 = vst [vmem:[%s1202 + $0x70] sm:$0xff] %v1231
        %v1233 = vld [vmem:[%s1201 + $0x78] sm:$0xff]
        %1234 = vst [vmem:[%s1202 + $0x78] sm:$0xff] %v1233
        %v1235 = vld [vmem:[%s1201 + $0x80] sm:$0xff]
        %1236 = vst [vmem:[%s1202 + $0x80] sm:$0xff] %v1235
        %v1237 = vld [vmem:[%s1201 + $0x88] sm:$0xff]
        %1238 = vst [vmem:[%s1202 + $0x88] sm:$0xff] %v1237
        %v1239 = vld [vmem:[%s1201 + $0x90] sm:$0xff]
        %1240 = vst [vmem:[%s1202 + $0x90] sm:$0xff] %v1239
        %v1241 = vld [vmem:[%s1201 + $0x98] sm:$0xff]
        %1242 = vst [vmem:[%s1202 + $0x98] sm:$0xff] %v1241
        %v1243 = vld [vmem:[%s1201 + $0xa0] sm:$0xff]
        %1244 = vst [vmem:[%s1202 + $0xa0] sm:$0xff] %v1243
        %v1245 = vld [vmem:[%s1201 + $0xa8] sm:$0xff]
        %1246 = vst [vmem:[%s1202 + $0xa8] sm:$0xff] %v1245
        %v1247 = vld [vmem:[%s1201 + $0xb0] sm:$0xff]
        %1248 = vst [vmem:[%s1202 + $0xb0] sm:$0xff] %v1247
        %v1249 = vld [vmem:[%s1201 + $0xb8] sm:$0xff]
        %1250 = vst [vmem:[%s1202 + $0xb8] sm:$0xff] %v1249
      $region172: #{network_forward.1} parent=166 // loop_footer
        %s1200 = sadd.s32 1, %s1196
      $region173: #{network_forward.1} parent=166 // loop_footer_branch
        %1195 = sbr.rel target = $region169
      $region174: #{network_forward.1} parent=166 // loop_exit
        _
    $region167: #{network_forward.1} parent=151 // pred_fallthru
      _
    %p1251 = pneg %p1191
    // Predicated region
    $region175: #{network_forward.1} parent=151 // pred_check
      _
    $region176: #{network_forward.1} parent=151 // pred_check_branch
      %1253 = sbr.rel (%p1191) target = $region178
    $region177: #{network_forward.1} parent=151 // pred_region
      %s1254 = sand.u32 192, 7
    $region178: #{network_forward.1} parent=151 // pred_fallthru
      _
  $region152: #{network_forward.1} parent=0 // pred_fallthru
    _
  // Predicated region
  $region153: #{network_forward.1} parent=0 // pred_check
    %p1176 = pneg %p1172
  $region154: #{network_forward.1} parent=0 // pred_check_branch
    %1178 = sbr.rel (%p1176) target = $region156
  $region155: #{network_forward.1} parent=0 // pred_region
    %s1179 = sshllo.u32 0, 192
    loop: start=0, step=1, limit=1
    $region157: #{network_forward.1} parent=155 // loop_pre_header
      _
    $region158: #{network_forward.1} parent=155 // loop_header
      %s1181 = sphi 0, %s1185
      %p1182 = scmp.ge.s32.totalorder %s1181, 1
      %s1186 = sphi %s9, %s9
      %s1187 = sphi [#allocation7], [#allocation7]
    $region159: #{network_forward.1} parent=155 // loop_header_branch
      %1184 = sbr.rel (%p1182) target = $region163
    $region160: #{network_forward.1} parent=155 // loop_body
      %v1188 = vld [vmem:[%s1186] sm:%s1179]
      %1189 = vst [vmem:[%s1187] sm:%s1179] %v1188
    $region161: #{network_forward.1} parent=155 // loop_footer
      %s1185 = sadd.s32 1, %s1181
    $region162: #{network_forward.1} parent=155 // loop_footer_branch
      %1180 = sbr.rel target = $region158
    $region163: #{network_forward.1} parent=155 // loop_exit
      _
  $region156: #{network_forward.1} parent=0 // pred_fallthru
    _
  // Predicated region
  $region179: #{network_forward.1} parent=0 // pred_check
    _
  $region180: #{network_forward.1} parent=0 // pred_check_branch
    %1257 = sbr.rel (0) target = $region182
  $region181: #{network_forward.1} parent=0 // pred_region
    %1258 = vsyncadd %s1170, 3072
  $region182: #{network_forward.1} parent=0 // pred_fallthru
    _
  %s1259 = scalar_lea.sflag [#allocation9], 5
  %p1261 = scmp.lt.u32.totalorder 1, 8
  %p1262 = pneg %p1261
  // Predicated region
  $region183: #{network_forward.1} parent=0 // pred_check
    _
  $region184: #{network_forward.1} parent=0 // pred_check_branch
    %1264 = sbr.rel (%p1261) target = $region186
  $region185: #{network_forward.1} parent=0 // pred_region
    %s1279 = sand.u32 1, 7
    %p1280 = scmp.eq.s32.totalorder %s1279, 0
    %p1281 = pneg %p1280
    // Predicated region
    $region198: #{network_forward.1} parent=185 // pred_check
      _
    $region199: #{network_forward.1} parent=185 // pred_check_branch
      %1283 = sbr.rel (%p1280) target = $region201
    $region200: #{network_forward.1} parent=185 // pred_region
      %s1284 = sand.u32 1, 7
      %s1285 = ssub.s32 1, %s1284
      %s1286 = scalar_lea.vmem %s10, %s1285
      %s1287 = ssub.s32 1, %s1284
      %s1288 = scalar_lea.vmem [#allocation8], %s1287
      %s1289 = sshllo.u32 0, %s1284
      loop: start=0, step=1, limit=1
      $region202: #{network_forward.1} parent=200 // loop_pre_header
        _
      $region203: #{network_forward.1} parent=200 // loop_header
        %s1291 = sphi 0, %s1295
        %p1292 = scmp.ge.s32.totalorder %s1291, 1
        %s1296 = sphi %s1286, %s1286
        %s1297 = sphi %s1288, %s1288
      $region204: #{network_forward.1} parent=200 // loop_header_branch
        %1294 = sbr.rel (%p1292) target = $region208
      $region205: #{network_forward.1} parent=200 // loop_body
        %v1298 = vld [vmem:[%s1296] sm:%s1289]
        %1299 = vst [vmem:[%s1297] sm:%s1289] %v1298
      $region206: #{network_forward.1} parent=200 // loop_footer
        %s1295 = sadd.s32 1, %s1291
      $region207: #{network_forward.1} parent=200 // loop_footer_branch
        %1290 = sbr.rel target = $region203
      $region208: #{network_forward.1} parent=200 // loop_exit
        _
    $region201: #{network_forward.1} parent=185 // pred_fallthru
      _
  $region186: #{network_forward.1} parent=0 // pred_fallthru
    _
  // Predicated region
  $region187: #{network_forward.1} parent=0 // pred_check
    %p1265 = pneg %p1261
  $region188: #{network_forward.1} parent=0 // pred_check_branch
    %1267 = sbr.rel (%p1265) target = $region190
  $region189: #{network_forward.1} parent=0 // pred_region
    %s1268 = sshllo.u32 0, 1
    loop: start=0, step=1, limit=1
    $region191: #{network_forward.1} parent=189 // loop_pre_header
      _
    $region192: #{network_forward.1} parent=189 // loop_header
      %s1270 = sphi 0, %s1274
      %p1271 = scmp.ge.s32.totalorder %s1270, 1
      %s1275 = sphi %s10, %s10
      %s1276 = sphi [#allocation8], [#allocation8]
    $region193: #{network_forward.1} parent=189 // loop_header_branch
      %1273 = sbr.rel (%p1271) target = $region197
    $region194: #{network_forward.1} parent=189 // loop_body
      %v1277 = vld [vmem:[%s1275] sm:%s1268]
      %1278 = vst [vmem:[%s1276] sm:%s1268] %v1277
    $region195: #{network_forward.1} parent=189 // loop_footer
      %s1274 = sadd.s32 1, %s1270
    $region196: #{network_forward.1} parent=189 // loop_footer_branch
      %1269 = sbr.rel target = $region192
    $region197: #{network_forward.1} parent=189 // loop_exit
      _
  $region190: #{network_forward.1} parent=0 // pred_fallthru
    _
  // Predicated region
  $region209: #{network_forward.1} parent=0 // pred_check
    _
  $region210: #{network_forward.1} parent=0 // pred_check_branch
    %1302 = sbr.rel (0) target = $region212
  $region211: #{network_forward.1} parent=0 // pred_region
    %1303 = vsyncadd %s1259, 16
  $region212: #{network_forward.1} parent=0 // pred_fallthru
    _
  %vm1304 = vcmask 1047680
  %1305 = vst.msk [vmem:[#allocation2 + $0x18] sm:$0xff] %vm1304, 0
  %1306 = vst.msk [vmem:[#allocation2 + $0x38] sm:$0xff] %vm1304, 0
  %1307 = vst.msk [vmem:[#allocation2 + $0x58] sm:$0xff] %vm1304, 0
  %1308 = vst.msk [vmem:[#allocation2 + $0x78] sm:$0xff] %vm1304, 0
  %1309 = vst.msk [vmem:[#allocation2 + $0x98] sm:$0xff] %vm1304, 0
  %1310 = vst.msk [vmem:[#allocation2 + $0xb8] sm:$0xff] %vm1304, 0
  %1311 = vst.msk [vmem:[#allocation2 + $0xd8] sm:$0xff] %vm1304, 0
  %1312 = vst.msk [vmem:[#allocation2 + $0xf8] sm:$0xff] %vm1304, 0
  %1313 = vst.msk [vmem:[#allocation2 + $0x118] sm:$0xff] %vm1304, 0
  %1314 = vst.msk [vmem:[#allocation2 + $0x138] sm:$0xff] %vm1304, 0
  %1315 = vst.msk [vmem:[#allocation2 + $0x158] sm:$0xff] %vm1304, 0
  %1316 = vst.msk [vmem:[#allocation2 + $0x178] sm:$0xff] %vm1304, 0
  %1317 = vst.msk [vmem:[#allocation2 + $0x198] sm:$0xff] %vm1304, 0
  %1318 = vst.msk [vmem:[#allocation2 + $0x1b8] sm:$0xff] %vm1304, 0
  %1319 = vst.msk [vmem:[#allocation2 + $0x1d8] sm:$0xff] %vm1304, 0
  %1320 = vst.msk [vmem:[#allocation2 + $0x1f8] sm:$0xff] %vm1304, 0
  %v1321 = vld [vmem:[%s0] sm:$0xff]
  %v1322 = vld [vmem:[%s0 + $0x8] sm:$0xff]
  %v1323 = vld [vmem:[%s0 + $0x10] sm:$0xff]
  %v1324 = vld [vmem:[%s0 + $0x18] sm:$0xff]
  %v1325 = vld [vmem:[%s0 + $0x20] sm:$0xff]
  %v1326 = vld [vmem:[%s0 + $0x28] sm:$0xff]
  %v1327 = vld [vmem:[%s0 + $0x30] sm:$0xff]
  %v1328 = vld [vmem:[%s0 + $0x38] sm:$0xff]
  %v1329 = vld [vmem:[%s0 + $0x40] sm:$0xff]
  %v1330 = vld [vmem:[%s0 + $0x48] sm:$0xff]
  %v1331 = vld [vmem:[%s0 + $0x50] sm:$0xff]
  %v1332 = vld [vmem:[%s0 + $0x58] sm:$0xff]
  %v1333 = vld [vmem:[%s0 + $0x60] sm:$0xff]
  %v1334 = vld [vmem:[%s0 + $0x68] sm:$0xff]
  %v1335 = vld [vmem:[%s0 + $0x70] sm:$0xff]
  %v1336 = vld [vmem:[%s0 + $0x78] sm:$0xff]
  %v1337 = vld [vmem:[%s0 + $0x80] sm:$0xff]
  %v1338 = vld [vmem:[%s0 + $0x88] sm:$0xff]
  %v1339 = vld [vmem:[%s0 + $0x90] sm:$0xff]
  %v1340 = vld [vmem:[%s0 + $0x98] sm:$0xff]
  %v1341 = vld [vmem:[%s0 + $0xa0] sm:$0xff]
  %v1342 = vld [vmem:[%s0 + $0xa8] sm:$0xff]
  %v1343 = vld [vmem:[%s0 + $0xb0] sm:$0xff]
  %v1344 = vld [vmem:[%s0 + $0xb8] sm:$0xff]
  %v1345 = vld [vmem:[%s0 + $0xc0] sm:$0xff]
  %v1346 = vld [vmem:[%s0 + $0xc8] sm:$0xff]
  %v1347 = vld [vmem:[%s0 + $0xd0] sm:$0xff]
  %v1348 = vld [vmem:[%s0 + $0xd8] sm:$0xff]
  %v1349 = vld [vmem:[%s0 + $0xe0] sm:$0xff]
  %v1350 = vld [vmem:[%s0 + $0xe8] sm:$0xff]
  %v1351 = vld [vmem:[%s0 + $0xf0] sm:$0xff]
  %v1352 = vld [vmem:[%s0 + $0xf8] sm:$0xff]
  %v1353 = vld [vmem:[%s0 + $0x100] sm:$0xff]
  %v1354 = vld [vmem:[%s0 + $0x108] sm:$0xff]
  %v1355 = vld [vmem:[%s0 + $0x110] sm:$0xff]
  %v1356 = vld [vmem:[%s0 + $0x118] sm:$0xff]
  %v1357 = vld [vmem:[%s0 + $0x120] sm:$0xff]
  %v1358 = vld [vmem:[%s0 + $0x128] sm:$0xff]
  %v1359 = vld [vmem:[%s0 + $0x130] sm:$0xff]
  %v1360 = vld [vmem:[%s0 + $0x138] sm:$0xff]
  %v1361 = vld [vmem:[%s0 + $0x140] sm:$0xff]
  %v1362 = vld [vmem:[%s0 + $0x148] sm:$0xff]
  %v1363 = vld [vmem:[%s0 + $0x150] sm:$0xff]
  %v1364 = vld [vmem:[%s0 + $0x158] sm:$0xff]
  %v1365 = vld [vmem:[%s0 + $0x160] sm:$0xff]
  %v1366 = vld [vmem:[%s0 + $0x168] sm:$0xff]
  %v1367 = vld [vmem:[%s0 + $0x170] sm:$0xff]
  %v1368 = vld [vmem:[%s0 + $0x178] sm:$0xff]
  %v1369 = vld [vmem:[%s0 + $0x180] sm:$0xff]
  %v1370 = vld [vmem:[%s0 + $0x188] sm:$0xff]
  %v1371 = vld [vmem:[%s0 + $0x190] sm:$0xff]
  %v1372 = vld [vmem:[%s0 + $0x198] sm:$0xff]
  %v1373 = vld [vmem:[%s0 + $0x1a0] sm:$0xff]
  %v1374 = vld [vmem:[%s0 + $0x1a8] sm:$0xff]
  %v1375 = vld [vmem:[%s0 + $0x1b0] sm:$0xff]
  %v1376 = vld [vmem:[%s0 + $0x1b8] sm:$0xff]
  %v1377 = vld [vmem:[%s0 + $0x1c0] sm:$0xff]
  %v1378 = vld [vmem:[%s0 + $0x1c8] sm:$0xff]
  %v1379 = vld [vmem:[%s0 + $0x1d0] sm:$0xff]
  %v1380 = vld [vmem:[%s0 + $0x1d8] sm:$0xff]
  %v1381 = vld [vmem:[%s0 + $0x1e0] sm:$0xff]
  %v1382 = vld [vmem:[%s0 + $0x1e8] sm:$0xff]
  %v1383 = vld [vmem:[%s0 + $0x1f0] sm:$0xff]
  %v1384 = vld [vmem:[%s0 + $0x1f8] sm:$0xff]
  %v1385 = vld [vmem:[%s0 + $0x200] sm:$0xff]
  %v1386 = vld [vmem:[%s0 + $0x208] sm:$0xff]
  %v1387 = vld [vmem:[%s0 + $0x210] sm:$0xff]
  %v1388 = vld [vmem:[%s0 + $0x218] sm:$0xff]
  %v1389 = vld [vmem:[%s0 + $0x220] sm:$0xff]
  %v1390 = vld [vmem:[%s0 + $0x228] sm:$0xff]
  %v1391 = vld [vmem:[%s0 + $0x230] sm:$0xff]
  %v1392 = vld [vmem:[%s0 + $0x238] sm:$0xff]
  %v1393 = vld [vmem:[%s0 + $0x240] sm:$0xff]
  %v1394 = vld [vmem:[%s0 + $0x248] sm:$0xff]
  %v1395 = vld [vmem:[%s0 + $0x250] sm:$0xff]
  %v1396 = vld [vmem:[%s0 + $0x258] sm:$0xff]
  %v1397 = vld [vmem:[%s0 + $0x260] sm:$0xff]
  %v1398 = vld [vmem:[%s0 + $0x268] sm:$0xff]
  %v1399 = vld [vmem:[%s0 + $0x270] sm:$0xff]
  %v1400 = vld [vmem:[%s0 + $0x278] sm:$0xff]
  %v1401 = vld [vmem:[%s0 + $0x280] sm:$0xff]
  %v1402 = vld [vmem:[%s0 + $0x288] sm:$0xff]
  %v1403 = vld [vmem:[%s0 + $0x290] sm:$0xff]
  %v1404 = vld [vmem:[%s0 + $0x298] sm:$0xff]
  %v1405 = vld [vmem:[%s0 + $0x2a0] sm:$0xff]
  %v1406 = vld [vmem:[%s0 + $0x2a8] sm:$0xff]
  %v1407 = vld [vmem:[%s0 + $0x2b0] sm:$0xff]
  %v1408 = vld [vmem:[%s0 + $0x2b8] sm:$0xff]
  %v1409 = vld [vmem:[%s0 + $0x2c0] sm:$0xff]
  %v1410 = vld [vmem:[%s0 + $0x2c8] sm:$0xff]
  %v1411 = vld [vmem:[%s0 + $0x2d0] sm:$0xff]
  %v1412 = vld [vmem:[%s0 + $0x2d8] sm:$0xff]
  %v1413 = vld [vmem:[%s0 + $0x2e0] sm:$0xff]
  %v1414 = vld [vmem:[%s0 + $0x2e8] sm:$0xff]
  %v1415 = vld [vmem:[%s0 + $0x2f0] sm:$0xff]
  %v1416 = vld [vmem:[%s0 + $0x2f8] sm:$0xff]
  %v1417 = vld [vmem:[%s0 + $0x300] sm:$0xff]
  %v1418 = vld [vmem:[%s0 + $0x308] sm:$0xff]
  %v1419 = vld [vmem:[%s0 + $0x310] sm:$0xff]
  %v1420 = vld [vmem:[%s0 + $0x318] sm:$0xff]
  %v1421 = vld [vmem:[%s0 + $0x320] sm:$0xff]
  %v1422 = vld [vmem:[%s0 + $0x328] sm:$0xff]
  %v1423 = vld [vmem:[%s0 + $0x330] sm:$0xff]
  %v1424 = vld [vmem:[%s0 + $0x338] sm:$0xff]
  %v1425 = vld [vmem:[%s0 + $0x340] sm:$0xff]
  %v1426 = vld [vmem:[%s0 + $0x348] sm:$0xff]
  %v1427 = vld [vmem:[%s0 + $0x350] sm:$0xff]
  %v1428 = vld [vmem:[%s0 + $0x358] sm:$0xff]
  %v1429 = vld [vmem:[%s0 + $0x360] sm:$0xff]
  %v1430 = vld [vmem:[%s0 + $0x368] sm:$0xff]
  %v1431 = vld [vmem:[%s0 + $0x370] sm:$0xff]
  %v1432 = vld [vmem:[%s0 + $0x378] sm:$0xff]
  %v1433 = vld [vmem:[%s0 + $0x380] sm:$0xff]
  %v1434 = vld [vmem:[%s0 + $0x388] sm:$0xff]
  %v1435 = vld [vmem:[%s0 + $0x390] sm:$0xff]
  %v1436 = vld [vmem:[%s0 + $0x398] sm:$0xff]
  %v1437 = vld [vmem:[%s0 + $0x3a0] sm:$0xff]
  %v1438 = vld [vmem:[%s0 + $0x3a8] sm:$0xff]
  %v1439 = vld [vmem:[%s0 + $0x3b0] sm:$0xff]
  %v1440 = vld [vmem:[%s0 + $0x3b8] sm:$0xff]
  %v1441 = vld [vmem:[%s0 + $0x3c0] sm:$0xff]
  %v1442 = vld [vmem:[%s0 + $0x3c8] sm:$0xff]
  %v1443 = vld [vmem:[%s0 + $0x3d0] sm:$0xff]
  %v1444 = vld [vmem:[%s0 + $0x3d8] sm:$0xff]
  %v1445 = vld [vmem:[%s0 + $0x3e0] sm:$0xff]
  %v1446 = vld [vmem:[%s0 + $0x3e8] sm:$0xff]
  %v1447 = vld [vmem:[%s0 + $0x3f0] sm:$0xff]
  %v1448 = vld [vmem:[%s0 + $0x3f8] sm:$0xff]
  %v1449 = vpack.c.bf16 %v1325, %v1321
  %v1450 = vpack.c.bf16 %v1326, %v1322
  %v1451 = vpack.c.bf16 %v1327, %v1323
  %v1452 = vpack.c.bf16 %v1328, %v1324
  %v1453 = vpack.c.bf16 %v1333, %v1329
  %v1454 = vpack.c.bf16 %v1334, %v1330
  %v1455 = vpack.c.bf16 %v1335, %v1331
  %v1456 = vpack.c.bf16 %v1336, %v1332
  %v1457 = vpack.c.bf16 %v1341, %v1337
  %v1458 = vpack.c.bf16 %v1342, %v1338
  %v1459 = vpack.c.bf16 %v1343, %v1339
  %v1460 = vpack.c.bf16 %v1344, %v1340
  %v1461 = vpack.c.bf16 %v1349, %v1345
  %v1462 = vpack.c.bf16 %v1350, %v1346
  %v1463 = vpack.c.bf16 %v1351, %v1347
  %v1464 = vpack.c.bf16 %v1352, %v1348
  %v1465 = vpack.c.bf16 %v1357, %v1353
  %v1466 = vpack.c.bf16 %v1358, %v1354
  %v1467 = vpack.c.bf16 %v1359, %v1355
  %v1468 = vpack.c.bf16 %v1360, %v1356
  %v1469 = vpack.c.bf16 %v1365, %v1361
  %v1470 = vpack.c.bf16 %v1366, %v1362
  %v1471 = vpack.c.bf16 %v1367, %v1363
  %v1472 = vpack.c.bf16 %v1368, %v1364
  %v1473 = vpack.c.bf16 %v1373, %v1369
  %v1474 = vpack.c.bf16 %v1374, %v1370
  %v1475 = vpack.c.bf16 %v1375, %v1371
  %v1476 = vpack.c.bf16 %v1376, %v1372
  %v1477 = vpack.c.bf16 %v1381, %v1377
  %v1478 = vpack.c.bf16 %v1382, %v1378
  %v1479 = vpack.c.bf16 %v1383, %v1379
  %v1480 = vpack.c.bf16 %v1384, %v1380
  %v1481 = vpack.c.bf16 %v1389, %v1385
  %v1482 = vpack.c.bf16 %v1390, %v1386
  %v1483 = vpack.c.bf16 %v1391, %v1387
  %v1484 = vpack.c.bf16 %v1392, %v1388
  %v1485 = vpack.c.bf16 %v1397, %v1393
  %v1486 = vpack.c.bf16 %v1398, %v1394
  %v1487 = vpack.c.bf16 %v1399, %v1395
  %v1488 = vpack.c.bf16 %v1400, %v1396
  %v1489 = vpack.c.bf16 %v1405, %v1401
  %v1490 = vpack.c.bf16 %v1406, %v1402
  %v1491 = vpack.c.bf16 %v1407, %v1403
  %v1492 = vpack.c.bf16 %v1408, %v1404
  %v1493 = vpack.c.bf16 %v1413, %v1409
  %v1494 = vpack.c.bf16 %v1414, %v1410
  %v1495 = vpack.c.bf16 %v1415, %v1411
  %v1496 = vpack.c.bf16 %v1416, %v1412
  %v1497 = vpack.c.bf16 %v1421, %v1417
  %v1498 = vpack.c.bf16 %v1422, %v1418
  %v1499 = vpack.c.bf16 %v1423, %v1419
  %v1500 = vpack.c.bf16 %v1424, %v1420
  %v1501 = vpack.c.bf16 %v1429, %v1425
  %v1502 = vpack.c.bf16 %v1430, %v1426
  %v1503 = vpack.c.bf16 %v1431, %v1427
  %v1504 = vpack.c.bf16 %v1432, %v1428
  %v1505 = vpack.c.bf16 %v1437, %v1433
  %v1506 = vpack.c.bf16 %v1438, %v1434
  %v1507 = vpack.c.bf16 %v1439, %v1435
  %v1508 = vpack.c.bf16 %v1440, %v1436
  %v1509 = vpack.c.bf16 %v1445, %v1441
  %v1510 = vpack.c.bf16 %v1446, %v1442
  %v1511 = vpack.c.bf16 %v1447, %v1443
  %v1512 = vpack.c.bf16 %v1448, %v1444
  %1513 = vst [vmem:[#allocation2] sm:$0xff] %v1449
  %1514 = vst [vmem:[#allocation2 + $0x8] sm:$0xff] %v1450
  %1515 = vst [vmem:[#allocation2 + $0x10] sm:$0xff] %v1451
  %vm1516 = vcmask 130048
  %1517 = vst.msk [vmem:[#allocation2 + $0x18] sm:$0xff] %vm1516, %v1452
  %1518 = vst [vmem:[#allocation2 + $0x20] sm:$0xff] %v1453
  %1519 = vst [vmem:[#allocation2 + $0x28] sm:$0xff] %v1454
  %1520 = vst [vmem:[#allocation2 + $0x30] sm:$0xff] %v1455
  %1521 = vst.msk [vmem:[#allocation2 + $0x38] sm:$0xff] %vm1516, %v1456
  %1522 = vst [vmem:[#allocation2 + $0x40] sm:$0xff] %v1457
  %1523 = vst [vmem:[#allocation2 + $0x48] sm:$0xff] %v1458
  %1524 = vst [vmem:[#allocation2 + $0x50] sm:$0xff] %v1459
  %1525 = vst.msk [vmem:[#allocation2 + $0x58] sm:$0xff] %vm1516, %v1460
  %1526 = vst [vmem:[#allocation2 + $0x60] sm:$0xff] %v1461
  %1527 = vst [vmem:[#allocation2 + $0x68] sm:$0xff] %v1462
  %1528 = vst [vmem:[#allocation2 + $0x70] sm:$0xff] %v1463
  %1529 = vst.msk [vmem:[#allocation2 + $0x78] sm:$0xff] %vm1516, %v1464
  %1530 = vst [vmem:[#allocation2 + $0x80] sm:$0xff] %v1465
  %1531 = vst [vmem:[#allocation2 + $0x88] sm:$0xff] %v1466
  %1532 = vst [vmem:[#allocation2 + $0x90] sm:$0xff] %v1467
  %1533 = vst.msk [vmem:[#allocation2 + $0x98] sm:$0xff] %vm1516, %v1468
  %1534 = vst [vmem:[#allocation2 + $0xa0] sm:$0xff] %v1469
  %1535 = vst [vmem:[#allocation2 + $0xa8] sm:$0xff] %v1470
  %1536 = vst [vmem:[#allocation2 + $0xb0] sm:$0xff] %v1471
  %1537 = vst.msk [vmem:[#allocation2 + $0xb8] sm:$0xff] %vm1516, %v1472
  %1538 = vst [vmem:[#allocation2 + $0xc0] sm:$0xff] %v1473
  %1539 = vst [vmem:[#allocation2 + $0xc8] sm:$0xff] %v1474
  %1540 = vst [vmem:[#allocation2 + $0xd0] sm:$0xff] %v1475
  %1541 = vst.msk [vmem:[#allocation2 + $0xd8] sm:$0xff] %vm1516, %v1476
  %1542 = vst [vmem:[#allocation2 + $0xe0] sm:$0xff] %v1477
  %1543 = vst [vmem:[#allocation2 + $0xe8] sm:$0xff] %v1478
  %1544 = vst [vmem:[#allocation2 + $0xf0] sm:$0xff] %v1479
  %1545 = vst.msk [vmem:[#allocation2 + $0xf8] sm:$0xff] %vm1516, %v1480
  %1546 = vst [vmem:[#allocation2 + $0x100] sm:$0xff] %v1481
  %1547 = vst [vmem:[#allocation2 + $0x108] sm:$0xff] %v1482
  %1548 = vst [vmem:[#allocation2 + $0x110] sm:$0xff] %v1483
  %1549 = vst.msk [vmem:[#allocation2 + $0x118] sm:$0xff] %vm1516, %v1484
  %1550 = vst [vmem:[#allocation2 + $0x120] sm:$0xff] %v1485
  %1551 = vst [vmem:[#allocation2 + $0x128] sm:$0xff] %v1486
  %1552 = vst [vmem:[#allocation2 + $0x130] sm:$0xff] %v1487
  %1553 = vst.msk [vmem:[#allocation2 + $0x138] sm:$0xff] %vm1516, %v1488
  %1554 = vst [vmem:[#allocation2 + $0x140] sm:$0xff] %v1489
  %1555 = vst [vmem:[#allocation2 + $0x148] sm:$0xff] %v1490
  %1556 = vst [vmem:[#allocation2 + $0x150] sm:$0xff] %v1491
  %1557 = vst.msk [vmem:[#allocation2 + $0x158] sm:$0xff] %vm1516, %v1492
  %1558 = vst [vmem:[#allocation2 + $0x160] sm:$0xff] %v1493
  %1559 = vst [vmem:[#allocation2 + $0x168] sm:$0xff] %v1494
  %1560 = vst [vmem:[#allocation2 + $0x170] sm:$0xff] %v1495
  %1561 = vst.msk [vmem:[#allocation2 + $0x178] sm:$0xff] %vm1516, %v1496
  %1562 = vst [vmem:[#allocation2 + $0x180] sm:$0xff] %v1497
  %1563 = vst [vmem:[#allocation2 + $0x188] sm:$0xff] %v1498
  %1564 = vst [vmem:[#allocation2 + $0x190] sm:$0xff] %v1499
  %1565 = vst.msk [vmem:[#allocation2 + $0x198] sm:$0xff] %vm1516, %v1500
  %1566 = vst [vmem:[#allocation2 + $0x1a0] sm:$0xff] %v1501
  %1567 = vst [vmem:[#allocation2 + $0x1a8] sm:$0xff] %v1502
  %1568 = vst [vmem:[#allocation2 + $0x1b0] sm:$0xff] %v1503
  %1569 = vst.msk [vmem:[#allocation2 + $0x1b8] sm:$0xff] %vm1516, %v1504
  %1570 = vst [vmem:[#allocation2 + $0x1c0] sm:$0xff] %v1505
  %1571 = vst [vmem:[#allocation2 + $0x1c8] sm:$0xff] %v1506
  %1572 = vst [vmem:[#allocation2 + $0x1d0] sm:$0xff] %v1507
  %1573 = vst.msk [vmem:[#allocation2 + $0x1d8] sm:$0xff] %vm1516, %v1508
  %1574 = vst [vmem:[#allocation2 + $0x1e0] sm:$0xff] %v1509
  %1575 = vst [vmem:[#allocation2 + $0x1e8] sm:$0xff] %v1510
  %1576 = vst [vmem:[#allocation2 + $0x1f0] sm:$0xff] %v1511
  %1577 = vst.msk [vmem:[#allocation2 + $0x1f8] sm:$0xff] %vm1516, %v1512
  %v1578 = vld [vmem:[#allocation2] sm:$0xff]
  %v1579 = vld [vmem:[#allocation2 + $0x8] sm:$0xff]
  %v1580 = vld [vmem:[#allocation2 + $0x10] sm:$0xff]
  %v1581 = vld [vmem:[#allocation2 + $0x18] sm:$0xff]
  %v1582 = vld [vmem:[#allocation2 + $0x20] sm:$0xff]
  %v1583 = vld [vmem:[#allocation2 + $0x28] sm:$0xff]
  %v1584 = vld [vmem:[#allocation2 + $0x30] sm:$0xff]
  %v1585 = vld [vmem:[#allocation2 + $0x38] sm:$0xff]
  %v1586 = vld [vmem:[#allocation2 + $0x40] sm:$0xff]
  %v1587 = vld [vmem:[#allocation2 + $0x48] sm:$0xff]
  %v1588 = vld [vmem:[#allocation2 + $0x50] sm:$0xff]
  %v1589 = vld [vmem:[#allocation2 + $0x58] sm:$0xff]
  %v1590 = vld [vmem:[#allocation2 + $0x60] sm:$0xff]
  %v1591 = vld [vmem:[#allocation2 + $0x68] sm:$0xff]
  %v1592 = vld [vmem:[#allocation2 + $0x70] sm:$0xff]
  %v1593 = vld [vmem:[#allocation2 + $0x78] sm:$0xff]
  %v1594 = vld [vmem:[#allocation2 + $0x80] sm:$0xff]
  %v1595 = vld [vmem:[#allocation2 + $0x88] sm:$0xff]
  %v1596 = vld [vmem:[#allocation2 + $0x90] sm:$0xff]
  %v1597 = vld [vmem:[#allocation2 + $0x98] sm:$0xff]
  %v1598 = vld [vmem:[#allocation2 + $0xa0] sm:$0xff]
  %v1599 = vld [vmem:[#allocation2 + $0xa8] sm:$0xff]
  %v1600 = vld [vmem:[#allocation2 + $0xb0] sm:$0xff]
  %v1601 = vld [vmem:[#allocation2 + $0xb8] sm:$0xff]
  %v1602 = vld [vmem:[#allocation2 + $0xc0] sm:$0xff]
  %v1603 = vld [vmem:[#allocation2 + $0xc8] sm:$0xff]
  %v1604 = vld [vmem:[#allocation2 + $0xd0] sm:$0xff]
  %v1605 = vld [vmem:[#allocation2 + $0xd8] sm:$0xff]
  %v1606 = vld [vmem:[#allocation2 + $0xe0] sm:$0xff]
  %v1607 = vld [vmem:[#allocation2 + $0xe8] sm:$0xff]
  %v1608 = vld [vmem:[#allocation2 + $0xf0] sm:$0xff]
  %v1609 = vld [vmem:[#allocation2 + $0xf8] sm:$0xff]
  %v1610 = vld [vmem:[#allocation2 + $0x100] sm:$0xff]
  %v1611 = vld [vmem:[#allocation2 + $0x108] sm:$0xff]
  %v1612 = vld [vmem:[#allocation2 + $0x110] sm:$0xff]
  %v1613 = vld [vmem:[#allocation2 + $0x118] sm:$0xff]
  %v1614 = vld [vmem:[#allocation2 + $0x120] sm:$0xff]
  %v1615 = vld [vmem:[#allocation2 + $0x128] sm:$0xff]
  %v1616 = vld [vmem:[#allocation2 + $0x130] sm:$0xff]
  %v1617 = vld [vmem:[#allocation2 + $0x138] sm:$0xff]
  %v1618 = vld [vmem:[#allocation2 + $0x140] sm:$0xff]
  %v1619 = vld [vmem:[#allocation2 + $0x148] sm:$0xff]
  %v1620 = vld [vmem:[#allocation2 + $0x150] sm:$0xff]
  %v1621 = vld [vmem:[#allocation2 + $0x158] sm:$0xff]
  %v1622 = vld [vmem:[#allocation2 + $0x160] sm:$0xff]
  %v1623 = vld [vmem:[#allocation2 + $0x168] sm:$0xff]
  %v1624 = vld [vmem:[#allocation2 + $0x170] sm:$0xff]
  %v1625 = vld [vmem:[#allocation2 + $0x178] sm:$0xff]
  %v1626 = vld [vmem:[#allocation2 + $0x180] sm:$0xff]
  %v1627 = vld [vmem:[#allocation2 + $0x188] sm:$0xff]
  %v1628 = vld [vmem:[#allocation2 + $0x190] sm:$0xff]
  %v1629 = vld [vmem:[#allocation2 + $0x198] sm:$0xff]
  %v1630 = vld [vmem:[#allocation2 + $0x1a0] sm:$0xff]
  %v1631 = vld [vmem:[#allocation2 + $0x1a8] sm:$0xff]
  %v1632 = vld [vmem:[#allocation2 + $0x1b0] sm:$0xff]
  %v1633 = vld [vmem:[#allocation2 + $0x1b8] sm:$0xff]
  %v1634 = vld [vmem:[#allocation2 + $0x1c0] sm:$0xff]
  %v1635 = vld [vmem:[#allocation2 + $0x1c8] sm:$0xff]
  %v1636 = vld [vmem:[#allocation2 + $0x1d0] sm:$0xff]
  %v1637 = vld [vmem:[#allocation2 + $0x1d8] sm:$0xff]
  %v1638 = vld [vmem:[#allocation2 + $0x1e0] sm:$0xff]
  %v1639 = vld [vmem:[#allocation2 + $0x1e8] sm:$0xff]
  %v1640 = vld [vmem:[#allocation2 + $0x1f0] sm:$0xff]
  %v1641 = vld [vmem:[#allocation2 + $0x1f8] sm:$0xff]
  %v1642 = vld [vmem:[%s1] sm:$0xff]
  %v1643 = vld [vmem:[%s1 + $0x8] sm:$0xff]
  %v1644 = vld [vmem:[%s1 + $0x10] sm:$0xf]
  %v1645 = vld [vmem:[%s1 + $0x14] sm:$0xff]
  %v1646 = vld [vmem:[%s1 + $0x1c] sm:$0xff]
  %v1647 = vld [vmem:[%s1 + $0x24] sm:$0xf]
  %v1648 = vld [vmem:[%s1 + $0x28] sm:$0xff]
  %v1649 = vld [vmem:[%s1 + $0x30] sm:$0xff]
  %v1650 = vld [vmem:[%s1 + $0x38] sm:$0xf]
  %v1651 = vld [vmem:[%s1 + $0x3c] sm:$0xff]
  %v1652 = vld [vmem:[%s1 + $0x44] sm:$0xff]
  %v1653 = vld [vmem:[%s1 + $0x4c] sm:$0xf]
  %v1654 = vld [vmem:[%s1 + $0x50] sm:$0xff]
  %v1655 = vld [vmem:[%s1 + $0x58] sm:$0xff]
  %v1656 = vld [vmem:[%s1 + $0x60] sm:$0xf]
  %v1657 = vld [vmem:[%s1 + $0x64] sm:$0xff]
  %v1658 = vld [vmem:[%s1 + $0x6c] sm:$0xff]
  %v1659 = vld [vmem:[%s1 + $0x74] sm:$0xf]
  %v1660 = vld [vmem:[%s1 + $0x78] sm:$0xff]
  %v1661 = vld [vmem:[%s1 + $0x80] sm:$0xff]
  %v1662 = vld [vmem:[%s1 + $0x88] sm:$0xf]
  %v1663 = vld [vmem:[%s1 + $0x8c] sm:$0xff]
  %v1664 = vld [vmem:[%s1 + $0x94] sm:$0xff]
  %v1665 = vld [vmem:[%s1 + $0x9c] sm:$0xf]
  %v1666 = vld [vmem:[%s1 + $0xa0] sm:$0xff]
  %v1667 = vld [vmem:[%s1 + $0xa8] sm:$0xff]
  %v1668 = vld [vmem:[%s1 + $0xb0] sm:$0xf]
  %v1669 = vld [vmem:[%s1 + $0xb4] sm:$0xff]
  %v1670 = vld [vmem:[%s1 + $0xbc] sm:$0xff]
  %v1671 = vld [vmem:[%s1 + $0xc4] sm:$0xf]
  %v1672 = vld [vmem:[%s1 + $0xc8] sm:$0xff]
  %v1673 = vld [vmem:[%s1 + $0xd0] sm:$0xff]
  %v1674 = vld [vmem:[%s1 + $0xd8] sm:$0xf]
  %v1675 = vld [vmem:[%s1 + $0xdc] sm:$0xff]
  %v1676 = vld [vmem:[%s1 + $0xe4] sm:$0xff]
  %v1677 = vld [vmem:[%s1 + $0xec] sm:$0xf]
  %v1678 = vld [vmem:[%s1 + $0xf0] sm:$0xff]
  %v1679 = vld [vmem:[%s1 + $0xf8] sm:$0xff]
  %v1680 = vld [vmem:[%s1 + $0x100] sm:$0xf]
  %v1681 = vld [vmem:[%s1 + $0x104] sm:$0xff]
  %v1682 = vld [vmem:[%s1 + $0x10c] sm:$0xff]
  %v1683 = vld [vmem:[%s1 + $0x114] sm:$0xf]
  %v1684 = vld [vmem:[%s1 + $0x118] sm:$0xff]
  %v1685 = vld [vmem:[%s1 + $0x120] sm:$0xff]
  %v1686 = vld [vmem:[%s1 + $0x128] sm:$0xf]
  %v1687 = vld [vmem:[%s1 + $0x12c] sm:$0xff]
  %v1688 = vld [vmem:[%s1 + $0x134] sm:$0xff]
  %v1689 = vld [vmem:[%s1 + $0x13c] sm:$0xf]
  %v1690 = vld [vmem:[%s1 + $0x140] sm:$0xff]
  %v1691 = vld [vmem:[%s1 + $0x148] sm:$0xff]
  %v1692 = vld [vmem:[%s1 + $0x150] sm:$0xf]
  %v1693 = vld [vmem:[%s1 + $0x154] sm:$0xff]
  %v1694 = vld [vmem:[%s1 + $0x15c] sm:$0xff]
  %v1695 = vld [vmem:[%s1 + $0x164] sm:$0xf]
  %v1696 = vld [vmem:[%s1 + $0x168] sm:$0xff]
  %v1697 = vld [vmem:[%s1 + $0x170] sm:$0xff]
  %v1698 = vld [vmem:[%s1 + $0x178] sm:$0xf]
  %v1699 = vld [vmem:[%s1 + $0x17c] sm:$0xff]
  %v1700 = vld [vmem:[%s1 + $0x184] sm:$0xff]
  %v1701 = vld [vmem:[%s1 + $0x18c] sm:$0xf]
  %v1702 = vld [vmem:[%s1 + $0x190] sm:$0xff]
  %v1703 = vld [vmem:[%s1 + $0x198] sm:$0xff]
  %v1704 = vld [vmem:[%s1 + $0x1a0] sm:$0xf]
  %v1705 = vld [vmem:[%s1 + $0x1a4] sm:$0xff]
  %v1706 = vld [vmem:[%s1 + $0x1ac] sm:$0xff]
  %v1707 = vld [vmem:[%s1 + $0x1b4] sm:$0xf]
  %v1708 = vld [vmem:[%s1 + $0x1b8] sm:$0xff]
  %v1709 = vld [vmem:[%s1 + $0x1c0] sm:$0xff]
  %v1710 = vld [vmem:[%s1 + $0x1c8] sm:$0xf]
  %v1711 = vld [vmem:[%s1 + $0x1cc] sm:$0xff]
  %v1712 = vld [vmem:[%s1 + $0x1d4] sm:$0xff]
  %v1713 = vld [vmem:[%s1 + $0x1dc] sm:$0xf]
  %v1714 = vld [vmem:[%s1 + $0x1e0] sm:$0xff]
  %v1715 = vld [vmem:[%s1 + $0x1e8] sm:$0xff]
  %v1716 = vld [vmem:[%s1 + $0x1f0] sm:$0xf]
  %v1717 = vld [vmem:[%s1 + $0x1f4] sm:$0xff]
  %v1718 = vld [vmem:[%s1 + $0x1fc] sm:$0xff]
  %v1719 = vld [vmem:[%s1 + $0x204] sm:$0xf]
  %v1720 = vld [vmem:[%s1 + $0x208] sm:$0xff]
  %v1721 = vld [vmem:[%s1 + $0x210] sm:$0xff]
  %v1722 = vld [vmem:[%s1 + $0x218] sm:$0xf]
  %v1723 = vld [vmem:[%s1 + $0x21c] sm:$0xff]
  %v1724 = vld [vmem:[%s1 + $0x224] sm:$0xff]
  %v1725 = vld [vmem:[%s1 + $0x22c] sm:$0xf]
  %v1726 = vld [vmem:[%s1 + $0x230] sm:$0xff]
  %v1727 = vld [vmem:[%s1 + $0x238] sm:$0xff]
  %v1728 = vld [vmem:[%s1 + $0x240] sm:$0xf]
  %v1729 = vld [vmem:[%s1 + $0x244] sm:$0xff]
  %v1730 = vld [vmem:[%s1 + $0x24c] sm:$0xff]
  %v1731 = vld [vmem:[%s1 + $0x254] sm:$0xf]
  %v1732 = vld [vmem:[%s1 + $0x258] sm:$0xff]
  %v1733 = vld [vmem:[%s1 + $0x260] sm:$0xff]
  %v1734 = vld [vmem:[%s1 + $0x268] sm:$0xf]
  %v1735 = vld [vmem:[%s1 + $0x26c] sm:$0xff]
  %v1736 = vld [vmem:[%s1 + $0x274] sm:$0xff]
  %v1737 = vld [vmem:[%s1 + $0x27c] sm:$0xf]
  %v1738 = vld [vmem:[%s1 + $0x280] sm:$0xff]
  %v1739 = vld [vmem:[%s1 + $0x288] sm:$0xff]
  %v1740 = vld [vmem:[%s1 + $0x290] sm:$0xf]
  %v1741 = vld [vmem:[%s1 + $0x294] sm:$0xff]
  %v1742 = vld [vmem:[%s1 + $0x29c] sm:$0xff]
  %v1743 = vld [vmem:[%s1 + $0x2a4] sm:$0xf]
  %v1744 = vld [vmem:[%s1 + $0x2a8] sm:$0xff]
  %v1745 = vld [vmem:[%s1 + $0x2b0] sm:$0xff]
  %v1746 = vld [vmem:[%s1 + $0x2b8] sm:$0xf]
  %v1747 = vld [vmem:[%s1 + $0x2bc] sm:$0xff]
  %v1748 = vld [vmem:[%s1 + $0x2c4] sm:$0xff]
  %v1749 = vld [vmem:[%s1 + $0x2cc] sm:$0xf]
  %v1750 = vld [vmem:[%s1 + $0x2d0] sm:$0xff]
  %v1751 = vld [vmem:[%s1 + $0x2d8] sm:$0xff]
  %v1752 = vld [vmem:[%s1 + $0x2e0] sm:$0xf]
  %v1753 = vld [vmem:[%s1 + $0x2e4] sm:$0xff]
  %v1754 = vld [vmem:[%s1 + $0x2ec] sm:$0xff]
  %v1755 = vld [vmem:[%s1 + $0x2f4] sm:$0xf]
  %v1756 = vld [vmem:[%s1 + $0x2f8] sm:$0xff]
  %v1757 = vld [vmem:[%s1 + $0x300] sm:$0xff]
  %v1758 = vld [vmem:[%s1 + $0x308] sm:$0xf]
  %v1759 = vld [vmem:[%s1 + $0x30c] sm:$0xff]
  %v1760 = vld [vmem:[%s1 + $0x314] sm:$0xff]
  %v1761 = vld [vmem:[%s1 + $0x31c] sm:$0xf]
  %v1762 = vld [vmem:[%s1 + $0x320] sm:$0xff]
  %v1763 = vld [vmem:[%s1 + $0x328] sm:$0xff]
  %v1764 = vld [vmem:[%s1 + $0x330] sm:$0xf]
  %v1765 = vld [vmem:[%s1 + $0x334] sm:$0xff]
  %v1766 = vld [vmem:[%s1 + $0x33c] sm:$0xff]
  %v1767 = vld [vmem:[%s1 + $0x344] sm:$0xf]
  %v1768 = vld [vmem:[%s1 + $0x348] sm:$0xff]
  %v1769 = vld [vmem:[%s1 + $0x350] sm:$0xff]
  %v1770 = vld [vmem:[%s1 + $0x358] sm:$0xf]
  %v1771 = vld [vmem:[%s1 + $0x35c] sm:$0xff]
  %v1772 = vld [vmem:[%s1 + $0x364] sm:$0xff]
  %v1773 = vld [vmem:[%s1 + $0x36c] sm:$0xf]
  %v1774 = vld [vmem:[%s1 + $0x370] sm:$0xff]
  %v1775 = vld [vmem:[%s1 + $0x378] sm:$0xff]
  %v1776 = vld [vmem:[%s1 + $0x380] sm:$0xf]
  %v1777 = vld [vmem:[%s1 + $0x384] sm:$0xff]
  %v1778 = vld [vmem:[%s1 + $0x38c] sm:$0xff]
  %v1779 = vld [vmem:[%s1 + $0x394] sm:$0xf]
  %v1780 = vld [vmem:[%s1 + $0x398] sm:$0xff]
  %v1781 = vld [vmem:[%s1 + $0x3a0] sm:$0xff]
  %v1782 = vld [vmem:[%s1 + $0x3a8] sm:$0xf]
  %v1783 = vld [vmem:[%s1 + $0x3ac] sm:$0xff]
  %v1784 = vld [vmem:[%s1 + $0x3b4] sm:$0xff]
  %v1785 = vld [vmem:[%s1 + $0x3bc] sm:$0xf]
  %v1786 = vld [vmem:[%s1 + $0x3c0] sm:$0xff]
  %v1787 = vld [vmem:[%s1 + $0x3c8] sm:$0xff]
  %v1788 = vld [vmem:[%s1 + $0x3d0] sm:$0xf]
  %v1789 = vld [vmem:[%s1 + $0x3d4] sm:$0xff]
  %v1790 = vld [vmem:[%s1 + $0x3dc] sm:$0xff]
  %v1791 = vld [vmem:[%s1 + $0x3e4] sm:$0xf]
  %v1792 = vld [vmem:[%s1 + $0x3e8] sm:$0xff]
  %v1793 = vld [vmem:[%s1 + $0x3f0] sm:$0xff]
  %v1794 = vld [vmem:[%s1 + $0x3f8] sm:$0xf]
  %v1795 = vld [vmem:[%s1 + $0x3fc] sm:$0xff]
  %v1796 = vld [vmem:[%s1 + $0x404] sm:$0xff]
  %v1797 = vld [vmem:[%s1 + $0x40c] sm:$0xf]
  %v1798 = vld [vmem:[%s1 + $0x410] sm:$0xff]
  %v1799 = vld [vmem:[%s1 + $0x418] sm:$0xff]
  %v1800 = vld [vmem:[%s1 + $0x420] sm:$0xf]
  %v1801 = vld [vmem:[%s1 + $0x424] sm:$0xff]
  %v1802 = vld [vmem:[%s1 + $0x42c] sm:$0xff]
  %v1803 = vld [vmem:[%s1 + $0x434] sm:$0xf]
  %v1804 = vld [vmem:[%s1 + $0x438] sm:$0xff]
  %v1805 = vld [vmem:[%s1 + $0x440] sm:$0xff]
  %v1806 = vld [vmem:[%s1 + $0x448] sm:$0xf]
  %v1807 = vld [vmem:[%s1 + $0x44c] sm:$0xff]
  %v1808 = vld [vmem:[%s1 + $0x454] sm:$0xff]
  %v1809 = vld [vmem:[%s1 + $0x45c] sm:$0xf]
  %v1810 = vld [vmem:[%s1 + $0x460] sm:$0xff]
  %v1811 = vld [vmem:[%s1 + $0x468] sm:$0xff]
  %v1812 = vld [vmem:[%s1 + $0x470] sm:$0xf]
  %v1813 = vld [vmem:[%s1 + $0x474] sm:$0xff]
  %v1814 = vld [vmem:[%s1 + $0x47c] sm:$0xff]
  %v1815 = vld [vmem:[%s1 + $0x484] sm:$0xf]
  %v1816 = vld [vmem:[%s1 + $0x488] sm:$0xff]
  %v1817 = vld [vmem:[%s1 + $0x490] sm:$0xff]
  %v1818 = vld [vmem:[%s1 + $0x498] sm:$0xf]
  %v1819 = vld [vmem:[%s1 + $0x49c] sm:$0xff]
  %v1820 = vld [vmem:[%s1 + $0x4a4] sm:$0xff]
  %v1821 = vld [vmem:[%s1 + $0x4ac] sm:$0xf]
  %v1822 = vld [vmem:[%s1 + $0x4b0] sm:$0xff]
  %v1823 = vld [vmem:[%s1 + $0x4b8] sm:$0xff]
  %v1824 = vld [vmem:[%s1 + $0x4c0] sm:$0xf]
  %v1825 = vld [vmem:[%s1 + $0x4c4] sm:$0xff]
  %v1826 = vld [vmem:[%s1 + $0x4cc] sm:$0xff]
  %v1827 = vld [vmem:[%s1 + $0x4d4] sm:$0xf]
  %v1828 = vld [vmem:[%s1 + $0x4d8] sm:$0xff]
  %v1829 = vld [vmem:[%s1 + $0x4e0] sm:$0xff]
  %v1830 = vld [vmem:[%s1 + $0x4e8] sm:$0xf]
  %v1831 = vld [vmem:[%s1 + $0x4ec] sm:$0xff]
  %v1832 = vld [vmem:[%s1 + $0x4f4] sm:$0xff]
  %v1833 = vld [vmem:[%s1 + $0x4fc] sm:$0xf]
  %v1834 = vld [vmem:[%s2] sm:$0x1f]
  %v1836 = vlaneseq
  %v1837 = vshrl.u32 %v1836, 7
  %v1838 = vsub.s32 0, %v1837
  %v1839 = vrot.slane %v1834, %v1838
  %v1840 = vlaneseq
  %v1841 = vshrl.u32 %v1840, 7
  %v1842 = vsub.s32 1, %v1841
  %v1843 = vrot.slane %v1834, %v1842
  %v1844 = vlaneseq
  %v1845 = vshrl.u32 %v1844, 7
  %v1846 = vsub.s32 2, %v1845
  %v1847 = vrot.slane %v1834, %v1846
  %v1848 = vlaneseq
  %v1849 = vshrl.u32 %v1848, 7
  %v1850 = vsub.s32 3, %v1849
  %v1851 = vrot.slane %v1834, %v1850
  %v1852 = vlaneseq
  %v1853 = vshrl.u32 %v1852, 7
  %v1854 = vsub.s32 4, %v1853
  %v1855 = vrot.slane %v1834, %v1854
  %v2053 = vunpack.c.l.b16 %v1642
  %v2054 = vunpack.c.h.b16 %v1642
  %v2055 = vunpack.c.l.b16 %v1643
  %v2056 = vunpack.c.h.b16 %v1643
  %v2057 = vunpack.c.l.b16 %v1644
  %v2058 = vunpack.c.l.b16 %v1645
  %v2059 = vunpack.c.h.b16 %v1645
  %v2060 = vunpack.c.l.b16 %v1646
  %v2061 = vunpack.c.h.b16 %v1646
  %v2062 = vunpack.c.l.b16 %v1647
  %v2063 = vunpack.c.l.b16 %v1648
  %v2064 = vunpack.c.h.b16 %v1648
  %v2065 = vunpack.c.l.b16 %v1649
  %v2066 = vunpack.c.h.b16 %v1649
  %v2067 = vunpack.c.l.b16 %v1650
  %v2068 = vunpack.c.l.b16 %v1651
  %v2069 = vunpack.c.h.b16 %v1651
  %v2070 = vunpack.c.l.b16 %v1652
  %v2071 = vunpack.c.h.b16 %v1652
  %v2072 = vunpack.c.l.b16 %v1653
  %v2073 = vunpack.c.l.b16 %v1654
  %v2074 = vunpack.c.h.b16 %v1654
  %v2075 = vunpack.c.l.b16 %v1655
  %v2076 = vunpack.c.h.b16 %v1655
  %v2077 = vunpack.c.l.b16 %v1656
  %v2078 = vunpack.c.l.b16 %v1657
  %v2079 = vunpack.c.h.b16 %v1657
  %v2080 = vunpack.c.l.b16 %v1658
  %v2081 = vunpack.c.h.b16 %v1658
  %v2082 = vunpack.c.l.b16 %v1659
  %v2083 = vunpack.c.l.b16 %v1660
  %v2084 = vunpack.c.h.b16 %v1660
  %v2085 = vunpack.c.l.b16 %v1661
  %v2086 = vunpack.c.h.b16 %v1661
  %v2087 = vunpack.c.l.b16 %v1662
  %v2088 = vunpack.c.l.b16 %v1663
  %v2089 = vunpack.c.h.b16 %v1663
  %v2090 = vunpack.c.l.b16 %v1664
  %v2091 = vunpack.c.h.b16 %v1664
  %v2092 = vunpack.c.l.b16 %v1665
  %v2093 = vunpack.c.l.b16 %v1666
  %v2094 = vunpack.c.h.b16 %v1666
  %v2095 = vunpack.c.l.b16 %v1667
  %v2096 = vunpack.c.h.b16 %v1667
  %v2097 = vunpack.c.l.b16 %v1668
  %v2098 = vunpack.c.l.b16 %v1669
  %v2099 = vunpack.c.h.b16 %v1669
  %v2100 = vunpack.c.l.b16 %v1670
  %v2101 = vunpack.c.h.b16 %v1670
  %v2102 = vunpack.c.l.b16 %v1671
  %v2103 = vunpack.c.l.b16 %v1672
  %v2104 = vunpack.c.h.b16 %v1672
  %v2105 = vunpack.c.l.b16 %v1673
  %v2106 = vunpack.c.h.b16 %v1673
  %v2107 = vunpack.c.l.b16 %v1674
  %v2108 = vunpack.c.l.b16 %v1675
  %v2109 = vunpack.c.h.b16 %v1675
  %v2110 = vunpack.c.l.b16 %v1676
  %v2111 = vunpack.c.h.b16 %v1676
  %v2112 = vunpack.c.l.b16 %v1677
  %v2113 = vunpack.c.l.b16 %v1678
  %v2114 = vunpack.c.h.b16 %v1678
  %v2115 = vunpack.c.l.b16 %v1679
  %v2116 = vunpack.c.h.b16 %v1679
  %v2117 = vunpack.c.l.b16 %v1680
  %v2118 = vunpack.c.l.b16 %v1681
  %v2119 = vunpack.c.h.b16 %v1681
  %v2120 = vunpack.c.l.b16 %v1682
  %v2121 = vunpack.c.h.b16 %v1682
  %v2122 = vunpack.c.l.b16 %v1683
  %v2123 = vunpack.c.l.b16 %v1684
  %v2124 = vunpack.c.h.b16 %v1684
  %v2125 = vunpack.c.l.b16 %v1685
  %v2126 = vunpack.c.h.b16 %v1685
  %v2127 = vunpack.c.l.b16 %v1686
  %v2128 = vunpack.c.l.b16 %v1687
  %v2129 = vunpack.c.h.b16 %v1687
  %v2130 = vunpack.c.l.b16 %v1688
  %v2131 = vunpack.c.h.b16 %v1688
  %v2132 = vunpack.c.l.b16 %v1689
  %v2133 = vunpack.c.l.b16 %v1690
  %v2134 = vunpack.c.h.b16 %v1690
  %v2135 = vunpack.c.l.b16 %v1691
  %v2136 = vunpack.c.h.b16 %v1691
  %v2137 = vunpack.c.l.b16 %v1692
  %v2138 = vunpack.c.l.b16 %v1693
  %v2139 = vunpack.c.h.b16 %v1693
  %v2140 = vunpack.c.l.b16 %v1694
  %v2141 = vunpack.c.h.b16 %v1694
  %v2142 = vunpack.c.l.b16 %v1695
  %v2143 = vunpack.c.l.b16 %v1696
  %v2144 = vunpack.c.h.b16 %v1696
  %v2145 = vunpack.c.l.b16 %v1697
  %v2146 = vunpack.c.h.b16 %v1697
  %v2147 = vunpack.c.l.b16 %v1698
  %v2148 = vunpack.c.l.b16 %v1699
  %v2149 = vunpack.c.h.b16 %v1699
  %v2150 = vunpack.c.l.b16 %v1700
  %v2151 = vunpack.c.h.b16 %v1700
  %v2152 = vunpack.c.l.b16 %v1701
  %v2153 = vunpack.c.l.b16 %v1702
  %v2154 = vunpack.c.h.b16 %v1702
  %v2155 = vunpack.c.l.b16 %v1703
  %v2156 = vunpack.c.h.b16 %v1703
  %v2157 = vunpack.c.l.b16 %v1704
  %v2158 = vunpack.c.l.b16 %v1705
  %v2159 = vunpack.c.h.b16 %v1705
  %v2160 = vunpack.c.l.b16 %v1706
  %v2161 = vunpack.c.h.b16 %v1706
  %v2162 = vunpack.c.l.b16 %v1707
  %v2163 = vunpack.c.l.b16 %v1708
  %v2164 = vunpack.c.h.b16 %v1708
  %v2165 = vunpack.c.l.b16 %v1709
  %v2166 = vunpack.c.h.b16 %v1709
  %v2167 = vunpack.c.l.b16 %v1710
  %v2168 = vunpack.c.l.b16 %v1711
  %v2169 = vunpack.c.h.b16 %v1711
  %v2170 = vunpack.c.l.b16 %v1712
  %v2171 = vunpack.c.h.b16 %v1712
  %v2172 = vunpack.c.l.b16 %v1713
  %v2173 = vunpack.c.l.b16 %v1714
  %v2174 = vunpack.c.h.b16 %v1714
  %v2175 = vunpack.c.l.b16 %v1715
  %v2176 = vunpack.c.h.b16 %v1715
  %v2177 = vunpack.c.l.b16 %v1716
  %v2178 = vunpack.c.l.b16 %v1717
  %v2179 = vunpack.c.h.b16 %v1717
  %v2180 = vunpack.c.l.b16 %v1718
  %v2181 = vunpack.c.h.b16 %v1718
  %v2182 = vunpack.c.l.b16 %v1719
  %v2183 = vunpack.c.l.b16 %v1720
  %v2184 = vunpack.c.h.b16 %v1720
  %v2185 = vunpack.c.l.b16 %v1721
  %v2186 = vunpack.c.h.b16 %v1721
  %v2187 = vunpack.c.l.b16 %v1722
  %v2188 = vunpack.c.l.b16 %v1723
  %v2189 = vunpack.c.h.b16 %v1723
  %v2190 = vunpack.c.l.b16 %v1724
  %v2191 = vunpack.c.h.b16 %v1724
  %v2192 = vunpack.c.l.b16 %v1725
  %v2193 = vunpack.c.l.b16 %v1726
  %v2194 = vunpack.c.h.b16 %v1726
  %v2195 = vunpack.c.l.b16 %v1727
  %v2196 = vunpack.c.h.b16 %v1727
  %v2197 = vunpack.c.l.b16 %v1728
  %v2198 = vunpack.c.l.b16 %v1729
  %v2199 = vunpack.c.h.b16 %v1729
  %v2200 = vunpack.c.l.b16 %v1730
  %v2201 = vunpack.c.h.b16 %v1730
  %v2202 = vunpack.c.l.b16 %v1731
  %v2203 = vunpack.c.l.b16 %v1732
  %v2204 = vunpack.c.h.b16 %v1732
  %v2205 = vunpack.c.l.b16 %v1733
  %v2206 = vunpack.c.h.b16 %v1733
  %v2207 = vunpack.c.l.b16 %v1734
  %v2208 = vunpack.c.l.b16 %v1735
  %v2209 = vunpack.c.h.b16 %v1735
  %v2210 = vunpack.c.l.b16 %v1736
  %v2211 = vunpack.c.h.b16 %v1736
  %v2212 = vunpack.c.l.b16 %v1737
  %v2213 = vunpack.c.l.b16 %v1738
  %v2214 = vunpack.c.h.b16 %v1738
  %v2215 = vunpack.c.l.b16 %v1739
  %v2216 = vunpack.c.h.b16 %v1739
  %v2217 = vunpack.c.l.b16 %v1740
  %v2218 = vunpack.c.l.b16 %v1741
  %v2219 = vunpack.c.h.b16 %v1741
  %v2220 = vunpack.c.l.b16 %v1742
  %v2221 = vunpack.c.h.b16 %v1742
  %v2222 = vunpack.c.l.b16 %v1743
  %v2223 = vunpack.c.l.b16 %v1744
  %v2224 = vunpack.c.h.b16 %v1744
  %v2225 = vunpack.c.l.b16 %v1745
  %v2226 = vunpack.c.h.b16 %v1745
  %v2227 = vunpack.c.l.b16 %v1746
  %v2228 = vunpack.c.l.b16 %v1747
  %v2229 = vunpack.c.h.b16 %v1747
  %v2230 = vunpack.c.l.b16 %v1748
  %v2231 = vunpack.c.h.b16 %v1748
  %v2232 = vunpack.c.l.b16 %v1749
  %v2233 = vunpack.c.l.b16 %v1750
  %v2234 = vunpack.c.h.b16 %v1750
  %v2235 = vunpack.c.l.b16 %v1751
  %v2236 = vunpack.c.h.b16 %v1751
  %v2237 = vunpack.c.l.b16 %v1752
  %v2238 = vunpack.c.l.b16 %v1753
  %v2239 = vunpack.c.h.b16 %v1753
  %v2240 = vunpack.c.l.b16 %v1754
  %v2241 = vunpack.c.h.b16 %v1754
  %v2242 = vunpack.c.l.b16 %v1755
  %v2243 = vunpack.c.l.b16 %v1756
  %v2244 = vunpack.c.h.b16 %v1756
  %v2245 = vunpack.c.l.b16 %v1757
  %v2246 = vunpack.c.h.b16 %v1757
  %v2247 = vunpack.c.l.b16 %v1758
  %v2248 = vunpack.c.l.b16 %v1759
  %v2249 = vunpack.c.h.b16 %v1759
  %v2250 = vunpack.c.l.b16 %v1760
  %v2251 = vunpack.c.h.b16 %v1760
  %v2252 = vunpack.c.l.b16 %v1761
  %v2253 = vunpack.c.l.b16 %v1762
  %v2254 = vunpack.c.h.b16 %v1762
  %v2255 = vunpack.c.l.b16 %v1763
  %v2256 = vunpack.c.h.b16 %v1763
  %v2257 = vunpack.c.l.b16 %v1764
  %v2258 = vunpack.c.l.b16 %v1765
  %v2259 = vunpack.c.h.b16 %v1765
  %v2260 = vunpack.c.l.b16 %v1766
  %v2261 = vunpack.c.h.b16 %v1766
  %v2262 = vunpack.c.l.b16 %v1767
  %v2263 = vunpack.c.l.b16 %v1768
  %v2264 = vunpack.c.h.b16 %v1768
  %v2265 = vunpack.c.l.b16 %v1769
  %v2266 = vunpack.c.h.b16 %v1769
  %v2267 = vunpack.c.l.b16 %v1770
  %v2268 = vunpack.c.l.b16 %v1771
  %v2269 = vunpack.c.h.b16 %v1771
  %v2270 = vunpack.c.l.b16 %v1772
  %v2271 = vunpack.c.h.b16 %v1772
  %v2272 = vunpack.c.l.b16 %v1773
  %v2273 = vunpack.c.l.b16 %v1774
  %v2274 = vunpack.c.h.b16 %v1774
  %v2275 = vunpack.c.l.b16 %v1775
  %v2276 = vunpack.c.h.b16 %v1775
  %v2277 = vunpack.c.l.b16 %v1776
  %v2278 = vunpack.c.l.b16 %v1777
  %v2279 = vunpack.c.h.b16 %v1777
  %v2280 = vunpack.c.l.b16 %v1778
  %v2281 = vunpack.c.h.b16 %v1778
  %v2282 = vunpack.c.l.b16 %v1779
  %v2283 = vunpack.c.l.b16 %v1780
  %v2284 = vunpack.c.h.b16 %v1780
  %v2285 = vunpack.c.l.b16 %v1781
  %v2286 = vunpack.c.h.b16 %v1781
  %v2287 = vunpack.c.l.b16 %v1782
  %v2288 = vunpack.c.l.b16 %v1783
  %v2289 = vunpack.c.h.b16 %v1783
  %v2290 = vunpack.c.l.b16 %v1784
  %v2291 = vunpack.c.h.b16 %v1784
  %v2292 = vunpack.c.l.b16 %v1785
  %v2293 = vunpack.c.l.b16 %v1786
  %v2294 = vunpack.c.h.b16 %v1786
  %v2295 = vunpack.c.l.b16 %v1787
  %v2296 = vunpack.c.h.b16 %v1787
  %v2297 = vunpack.c.l.b16 %v1788
  %v2298 = vunpack.c.l.b16 %v1789
  %v2299 = vunpack.c.h.b16 %v1789
  %v2300 = vunpack.c.l.b16 %v1790
  %v2301 = vunpack.c.h.b16 %v1790
  %v2302 = vunpack.c.l.b16 %v1791
  %v2303 = vunpack.c.l.b16 %v1792
  %v2304 = vunpack.c.h.b16 %v1792
  %v2305 = vunpack.c.l.b16 %v1793
  %v2306 = vunpack.c.h.b16 %v1793
  %v2307 = vunpack.c.l.b16 %v1794
  %v2308 = vunpack.c.l.b16 %v1795
  %v2309 = vunpack.c.h.b16 %v1795
  %v2310 = vunpack.c.l.b16 %v1796
  %v2311 = vunpack.c.h.b16 %v1796
  %v2312 = vunpack.c.l.b16 %v1797
  %v2313 = vunpack.c.l.b16 %v1798
  %v2314 = vunpack.c.h.b16 %v1798
  %v2315 = vunpack.c.l.b16 %v1799
  %v2316 = vunpack.c.h.b16 %v1799
  %v2317 = vunpack.c.l.b16 %v1800
  %v2318 = vunpack.c.l.b16 %v1801
  %v2319 = vunpack.c.h.b16 %v1801
  %v2320 = vunpack.c.l.b16 %v1802
  %v2321 = vunpack.c.h.b16 %v1802
  %v2322 = vunpack.c.l.b16 %v1803
  %v2323 = vunpack.c.l.b16 %v1804
  %v2324 = vunpack.c.h.b16 %v1804
  %v2325 = vunpack.c.l.b16 %v1805
  %v2326 = vunpack.c.h.b16 %v1805
  %v2327 = vunpack.c.l.b16 %v1806
  %v2328 = vunpack.c.l.b16 %v1807
  %v2329 = vunpack.c.h.b16 %v1807
  %v2330 = vunpack.c.l.b16 %v1808
  %v2331 = vunpack.c.h.b16 %v1808
  %v2332 = vunpack.c.l.b16 %v1809
  %v2333 = vunpack.c.l.b16 %v1810
  %v2334 = vunpack.c.h.b16 %v1810
  %v2335 = vunpack.c.l.b16 %v1811
  %v2336 = vunpack.c.h.b16 %v1811
  %v2337 = vunpack.c.l.b16 %v1812
  %v2338 = vunpack.c.l.b16 %v1813
  %v2339 = vunpack.c.h.b16 %v1813
  %v2340 = vunpack.c.l.b16 %v1814
  %v2341 = vunpack.c.h.b16 %v1814
  %v2342 = vunpack.c.l.b16 %v1815
  %v2343 = vunpack.c.l.b16 %v1816
  %v2344 = vunpack.c.h.b16 %v1816
  %v2345 = vunpack.c.l.b16 %v1817
  %v2346 = vunpack.c.h.b16 %v1817
  %v2347 = vunpack.c.l.b16 %v1818
  %v2348 = vunpack.c.l.b16 %v1819
  %v2349 = vunpack.c.h.b16 %v1819
  %v2350 = vunpack.c.l.b16 %v1820
  %v2351 = vunpack.c.h.b16 %v1820
  %v2352 = vunpack.c.l.b16 %v1821
  %v2353 = vunpack.c.l.b16 %v1822
  %v2354 = vunpack.c.h.b16 %v1822
  %v2355 = vunpack.c.l.b16 %v1823
  %v2356 = vunpack.c.h.b16 %v1823
  %v2357 = vunpack.c.l.b16 %v1824
  %v2358 = vunpack.c.l.b16 %v1825
  %v2359 = vunpack.c.h.b16 %v1825
  %v2360 = vunpack.c.l.b16 %v1826
  %v2361 = vunpack.c.h.b16 %v1826
  %v2362 = vunpack.c.l.b16 %v1827
  %v2363 = vunpack.c.l.b16 %v1828
  %v2364 = vunpack.c.h.b16 %v1828
  %v2365 = vunpack.c.l.b16 %v1829
  %v2366 = vunpack.c.h.b16 %v1829
  %v2367 = vunpack.c.l.b16 %v1830
  %v2368 = vunpack.c.l.b16 %v1831
  %v2369 = vunpack.c.h.b16 %v1831
  %v2370 = vunpack.c.l.b16 %v1832
  %v2371 = vunpack.c.h.b16 %v1832
  %v2372 = vunpack.c.l.b16 %v1833
  %v2373 = vpack.c.b16 %v2058, %v2053
  %v2374 = vpack.c.b16 %v2059, %v2054
  %v2375 = vpack.c.b16 %v2060, %v2055
  %v2376 = vpack.c.b16 %v2061, %v2056
  %v2377 = vpack.c.b16 %v2062, %v2057
  %v2378 = vpack.c.b16 %v2068, %v2063
  %v2379 = vpack.c.b16 %v2069, %v2064
  %v2380 = vpack.c.b16 %v2070, %v2065
  %v2381 = vpack.c.b16 %v2071, %v2066
  %v2382 = vpack.c.b16 %v2072, %v2067
  %v2383 = vpack.c.b16 %v2078, %v2073
  %v2384 = vpack.c.b16 %v2079, %v2074
  %v2385 = vpack.c.b16 %v2080, %v2075
  %v2386 = vpack.c.b16 %v2081, %v2076
  %v2387 = vpack.c.b16 %v2082, %v2077
  %v2388 = vpack.c.b16 %v2088, %v2083
  %v2389 = vpack.c.b16 %v2089, %v2084
  %v2390 = vpack.c.b16 %v2090, %v2085
  %v2391 = vpack.c.b16 %v2091, %v2086
  %v2392 = vpack.c.b16 %v2092, %v2087
  %v2393 = vpack.c.b16 %v2098, %v2093
  %v2394 = vpack.c.b16 %v2099, %v2094
  %v2395 = vpack.c.b16 %v2100, %v2095
  %v2396 = vpack.c.b16 %v2101, %v2096
  %v2397 = vpack.c.b16 %v2102, %v2097
  %v2398 = vpack.c.b16 %v2108, %v2103
  %v2399 = vpack.c.b16 %v2109, %v2104
  %v2400 = vpack.c.b16 %v2110, %v2105
  %v2401 = vpack.c.b16 %v2111, %v2106
  %v2402 = vpack.c.b16 %v2112, %v2107
  %v2403 = vpack.c.b16 %v2118, %v2113
  %v2404 = vpack.c.b16 %v2119, %v2114
  %v2405 = vpack.c.b16 %v2120, %v2115
  %v2406 = vpack.c.b16 %v2121, %v2116
  %v2407 = vpack.c.b16 %v2122, %v2117
  %v2408 = vpack.c.b16 %v2128, %v2123
  %v2409 = vpack.c.b16 %v2129, %v2124
  %v2410 = vpack.c.b16 %v2130, %v2125
  %v2411 = vpack.c.b16 %v2131, %v2126
  %v2412 = vpack.c.b16 %v2132, %v2127
  %v2413 = vpack.c.b16 %v2138, %v2133
  %v2414 = vpack.c.b16 %v2139, %v2134
  %v2415 = vpack.c.b16 %v2140, %v2135
  %v2416 = vpack.c.b16 %v2141, %v2136
  %v2417 = vpack.c.b16 %v2142, %v2137
  %v2418 = vpack.c.b16 %v2148, %v2143
  %v2419 = vpack.c.b16 %v2149, %v2144
  %v2420 = vpack.c.b16 %v2150, %v2145
  %v2421 = vpack.c.b16 %v2151, %v2146
  %v2422 = vpack.c.b16 %v2152, %v2147
  %v2423 = vpack.c.b16 %v2158, %v2153
  %v2424 = vpack.c.b16 %v2159, %v2154
  %v2425 = vpack.c.b16 %v2160, %v2155
  %v2426 = vpack.c.b16 %v2161, %v2156
  %v2427 = vpack.c.b16 %v2162, %v2157
  %v2428 = vpack.c.b16 %v2168, %v2163
  %v2429 = vpack.c.b16 %v2169, %v2164
  %v2430 = vpack.c.b16 %v2170, %v2165
  %v2431 = vpack.c.b16 %v2171, %v2166
  %v2432 = vpack.c.b16 %v2172, %v2167
  %v2433 = vpack.c.b16 %v2178, %v2173
  %v2434 = vpack.c.b16 %v2179, %v2174
  %v2435 = vpack.c.b16 %v2180, %v2175
  %v2436 = vpack.c.b16 %v2181, %v2176
  %v2437 = vpack.c.b16 %v2182, %v2177
  %v2438 = vpack.c.b16 %v2188, %v2183
  %v2439 = vpack.c.b16 %v2189, %v2184
  %v2440 = vpack.c.b16 %v2190, %v2185
  %v2441 = vpack.c.b16 %v2191, %v2186
  %v2442 = vpack.c.b16 %v2192, %v2187
  %v2443 = vpack.c.b16 %v2198, %v2193
  %v2444 = vpack.c.b16 %v2199, %v2194
  %v2445 = vpack.c.b16 %v2200, %v2195
  %v2446 = vpack.c.b16 %v2201, %v2196
  %v2447 = vpack.c.b16 %v2202, %v2197
  %v2448 = vpack.c.b16 %v2208, %v2203
  %v2449 = vpack.c.b16 %v2209, %v2204
  %v2450 = vpack.c.b16 %v2210, %v2205
  %v2451 = vpack.c.b16 %v2211, %v2206
  %v2452 = vpack.c.b16 %v2212, %v2207
  %v2453 = vpack.c.b16 %v2218, %v2213
  %v2454 = vpack.c.b16 %v2219, %v2214
  %v2455 = vpack.c.b16 %v2220, %v2215
  %v2456 = vpack.c.b16 %v2221, %v2216
  %v2457 = vpack.c.b16 %v2222, %v2217
  %v2458 = vpack.c.b16 %v2228, %v2223
  %v2459 = vpack.c.b16 %v2229, %v2224
  %v2460 = vpack.c.b16 %v2230, %v2225
  %v2461 = vpack.c.b16 %v2231, %v2226
  %v2462 = vpack.c.b16 %v2232, %v2227
  %v2463 = vpack.c.b16 %v2238, %v2233
  %v2464 = vpack.c.b16 %v2239, %v2234
  %v2465 = vpack.c.b16 %v2240, %v2235
  %v2466 = vpack.c.b16 %v2241, %v2236
  %v2467 = vpack.c.b16 %v2242, %v2237
  %v2468 = vpack.c.b16 %v2248, %v2243
  %v2469 = vpack.c.b16 %v2249, %v2244
  %v2470 = vpack.c.b16 %v2250, %v2245
  %v2471 = vpack.c.b16 %v2251, %v2246
  %v2472 = vpack.c.b16 %v2252, %v2247
  %v2473 = vpack.c.b16 %v2258, %v2253
  %v2474 = vpack.c.b16 %v2259, %v2254
  %v2475 = vpack.c.b16 %v2260, %v2255
  %v2476 = vpack.c.b16 %v2261, %v2256
  %v2477 = vpack.c.b16 %v2262, %v2257
  %v2478 = vpack.c.b16 %v2268, %v2263
  %v2479 = vpack.c.b16 %v2269, %v2264
  %v2480 = vpack.c.b16 %v2270, %v2265
  %v2481 = vpack.c.b16 %v2271, %v2266
  %v2482 = vpack.c.b16 %v2272, %v2267
  %v2483 = vpack.c.b16 %v2278, %v2273
  %v2484 = vpack.c.b16 %v2279, %v2274
  %v2485 = vpack.c.b16 %v2280, %v2275
  %v2486 = vpack.c.b16 %v2281, %v2276
  %v2487 = vpack.c.b16 %v2282, %v2277
  %v2488 = vpack.c.b16 %v2288, %v2283
  %v2489 = vpack.c.b16 %v2289, %v2284
  %v2490 = vpack.c.b16 %v2290, %v2285
  %v2491 = vpack.c.b16 %v2291, %v2286
  %v2492 = vpack.c.b16 %v2292, %v2287
  %v2493 = vpack.c.b16 %v2298, %v2293
  %v2494 = vpack.c.b16 %v2299, %v2294
  %v2495 = vpack.c.b16 %v2300, %v2295
  %v2496 = vpack.c.b16 %v2301, %v2296
  %v2497 = vpack.c.b16 %v2302, %v2297
  %v2498 = vpack.c.b16 %v2308, %v2303
  %v2499 = vpack.c.b16 %v2309, %v2304
  %v2500 = vpack.c.b16 %v2310, %v2305
  %v2501 = vpack.c.b16 %v2311, %v2306
  %v2502 = vpack.c.b16 %v2312, %v2307
  %v2503 = vpack.c.b16 %v2318, %v2313
  %v2504 = vpack.c.b16 %v2319, %v2314
  %v2505 = vpack.c.b16 %v2320, %v2315
  %v2506 = vpack.c.b16 %v2321, %v2316
  %v2507 = vpack.c.b16 %v2322, %v2317
  %v2508 = vpack.c.b16 %v2328, %v2323
  %v2509 = vpack.c.b16 %v2329, %v2324
  %v2510 = vpack.c.b16 %v2330, %v2325
  %v2511 = vpack.c.b16 %v2331, %v2326
  %v2512 = vpack.c.b16 %v2332, %v2327
  %v2513 = vpack.c.b16 %v2338, %v2333
  %v2514 = vpack.c.b16 %v2339, %v2334
  %v2515 = vpack.c.b16 %v2340, %v2335
  %v2516 = vpack.c.b16 %v2341, %v2336
  %v2517 = vpack.c.b16 %v2342, %v2337
  %v2518 = vpack.c.b16 %v2348, %v2343
  %v2519 = vpack.c.b16 %v2349, %v2344
  %v2520 = vpack.c.b16 %v2350, %v2345
  %v2521 = vpack.c.b16 %v2351, %v2346
  %v2522 = vpack.c.b16 %v2352, %v2347
  %v2523 = vpack.c.b16 %v2358, %v2353
  %v2524 = vpack.c.b16 %v2359, %v2354
  %v2525 = vpack.c.b16 %v2360, %v2355
  %v2526 = vpack.c.b16 %v2361, %v2356
  %v2527 = vpack.c.b16 %v2362, %v2357
  %v2528 = vpack.c.b16 %v2368, %v2363
  %v2529 = vpack.c.b16 %v2369, %v2364
  %v2530 = vpack.c.b16 %v2370, %v2365
  %v2531 = vpack.c.b16 %v2371, %v2366
  %v2532 = vpack.c.b16 %v2372, %v2367
  %2693 = vmatprep.subr.bf16.mxu0 %v2374
  %2694 = vmatpush1.bf16.msra.mxu0 %v2373
  %2695 = vmatprep.subr.bf16.mxu0 %v2379
  %2696 = vmatpush1.bf16.msra.mxu0 %v2378
  %2697 = vmatprep.subr.bf16.mxu0 %v2384
  %2698 = vmatpush1.bf16.msra.mxu0 %v2383
  %2699 = vmatprep.subr.bf16.mxu0 %v2389
  %2700 = vmatpush1.bf16.msra.mxu0 %v2388
  %2701 = vmatprep.subr.bf16.mxu0 %v2394
  %2702 = vmatpush1.bf16.msra.mxu0 %v2393
  %2703 = vmatprep.subr.bf16.mxu0 %v2399
  %2704 = vmatpush1.bf16.msra.mxu0 %v2398
  %2705 = vmatprep.subr.bf16.mxu0 %v2404
  %2706 = vmatpush1.bf16.msra.mxu0 %v2403
  %2707 = vmatprep.subr.bf16.mxu0 %v2409
  %2708 = vmatpush1.bf16.msra.mxu0 %v2408
  %2709 = vmatprep.subr.bf16.mxu0 %v2414
  %2710 = vmatpush1.bf16.msra.mxu0 %v2413
  %2711 = vmatprep.subr.bf16.mxu0 %v2419
  %2712 = vmatpush1.bf16.msra.mxu0 %v2418
  %2713 = vmatprep.subr.bf16.mxu0 %v2424
  %2714 = vmatpush1.bf16.msra.mxu0 %v2423
  %2715 = vmatprep.subr.bf16.mxu0 %v2429
  %2716 = vmatpush1.bf16.msra.mxu0 %v2428
  %2717 = vmatprep.subr.bf16.mxu0 %v2434
  %2718 = vmatpush1.bf16.msra.mxu0 %v2433
  %2719 = vmatprep.subr.bf16.mxu0 %v2439
  %2720 = vmatpush1.bf16.msra.mxu0 %v2438
  %2721 = vmatprep.subr.bf16.mxu0 %v2444
  %2722 = vmatpush1.bf16.msra.mxu0 %v2443
  %2723 = vmatprep.subr.bf16.mxu0 %v2449
  %2724 = vmatpush1.bf16.msra.mxu0 %v2448
  %2725 = vmatprep.mubr.bf16.mxu0 %v1579
  %2726 = vmatmul.mubr.bf16.gmra.mrb[0].mxu0 %v1578
  %v2727 = vpop.f32.mrb[0].mxu0
  %v2728 = vadd.f32 %v1839, %v2727
  %v2729 = vpop.f32.mrb[0].mxu0
  %v2730 = vadd.f32 %v1843, %v2729
  %v2731 = vpop.f32.mrb[0].mxu0
  %v2732 = vadd.f32 %v1839, %v2731
  %v2733 = vpop.f32.mrb[0].mxu0
  %v2734 = vadd.f32 %v1843, %v2733
  %2735 = vmatprep.mubr.bf16.mxu0 %v1583
  %2736 = vmatmul.mubr.bf16.gmra.mrb[0].mxu0 %v1582
  %v2737 = vpop.f32.mrb[0].mxu0
  %v2738 = vadd.f32 %v1839, %v2737
  %v2739 = vpop.f32.mrb[0].mxu0
  %v2740 = vadd.f32 %v1843, %v2739
  %v2741 = vpop.f32.mrb[0].mxu0
  %v2742 = vadd.f32 %v1839, %v2741
  %v2743 = vpop.f32.mrb[0].mxu0
  %v2744 = vadd.f32 %v1843, %v2743
  %2745 = vmatprep.mubr.bf16.mxu0 %v1587
  %2746 = vmatmul.mubr.bf16.gmra.mrb[0].mxu0 %v1586
  %v2747 = vpop.f32.mrb[0].mxu0
  %v2748 = vadd.f32 %v1839, %v2747
  %v2749 = vpop.f32.mrb[0].mxu0
  %v2750 = vadd.f32 %v1843, %v2749
  %v2751 = vpop.f32.mrb[0].mxu0
  %v2752 = vadd.f32 %v1839, %v2751
  %v2753 = vpop.f32.mrb[0].mxu0
  %v2754 = vadd.f32 %v1843, %v2753
  %2755 = vmatprep.mubr.bf16.mxu0 %v1591
  %2756 = vmatmul.mubr.bf16.gmra.mrb[0].mxu0 %v1590
  %v2757 = vpop.f32.mrb[0].mxu0
  %v2758 = vadd.f32 %v1839, %v2757
  %v2759 = vpop.f32.mrb[0].mxu0
  %v2760 = vadd.f32 %v1843, %v2759
  %v2761 = vpop.f32.mrb[0].mxu0
  %v2762 = vadd.f32 %v1839, %v2761
  %v2763 = vpop.f32.mrb[0].mxu0
  %v2764 = vadd.f32 %v1843, %v2763
  %2765 = vmatprep.mubr.bf16.mxu0 %v1595
  %2766 = vmatmul.mubr.bf16.gmra.mrb[0].mxu0 %v1594
  %v2767 = vpop.f32.mrb[0].mxu0
  %v2768 = vadd.f32 %v1839, %v2767
  %v2769 = vpop.f32.mrb[0].mxu0
  %v2770 = vadd.f32 %v1843, %v2769
  %v2771 = vpop.f32.mrb[0].mxu0
  %v2772 = vadd.f32 %v1839, %v2771
  %v2773 = vpop.f32.mrb[0].mxu0
  %v2774 = vadd.f32 %v1843, %v2773
  %2775 = vmatprep.mubr.bf16.mxu0 %v1599
  %2776 = vmatmul.mubr.bf16.gmra.mrb[0].mxu0 %v1598
  %v2777 = vpop.f32.mrb[0].mxu0
  %v2778 = vadd.f32 %v1839, %v2777
  %v2779 = vpop.f32.mrb[0].mxu0
  %v2780 = vadd.f32 %v1843, %v2779
  %v2781 = vpop.f32.mrb[0].mxu0
  %v2782 = vadd.f32 %v1839, %v2781
  %v2783 = vpop.f32.mrb[0].mxu0
  %v2784 = vadd.f32 %v1843, %v2783
  %2785 = vmatprep.mubr.bf16.mxu0 %v1603
  %2786 = vmatmul.mubr.bf16.gmra.mrb[0].mxu0 %v1602
  %v2787 = vpop.f32.mrb[0].mxu0
  %v2788 = vadd.f32 %v1839, %v2787
  %v2789 = vpop.f32.mrb[0].mxu0
  %v2790 = vadd.f32 %v1843, %v2789
  %v2791 = vpop.f32.mrb[0].mxu0
  %v2792 = vadd.f32 %v1839, %v2791
  %v2793 = vpop.f32.mrb[0].mxu0
  %v2794 = vadd.f32 %v1843, %v2793
  %2795 = vmatprep.mubr.bf16.mxu0 %v1607
  %2796 = vmatmul.mubr.bf16.gmra.mrb[0].mxu0 %v1606
  %v2797 = vpop.f32.mrb[0].mxu0
  %v2798 = vadd.f32 %v1839, %v2797
  %v2799 = vpop.f32.mrb[0].mxu0
  %v2800 = vadd.f32 %v1843, %v2799
  %v2801 = vpop.f32.mrb[0].mxu0
  %v2802 = vadd.f32 %v1839, %v2801
  %v2803 = vpop.f32.mrb[0].mxu0
  %v2804 = vadd.f32 %v1843, %v2803
  %2805 = vmatprep.mubr.bf16.mxu0 %v1611
  %2806 = vmatmul.mubr.bf16.gmra.mrb[0].mxu0 %v1610
  %v2807 = vpop.f32.mrb[0].mxu0
  %v2808 = vadd.f32 %v1839, %v2807
  %v2809 = vpop.f32.mrb[0].mxu0
  %v2810 = vadd.f32 %v1843, %v2809
  %v2811 = vpop.f32.mrb[0].mxu0
  %v2812 = vadd.f32 %v1839, %v2811
  %v2813 = vpop.f32.mrb[0].mxu0
  %v2814 = vadd.f32 %v1843, %v2813
  %2815 = vmatprep.mubr.bf16.mxu0 %v1615
  %2816 = vmatmul.mubr.bf16.gmra.mrb[0].mxu0 %v1614
  %v2817 = vpop.f32.mrb[0].mxu0
  %v2818 = vadd.f32 %v1839, %v2817
  %v2819 = vpop.f32.mrb[0].mxu0
  %v2820 = vadd.f32 %v1843, %v2819
  %v2821 = vpop.f32.mrb[0].mxu0
  %v2822 = vadd.f32 %v1839, %v2821
  %v2823 = vpop.f32.mrb[0].mxu0
  %v2824 = vadd.f32 %v1843, %v2823
  %2825 = vmatprep.mubr.bf16.mxu0 %v1619
  %2826 = vmatmul.mubr.bf16.gmra.mrb[0].mxu0 %v1618
  %v2827 = vpop.f32.mrb[0].mxu0
  %v2828 = vadd.f32 %v1839, %v2827
  %v2829 = vpop.f32.mrb[0].mxu0
  %v2830 = vadd.f32 %v1843, %v2829
  %v2831 = vpop.f32.mrb[0].mxu0
  %v2832 = vadd.f32 %v1839, %v2831
  %v2833 = vpop.f32.mrb[0].mxu0
  %v2834 = vadd.f32 %v1843, %v2833
  %2835 = vmatprep.mubr.bf16.mxu0 %v1623
  %2836 = vmatmul.mubr.bf16.gmra.mrb[0].mxu0 %v1622
  %v2837 = vpop.f32.mrb[0].mxu0
  %v2838 = vadd.f32 %v1839, %v2837
  %v2839 = vpop.f32.mrb[0].mxu0
  %v2840 = vadd.f32 %v1843, %v2839
  %v2841 = vpop.f32.mrb[0].mxu0
  %v2842 = vadd.f32 %v1839, %v2841
  %v2843 = vpop.f32.mrb[0].mxu0
  %v2844 = vadd.f32 %v1843, %v2843
  %2845 = vmatprep.mubr.bf16.mxu0 %v1627
  %2846 = vmatmul.mubr.bf16.gmra.mrb[0].mxu0 %v1626
  %v2847 = vpop.f32.mrb[0].mxu0
  %v2848 = vadd.f32 %v1839, %v2847
  %v2849 = vpop.f32.mrb[0].mxu0
  %v2850 = vadd.f32 %v1843, %v2849
  %v2851 = vpop.f32.mrb[0].mxu0
  %v2852 = vadd.f32 %v1839, %v2851
  %v2853 = vpop.f32.mrb[0].mxu0
  %v2854 = vadd.f32 %v1843, %v2853
  %2855 = vmatprep.mubr.bf16.mxu0 %v1631
  %2856 = vmatmul.mubr.bf16.gmra.mrb[0].mxu0 %v1630
  %v2857 = vpop.f32.mrb[0].mxu0
  %v2858 = vadd.f32 %v1839, %v2857
  %v2859 = vpop.f32.mrb[0].mxu0
  %v2860 = vadd.f32 %v1843, %v2859
  %v2861 = vpop.f32.mrb[0].mxu0
  %v2862 = vadd.f32 %v1839, %v2861
  %v2863 = vpop.f32.mrb[0].mxu0
  %v2864 = vadd.f32 %v1843, %v2863
  %2865 = vmatprep.mubr.bf16.mxu0 %v1635
  %2866 = vmatmul.mubr.bf16.gmra.mrb[0].mxu0 %v1634
  %v2867 = vpop.f32.mrb[0].mxu0
  %v2868 = vadd.f32 %v1839, %v2867
  %v2869 = vpop.f32.mrb[0].mxu0
  %v2870 = vadd.f32 %v1843, %v2869
  %v2871 = vpop.f32.mrb[0].mxu0
  %v2872 = vadd.f32 %v1839, %v2871
  %v2873 = vpop.f32.mrb[0].mxu0
  %v2874 = vadd.f32 %v1843, %v2873
  %2875 = vmatprep.mubr.bf16.mxu0 %v1639
  %2876 = vmatmul.mubr.bf16.gmra.mrb[0].mxu0 %v1638
  %v2877 = vpop.f32.mrb[0].mxu0
  %v2878 = vadd.f32 %v1839, %v2877
  %v2879 = vpop.f32.mrb[0].mxu0
  %v2880 = vadd.f32 %v1843, %v2879
  %v2881 = vpop.f32.mrb[0].mxu0
  %v2882 = vadd.f32 %v1839, %v2881
  %v2883 = vpop.f32.mrb[0].mxu0
  %v2884 = vadd.f32 %v1843, %v2883
  %2885 = vdwg.mxu0
  %2886 = vmatprep.subr.bf16.mxu0 %v2454
  %2887 = vmatpush1.bf16.msra.mxu0 %v2453
  %2888 = vmatprep.subr.bf16.mxu0 %v2459
  %2889 = vmatpush1.bf16.msra.mxu0 %v2458
  %2890 = vmatprep.subr.bf16.mxu0 %v2464
  %2891 = vmatpush1.bf16.msra.mxu0 %v2463
  %2892 = vmatprep.subr.bf16.mxu0 %v2469
  %2893 = vmatpush1.bf16.msra.mxu0 %v2468
  %2894 = vmatprep.subr.bf16.mxu0 %v2474
  %2895 = vmatpush1.bf16.msra.mxu0 %v2473
  %2896 = vmatprep.subr.bf16.mxu0 %v2479
  %2897 = vmatpush1.bf16.msra.mxu0 %v2478
  %2898 = vmatprep.subr.bf16.mxu0 %v2484
  %2899 = vmatpush1.bf16.msra.mxu0 %v2483
  %2900 = vmatprep.subr.bf16.mxu0 %v2489
  %2901 = vmatpush1.bf16.msra.mxu0 %v2488
  %2902 = vmatprep.subr.bf16.mxu0 %v2494
  %2903 = vmatpush1.bf16.msra.mxu0 %v2493
  %2904 = vmatprep.subr.bf16.mxu0 %v2499
  %2905 = vmatpush1.bf16.msra.mxu0 %v2498
  %2906 = vmatprep.subr.bf16.mxu0 %v2504
  %2907 = vmatpush1.bf16.msra.mxu0 %v2503
  %2908 = vmatprep.subr.bf16.mxu0 %v2509
  %2909 = vmatpush1.bf16.msra.mxu0 %v2508
  %2910 = vmatprep.subr.bf16.mxu0 %v2514
  %2911 = vmatpush1.bf16.msra.mxu0 %v2513
  %2912 = vmatprep.subr.bf16.mxu0 %v2519
  %2913 = vmatpush1.bf16.msra.mxu0 %v2518
  %2914 = vmatprep.subr.bf16.mxu0 %v2524
  %2915 = vmatpush1.bf16.msra.mxu0 %v2523
  %2916 = vmatprep.subr.bf16.mxu0 %v2529
  %2917 = vmatpush1.bf16.msra.mxu0 %v2528
  %2918 = vmatprep.mubr.bf16.mxu0 %v1581
  %2919 = vmatmul.mubr.bf16.gmra.mrb[0].mxu0 %v1580
  %v2920 = vpop.f32.mrb[0].mxu0
  %v2921 = vadd.f32 %v2728, %v2920
  %v2922 = vpop.f32.mrb[0].mxu0
  %v2923 = vadd.f32 %v2730, %v2922
  %v2924 = vpop.f32.mrb[0].mxu0
  %v2925 = vadd.f32 %v2732, %v2924
  %v2926 = vpop.f32.mrb[0].mxu0
  %v2927 = vadd.f32 %v2734, %v2926
  %2928 = vmatprep.mubr.bf16.mxu0 %v1585
  %2929 = vmatmul.mubr.bf16.gmra.mrb[0].mxu0 %v1584
  %v2930 = vpop.f32.mrb[0].mxu0
  %v2931 = vadd.f32 %v2738, %v2930
  %v2932 = vpop.f32.mrb[0].mxu0
  %v2933 = vadd.f32 %v2740, %v2932
  %v2934 = vpop.f32.mrb[0].mxu0
  %v2935 = vadd.f32 %v2742, %v2934
  %v2936 = vpop.f32.mrb[0].mxu0
  %v2937 = vadd.f32 %v2744, %v2936
  %2938 = vmatprep.mubr.bf16.mxu0 %v1589
  %2939 = vmatmul.mubr.bf16.gmra.mrb[0].mxu0 %v1588
  %v2940 = vpop.f32.mrb[0].mxu0
  %v2941 = vadd.f32 %v2748, %v2940
  %v2942 = vpop.f32.mrb[0].mxu0
  %v2943 = vadd.f32 %v2750, %v2942
  %v2944 = vpop.f32.mrb[0].mxu0
  %v2945 = vadd.f32 %v2752, %v2944
  %v2946 = vpop.f32.mrb[0].mxu0
  %v2947 = vadd.f32 %v2754, %v2946
  %2948 = vmatprep.mubr.bf16.mxu0 %v1593
  %2949 = vmatmul.mubr.bf16.gmra.mrb[0].mxu0 %v1592
  %v2950 = vpop.f32.mrb[0].mxu0
  %v2951 = vadd.f32 %v2758, %v2950
  %v2952 = vpop.f32.mrb[0].mxu0
  %v2953 = vadd.f32 %v2760, %v2952
  %v2954 = vpop.f32.mrb[0].mxu0
  %v2955 = vadd.f32 %v2762, %v2954
  %v2956 = vpop.f32.mrb[0].mxu0
  %v2957 = vadd.f32 %v2764, %v2956
  %2958 = vmatprep.mubr.bf16.mxu0 %v1597
  %2959 = vmatmul.mubr.bf16.gmra.mrb[0].mxu0 %v1596
  %v2960 = vpop.f32.mrb[0].mxu0
  %v2961 = vadd.f32 %v2768, %v2960
  %v2962 = vpop.f32.mrb[0].mxu0
  %v2963 = vadd.f32 %v2770, %v2962
  %v2964 = vpop.f32.mrb[0].mxu0
  %v2965 = vadd.f32 %v2772, %v2964
  %v2966 = vpop.f32.mrb[0].mxu0
  %v2967 = vadd.f32 %v2774, %v2966
  %2968 = vmatprep.mubr.bf16.mxu0 %v1601
  %2969 = vmatmul.mubr.bf16.gmra.mrb[0].mxu0 %v1600
  %v2970 = vpop.f32.mrb[0].mxu0
  %v2971 = vadd.f32 %v2778, %v2970
  %v2972 = vpop.f32.mrb[0].mxu0
  %v2973 = vadd.f32 %v2780, %v2972
  %v2974 = vpop.f32.mrb[0].mxu0
  %v2975 = vadd.f32 %v2782, %v2974
  %v2976 = vpop.f32.mrb[0].mxu0
  %v2977 = vadd.f32 %v2784, %v2976
  %2978 = vmatprep.mubr.bf16.mxu0 %v1605
  %2979 = vmatmul.mubr.bf16.gmra.mrb[0].mxu0 %v1604
  %v2980 = vpop.f32.mrb[0].mxu0
  %v2981 = vadd.f32 %v2788, %v2980
  %v2982 = vpop.f32.mrb[0].mxu0
  %v2983 = vadd.f32 %v2790, %v2982
  %v2984 = vpop.f32.mrb[0].mxu0
  %v2985 = vadd.f32 %v2792, %v2984
  %v2986 = vpop.f32.mrb[0].mxu0
  %v2987 = vadd.f32 %v2794, %v2986
  %2988 = vmatprep.mubr.bf16.mxu0 %v1609
  %2989 = vmatmul.mubr.bf16.gmra.mrb[0].mxu0 %v1608
  %v2990 = vpop.f32.mrb[0].mxu0
  %v2991 = vadd.f32 %v2798, %v2990
  %v2992 = vpop.f32.mrb[0].mxu0
  %v2993 = vadd.f32 %v2800, %v2992
  %v2994 = vpop.f32.mrb[0].mxu0
  %v2995 = vadd.f32 %v2802, %v2994
  %v2996 = vpop.f32.mrb[0].mxu0
  %v2997 = vadd.f32 %v2804, %v2996
  %2998 = vmatprep.mubr.bf16.mxu0 %v1613
  %2999 = vmatmul.mubr.bf16.gmra.mrb[0].mxu0 %v1612
  %v3000 = vpop.f32.mrb[0].mxu0
  %v3001 = vadd.f32 %v2808, %v3000
  %v3002 = vpop.f32.mrb[0].mxu0
  %v3003 = vadd.f32 %v2810, %v3002
  %v3004 = vpop.f32.mrb[0].mxu0
  %v3005 = vadd.f32 %v2812, %v3004
  %v3006 = vpop.f32.mrb[0].mxu0
  %v3007 = vadd.f32 %v2814, %v3006
  %3008 = vmatprep.mubr.bf16.mxu0 %v1617
  %3009 = vmatmul.mubr.bf16.gmra.mrb[0].mxu0 %v1616
  %v3010 = vpop.f32.mrb[0].mxu0
  %v3011 = vadd.f32 %v2818, %v3010
  %v3012 = vpop.f32.mrb[0].mxu0
  %v3013 = vadd.f32 %v2820, %v3012
  %v3014 = vpop.f32.mrb[0].mxu0
  %v3015 = vadd.f32 %v2822, %v3014
  %v3016 = vpop.f32.mrb[0].mxu0
  %v3017 = vadd.f32 %v2824, %v3016
  %3018 = vmatprep.mubr.bf16.mxu0 %v1621
  %3019 = vmatmul.mubr.bf16.gmra.mrb[0].mxu0 %v1620
  %v3020 = vpop.f32.mrb[0].mxu0
  %v3021 = vadd.f32 %v2828, %v3020
  %v3022 = vpop.f32.mrb[0].mxu0
  %v3023 = vadd.f32 %v2830, %v3022
  %v3024 = vpop.f32.mrb[0].mxu0
  %v3025 = vadd.f32 %v2832, %v3024
  %v3026 = vpop.f32.mrb[0].mxu0
  %v3027 = vadd.f32 %v2834, %v3026
  %3028 = vmatprep.mubr.bf16.mxu0 %v1625
  %3029 = vmatmul.mubr.bf16.gmra.mrb[0].mxu0 %v1624
  %v3030 = vpop.f32.mrb[0].mxu0
  %v3031 = vadd.f32 %v2838, %v3030
  %v3032 = vpop.f32.mrb[0].mxu0
  %v3033 = vadd.f32 %v2840, %v3032
  %v3034 = vpop.f32.mrb[0].mxu0
  %v3035 = vadd.f32 %v2842, %v3034
  %v3036 = vpop.f32.mrb[0].mxu0
  %v3037 = vadd.f32 %v2844, %v3036
  %3038 = vmatprep.mubr.bf16.mxu0 %v1629
  %3039 = vmatmul.mubr.bf16.gmra.mrb[0].mxu0 %v1628
  %v3040 = vpop.f32.mrb[0].mxu0
  %v3041 = vadd.f32 %v2848, %v3040
  %v3042 = vpop.f32.mrb[0].mxu0
  %v3043 = vadd.f32 %v2850, %v3042
  %v3044 = vpop.f32.mrb[0].mxu0
  %v3045 = vadd.f32 %v2852, %v3044
  %v3046 = vpop.f32.mrb[0].mxu0
  %v3047 = vadd.f32 %v2854, %v3046
  %3048 = vmatprep.mubr.bf16.mxu0 %v1633
  %3049 = vmatmul.mubr.bf16.gmra.mrb[0].mxu0 %v1632
  %v3050 = vpop.f32.mrb[0].mxu0
  %v3051 = vadd.f32 %v2858, %v3050
  %v3052 = vpop.f32.mrb[0].mxu0
  %v3053 = vadd.f32 %v2860, %v3052
  %v3054 = vpop.f32.mrb[0].mxu0
  %v3055 = vadd.f32 %v2862, %v3054
  %v3056 = vpop.f32.mrb[0].mxu0
  %v3057 = vadd.f32 %v2864, %v3056
  %3058 = vmatprep.mubr.bf16.mxu0 %v1637
  %3059 = vmatmul.mubr.bf16.gmra.mrb[0].mxu0 %v1636
  %v3060 = vpop.f32.mrb[0].mxu0
  %v3061 = vadd.f32 %v2868, %v3060
  %v3062 = vpop.f32.mrb[0].mxu0
  %v3063 = vadd.f32 %v2870, %v3062
  %v3064 = vpop.f32.mrb[0].mxu0
  %v3065 = vadd.f32 %v2872, %v3064
  %v3066 = vpop.f32.mrb[0].mxu0
  %v3067 = vadd.f32 %v2874, %v3066
  %3068 = vmatprep.mubr.bf16.mxu0 %v1641
  %3069 = vmatmul.mubr.bf16.gmra.mrb[0].mxu0 %v1640
  %v3070 = vpop.f32.mrb[0].mxu0
  %v3071 = vadd.f32 %v2878, %v3070
  %v3072 = vpop.f32.mrb[0].mxu0
  %v3073 = vadd.f32 %v2880, %v3072
  %v3074 = vpop.f32.mrb[0].mxu0
  %v3075 = vadd.f32 %v2882, %v3074
  %v3076 = vpop.f32.mrb[0].mxu0
  %v3077 = vadd.f32 %v2884, %v3076
  %3078 = vdwg.mxu0
  %3079 = vmatprep.subr.bf16.mxu0 %v2376
  %3080 = vmatpush1.bf16.msra.mxu0 %v2375
  %3081 = vmatprep.subr.bf16.mxu0 %v2381
  %3082 = vmatpush1.bf16.msra.mxu0 %v2380
  %3083 = vmatprep.subr.bf16.mxu0 %v2386
  %3084 = vmatpush1.bf16.msra.mxu0 %v2385
  %3085 = vmatprep.subr.bf16.mxu0 %v2391
  %3086 = vmatpush1.bf16.msra.mxu0 %v2390
  %3087 = vmatprep.subr.bf16.mxu0 %v2396
  %3088 = vmatpush1.bf16.msra.mxu0 %v2395
  %3089 = vmatprep.subr.bf16.mxu0 %v2401
  %3090 = vmatpush1.bf16.msra.mxu0 %v2400
  %3091 = vmatprep.subr.bf16.mxu0 %v2406
  %3092 = vmatpush1.bf16.msra.mxu0 %v2405
  %3093 = vmatprep.subr.bf16.mxu0 %v2411
  %3094 = vmatpush1.bf16.msra.mxu0 %v2410
  %3095 = vmatprep.subr.bf16.mxu0 %v2416
  %3096 = vmatpush1.bf16.msra.mxu0 %v2415
  %3097 = vmatprep.subr.bf16.mxu0 %v2421
  %3098 = vmatpush1.bf16.msra.mxu0 %v2420
  %3099 = vmatprep.subr.bf16.mxu0 %v2426
  %3100 = vmatpush1.bf16.msra.mxu0 %v2425
  %3101 = vmatprep.subr.bf16.mxu0 %v2431
  %3102 = vmatpush1.bf16.msra.mxu0 %v2430
  %3103 = vmatprep.subr.bf16.mxu0 %v2436
  %3104 = vmatpush1.bf16.msra.mxu0 %v2435
  %3105 = vmatprep.subr.bf16.mxu0 %v2441
  %3106 = vmatpush1.bf16.msra.mxu0 %v2440
  %3107 = vmatprep.subr.bf16.mxu0 %v2446
  %3108 = vmatpush1.bf16.msra.mxu0 %v2445
  %3109 = vmatprep.subr.bf16.mxu0 %v2451
  %3110 = vmatpush1.bf16.msra.mxu0 %v2450
  %3111 = vmatprep.mubr.bf16.mxu0 %v1579
  %3112 = vmatmul.mubr.bf16.gmra.mrb[0].mxu0 %v1578
  %v3113 = vpop.f32.mrb[0].mxu0
  %v3114 = vadd.f32 %v1847, %v3113
  %v3115 = vpop.f32.mrb[0].mxu0
  %v3116 = vadd.f32 %v1851, %v3115
  %v3117 = vpop.f32.mrb[0].mxu0
  %v3118 = vadd.f32 %v1847, %v3117
  %v3119 = vpop.f32.mrb[0].mxu0
  %v3120 = vadd.f32 %v1851, %v3119
  %3121 = vmatprep.mubr.bf16.mxu0 %v1583
  %3122 = vmatmul.mubr.bf16.gmra.mrb[0].mxu0 %v1582
  %v3123 = vpop.f32.mrb[0].mxu0
  %v3124 = vadd.f32 %v1847, %v3123
  %v3125 = vpop.f32.mrb[0].mxu0
  %v3126 = vadd.f32 %v1851, %v3125
  %v3127 = vpop.f32.mrb[0].mxu0
  %v3128 = vadd.f32 %v1847, %v3127
  %v3129 = vpop.f32.mrb[0].mxu0
  %v3130 = vadd.f32 %v1851, %v3129
  %3131 = vmatprep.mubr.bf16.mxu0 %v1587
  %3132 = vmatmul.mubr.bf16.gmra.mrb[0].mxu0 %v1586
  %v3133 = vpop.f32.mrb[0].mxu0
  %v3134 = vadd.f32 %v1847, %v3133
  %v3135 = vpop.f32.mrb[0].mxu0
  %v3136 = vadd.f32 %v1851, %v3135
  %v3137 = vpop.f32.mrb[0].mxu0
  %v3138 = vadd.f32 %v1847, %v3137
  %v3139 = vpop.f32.mrb[0].mxu0
  %v3140 = vadd.f32 %v1851, %v3139
  %3141 = vmatprep.mubr.bf16.mxu0 %v1591
  %3142 = vmatmul.mubr.bf16.gmra.mrb[0].mxu0 %v1590
  %v3143 = vpop.f32.mrb[0].mxu0
  %v3144 = vadd.f32 %v1847, %v3143
  %v3145 = vpop.f32.mrb[0].mxu0
  %v3146 = vadd.f32 %v1851, %v3145
  %v3147 = vpop.f32.mrb[0].mxu0
  %v3148 = vadd.f32 %v1847, %v3147
  %v3149 = vpop.f32.mrb[0].mxu0
  %v3150 = vadd.f32 %v1851, %v3149
  %3151 = vmatprep.mubr.bf16.mxu0 %v1595
  %3152 = vmatmul.mubr.bf16.gmra.mrb[0].mxu0 %v1594
  %v3153 = vpop.f32.mrb[0].mxu0
  %v3154 = vadd.f32 %v1847, %v3153
  %v3155 = vpop.f32.mrb[0].mxu0
  %v3156 = vadd.f32 %v1851, %v3155
  %v3157 = vpop.f32.mrb[0].mxu0
  %v3158 = vadd.f32 %v1847, %v3157
  %v3159 = vpop.f32.mrb[0].mxu0
  %v3160 = vadd.f32 %v1851, %v3159
  %3161 = vmatprep.mubr.bf16.mxu0 %v1599
  %3162 = vmatmul.mubr.bf16.gmra.mrb[0].mxu0 %v1598
  %v3163 = vpop.f32.mrb[0].mxu0
  %v3164 = vadd.f32 %v1847, %v3163
  %v3165 = vpop.f32.mrb[0].mxu0
  %v3166 = vadd.f32 %v1851, %v3165
  %v3167 = vpop.f32.mrb[0].mxu0
  %v3168 = vadd.f32 %v1847, %v3167
  %v3169 = vpop.f32.mrb[0].mxu0
  %v3170 = vadd.f32 %v1851, %v3169
  %3171 = vmatprep.mubr.bf16.mxu0 %v1603
  %3172 = vmatmul.mubr.bf16.gmra.mrb[0].mxu0 %v1602
  %v3173 = vpop.f32.mrb[0].mxu0
  %v3174 = vadd.f32 %v1847, %v3173
  %v3175 = vpop.f32.mrb[0].mxu0
  %v3176 = vadd.f32 %v1851, %v3175
  %v3177 = vpop.f32.mrb[0].mxu0
  %v3178 = vadd.f32 %v1847, %v3177
  %v3179 = vpop.f32.mrb[0].mxu0
  %v3180 = vadd.f32 %v1851, %v3179
  %3181 = vmatprep.mubr.bf16.mxu0 %v1607
  %3182 = vmatmul.mubr.bf16.gmra.mrb[0].mxu0 %v1606
  %v3183 = vpop.f32.mrb[0].mxu0
  %v3184 = vadd.f32 %v1847, %v3183
  %v3185 = vpop.f32.mrb[0].mxu0
  %v3186 = vadd.f32 %v1851, %v3185
  %v3187 = vpop.f32.mrb[0].mxu0
  %v3188 = vadd.f32 %v1847, %v3187
  %v3189 = vpop.f32.mrb[0].mxu0
  %v3190 = vadd.f32 %v1851, %v3189
  %3191 = vmatprep.mubr.bf16.mxu0 %v1611
  %3192 = vmatmul.mubr.bf16.gmra.mrb[0].mxu0 %v1610
  %v3193 = vpop.f32.mrb[0].mxu0
  %v3194 = vadd.f32 %v1847, %v3193
  %v3195 = vpop.f32.mrb[0].mxu0
  %v3196 = vadd.f32 %v1851, %v3195
  %v3197 = vpop.f32.mrb[0].mxu0
  %v3198 = vadd.f32 %v1847, %v3197
  %v3199 = vpop.f32.mrb[0].mxu0
  %v3200 = vadd.f32 %v1851, %v3199
  %3201 = vmatprep.mubr.bf16.mxu0 %v1615
  %3202 = vmatmul.mubr.bf16.gmra.mrb[0].mxu0 %v1614
  %v3203 = vpop.f32.mrb[0].mxu0
  %v3204 = vadd.f32 %v1847, %v3203
  %v3205 = vpop.f32.mrb[0].mxu0
  %v3206 = vadd.f32 %v1851, %v3205
  %v3207 = vpop.f32.mrb[0].mxu0
  %v3208 = vadd.f32 %v1847, %v3207
  %v3209 = vpop.f32.mrb[0].mxu0
  %v3210 = vadd.f32 %v1851, %v3209
  %3211 = vmatprep.mubr.bf16.mxu0 %v1619
  %3212 = vmatmul.mubr.bf16.gmra.mrb[0].mxu0 %v1618
  %v3213 = vpop.f32.mrb[0].mxu0
  %v3214 = vadd.f32 %v1847, %v3213
  %v3215 = vpop.f32.mrb[0].mxu0
  %v3216 = vadd.f32 %v1851, %v3215
  %v3217 = vpop.f32.mrb[0].mxu0
  %v3218 = vadd.f32 %v1847, %v3217
  %v3219 = vpop.f32.mrb[0].mxu0
  %v3220 = vadd.f32 %v1851, %v3219
  %3221 = vmatprep.mubr.bf16.mxu0 %v1623
  %3222 = vmatmul.mubr.bf16.gmra.mrb[0].mxu0 %v1622
  %v3223 = vpop.f32.mrb[0].mxu0
  %v3224 = vadd.f32 %v1847, %v3223
  %v3225 = vpop.f32.mrb[0].mxu0
  %v3226 = vadd.f32 %v1851, %v3225
  %v3227 = vpop.f32.mrb[0].mxu0
  %v3228 = vadd.f32 %v1847, %v3227
  %v3229 = vpop.f32.mrb[0].mxu0
  %v3230 = vadd.f32 %v1851, %v3229
  %3231 = vmatprep.mubr.bf16.mxu0 %v1627
  %3232 = vmatmul.mubr.bf16.gmra.mrb[0].mxu0 %v1626
  %v3233 = vpop.f32.mrb[0].mxu0
  %v3234 = vadd.f32 %v1847, %v3233
  %v3235 = vpop.f32.mrb[0].mxu0
  %v3236 = vadd.f32 %v1851, %v3235
  %v3237 = vpop.f32.mrb[0].mxu0
  %v3238 = vadd.f32 %v1847, %v3237
  %v3239 = vpop.f32.mrb[0].mxu0
  %v3240 = vadd.f32 %v1851, %v3239
  %3241 = vmatprep.mubr.bf16.mxu0 %v1631
  %3242 = vmatmul.mubr.bf16.gmra.mrb[0].mxu0 %v1630
  %v3243 = vpop.f32.mrb[0].mxu0
  %v3244 = vadd.f32 %v1847, %v3243
  %v3245 = vpop.f32.mrb[0].mxu0
  %v3246 = vadd.f32 %v1851, %v3245
  %v3247 = vpop.f32.mrb[0].mxu0
  %v3248 = vadd.f32 %v1847, %v3247
  %v3249 = vpop.f32.mrb[0].mxu0
  %v3250 = vadd.f32 %v1851, %v3249
  %3251 = vmatprep.mubr.bf16.mxu0 %v1635
  %3252 = vmatmul.mubr.bf16.gmra.mrb[0].mxu0 %v1634
  %v3253 = vpop.f32.mrb[0].mxu0
  %v3254 = vadd.f32 %v1847, %v3253
  %v3255 = vpop.f32.mrb[0].mxu0
  %v3256 = vadd.f32 %v1851, %v3255
  %v3257 = vpop.f32.mrb[0].mxu0
  %v3258 = vadd.f32 %v1847, %v3257
  %v3259 = vpop.f32.mrb[0].mxu0
  %v3260 = vadd.f32 %v1851, %v3259
  %3261 = vmatprep.mubr.bf16.mxu0 %v1639
  %3262 = vmatmul.mubr.bf16.gmra.mrb[0].mxu0 %v1638
  %v3263 = vpop.f32.mrb[0].mxu0
  %v3264 = vadd.f32 %v1847, %v3263
  %v3265 = vpop.f32.mrb[0].mxu0
  %v3266 = vadd.f32 %v1851, %v3265
  %v3267 = vpop.f32.mrb[0].mxu0
  %v3268 = vadd.f32 %v1847, %v3267
  %v3269 = vpop.f32.mrb[0].mxu0
  %v3270 = vadd.f32 %v1851, %v3269
  %3271 = vdwg.mxu0
  %3272 = vmatprep.subr.bf16.mxu0 %v2456
  %3273 = vmatpush1.bf16.msra.mxu0 %v2455
  %3274 = vmatprep.subr.bf16.mxu0 %v2461
  %3275 = vmatpush1.bf16.msra.mxu0 %v2460
  %3276 = vmatprep.subr.bf16.mxu0 %v2466
  %3277 = vmatpush1.bf16.msra.mxu0 %v2465
  %3278 = vmatprep.subr.bf16.mxu0 %v2471
  %3279 = vmatpush1.bf16.msra.mxu0 %v2470
  %3280 = vmatprep.subr.bf16.mxu0 %v2476
  %3281 = vmatpush1.bf16.msra.mxu0 %v2475
  %3282 = vmatprep.subr.bf16.mxu0 %v2481
  %3283 = vmatpush1.bf16.msra.mxu0 %v2480
  %3284 = vmatprep.subr.bf16.mxu0 %v2486
  %3285 = vmatpush1.bf16.msra.mxu0 %v2485
  %3286 = vmatprep.subr.bf16.mxu0 %v2491
  %3287 = vmatpush1.bf16.msra.mxu0 %v2490
  %3288 = vmatprep.subr.bf16.mxu0 %v2496
  %3289 = vmatpush1.bf16.msra.mxu0 %v2495
  %3290 = vmatprep.subr.bf16.mxu0 %v2501
  %3291 = vmatpush1.bf16.msra.mxu0 %v2500
  %3292 = vmatprep.subr.bf16.mxu0 %v2506
  %3293 = vmatpush1.bf16.msra.mxu0 %v2505
  %3294 = vmatprep.subr.bf16.mxu0 %v2511
  %3295 = vmatpush1.bf16.msra.mxu0 %v2510
  %3296 = vmatprep.subr.bf16.mxu0 %v2516
  %3297 = vmatpush1.bf16.msra.mxu0 %v2515
  %3298 = vmatprep.subr.bf16.mxu0 %v2521
  %3299 = vmatpush1.bf16.msra.mxu0 %v2520
  %3300 = vmatprep.subr.bf16.mxu0 %v2526
  %3301 = vmatpush1.bf16.msra.mxu0 %v2525
  %3302 = vmatprep.subr.bf16.mxu0 %v2531
  %3303 = vmatpush1.bf16.msra.mxu0 %v2530
  %3304 = vmatprep.mubr.bf16.mxu0 %v1581
  %3305 = vmatmul.mubr.bf16.gmra.mrb[0].mxu0 %v1580
  %v3306 = vpop.f32.mrb[0].mxu0
  %v3307 = vadd.f32 %v3114, %v3306
  %v3308 = vpop.f32.mrb[0].mxu0
  %v3309 = vadd.f32 %v3116, %v3308
  %v3310 = vpop.f32.mrb[0].mxu0
  %v3311 = vadd.f32 %v3118, %v3310
  %v3312 = vpop.f32.mrb[0].mxu0
  %v3313 = vadd.f32 %v3120, %v3312
  %3314 = vmatprep.mubr.bf16.mxu0 %v1585
  %3315 = vmatmul.mubr.bf16.gmra.mrb[0].mxu0 %v1584
  %v3316 = vpop.f32.mrb[0].mxu0
  %v3317 = vadd.f32 %v3124, %v3316
  %v3318 = vpop.f32.mrb[0].mxu0
  %v3319 = vadd.f32 %v3126, %v3318
  %v3320 = vpop.f32.mrb[0].mxu0
  %v3321 = vadd.f32 %v3128, %v3320
  %v3322 = vpop.f32.mrb[0].mxu0
  %v3323 = vadd.f32 %v3130, %v3322
  %3324 = vmatprep.mubr.bf16.mxu0 %v1589
  %3325 = vmatmul.mubr.bf16.gmra.mrb[0].mxu0 %v1588
  %v3326 = vpop.f32.mrb[0].mxu0
  %v3327 = vadd.f32 %v3134, %v3326
  %v3328 = vpop.f32.mrb[0].mxu0
  %v3329 = vadd.f32 %v3136, %v3328
  %v3330 = vpop.f32.mrb[0].mxu0
  %v3331 = vadd.f32 %v3138, %v3330
  %v3332 = vpop.f32.mrb[0].mxu0
  %v3333 = vadd.f32 %v3140, %v3332
  %3334 = vmatprep.mubr.bf16.mxu0 %v1593
  %3335 = vmatmul.mubr.bf16.gmra.mrb[0].mxu0 %v1592
  %v3336 = vpop.f32.mrb[0].mxu0
  %v3337 = vadd.f32 %v3144, %v3336
  %v3338 = vpop.f32.mrb[0].mxu0
  %v3339 = vadd.f32 %v3146, %v3338
  %v3340 = vpop.f32.mrb[0].mxu0
  %v3341 = vadd.f32 %v3148, %v3340
  %v3342 = vpop.f32.mrb[0].mxu0
  %v3343 = vadd.f32 %v3150, %v3342
  %3344 = vmatprep.mubr.bf16.mxu0 %v1597
  %3345 = vmatmul.mubr.bf16.gmra.mrb[0].mxu0 %v1596
  %v3346 = vpop.f32.mrb[0].mxu0
  %v3347 = vadd.f32 %v3154, %v3346
  %v3348 = vpop.f32.mrb[0].mxu0
  %v3349 = vadd.f32 %v3156, %v3348
  %v3350 = vpop.f32.mrb[0].mxu0
  %v3351 = vadd.f32 %v3158, %v3350
  %v3352 = vpop.f32.mrb[0].mxu0
  %v3353 = vadd.f32 %v3160, %v3352
  %3354 = vmatprep.mubr.bf16.mxu0 %v1601
  %3355 = vmatmul.mubr.bf16.gmra.mrb[0].mxu0 %v1600
  %v3356 = vpop.f32.mrb[0].mxu0
  %v3357 = vadd.f32 %v3164, %v3356
  %v3358 = vpop.f32.mrb[0].mxu0
  %v3359 = vadd.f32 %v3166, %v3358
  %v3360 = vpop.f32.mrb[0].mxu0
  %v3361 = vadd.f32 %v3168, %v3360
  %v3362 = vpop.f32.mrb[0].mxu0
  %v3363 = vadd.f32 %v3170, %v3362
  %3364 = vmatprep.mubr.bf16.mxu0 %v1605
  %3365 = vmatmul.mubr.bf16.gmra.mrb[0].mxu0 %v1604
  %v3366 = vpop.f32.mrb[0].mxu0
  %v3367 = vadd.f32 %v3174, %v3366
  %v3368 = vpop.f32.mrb[0].mxu0
  %v3369 = vadd.f32 %v3176, %v3368
  %v3370 = vpop.f32.mrb[0].mxu0
  %v3371 = vadd.f32 %v3178, %v3370
  %v3372 = vpop.f32.mrb[0].mxu0
  %v3373 = vadd.f32 %v3180, %v3372
  %3374 = vmatprep.mubr.bf16.mxu0 %v1609
  %3375 = vmatmul.mubr.bf16.gmra.mrb[0].mxu0 %v1608
  %v3376 = vpop.f32.mrb[0].mxu0
  %v3377 = vadd.f32 %v3184, %v3376
  %v3378 = vpop.f32.mrb[0].mxu0
  %v3379 = vadd.f32 %v3186, %v3378
  %v3380 = vpop.f32.mrb[0].mxu0
  %v3381 = vadd.f32 %v3188, %v3380
  %v3382 = vpop.f32.mrb[0].mxu0
  %v3383 = vadd.f32 %v3190, %v3382
  %3384 = vmatprep.mubr.bf16.mxu0 %v1613
  %3385 = vmatmul.mubr.bf16.gmra.mrb[0].mxu0 %v1612
  %v3386 = vpop.f32.mrb[0].mxu0
  %v3387 = vadd.f32 %v3194, %v3386
  %v3388 = vpop.f32.mrb[0].mxu0
  %v3389 = vadd.f32 %v3196, %v3388
  %v3390 = vpop.f32.mrb[0].mxu0
  %v3391 = vadd.f32 %v3198, %v3390
  %v3392 = vpop.f32.mrb[0].mxu0
  %v3393 = vadd.f32 %v3200, %v3392
  %3394 = vmatprep.mubr.bf16.mxu0 %v1617
  %3395 = vmatmul.mubr.bf16.gmra.mrb[0].mxu0 %v1616
  %v3396 = vpop.f32.mrb[0].mxu0
  %v3397 = vadd.f32 %v3204, %v3396
  %v3398 = vpop.f32.mrb[0].mxu0
  %v3399 = vadd.f32 %v3206, %v3398
  %v3400 = vpop.f32.mrb[0].mxu0
  %v3401 = vadd.f32 %v3208, %v3400
  %v3402 = vpop.f32.mrb[0].mxu0
  %v3403 = vadd.f32 %v3210, %v3402
  %3404 = vmatprep.mubr.bf16.mxu0 %v1621
  %3405 = vmatmul.mubr.bf16.gmra.mrb[0].mxu0 %v1620
  %v3406 = vpop.f32.mrb[0].mxu0
  %v3407 = vadd.f32 %v3214, %v3406
  %v3408 = vpop.f32.mrb[0].mxu0
  %v3409 = vadd.f32 %v3216, %v3408
  %v3410 = vpop.f32.mrb[0].mxu0
  %v3411 = vadd.f32 %v3218, %v3410
  %v3412 = vpop.f32.mrb[0].mxu0
  %v3413 = vadd.f32 %v3220, %v3412
  %3414 = vmatprep.mubr.bf16.mxu0 %v1625
  %3415 = vmatmul.mubr.bf16.gmra.mrb[0].mxu0 %v1624
  %v3416 = vpop.f32.mrb[0].mxu0
  %v3417 = vadd.f32 %v3224, %v3416
  %v3418 = vpop.f32.mrb[0].mxu0
  %v3419 = vadd.f32 %v3226, %v3418
  %v3420 = vpop.f32.mrb[0].mxu0
  %v3421 = vadd.f32 %v3228, %v3420
  %v3422 = vpop.f32.mrb[0].mxu0
  %v3423 = vadd.f32 %v3230, %v3422
  %3424 = vmatprep.mubr.bf16.mxu0 %v1629
  %3425 = vmatmul.mubr.bf16.gmra.mrb[0].mxu0 %v1628
  %v3426 = vpop.f32.mrb[0].mxu0
  %v3427 = vadd.f32 %v3234, %v3426
  %v3428 = vpop.f32.mrb[0].mxu0
  %v3429 = vadd.f32 %v3236, %v3428
  %v3430 = vpop.f32.mrb[0].mxu0
  %v3431 = vadd.f32 %v3238, %v3430
  %v3432 = vpop.f32.mrb[0].mxu0
  %v3433 = vadd.f32 %v3240, %v3432
  %3434 = vmatprep.mubr.bf16.mxu0 %v1633
  %3435 = vmatmul.mubr.bf16.gmra.mrb[0].mxu0 %v1632
  %v3436 = vpop.f32.mrb[0].mxu0
  %v3437 = vadd.f32 %v3244, %v3436
  %v3438 = vpop.f32.mrb[0].mxu0
  %v3439 = vadd.f32 %v3246, %v3438
  %v3440 = vpop.f32.mrb[0].mxu0
  %v3441 = vadd.f32 %v3248, %v3440
  %v3442 = vpop.f32.mrb[0].mxu0
  %v3443 = vadd.f32 %v3250, %v3442
  %3444 = vmatprep.mubr.bf16.mxu0 %v1637
  %3445 = vmatmul.mubr.bf16.gmra.mrb[0].mxu0 %v1636
  %v3446 = vpop.f32.mrb[0].mxu0
  %v3447 = vadd.f32 %v3254, %v3446
  %v3448 = vpop.f32.mrb[0].mxu0
  %v3449 = vadd.f32 %v3256, %v3448
  %v3450 = vpop.f32.mrb[0].mxu0
  %v3451 = vadd.f32 %v3258, %v3450
  %v3452 = vpop.f32.mrb[0].mxu0
  %v3453 = vadd.f32 %v3260, %v3452
  %3454 = vmatprep.mubr.bf16.mxu0 %v1641
  %3455 = vmatmul.mubr.bf16.gmra.mrb[0].mxu0 %v1640
  %v3456 = vpop.f32.mrb[0].mxu0
  %v3457 = vadd.f32 %v3264, %v3456
  %v3458 = vpop.f32.mrb[0].mxu0
  %v3459 = vadd.f32 %v3266, %v3458
  %v3460 = vpop.f32.mrb[0].mxu0
  %v3461 = vadd.f32 %v3268, %v3460
  %v3462 = vpop.f32.mrb[0].mxu0
  %v3463 = vadd.f32 %v3270, %v3462
  %3464 = vdwg.mxu0
  %3465 = vmatprep.subr.bf16.mxu0 0
  %3466 = vmatpush1.bf16.msra.mxu0 %v2377
  %3467 = vmatprep.subr.bf16.mxu0 0
  %3468 = vmatpush1.bf16.msra.mxu0 %v2382
  %3469 = vmatprep.subr.bf16.mxu0 0
  %3470 = vmatpush1.bf16.msra.mxu0 %v2387
  %3471 = vmatprep.subr.bf16.mxu0 0
  %3472 = vmatpush1.bf16.msra.mxu0 %v2392
  %3473 = vmatprep.subr.bf16.mxu0 0
  %3474 = vmatpush1.bf16.msra.mxu0 %v2397
  %3475 = vmatprep.subr.bf16.mxu0 0
  %3476 = vmatpush1.bf16.msra.mxu0 %v2402
  %3477 = vmatprep.subr.bf16.mxu0 0
  %3478 = vmatpush1.bf16.msra.mxu0 %v2407
  %3479 = vmatprep.subr.bf16.mxu0 0
  %3480 = vmatpush1.bf16.msra.mxu0 %v2412
  %3481 = vmatprep.subr.bf16.mxu0 0
  %3482 = vmatpush1.bf16.msra.mxu0 %v2417
  %3483 = vmatprep.subr.bf16.mxu0 0
  %3484 = vmatpush1.bf16.msra.mxu0 %v2422
  %3485 = vmatprep.subr.bf16.mxu0 0
  %3486 = vmatpush1.bf16.msra.mxu0 %v2427
  %3487 = vmatprep.subr.bf16.mxu0 0
  %3488 = vmatpush1.bf16.msra.mxu0 %v2432
  %3489 = vmatprep.subr.bf16.mxu0 0
  %3490 = vmatpush1.bf16.msra.mxu0 %v2437
  %3491 = vmatprep.subr.bf16.mxu0 0
  %3492 = vmatpush1.bf16.msra.mxu0 %v2442
  %3493 = vmatprep.subr.bf16.mxu0 0
  %3494 = vmatpush1.bf16.msra.mxu0 %v2447
  %3495 = vmatprep.subr.bf16.mxu0 0
  %3496 = vmatpush1.bf16.msra.mxu0 %v2452
  %3497 = vmatprep.mubr.bf16.mxu0 %v1579
  %3498 = vmatmul.mubr.bf16.gmra.mrb[0].mxu0 %v1578
  %v3499 = vpop.f32.mrb[0].mxu0
  %v3500 = vadd.f32 %v1855, %v3499
  %v3501 = vpop.f32.mrb[0].mxu0
  %v3502 = vpop.f32.mrb[0].mxu0
  %v3503 = vadd.f32 %v1855, %v3502
  %v3504 = vpop.f32.mrb[0].mxu0
  %3505 = vmatprep.mubr.bf16.mxu0 %v1583
  %3506 = vmatmul.mubr.bf16.gmra.mrb[0].mxu0 %v1582
  %v3507 = vpop.f32.mrb[0].mxu0
  %v3508 = vadd.f32 %v1855, %v3507
  %v3509 = vpop.f32.mrb[0].mxu0
  %v3510 = vpop.f32.mrb[0].mxu0
  %v3511 = vadd.f32 %v1855, %v3510
  %v3512 = vpop.f32.mrb[0].mxu0
  %3513 = vmatprep.mubr.bf16.mxu0 %v1587
  %3514 = vmatmul.mubr.bf16.gmra.mrb[0].mxu0 %v1586
  %v3515 = vpop.f32.mrb[0].mxu0
  %v3516 = vadd.f32 %v1855, %v3515
  %v3517 = vpop.f32.mrb[0].mxu0
  %v3518 = vpop.f32.mrb[0].mxu0
  %v3519 = vadd.f32 %v1855, %v3518
  %v3520 = vpop.f32.mrb[0].mxu0
  %3521 = vmatprep.mubr.bf16.mxu0 %v1591
  %3522 = vmatmul.mubr.bf16.gmra.mrb[0].mxu0 %v1590
  %v3523 = vpop.f32.mrb[0].mxu0
  %v3524 = vadd.f32 %v1855, %v3523
  %v3525 = vpop.f32.mrb[0].mxu0
  %v3526 = vpop.f32.mrb[0].mxu0
  %v3527 = vadd.f32 %v1855, %v3526
  %v3528 = vpop.f32.mrb[0].mxu0
  %3529 = vmatprep.mubr.bf16.mxu0 %v1595
  %3530 = vmatmul.mubr.bf16.gmra.mrb[0].mxu0 %v1594
  %v3531 = vpop.f32.mrb[0].mxu0
  %v3532 = vadd.f32 %v1855, %v3531
  %v3533 = vpop.f32.mrb[0].mxu0
  %v3534 = vpop.f32.mrb[0].mxu0
  %v3535 = vadd.f32 %v1855, %v3534
  %v3536 = vpop.f32.mrb[0].mxu0
  %3537 = vmatprep.mubr.bf16.mxu0 %v1599
  %3538 = vmatmul.mubr.bf16.gmra.mrb[0].mxu0 %v1598
  %v3539 = vpop.f32.mrb[0].mxu0
  %v3540 = vadd.f32 %v1855, %v3539
  %v3541 = vpop.f32.mrb[0].mxu0
  %v3542 = vpop.f32.mrb[0].mxu0
  %v3543 = vadd.f32 %v1855, %v3542
  %v3544 = vpop.f32.mrb[0].mxu0
  %3545 = vmatprep.mubr.bf16.mxu0 %v1603
  %3546 = vmatmul.mubr.bf16.gmra.mrb[0].mxu0 %v1602
  %v3547 = vpop.f32.mrb[0].mxu0
  %v3548 = vadd.f32 %v1855, %v3547
  %v3549 = vpop.f32.mrb[0].mxu0
  %v3550 = vpop.f32.mrb[0].mxu0
  %v3551 = vadd.f32 %v1855, %v3550
  %v3552 = vpop.f32.mrb[0].mxu0
  %3553 = vmatprep.mubr.bf16.mxu0 %v1607
  %3554 = vmatmul.mubr.bf16.gmra.mrb[0].mxu0 %v1606
  %v3555 = vpop.f32.mrb[0].mxu0
  %v3556 = vadd.f32 %v1855, %v3555
  %v3557 = vpop.f32.mrb[0].mxu0
  %v3558 = vpop.f32.mrb[0].mxu0
  %v3559 = vadd.f32 %v1855, %v3558
  %v3560 = vpop.f32.mrb[0].mxu0
  %3561 = vmatprep.mubr.bf16.mxu0 %v1611
  %3562 = vmatmul.mubr.bf16.gmra.mrb[0].mxu0 %v1610
  %v3563 = vpop.f32.mrb[0].mxu0
  %v3564 = vadd.f32 %v1855, %v3563
  %v3565 = vpop.f32.mrb[0].mxu0
  %v3566 = vpop.f32.mrb[0].mxu0
  %v3567 = vadd.f32 %v1855, %v3566
  %v3568 = vpop.f32.mrb[0].mxu0
  %3569 = vmatprep.mubr.bf16.mxu0 %v1615
  %3570 = vmatmul.mubr.bf16.gmra.mrb[0].mxu0 %v1614
  %v3571 = vpop.f32.mrb[0].mxu0
  %v3572 = vadd.f32 %v1855, %v3571
  %v3573 = vpop.f32.mrb[0].mxu0
  %v3574 = vpop.f32.mrb[0].mxu0
  %v3575 = vadd.f32 %v1855, %v3574
  %v3576 = vpop.f32.mrb[0].mxu0
  %3577 = vmatprep.mubr.bf16.mxu0 %v1619
  %3578 = vmatmul.mubr.bf16.gmra.mrb[0].mxu0 %v1618
  %v3579 = vpop.f32.mrb[0].mxu0
  %v3580 = vadd.f32 %v1855, %v3579
  %v3581 = vpop.f32.mrb[0].mxu0
  %v3582 = vpop.f32.mrb[0].mxu0
  %v3583 = vadd.f32 %v1855, %v3582
  %v3584 = vpop.f32.mrb[0].mxu0
  %3585 = vmatprep.mubr.bf16.mxu0 %v1623
  %3586 = vmatmul.mubr.bf16.gmra.mrb[0].mxu0 %v1622
  %v3587 = vpop.f32.mrb[0].mxu0
  %v3588 = vadd.f32 %v1855, %v3587
  %v3589 = vpop.f32.mrb[0].mxu0
  %v3590 = vpop.f32.mrb[0].mxu0
  %v3591 = vadd.f32 %v1855, %v3590
  %v3592 = vpop.f32.mrb[0].mxu0
  %3593 = vmatprep.mubr.bf16.mxu0 %v1627
  %3594 = vmatmul.mubr.bf16.gmra.mrb[0].mxu0 %v1626
  %v3595 = vpop.f32.mrb[0].mxu0
  %v3596 = vadd.f32 %v1855, %v3595
  %v3597 = vpop.f32.mrb[0].mxu0
  %v3598 = vpop.f32.mrb[0].mxu0
  %v3599 = vadd.f32 %v1855, %v3598
  %v3600 = vpop.f32.mrb[0].mxu0
  %3601 = vmatprep.mubr.bf16.mxu0 %v1631
  %3602 = vmatmul.mubr.bf16.gmra.mrb[0].mxu0 %v1630
  %v3603 = vpop.f32.mrb[0].mxu0
  %v3604 = vadd.f32 %v1855, %v3603
  %v3605 = vpop.f32.mrb[0].mxu0
  %v3606 = vpop.f32.mrb[0].mxu0
  %v3607 = vadd.f32 %v1855, %v3606
  %v3608 = vpop.f32.mrb[0].mxu0
  %3609 = vmatprep.mubr.bf16.mxu0 %v1635
  %3610 = vmatmul.mubr.bf16.gmra.mrb[0].mxu0 %v1634
  %v3611 = vpop.f32.mrb[0].mxu0
  %v3612 = vadd.f32 %v1855, %v3611
  %v3613 = vpop.f32.mrb[0].mxu0
  %v3614 = vpop.f32.mrb[0].mxu0
  %v3615 = vadd.f32 %v1855, %v3614
  %v3616 = vpop.f32.mrb[0].mxu0
  %3617 = vmatprep.mubr.bf16.mxu0 %v1639
  %3618 = vmatmul.mubr.bf16.gmra.mrb[0].mxu0 %v1638
  %v3619 = vpop.f32.mrb[0].mxu0
  %v3620 = vadd.f32 %v1855, %v3619
  %v3621 = vpop.f32.mrb[0].mxu0
  %v3622 = vpop.f32.mrb[0].mxu0
  %v3623 = vadd.f32 %v1855, %v3622
  %v3624 = vpop.f32.mrb[0].mxu0
  %3625 = vdwg.mxu0
  %3626 = vmatprep.subr.bf16.mxu0 0
  %3627 = vmatpush1.bf16.msra.mxu0 %v2457
  %3628 = vmatprep.subr.bf16.mxu0 0
  %3629 = vmatpush1.bf16.msra.mxu0 %v2462
  %3630 = vmatprep.subr.bf16.mxu0 0
  %3631 = vmatpush1.bf16.msra.mxu0 %v2467
  %3632 = vmatprep.subr.bf16.mxu0 0
  %3633 = vmatpush1.bf16.msra.mxu0 %v2472
  %3634 = vmatprep.subr.bf16.mxu0 0
  %3635 = vmatpush1.bf16.msra.mxu0 %v2477
  %3636 = vmatprep.subr.bf16.mxu0 0
  %3637 = vmatpush1.bf16.msra.mxu0 %v2482
  %3638 = vmatprep.subr.bf16.mxu0 0
  %3639 = vmatpush1.bf16.msra.mxu0 %v2487
  %3640 = vmatprep.subr.bf16.mxu0 0
  %3641 = vmatpush1.bf16.msra.mxu0 %v2492
  %3642 = vmatprep.subr.bf16.mxu0 0
  %3643 = vmatpush1.bf16.msra.mxu0 %v2497
  %3644 = vmatprep.subr.bf16.mxu0 0
  %3645 = vmatpush1.bf16.msra.mxu0 %v2502
  %3646 = vmatprep.subr.bf16.mxu0 0
  %3647 = vmatpush1.bf16.msra.mxu0 %v2507
  %3648 = vmatprep.subr.bf16.mxu0 0
  %3649 = vmatpush1.bf16.msra.mxu0 %v2512
  %3650 = vmatprep.subr.bf16.mxu0 0
  %3651 = vmatpush1.bf16.msra.mxu0 %v2517
  %3652 = vmatprep.subr.bf16.mxu0 0
  %3653 = vmatpush1.bf16.msra.mxu0 %v2522
  %3654 = vmatprep.subr.bf16.mxu0 0
  %3655 = vmatpush1.bf16.msra.mxu0 %v2527
  %3656 = vmatprep.subr.bf16.mxu0 0
  %3657 = vmatpush1.bf16.msra.mxu0 %v2532
  %3658 = vmatprep.mubr.bf16.mxu0 %v1581
  %3659 = vmatmul.mubr.bf16.gmra.mrb[0].mxu0 %v1580
  %v3660 = vpop.f32.mrb[0].mxu0
  %v3661 = vadd.f32 %v3500, %v3660
  %v3662 = vpop.f32.mrb[0].mxu0
  %v3663 = vpop.f32.mrb[0].mxu0
  %v3664 = vadd.f32 %v3503, %v3663
  %v3665 = vpop.f32.mrb[0].mxu0
  %3666 = vmatprep.mubr.bf16.mxu0 %v1585
  %3667 = vmatmul.mubr.bf16.gmra.mrb[0].mxu0 %v1584
  %v3668 = vpop.f32.mrb[0].mxu0
  %v3669 = vadd.f32 %v3508, %v3668
  %v3670 = vpop.f32.mrb[0].mxu0
  %v3671 = vpop.f32.mrb[0].mxu0
  %v3672 = vadd.f32 %v3511, %v3671
  %v3673 = vpop.f32.mrb[0].mxu0
  %3674 = vmatprep.mubr.bf16.mxu0 %v1589
  %3675 = vmatmul.mubr.bf16.gmra.mrb[0].mxu0 %v1588
  %v3676 = vpop.f32.mrb[0].mxu0
  %v3677 = vadd.f32 %v3516, %v3676
  %v3678 = vpop.f32.mrb[0].mxu0
  %v3679 = vpop.f32.mrb[0].mxu0
  %v3680 = vadd.f32 %v3519, %v3679
  %v3681 = vpop.f32.mrb[0].mxu0
  %3682 = vmatprep.mubr.bf16.mxu0 %v1593
  %3683 = vmatmul.mubr.bf16.gmra.mrb[0].mxu0 %v1592
  %v3684 = vpop.f32.mrb[0].mxu0
  %v3685 = vadd.f32 %v3524, %v3684
  %v3686 = vpop.f32.mrb[0].mxu0
  %v3687 = vpop.f32.mrb[0].mxu0
  %v3688 = vadd.f32 %v3527, %v3687
  %v3689 = vpop.f32.mrb[0].mxu0
  %3690 = vmatprep.mubr.bf16.mxu0 %v1597
  %3691 = vmatmul.mubr.bf16.gmra.mrb[0].mxu0 %v1596
  %v3692 = vpop.f32.mrb[0].mxu0
  %v3693 = vadd.f32 %v3532, %v3692
  %v3694 = vpop.f32.mrb[0].mxu0
  %v3695 = vpop.f32.mrb[0].mxu0
  %v3696 = vadd.f32 %v3535, %v3695
  %v3697 = vpop.f32.mrb[0].mxu0
  %3698 = vmatprep.mubr.bf16.mxu0 %v1601
  %3699 = vmatmul.mubr.bf16.gmra.mrb[0].mxu0 %v1600
  %v3700 = vpop.f32.mrb[0].mxu0
  %v3701 = vadd.f32 %v3540, %v3700
  %v3702 = vpop.f32.mrb[0].mxu0
  %v3703 = vpop.f32.mrb[0].mxu0
  %v3704 = vadd.f32 %v3543, %v3703
  %v3705 = vpop.f32.mrb[0].mxu0
  %3706 = vmatprep.mubr.bf16.mxu0 %v1605
  %3707 = vmatmul.mubr.bf16.gmra.mrb[0].mxu0 %v1604
  %v3708 = vpop.f32.mrb[0].mxu0
  %v3709 = vadd.f32 %v3548, %v3708
  %v3710 = vpop.f32.mrb[0].mxu0
  %v3711 = vpop.f32.mrb[0].mxu0
  %v3712 = vadd.f32 %v3551, %v3711
  %v3713 = vpop.f32.mrb[0].mxu0
  %3714 = vmatprep.mubr.bf16.mxu0 %v1609
  %3715 = vmatmul.mubr.bf16.gmra.mrb[0].mxu0 %v1608
  %v3716 = vpop.f32.mrb[0].mxu0
  %v3717 = vadd.f32 %v3556, %v3716
  %v3718 = vpop.f32.mrb[0].mxu0
  %v3719 = vpop.f32.mrb[0].mxu0
  %v3720 = vadd.f32 %v3559, %v3719
  %v3721 = vpop.f32.mrb[0].mxu0
  %3722 = vmatprep.mubr.bf16.mxu0 %v1613
  %3723 = vmatmul.mubr.bf16.gmra.mrb[0].mxu0 %v1612
  %v3724 = vpop.f32.mrb[0].mxu0
  %v3725 = vadd.f32 %v3564, %v3724
  %v3726 = vpop.f32.mrb[0].mxu0
  %v3727 = vpop.f32.mrb[0].mxu0
  %v3728 = vadd.f32 %v3567, %v3727
  %v3729 = vpop.f32.mrb[0].mxu0
  %3730 = vmatprep.mubr.bf16.mxu0 %v1617
  %3731 = vmatmul.mubr.bf16.gmra.mrb[0].mxu0 %v1616
  %v3732 = vpop.f32.mrb[0].mxu0
  %v3733 = vadd.f32 %v3572, %v3732
  %v3734 = vpop.f32.mrb[0].mxu0
  %v3735 = vpop.f32.mrb[0].mxu0
  %v3736 = vadd.f32 %v3575, %v3735
  %v3737 = vpop.f32.mrb[0].mxu0
  %3738 = vmatprep.mubr.bf16.mxu0 %v1621
  %3739 = vmatmul.mubr.bf16.gmra.mrb[0].mxu0 %v1620
  %v3740 = vpop.f32.mrb[0].mxu0
  %v3741 = vadd.f32 %v3580, %v3740
  %v3742 = vpop.f32.mrb[0].mxu0
  %v3743 = vpop.f32.mrb[0].mxu0
  %v3744 = vadd.f32 %v3583, %v3743
  %v3745 = vpop.f32.mrb[0].mxu0
  %3746 = vmatprep.mubr.bf16.mxu0 %v1625
  %3747 = vmatmul.mubr.bf16.gmra.mrb[0].mxu0 %v1624
  %v3748 = vpop.f32.mrb[0].mxu0
  %v3749 = vadd.f32 %v3588, %v3748
  %v3750 = vpop.f32.mrb[0].mxu0
  %v3751 = vpop.f32.mrb[0].mxu0
  %v3752 = vadd.f32 %v3591, %v3751
  %v3753 = vpop.f32.mrb[0].mxu0
  %3754 = vmatprep.mubr.bf16.mxu0 %v1629
  %3755 = vmatmul.mubr.bf16.gmra.mrb[0].mxu0 %v1628
  %v3756 = vpop.f32.mrb[0].mxu0
  %v3757 = vadd.f32 %v3596, %v3756
  %v3758 = vpop.f32.mrb[0].mxu0
  %v3759 = vpop.f32.mrb[0].mxu0
  %v3760 = vadd.f32 %v3599, %v3759
  %v3761 = vpop.f32.mrb[0].mxu0
  %3762 = vmatprep.mubr.bf16.mxu0 %v1633
  %3763 = vmatmul.mubr.bf16.gmra.mrb[0].mxu0 %v1632
  %v3764 = vpop.f32.mrb[0].mxu0
  %v3765 = vadd.f32 %v3604, %v3764
  %v3766 = vpop.f32.mrb[0].mxu0
  %v3767 = vpop.f32.mrb[0].mxu0
  %v3768 = vadd.f32 %v3607, %v3767
  %v3769 = vpop.f32.mrb[0].mxu0
  %3770 = vmatprep.mubr.bf16.mxu0 %v1637
  %3771 = vmatmul.mubr.bf16.gmra.mrb[0].mxu0 %v1636
  %v3772 = vpop.f32.mrb[0].mxu0
  %v3773 = vadd.f32 %v3612, %v3772
  %v3774 = vpop.f32.mrb[0].mxu0
  %v3775 = vpop.f32.mrb[0].mxu0
  %v3776 = vadd.f32 %v3615, %v3775
  %v3777 = vpop.f32.mrb[0].mxu0
  %3778 = vmatprep.mubr.bf16.mxu0 %v1641
  %3779 = vmatmul.mubr.bf16.gmra.mrb[0].mxu0 %v1640
  %v3780 = vpop.f32.mrb[0].mxu0
  %v3781 = vadd.f32 %v3620, %v3780
  %v3782 = vpop.f32.mrb[0].mxu0
  %v3783 = vpop.f32.mrb[0].mxu0
  %v3784 = vadd.f32 %v3623, %v3783
  %v3785 = vpop.f32.mrb[0].mxu0
  %3786 = vdwg.mxu0
  %v3787 = vmax.f32 %v2921, 0.0
  %v3788 = vmax.f32 %v2923, 0.0
  %v3789 = vmax.f32 %v3307, 0.0
  %v3790 = vmax.f32 %v3309, 0.0
  %v3791 = vmax.f32 %v3661, 0.0
  %v3792 = vmax.f32 %v2925, 0.0
  %v3793 = vmax.f32 %v2927, 0.0
  %v3794 = vmax.f32 %v3311, 0.0
  %v3795 = vmax.f32 %v3313, 0.0
  %v3796 = vmax.f32 %v3664, 0.0
  %v3797 = vmax.f32 %v2931, 0.0
  %v3798 = vmax.f32 %v2933, 0.0
  %v3799 = vmax.f32 %v3317, 0.0
  %v3800 = vmax.f32 %v3319, 0.0
  %v3801 = vmax.f32 %v3669, 0.0
  %v3802 = vmax.f32 %v2935, 0.0
  %v3803 = vmax.f32 %v2937, 0.0
  %v3804 = vmax.f32 %v3321, 0.0
  %v3805 = vmax.f32 %v3323, 0.0
  %v3806 = vmax.f32 %v3672, 0.0
  %v3807 = vmax.f32 %v2941, 0.0
  %v3808 = vmax.f32 %v2943, 0.0
  %v3809 = vmax.f32 %v3327, 0.0
  %v3810 = vmax.f32 %v3329, 0.0
  %v3811 = vmax.f32 %v3677, 0.0
  %v3812 = vmax.f32 %v2945, 0.0
  %v3813 = vmax.f32 %v2947, 0.0
  %v3814 = vmax.f32 %v3331, 0.0
  %v3815 = vmax.f32 %v3333, 0.0
  %v3816 = vmax.f32 %v3680, 0.0
  %v3817 = vmax.f32 %v2951, 0.0
  %v3818 = vmax.f32 %v2953, 0.0
  %v3819 = vmax.f32 %v3337, 0.0
  %v3820 = vmax.f32 %v3339, 0.0
  %v3821 = vmax.f32 %v3685, 0.0
  %v3822 = vmax.f32 %v2955, 0.0
  %v3823 = vmax.f32 %v2957, 0.0
  %v3824 = vmax.f32 %v3341, 0.0
  %v3825 = vmax.f32 %v3343, 0.0
  %v3826 = vmax.f32 %v3688, 0.0
  %v3827 = vmax.f32 %v2961, 0.0
  %v3828 = vmax.f32 %v2963, 0.0
  %v3829 = vmax.f32 %v3347, 0.0
  %v3830 = vmax.f32 %v3349, 0.0
  %v3831 = vmax.f32 %v3693, 0.0
  %v3832 = vmax.f32 %v2965, 0.0
  %v3833 = vmax.f32 %v2967, 0.0
  %v3834 = vmax.f32 %v3351, 0.0
  %v3835 = vmax.f32 %v3353, 0.0
  %v3836 = vmax.f32 %v3696, 0.0
  %v3837 = vmax.f32 %v2971, 0.0
  %v3838 = vmax.f32 %v2973, 0.0
  %v3839 = vmax.f32 %v3357, 0.0
  %v3840 = vmax.f32 %v3359, 0.0
  %v3841 = vmax.f32 %v3701, 0.0
  %v3842 = vmax.f32 %v2975, 0.0
  %v3843 = vmax.f32 %v2977, 0.0
  %v3844 = vmax.f32 %v3361, 0.0
  %v3845 = vmax.f32 %v3363, 0.0
  %v3846 = vmax.f32 %v3704, 0.0
  %v3847 = vmax.f32 %v2981, 0.0
  %v3848 = vmax.f32 %v2983, 0.0
  %v3849 = vmax.f32 %v3367, 0.0
  %v3850 = vmax.f32 %v3369, 0.0
  %v3851 = vmax.f32 %v3709, 0.0
  %v3852 = vmax.f32 %v2985, 0.0
  %v3853 = vmax.f32 %v2987, 0.0
  %v3854 = vmax.f32 %v3371, 0.0
  %v3855 = vmax.f32 %v3373, 0.0
  %v3856 = vmax.f32 %v3712, 0.0
  %v3857 = vmax.f32 %v2991, 0.0
  %v3858 = vmax.f32 %v2993, 0.0
  %v3859 = vmax.f32 %v3377, 0.0
  %v3860 = vmax.f32 %v3379, 0.0
  %v3861 = vmax.f32 %v3717, 0.0
  %v3862 = vmax.f32 %v2995, 0.0
  %v3863 = vmax.f32 %v2997, 0.0
  %v3864 = vmax.f32 %v3381, 0.0
  %v3865 = vmax.f32 %v3383, 0.0
  %v3866 = vmax.f32 %v3720, 0.0
  %v3867 = vmax.f32 %v3001, 0.0
  %v3868 = vmax.f32 %v3003, 0.0
  %v3869 = vmax.f32 %v3387, 0.0
  %v3870 = vmax.f32 %v3389, 0.0
  %v3871 = vmax.f32 %v3725, 0.0
  %v3872 = vmax.f32 %v3005, 0.0
  %v3873 = vmax.f32 %v3007, 0.0
  %v3874 = vmax.f32 %v3391, 0.0
  %v3875 = vmax.f32 %v3393, 0.0
  %v3876 = vmax.f32 %v3728, 0.0
  %v3877 = vmax.f32 %v3011, 0.0
  %v3878 = vmax.f32 %v3013, 0.0
  %v3879 = vmax.f32 %v3397, 0.0
  %v3880 = vmax.f32 %v3399, 0.0
  %v3881 = vmax.f32 %v3733, 0.0
  %v3882 = vmax.f32 %v3015, 0.0
  %v3883 = vmax.f32 %v3017, 0.0
  %v3884 = vmax.f32 %v3401, 0.0
  %v3885 = vmax.f32 %v3403, 0.0
  %v3886 = vmax.f32 %v3736, 0.0
  %v3887 = vmax.f32 %v3021, 0.0
  %v3888 = vmax.f32 %v3023, 0.0
  %v3889 = vmax.f32 %v3407, 0.0
  %v3890 = vmax.f32 %v3409, 0.0
  %v3891 = vmax.f32 %v3741, 0.0
  %v3892 = vmax.f32 %v3025, 0.0
  %v3893 = vmax.f32 %v3027, 0.0
  %v3894 = vmax.f32 %v3411, 0.0
  %v3895 = vmax.f32 %v3413, 0.0
  %v3896 = vmax.f32 %v3744, 0.0
  %v3897 = vmax.f32 %v3031, 0.0
  %v3898 = vmax.f32 %v3033, 0.0
  %v3899 = vmax.f32 %v3417, 0.0
  %v3900 = vmax.f32 %v3419, 0.0
  %v3901 = vmax.f32 %v3749, 0.0
  %v3902 = vmax.f32 %v3035, 0.0
  %v3903 = vmax.f32 %v3037, 0.0
  %v3904 = vmax.f32 %v3421, 0.0
  %v3905 = vmax.f32 %v3423, 0.0
  %v3906 = vmax.f32 %v3752, 0.0
  %v3907 = vmax.f32 %v3041, 0.0
  %v3908 = vmax.f32 %v3043, 0.0
  %v3909 = vmax.f32 %v3427, 0.0
  %v3910 = vmax.f32 %v3429, 0.0
  %v3911 = vmax.f32 %v3757, 0.0
  %v3912 = vmax.f32 %v3045, 0.0
  %v3913 = vmax.f32 %v3047, 0.0
  %v3914 = vmax.f32 %v3431, 0.0
  %v3915 = vmax.f32 %v3433, 0.0
  %v3916 = vmax.f32 %v3760, 0.0
  %v3917 = vmax.f32 %v3051, 0.0
  %v3918 = vmax.f32 %v3053, 0.0
  %v3919 = vmax.f32 %v3437, 0.0
  %v3920 = vmax.f32 %v3439, 0.0
  %v3921 = vmax.f32 %v3765, 0.0
  %v3922 = vmax.f32 %v3055, 0.0
  %v3923 = vmax.f32 %v3057, 0.0
  %v3924 = vmax.f32 %v3441, 0.0
  %v3925 = vmax.f32 %v3443, 0.0
  %v3926 = vmax.f32 %v3768, 0.0
  %v3927 = vmax.f32 %v3061, 0.0
  %v3928 = vmax.f32 %v3063, 0.0
  %v3929 = vmax.f32 %v3447, 0.0
  %v3930 = vmax.f32 %v3449, 0.0
  %v3931 = vmax.f32 %v3773, 0.0
  %v3932 = vmax.f32 %v3065, 0.0
  %v3933 = vmax.f32 %v3067, 0.0
  %v3934 = vmax.f32 %v3451, 0.0
  %v3935 = vmax.f32 %v3453, 0.0
  %v3936 = vmax.f32 %v3776, 0.0
  %v3937 = vmax.f32 %v3071, 0.0
  %v3938 = vmax.f32 %v3073, 0.0
  %v3939 = vmax.f32 %v3457, 0.0
  %v3940 = vmax.f32 %v3459, 0.0
  %v3941 = vmax.f32 %v3781, 0.0
  %v3942 = vmax.f32 %v3075, 0.0
  %v3943 = vmax.f32 %v3077, 0.0
  %v3944 = vmax.f32 %v3461, 0.0
  %v3945 = vmax.f32 %v3463, 0.0
  %v3946 = vmax.f32 %v3784, 0.0
  %v3947 = vadd.f32 %v3787, %v3792
  %v3948 = vadd.f32 %v3947, %v3797
  %v3949 = vadd.f32 %v3948, %v3802
  %v3950 = vadd.f32 %v3949, %v3807
  %v3951 = vadd.f32 %v3950, %v3812
  %v3952 = vadd.f32 %v3951, %v3817
  %v3953 = vadd.f32 %v3952, %v3822
  %v3954 = vadd.f32 %v3953, %v3827
  %v3955 = vadd.f32 %v3954, %v3832
  %v3956 = vadd.f32 %v3955, %v3837
  %v3957 = vadd.f32 %v3956, %v3842
  %v3958 = vadd.f32 %v3957, %v3847
  %v3959 = vadd.f32 %v3958, %v3852
  %v3960 = vadd.f32 %v3959, %v3857
  %v3961 = vadd.f32 %v3960, %v3862
  %v3962 = vadd.f32 %v3961, %v3867
  %v3963 = vadd.f32 %v3962, %v3872
  %v3964 = vadd.f32 %v3963, %v3877
  %v3965 = vadd.f32 %v3964, %v3882
  %v3966 = vadd.f32 %v3965, %v3887
  %v3967 = vadd.f32 %v3966, %v3892
  %v3968 = vadd.f32 %v3967, %v3897
  %v3969 = vadd.f32 %v3968, %v3902
  %v3970 = vadd.f32 %v3969, %v3907
  %v3971 = vadd.f32 %v3970, %v3912
  %v3972 = vadd.f32 %v3971, %v3917
  %v3973 = vadd.f32 %v3972, %v3922
  %v3974 = vadd.f32 %v3973, %v3927
  %v3975 = vadd.f32 %v3974, %v3932
  %v3976 = vadd.f32 %v3975, %v3937
  %v3977 = vadd.f32 %v3976, %v3942
  %v3978 = vrot.slane %v3977, 4
  %v3979 = vadd.f32 %v3977, %v3978
  %v3980 = vrot.slane %v3979, 2
  %v3981 = vadd.f32 %v3979, %v3980
  %v3982 = vrot.slane %v3981, 1
  %v3983 = vadd.f32 %v3981, %v3982
  %v3984 = vadd.f32 %v3788, %v3793
  %v3985 = vadd.f32 %v3984, %v3798
  %v3986 = vadd.f32 %v3985, %v3803
  %v3987 = vadd.f32 %v3986, %v3808
  %v3988 = vadd.f32 %v3987, %v3813
  %v3989 = vadd.f32 %v3988, %v3818
  %v3990 = vadd.f32 %v3989, %v3823
  %v3991 = vadd.f32 %v3990, %v3828
  %v3992 = vadd.f32 %v3991, %v3833
  %v3993 = vadd.f32 %v3992, %v3838
  %v3994 = vadd.f32 %v3993, %v3843
  %v3995 = vadd.f32 %v3994, %v3848
  %v3996 = vadd.f32 %v3995, %v3853
  %v3997 = vadd.f32 %v3996, %v3858
  %v3998 = vadd.f32 %v3997, %v3863
  %v3999 = vadd.f32 %v3998, %v3868
  %v4000 = vadd.f32 %v3999, %v3873
  %v4001 = vadd.f32 %v4000, %v3878
  %v4002 = vadd.f32 %v4001, %v3883
  %v4003 = vadd.f32 %v4002, %v3888
  %v4004 = vadd.f32 %v4003, %v3893
  %v4005 = vadd.f32 %v4004, %v3898
  %v4006 = vadd.f32 %v4005, %v3903
  %v4007 = vadd.f32 %v4006, %v3908
  %v4008 = vadd.f32 %v4007, %v3913
  %v4009 = vadd.f32 %v4008, %v3918
  %v4010 = vadd.f32 %v4009, %v3923
  %v4011 = vadd.f32 %v4010, %v3928
  %v4012 = vadd.f32 %v4011, %v3933
  %v4013 = vadd.f32 %v4012, %v3938
  %v4014 = vadd.f32 %v4013, %v3943
  %v4015 = vrot.slane %v4014, 4
  %v4016 = vadd.f32 %v4014, %v4015
  %v4017 = vrot.slane %v4016, 2
  %v4018 = vadd.f32 %v4016, %v4017
  %v4019 = vrot.slane %v4018, 1
  %v4020 = vadd.f32 %v4018, %v4019
  %v4021 = vadd.f32 %v3789, %v3794
  %v4022 = vadd.f32 %v4021, %v3799
  %v4023 = vadd.f32 %v4022, %v3804
  %v4024 = vadd.f32 %v4023, %v3809
  %v4025 = vadd.f32 %v4024, %v3814
  %v4026 = vadd.f32 %v4025, %v3819
  %v4027 = vadd.f32 %v4026, %v3824
  %v4028 = vadd.f32 %v4027, %v3829
  %v4029 = vadd.f32 %v4028, %v3834
  %v4030 = vadd.f32 %v4029, %v3839
  %v4031 = vadd.f32 %v4030, %v3844
  %v4032 = vadd.f32 %v4031, %v3849
  %v4033 = vadd.f32 %v4032, %v3854
  %v4034 = vadd.f32 %v4033, %v3859
  %v4035 = vadd.f32 %v4034, %v3864
  %v4036 = vadd.f32 %v4035, %v3869
  %v4037 = vadd.f32 %v4036, %v3874
  %v4038 = vadd.f32 %v4037, %v3879
  %v4039 = vadd.f32 %v4038, %v3884
  %v4040 = vadd.f32 %v4039, %v3889
  %v4041 = vadd.f32 %v4040, %v3894
  %v4042 = vadd.f32 %v4041, %v3899
  %v4043 = vadd.f32 %v4042, %v3904
  %v4044 = vadd.f32 %v4043, %v3909
  %v4045 = vadd.f32 %v4044, %v3914
  %v4046 = vadd.f32 %v4045, %v3919
  %v4047 = vadd.f32 %v4046, %v3924
  %v4048 = vadd.f32 %v4047, %v3929
  %v4049 = vadd.f32 %v4048, %v3934
  %v4050 = vadd.f32 %v4049, %v3939
  %v4051 = vadd.f32 %v4050, %v3944
  %v4052 = vrot.slane %v4051, 4
  %v4053 = vadd.f32 %v4051, %v4052
  %v4054 = vrot.slane %v4053, 2
  %v4055 = vadd.f32 %v4053, %v4054
  %v4056 = vrot.slane %v4055, 1
  %v4057 = vadd.f32 %v4055, %v4056
  %v4058 = vadd.f32 %v3790, %v3795
  %v4059 = vadd.f32 %v4058, %v3800
  %v4060 = vadd.f32 %v4059, %v3805
  %v4061 = vadd.f32 %v4060, %v3810
  %v4062 = vadd.f32 %v4061, %v3815
  %v4063 = vadd.f32 %v4062, %v3820
  %v4064 = vadd.f32 %v4063, %v3825
  %v4065 = vadd.f32 %v4064, %v3830
  %v4066 = vadd.f32 %v4065, %v3835
  %v4067 = vadd.f32 %v4066, %v3840
  %v4068 = vadd.f32 %v4067, %v3845
  %v4069 = vadd.f32 %v4068, %v3850
  %v4070 = vadd.f32 %v4069, %v3855
  %v4071 = vadd.f32 %v4070, %v3860
  %v4072 = vadd.f32 %v4071, %v3865
  %v4073 = vadd.f32 %v4072, %v3870
  %v4074 = vadd.f32 %v4073, %v3875
  %v4075 = vadd.f32 %v4074, %v3880
  %v4076 = vadd.f32 %v4075, %v3885
  %v4077 = vadd.f32 %v4076, %v3890
  %v4078 = vadd.f32 %v4077, %v3895
  %v4079 = vadd.f32 %v4078, %v3900
  %v4080 = vadd.f32 %v4079, %v3905
  %v4081 = vadd.f32 %v4080, %v3910
  %v4082 = vadd.f32 %v4081, %v3915
  %v4083 = vadd.f32 %v4082, %v3920
  %v4084 = vadd.f32 %v4083, %v3925
  %v4085 = vadd.f32 %v4084, %v3930
  %v4086 = vadd.f32 %v4085, %v3935
  %v4087 = vadd.f32 %v4086, %v3940
  %v4088 = vadd.f32 %v4087, %v3945
  %v4089 = vrot.slane %v4088, 4
  %v4090 = vadd.f32 %v4088, %v4089
  %v4091 = vrot.slane %v4090, 2
  %v4092 = vadd.f32 %v4090, %v4091
  %v4093 = vrot.slane %v4092, 1
  %v4094 = vadd.f32 %v4092, %v4093
  %v4095 = vadd.f32 %v3791, %v3796
  %v4096 = vadd.f32 %v4095, %v3801
  %v4097 = vadd.f32 %v4096, %v3806
  %v4098 = vadd.f32 %v4097, %v3811
  %v4099 = vadd.f32 %v4098, %v3816
  %v4100 = vadd.f32 %v4099, %v3821
  %v4101 = vadd.f32 %v4100, %v3826
  %v4102 = vadd.f32 %v4101, %v3831
  %v4103 = vadd.f32 %v4102, %v3836
  %v4104 = vadd.f32 %v4103, %v3841
  %v4105 = vadd.f32 %v4104, %v3846
  %v4106 = vadd.f32 %v4105, %v3851
  %v4107 = vadd.f32 %v4106, %v3856
  %v4108 = vadd.f32 %v4107, %v3861
  %v4109 = vadd.f32 %v4108, %v3866
  %v4110 = vadd.f32 %v4109, %v3871
  %v4111 = vadd.f32 %v4110, %v3876
  %v4112 = vadd.f32 %v4111, %v3881
  %v4113 = vadd.f32 %v4112, %v3886
  %v4114 = vadd.f32 %v4113, %v3891
  %v4115 = vadd.f32 %v4114, %v3896
  %v4116 = vadd.f32 %v4115, %v3901
  %v4117 = vadd.f32 %v4116, %v3906
  %v4118 = vadd.f32 %v4117, %v3911
  %v4119 = vadd.f32 %v4118, %v3916
  %v4120 = vadd.f32 %v4119, %v3921
  %v4121 = vadd.f32 %v4120, %v3926
  %v4122 = vadd.f32 %v4121, %v3931
  %v4123 = vadd.f32 %v4122, %v3936
  %v4124 = vadd.f32 %v4123, %v3941
  %v4125 = vadd.f32 %v4124, %v3946
  %v4126 = vrot.slane %v4125, 4
  %v4127 = vadd.f32 %v4125, %v4126
  %v4128 = vrot.slane %v4127, 2
  %v4129 = vadd.f32 %v4127, %v4128
  %v4130 = vrot.slane %v4129, 1
  %v4131 = vadd.f32 %v4129, %v4130
  %v4132 = vmul.f32 %v3983, 0.00390625
  %v4133 = vmul.f32 %v4020, 0.00390625
  %v4134 = vmul.f32 %v4057, 0.00390625
  %v4135 = vmul.f32 %v4094, 0.00390625
  %v4136 = vmul.f32 %v4131, 0.00390625
  %v4137 = vmul.f32 %v3787, %v3787
  %v4138 = vmul.f32 %v3788, %v3788
  %v4139 = vmul.f32 %v3789, %v3789
  %v4140 = vmul.f32 %v3790, %v3790
  %v4141 = vmul.f32 %v3791, %v3791
  %v4142 = vmul.f32 %v3792, %v3792
  %v4143 = vmul.f32 %v3793, %v3793
  %v4144 = vmul.f32 %v3794, %v3794
  %v4145 = vmul.f32 %v3795, %v3795
  %v4146 = vmul.f32 %v3796, %v3796
  %v4147 = vmul.f32 %v3797, %v3797
  %v4148 = vmul.f32 %v3798, %v3798
  %v4149 = vmul.f32 %v3799, %v3799
  %v4150 = vmul.f32 %v3800, %v3800
  %v4151 = vmul.f32 %v3801, %v3801
  %v4152 = vmul.f32 %v3802, %v3802
  %v4153 = vmul.f32 %v3803, %v3803
  %v4154 = vmul.f32 %v3804, %v3804
  %v4155 = vmul.f32 %v3805, %v3805
  %v4156 = vmul.f32 %v3806, %v3806
  %v4157 = vmul.f32 %v3807, %v3807
  %v4158 = vmul.f32 %v3808, %v3808
  %v4159 = vmul.f32 %v3809, %v3809
  %v4160 = vmul.f32 %v3810, %v3810
  %v4161 = vmul.f32 %v3811, %v3811
  %v4162 = vmul.f32 %v3812, %v3812
  %v4163 = vmul.f32 %v3813, %v3813
  %v4164 = vmul.f32 %v3814, %v3814
  %v4165 = vmul.f32 %v3815, %v3815
  %v4166 = vmul.f32 %v3816, %v3816
  %v4167 = vmul.f32 %v3817, %v3817
  %v4168 = vmul.f32 %v3818, %v3818
  %v4169 = vmul.f32 %v3819, %v3819
  %v4170 = vmul.f32 %v3820, %v3820
  %v4171 = vmul.f32 %v3821, %v3821
  %v4172 = vmul.f32 %v3822, %v3822
  %v4173 = vmul.f32 %v3823, %v3823
  %v4174 = vmul.f32 %v3824, %v3824
  %v4175 = vmul.f32 %v3825, %v3825
  %v4176 = vmul.f32 %v3826, %v3826
  %v4177 = vmul.f32 %v3827, %v3827
  %v4178 = vmul.f32 %v3828, %v3828
  %v4179 = vmul.f32 %v3829, %v3829
  %v4180 = vmul.f32 %v3830, %v3830
  %v4181 = vmul.f32 %v3831, %v3831
  %v4182 = vmul.f32 %v3832, %v3832
  %v4183 = vmul.f32 %v3833, %v3833
  %v4184 = vmul.f32 %v3834, %v3834
  %v4185 = vmul.f32 %v3835, %v3835
  %v4186 = vmul.f32 %v3836, %v3836
  %v4187 = vmul.f32 %v3837, %v3837
  %v4188 = vmul.f32 %v3838, %v3838
  %v4189 = vmul.f32 %v3839, %v3839
  %v4190 = vmul.f32 %v3840, %v3840
  %v4191 = vmul.f32 %v3841, %v3841
  %v4192 = vmul.f32 %v3842, %v3842
  %v4193 = vmul.f32 %v3843, %v3843
  %v4194 = vmul.f32 %v3844, %v3844
  %v4195 = vmul.f32 %v3845, %v3845
  %v4196 = vmul.f32 %v3846, %v3846
  %v4197 = vmul.f32 %v3847, %v3847
  %v4198 = vmul.f32 %v3848, %v3848
  %v4199 = vmul.f32 %v3849, %v3849
  %v4200 = vmul.f32 %v3850, %v3850
  %v4201 = vmul.f32 %v3851, %v3851
  %v4202 = vmul.f32 %v3852, %v3852
  %v4203 = vmul.f32 %v3853, %v3853
  %v4204 = vmul.f32 %v3854, %v3854
  %v4205 = vmul.f32 %v3855, %v3855
  %v4206 = vmul.f32 %v3856, %v3856
  %v4207 = vmul.f32 %v3857, %v3857
  %v4208 = vmul.f32 %v3858, %v3858
  %v4209 = vmul.f32 %v3859, %v3859
  %v4210 = vmul.f32 %v3860, %v3860
  %v4211 = vmul.f32 %v3861, %v3861
  %v4212 = vmul.f32 %v3862, %v3862
  %v4213 = vmul.f32 %v3863, %v3863
  %v4214 = vmul.f32 %v3864, %v3864
  %v4215 = vmul.f32 %v3865, %v3865
  %v4216 = vmul.f32 %v3866, %v3866
  %v4217 = vmul.f32 %v3867, %v3867
  %v4218 = vmul.f32 %v3868, %v3868
  %v4219 = vmul.f32 %v3869, %v3869
  %v4220 = vmul.f32 %v3870, %v3870
  %v4221 = vmul.f32 %v3871, %v3871
  %v4222 = vmul.f32 %v3872, %v3872
  %v4223 = vmul.f32 %v3873, %v3873
  %v4224 = vmul.f32 %v3874, %v3874
  %v4225 = vmul.f32 %v3875, %v3875
  %v4226 = vmul.f32 %v3876, %v3876
  %v4227 = vmul.f32 %v3877, %v3877
  %v4228 = vmul.f32 %v3878, %v3878
  %v4229 = vmul.f32 %v3879, %v3879
  %v4230 = vmul.f32 %v3880, %v3880
  %v4231 = vmul.f32 %v3881, %v3881
  %v4232 = vmul.f32 %v3882, %v3882
  %v4233 = vmul.f32 %v3883, %v3883
  %v4234 = vmul.f32 %v3884, %v3884
  %v4235 = vmul.f32 %v3885, %v3885
  %v4236 = vmul.f32 %v3886, %v3886
  %v4237 = vmul.f32 %v3887, %v3887
  %v4238 = vmul.f32 %v3888, %v3888
  %v4239 = vmul.f32 %v3889, %v3889
  %v4240 = vmul.f32 %v3890, %v3890
  %v4241 = vmul.f32 %v3891, %v3891
  %v4242 = vmul.f32 %v3892, %v3892
  %v4243 = vmul.f32 %v3893, %v3893
  %v4244 = vmul.f32 %v3894, %v3894
  %v4245 = vmul.f32 %v3895, %v3895
  %v4246 = vmul.f32 %v3896, %v3896
  %v4247 = vmul.f32 %v3897, %v3897
  %v4248 = vmul.f32 %v3898, %v3898
  %v4249 = vmul.f32 %v3899, %v3899
  %v4250 = vmul.f32 %v3900, %v3900
  %v4251 = vmul.f32 %v3901, %v3901
  %v4252 = vmul.f32 %v3902, %v3902
  %v4253 = vmul.f32 %v3903, %v3903
  %v4254 = vmul.f32 %v3904, %v3904
  %v4255 = vmul.f32 %v3905, %v3905
  %v4256 = vmul.f32 %v3906, %v3906
  %v4257 = vmul.f32 %v3907, %v3907
  %v4258 = vmul.f32 %v3908, %v3908
  %v4259 = vmul.f32 %v3909, %v3909
  %v4260 = vmul.f32 %v3910, %v3910
  %v4261 = vmul.f32 %v3911, %v3911
  %v4262 = vmul.f32 %v3912, %v3912
  %v4263 = vmul.f32 %v3913, %v3913
  %v4264 = vmul.f32 %v3914, %v3914
  %v4265 = vmul.f32 %v3915, %v3915
  %v4266 = vmul.f32 %v3916, %v3916
  %v4267 = vmul.f32 %v3917, %v3917
  %v4268 = vmul.f32 %v3918, %v3918
  %v4269 = vmul.f32 %v3919, %v3919
  %v4270 = vmul.f32 %v3920, %v3920
  %v4271 = vmul.f32 %v3921, %v3921
  %v4272 = vmul.f32 %v3922, %v3922
  %v4273 = vmul.f32 %v3923, %v3923
  %v4274 = vmul.f32 %v3924, %v3924
  %v4275 = vmul.f32 %v3925, %v3925
  %v4276 = vmul.f32 %v3926, %v3926
  %v4277 = vmul.f32 %v3927, %v3927
  %v4278 = vmul.f32 %v3928, %v3928
  %v4279 = vmul.f32 %v3929, %v3929
  %v4280 = vmul.f32 %v3930, %v3930
  %v4281 = vmul.f32 %v3931, %v3931
  %v4282 = vmul.f32 %v3932, %v3932
  %v4283 = vmul.f32 %v3933, %v3933
  %v4284 = vmul.f32 %v3934, %v3934
  %v4285 = vmul.f32 %v3935, %v3935
  %v4286 = vmul.f32 %v3936, %v3936
  %v4287 = vmul.f32 %v3937, %v3937
  %v4288 = vmul.f32 %v3938, %v3938
  %v4289 = vmul.f32 %v3939, %v3939
  %v4290 = vmul.f32 %v3940, %v3940
  %v4291 = vmul.f32 %v3941, %v3941
  %v4292 = vmul.f32 %v3942, %v3942
  %v4293 = vmul.f32 %v3943, %v3943
  %v4294 = vmul.f32 %v3944, %v3944
  %v4295 = vmul.f32 %v3945, %v3945
  %v4296 = vmul.f32 %v3946, %v3946
  %v4297 = vadd.f32 %v4137, %v4142
  %v4298 = vadd.f32 %v4297, %v4147
  %v4299 = vadd.f32 %v4298, %v4152
  %v4300 = vadd.f32 %v4299, %v4157
  %v4301 = vadd.f32 %v4300, %v4162
  %v4302 = vadd.f32 %v4301, %v4167
  %v4303 = vadd.f32 %v4302, %v4172
  %v4304 = vadd.f32 %v4303, %v4177
  %v4305 = vadd.f32 %v4304, %v4182
  %v4306 = vadd.f32 %v4305, %v4187
  %v4307 = vadd.f32 %v4306, %v4192
  %v4308 = vadd.f32 %v4307, %v4197
  %v4309 = vadd.f32 %v4308, %v4202
  %v4310 = vadd.f32 %v4309, %v4207
  %v4311 = vadd.f32 %v4310, %v4212
  %v4312 = vadd.f32 %v4311, %v4217
  %v4313 = vadd.f32 %v4312, %v4222
  %v4314 = vadd.f32 %v4313, %v4227
  %v4315 = vadd.f32 %v4314, %v4232
  %v4316 = vadd.f32 %v4315, %v4237
  %v4317 = vadd.f32 %v4316, %v4242
  %v4318 = vadd.f32 %v4317, %v4247
  %v4319 = vadd.f32 %v4318, %v4252
  %v4320 = vadd.f32 %v4319, %v4257
  %v4321 = vadd.f32 %v4320, %v4262
  %v4322 = vadd.f32 %v4321, %v4267
  %v4323 = vadd.f32 %v4322, %v4272
  %v4324 = vadd.f32 %v4323, %v4277
  %v4325 = vadd.f32 %v4324, %v4282
  %v4326 = vadd.f32 %v4325, %v4287
  %v4327 = vadd.f32 %v4326, %v4292
  %v4328 = vrot.slane %v4327, 4
  %v4329 = vadd.f32 %v4327, %v4328
  %v4330 = vrot.slane %v4329, 2
  %v4331 = vadd.f32 %v4329, %v4330
  %v4332 = vrot.slane %v4331, 1
  %v4333 = vadd.f32 %v4331, %v4332
  %v4334 = vadd.f32 %v4138, %v4143
  %v4335 = vadd.f32 %v4334, %v4148
  %v4336 = vadd.f32 %v4335, %v4153
  %v4337 = vadd.f32 %v4336, %v4158
  %v4338 = vadd.f32 %v4337, %v4163
  %v4339 = vadd.f32 %v4338, %v4168
  %v4340 = vadd.f32 %v4339, %v4173
  %v4341 = vadd.f32 %v4340, %v4178
  %v4342 = vadd.f32 %v4341, %v4183
  %v4343 = vadd.f32 %v4342, %v4188
  %v4344 = vadd.f32 %v4343, %v4193
  %v4345 = vadd.f32 %v4344, %v4198
  %v4346 = vadd.f32 %v4345, %v4203
  %v4347 = vadd.f32 %v4346, %v4208
  %v4348 = vadd.f32 %v4347, %v4213
  %v4349 = vadd.f32 %v4348, %v4218
  %v4350 = vadd.f32 %v4349, %v4223
  %v4351 = vadd.f32 %v4350, %v4228
  %v4352 = vadd.f32 %v4351, %v4233
  %v4353 = vadd.f32 %v4352, %v4238
  %v4354 = vadd.f32 %v4353, %v4243
  %v4355 = vadd.f32 %v4354, %v4248
  %v4356 = vadd.f32 %v4355, %v4253
  %v4357 = vadd.f32 %v4356, %v4258
  %v4358 = vadd.f32 %v4357, %v4263
  %v4359 = vadd.f32 %v4358, %v4268
  %v4360 = vadd.f32 %v4359, %v4273
  %v4361 = vadd.f32 %v4360, %v4278
  %v4362 = vadd.f32 %v4361, %v4283
  %v4363 = vadd.f32 %v4362, %v4288
  %v4364 = vadd.f32 %v4363, %v4293
  %v4365 = vrot.slane %v4364, 4
  %v4366 = vadd.f32 %v4364, %v4365
  %v4367 = vrot.slane %v4366, 2
  %v4368 = vadd.f32 %v4366, %v4367
  %v4369 = vrot.slane %v4368, 1
  %v4370 = vadd.f32 %v4368, %v4369
  %v4371 = vadd.f32 %v4139, %v4144
  %v4372 = vadd.f32 %v4371, %v4149
  %v4373 = vadd.f32 %v4372, %v4154
  %v4374 = vadd.f32 %v4373, %v4159
  %v4375 = vadd.f32 %v4374, %v4164
  %v4376 = vadd.f32 %v4375, %v4169
  %v4377 = vadd.f32 %v4376, %v4174
  %v4378 = vadd.f32 %v4377, %v4179
  %v4379 = vadd.f32 %v4378, %v4184
  %v4380 = vadd.f32 %v4379, %v4189
  %v4381 = vadd.f32 %v4380, %v4194
  %v4382 = vadd.f32 %v4381, %v4199
  %v4383 = vadd.f32 %v4382, %v4204
  %v4384 = vadd.f32 %v4383, %v4209
  %v4385 = vadd.f32 %v4384, %v4214
  %v4386 = vadd.f32 %v4385, %v4219
  %v4387 = vadd.f32 %v4386, %v4224
  %v4388 = vadd.f32 %v4387, %v4229
  %v4389 = vadd.f32 %v4388, %v4234
  %v4390 = vadd.f32 %v4389, %v4239
  %v4391 = vadd.f32 %v4390, %v4244
  %v4392 = vadd.f32 %v4391, %v4249
  %v4393 = vadd.f32 %v4392, %v4254
  %v4394 = vadd.f32 %v4393, %v4259
  %v4395 = vadd.f32 %v4394, %v4264
  %v4396 = vadd.f32 %v4395, %v4269
  %v4397 = vadd.f32 %v4396, %v4274
  %v4398 = vadd.f32 %v4397, %v4279
  %v4399 = vadd.f32 %v4398, %v4284
  %v4400 = vadd.f32 %v4399, %v4289
  %v4401 = vadd.f32 %v4400, %v4294
  %v4402 = vrot.slane %v4401, 4
  %v4403 = vadd.f32 %v4401, %v4402
  %v4404 = vrot.slane %v4403, 2
  %v4405 = vadd.f32 %v4403, %v4404
  %v4406 = vrot.slane %v4405, 1
  %v4407 = vadd.f32 %v4405, %v4406
  %v4408 = vadd.f32 %v4140, %v4145
  %v4409 = vadd.f32 %v4408, %v4150
  %v4410 = vadd.f32 %v4409, %v4155
  %v4411 = vadd.f32 %v4410, %v4160
  %v4412 = vadd.f32 %v4411, %v4165
  %v4413 = vadd.f32 %v4412, %v4170
  %v4414 = vadd.f32 %v4413, %v4175
  %v4415 = vadd.f32 %v4414, %v4180
  %v4416 = vadd.f32 %v4415, %v4185
  %v4417 = vadd.f32 %v4416, %v4190
  %v4418 = vadd.f32 %v4417, %v4195
  %v4419 = vadd.f32 %v4418, %v4200
  %v4420 = vadd.f32 %v4419, %v4205
  %v4421 = vadd.f32 %v4420, %v4210
  %v4422 = vadd.f32 %v4421, %v4215
  %v4423 = vadd.f32 %v4422, %v4220
  %v4424 = vadd.f32 %v4423, %v4225
  %v4425 = vadd.f32 %v4424, %v4230
  %v4426 = vadd.f32 %v4425, %v4235
  %v4427 = vadd.f32 %v4426, %v4240
  %v4428 = vadd.f32 %v4427, %v4245
  %v4429 = vadd.f32 %v4428, %v4250
  %v4430 = vadd.f32 %v4429, %v4255
  %v4431 = vadd.f32 %v4430, %v4260
  %v4432 = vadd.f32 %v4431, %v4265
  %v4433 = vadd.f32 %v4432, %v4270
  %v4434 = vadd.f32 %v4433, %v4275
  %v4435 = vadd.f32 %v4434, %v4280
  %v4436 = vadd.f32 %v4435, %v4285
  %v4437 = vadd.f32 %v4436, %v4290
  %v4438 = vadd.f32 %v4437, %v4295
  %v4439 = vrot.slane %v4438, 4
  %v4440 = vadd.f32 %v4438, %v4439
  %v4441 = vrot.slane %v4440, 2
  %v4442 = vadd.f32 %v4440, %v4441
  %v4443 = vrot.slane %v4442, 1
  %v4444 = vadd.f32 %v4442, %v4443
  %v4445 = vadd.f32 %v4141, %v4146
  %v4446 = vadd.f32 %v4445, %v4151
  %v4447 = vadd.f32 %v4446, %v4156
  %v4448 = vadd.f32 %v4447, %v4161
  %v4449 = vadd.f32 %v4448, %v4166
  %v4450 = vadd.f32 %v4449, %v4171
  %v4451 = vadd.f32 %v4450, %v4176
  %v4452 = vadd.f32 %v4451, %v4181
  %v4453 = vadd.f32 %v4452, %v4186
  %v4454 = vadd.f32 %v4453, %v4191
  %v4455 = vadd.f32 %v4454, %v4196
  %v4456 = vadd.f32 %v4455, %v4201
  %v4457 = vadd.f32 %v4456, %v4206
  %v4458 = vadd.f32 %v4457, %v4211
  %v4459 = vadd.f32 %v4458, %v4216
  %v4460 = vadd.f32 %v4459, %v4221
  %v4461 = vadd.f32 %v4460, %v4226
  %v4462 = vadd.f32 %v4461, %v4231
  %v4463 = vadd.f32 %v4462, %v4236
  %v4464 = vadd.f32 %v4463, %v4241
  %v4465 = vadd.f32 %v4464, %v4246
  %v4466 = vadd.f32 %v4465, %v4251
  %v4467 = vadd.f32 %v4466, %v4256
  %v4468 = vadd.f32 %v4467, %v4261
  %v4469 = vadd.f32 %v4468, %v4266
  %v4470 = vadd.f32 %v4469, %v4271
  %v4471 = vadd.f32 %v4470, %v4276
  %v4472 = vadd.f32 %v4471, %v4281
  %v4473 = vadd.f32 %v4472, %v4286
  %v4474 = vadd.f32 %v4473, %v4291
  %v4475 = vadd.f32 %v4474, %v4296
  %v4476 = vrot.slane %v4475, 4
  %v4477 = vadd.f32 %v4475, %v4476
  %v4478 = vrot.slane %v4477, 2
  %v4479 = vadd.f32 %v4477, %v4478
  %v4480 = vrot.slane %v4479, 1
  %v4481 = vadd.f32 %v4479, %v4480
  %v4482 = vmul.f32 %v4333, 0.00390625
  %v4483 = vmul.f32 %v4370, 0.00390625
  %v4484 = vmul.f32 %v4407, 0.00390625
  %v4485 = vmul.f32 %v4444, 0.00390625
  %v4486 = vmul.f32 %v4481, 0.00390625
  %v4487 = vmul.f32 %v4132, %v4132
  %v4488 = vmul.f32 %v4133, %v4133
  %v4489 = vmul.f32 %v4134, %v4134
  %v4490 = vmul.f32 %v4135, %v4135
  %v4491 = vmul.f32 %v4136, %v4136
  %v4492 = vsub.f32 %v4482, %v4487
  %v4493 = vsub.f32 %v4483, %v4488
  %v4494 = vsub.f32 %v4484, %v4489
  %v4495 = vsub.f32 %v4485, %v4490
  %v4496 = vsub.f32 %v4486, %v4491
  %v4497 = vmax.f32 %v4492, 0.0
  %v4498 = vmax.f32 %v4493, 0.0
  %v4499 = vmax.f32 %v4494, 0.0
  %v4500 = vmax.f32 %v4495, 0.0
  %v4501 = vmax.f32 %v4496, 0.0
  %v4502 = vld [vmem:[%s3] sm:$0x1f]
  %v4503 = vadd.f32 %v4497, 1e-05
  %v4504 = vadd.f32 %v4498, 1e-05
  %v4505 = vadd.f32 %v4499, 1e-05
  %v4506 = vadd.f32 %v4500, 1e-05
  %v4507 = vadd.f32 %v4501, 1e-05
  %v4508 = vrsqrt.pop %v4503
  %v4509 = vrsqrt.pop %v4504
  %v4510 = vrsqrt.pop %v4505
  %v4511 = vrsqrt.pop %v4506
  %v4512 = vrsqrt.pop %v4507
  %v4518 = vcombine.low %v4508, %v4509
  %v4519 = vcombine.low %v4510, %v4511
  %v4521 = vunpack.c.l.s4 1966171168
  %v4522 = vunpack.c.0.s8 %v4521
  %v4523 = vlaneseq
  %v4524 = vshrl.u32 %v4523, 7
  %v4525 = vsub.s32 %v4522, %v4524
  %v4526 = vrot.slane %v4518, %v4525
  %v4528 = vunpack.c.l.s4 1966171168
  %v4529 = vunpack.c.0.s8 %v4528
  %v4530 = vlaneseq
  %v4531 = vshrl.u32 %v4530, 7
  %v4532 = vsub.s32 %v4529, %v4531
  %v4533 = vrot.slane %v4519, %v4532
  %v4535 = vunpack.c.l.s4 1966171168
  %v4536 = vunpack.c.0.s8 %v4535
  %v4537 = vlaneseq
  %v4538 = vshrl.u32 %v4537, 7
  %v4539 = vsub.s32 %v4536, %v4538
  %v4540 = vrot.slane %v4512, %v4539
  %v4541 = vcombine.low %v4526, %v4533
  %v4543 = vunpack.c.l.s4 1966171168
  %v4544 = vunpack.c.0.s8 %v4543
  %v4545 = vlaneseq
  %v4546 = vshrl.u32 %v4545, 7
  %v4547 = vsub.s32 %v4544, %v4546
  %v4548 = vrot.slane %v4541, %v4547
  %v4550 = vunpack.c.l.s4 1966171168
  %v4551 = vunpack.c.0.s8 %v4550
  %v4552 = vlaneseq
  %v4553 = vshrl.u32 %v4552, 7
  %v4554 = vsub.s32 %v4551, %v4553
  %v4555 = vrot.slane %v4540, %v4554
  %v4556 = vcombine.low %v4548, %v4555
  %v4558 = vmul.f32 %v4502, %v4556
  %v4559 = vld [vmem:[%s4] sm:$0x1f]
  %v4561 = vlaneseq
  %v4562 = vshrl.u32 %v4561, 7
  %v4563 = vsub.s32 0, %v4562
  %v4564 = vrot.slane %v4558, %v4563
  %v4565 = vlaneseq
  %v4566 = vshrl.u32 %v4565, 7
  %v4567 = vsub.s32 1, %v4566
  %v4568 = vrot.slane %v4558, %v4567
  %v4569 = vlaneseq
  %v4570 = vshrl.u32 %v4569, 7
  %v4571 = vsub.s32 2, %v4570
  %v4572 = vrot.slane %v4558, %v4571
  %v4573 = vlaneseq
  %v4574 = vshrl.u32 %v4573, 7
  %v4575 = vsub.s32 3, %v4574
  %v4576 = vrot.slane %v4558, %v4575
  %v4577 = vlaneseq
  %v4578 = vshrl.u32 %v4577, 7
  %v4579 = vsub.s32 4, %v4578
  %v4580 = vrot.slane %v4558, %v4579
  %v4586 = vmul.f32 %v4132, %v4564
  %v4587 = vmul.f32 %v4133, %v4568
  %v4588 = vmul.f32 %v4134, %v4572
  %v4589 = vmul.f32 %v4135, %v4576
  %v4590 = vmul.f32 %v4136, %v4580
  %v4596 = vcombine.low %v4586, %v4587
  %v4597 = vcombine.low %v4588, %v4589
  %v4599 = vunpack.c.l.s4 1966171168
  %v4600 = vunpack.c.0.s8 %v4599
  %v4601 = vlaneseq
  %v4602 = vshrl.u32 %v4601, 7
  %v4603 = vsub.s32 %v4600, %v4602
  %v4604 = vrot.slane %v4596, %v4603
  %v4606 = vunpack.c.l.s4 1966171168
  %v4607 = vunpack.c.0.s8 %v4606
  %v4608 = vlaneseq
  %v4609 = vshrl.u32 %v4608, 7
  %v4610 = vsub.s32 %v4607, %v4609
  %v4611 = vrot.slane %v4597, %v4610
  %v4613 = vunpack.c.l.s4 1966171168
  %v4614 = vunpack.c.0.s8 %v4613
  %v4615 = vlaneseq
  %v4616 = vshrl.u32 %v4615, 7
  %v4617 = vsub.s32 %v4614, %v4616
  %v4618 = vrot.slane %v4590, %v4617
  %v4619 = vcombine.low %v4604, %v4611
  %v4621 = vunpack.c.l.s4 1966171168
  %v4622 = vunpack.c.0.s8 %v4621
  %v4623 = vlaneseq
  %v4624 = vshrl.u32 %v4623, 7
  %v4625 = vsub.s32 %v4622, %v4624
  %v4626 = vrot.slane %v4619, %v4625
  %v4628 = vunpack.c.l.s4 1966171168
  %v4629 = vunpack.c.0.s8 %v4628
  %v4630 = vlaneseq
  %v4631 = vshrl.u32 %v4630, 7
  %v4632 = vsub.s32 %v4629, %v4631
  %v4633 = vrot.slane %v4618, %v4632
  %v4634 = vcombine.low %v4626, %v4633
  %v4636 = vsub.f32 %v4559, %v4634
  %v4637 = vmul.f32 %v3787, %v4564
  %v4638 = vmul.f32 %v3788, %v4568
  %v4639 = vmul.f32 %v3789, %v4572
  %v4640 = vmul.f32 %v3790, %v4576
  %v4641 = vmul.f32 %v3791, %v4580
  %v4642 = vmul.f32 %v3792, %v4564
  %v4643 = vmul.f32 %v3793, %v4568
  %v4644 = vmul.f32 %v3794, %v4572
  %v4645 = vmul.f32 %v3795, %v4576
  %v4646 = vmul.f32 %v3796, %v4580
  %v4647 = vmul.f32 %v3797, %v4564
  %v4648 = vmul.f32 %v3798, %v4568
  %v4649 = vmul.f32 %v3799, %v4572
  %v4650 = vmul.f32 %v3800, %v4576
  %v4651 = vmul.f32 %v3801, %v4580
  %v4652 = vmul.f32 %v3802, %v4564
  %v4653 = vmul.f32 %v3803, %v4568
  %v4654 = vmul.f32 %v3804, %v4572
  %v4655 = vmul.f32 %v3805, %v4576
  %v4656 = vmul.f32 %v3806, %v4580
  %v4657 = vmul.f32 %v3807, %v4564
  %v4658 = vmul.f32 %v3808, %v4568
  %v4659 = vmul.f32 %v3809, %v4572
  %v4660 = vmul.f32 %v3810, %v4576
  %v4661 = vmul.f32 %v3811, %v4580
  %v4662 = vmul.f32 %v3812, %v4564
  %v4663 = vmul.f32 %v3813, %v4568
  %v4664 = vmul.f32 %v3814, %v4572
  %v4665 = vmul.f32 %v3815, %v4576
  %v4666 = vmul.f32 %v3816, %v4580
  %v4667 = vmul.f32 %v3817, %v4564
  %v4668 = vmul.f32 %v3818, %v4568
  %v4669 = vmul.f32 %v3819, %v4572
  %v4670 = vmul.f32 %v3820, %v4576
  %v4671 = vmul.f32 %v3821, %v4580
  %v4672 = vmul.f32 %v3822, %v4564
  %v4673 = vmul.f32 %v3823, %v4568
  %v4674 = vmul.f32 %v3824, %v4572
  %v4675 = vmul.f32 %v3825, %v4576
  %v4676 = vmul.f32 %v3826, %v4580
  %v4677 = vmul.f32 %v3827, %v4564
  %v4678 = vmul.f32 %v3828, %v4568
  %v4679 = vmul.f32 %v3829, %v4572
  %v4680 = vmul.f32 %v3830, %v4576
  %v4681 = vmul.f32 %v3831, %v4580
  %v4682 = vmul.f32 %v3832, %v4564
  %v4683 = vmul.f32 %v3833, %v4568
  %v4684 = vmul.f32 %v3834, %v4572
  %v4685 = vmul.f32 %v3835, %v4576
  %v4686 = vmul.f32 %v3836, %v4580
  %v4687 = vmul.f32 %v3837, %v4564
  %v4688 = vmul.f32 %v3838, %v4568
  %v4689 = vmul.f32 %v3839, %v4572
  %v4690 = vmul.f32 %v3840, %v4576
  %v4691 = vmul.f32 %v3841, %v4580
  %v4692 = vmul.f32 %v3842, %v4564
  %v4693 = vmul.f32 %v3843, %v4568
  %v4694 = vmul.f32 %v3844, %v4572
  %v4695 = vmul.f32 %v3845, %v4576
  %v4696 = vmul.f32 %v3846, %v4580
  %v4697 = vmul.f32 %v3847, %v4564
  %v4698 = vmul.f32 %v3848, %v4568
  %v4699 = vmul.f32 %v3849, %v4572
  %v4700 = vmul.f32 %v3850, %v4576
  %v4701 = vmul.f32 %v3851, %v4580
  %v4702 = vmul.f32 %v3852, %v4564
  %v4703 = vmul.f32 %v3853, %v4568
  %v4704 = vmul.f32 %v3854, %v4572
  %v4705 = vmul.f32 %v3855, %v4576
  %v4706 = vmul.f32 %v3856, %v4580
  %v4707 = vmul.f32 %v3857, %v4564
  %v4708 = vmul.f32 %v3858, %v4568
  %v4709 = vmul.f32 %v3859, %v4572
  %v4710 = vmul.f32 %v3860, %v4576
  %v4711 = vmul.f32 %v3861, %v4580
  %v4712 = vmul.f32 %v3862, %v4564
  %v4713 = vmul.f32 %v3863, %v4568
  %v4714 = vmul.f32 %v3864, %v4572
  %v4715 = vmul.f32 %v3865, %v4576
  %v4716 = vmul.f32 %v3866, %v4580
  %v4717 = vmul.f32 %v3867, %v4564
  %v4718 = vmul.f32 %v3868, %v4568
  %v4719 = vmul.f32 %v3869, %v4572
  %v4720 = vmul.f32 %v3870, %v4576
  %v4721 = vmul.f32 %v3871, %v4580
  %v4722 = vmul.f32 %v3872, %v4564
  %v4723 = vmul.f32 %v3873, %v4568
  %v4724 = vmul.f32 %v3874, %v4572
  %v4725 = vmul.f32 %v3875, %v4576
  %v4726 = vmul.f32 %v3876, %v4580
  %v4727 = vmul.f32 %v3877, %v4564
  %v4728 = vmul.f32 %v3878, %v4568
  %v4729 = vmul.f32 %v3879, %v4572
  %v4730 = vmul.f32 %v3880, %v4576
  %v4731 = vmul.f32 %v3881, %v4580
  %v4732 = vmul.f32 %v3882, %v4564
  %v4733 = vmul.f32 %v3883, %v4568
  %v4734 = vmul.f32 %v3884, %v4572
  %v4735 = vmul.f32 %v3885, %v4576
  %v4736 = vmul.f32 %v3886, %v4580
  %v4737 = vmul.f32 %v3887, %v4564
  %v4738 = vmul.f32 %v3888, %v4568
  %v4739 = vmul.f32 %v3889, %v4572
  %v4740 = vmul.f32 %v3890, %v4576
  %v4741 = vmul.f32 %v3891, %v4580
  %v4742 = vmul.f32 %v3892, %v4564
  %v4743 = vmul.f32 %v3893, %v4568
  %v4744 = vmul.f32 %v3894, %v4572
  %v4745 = vmul.f32 %v3895, %v4576
  %v4746 = vmul.f32 %v3896, %v4580
  %v4747 = vmul.f32 %v3897, %v4564
  %v4748 = vmul.f32 %v3898, %v4568
  %v4749 = vmul.f32 %v3899, %v4572
  %v4750 = vmul.f32 %v3900, %v4576
  %v4751 = vmul.f32 %v3901, %v4580
  %v4752 = vmul.f32 %v3902, %v4564
  %v4753 = vmul.f32 %v3903, %v4568
  %v4754 = vmul.f32 %v3904, %v4572
  %v4755 = vmul.f32 %v3905, %v4576
  %v4756 = vmul.f32 %v3906, %v4580
  %v4757 = vmul.f32 %v3907, %v4564
  %v4758 = vmul.f32 %v3908, %v4568
  %v4759 = vmul.f32 %v3909, %v4572
  %v4760 = vmul.f32 %v3910, %v4576
  %v4761 = vmul.f32 %v3911, %v4580
  %v4762 = vmul.f32 %v3912, %v4564
  %v4763 = vmul.f32 %v3913, %v4568
  %v4764 = vmul.f32 %v3914, %v4572
  %v4765 = vmul.f32 %v3915, %v4576
  %v4766 = vmul.f32 %v3916, %v4580
  %v4767 = vmul.f32 %v3917, %v4564
  %v4768 = vmul.f32 %v3918, %v4568
  %v4769 = vmul.f32 %v3919, %v4572
  %v4770 = vmul.f32 %v3920, %v4576
  %v4771 = vmul.f32 %v3921, %v4580
  %v4772 = vmul.f32 %v3922, %v4564
  %v4773 = vmul.f32 %v3923, %v4568
  %v4774 = vmul.f32 %v3924, %v4572
  %v4775 = vmul.f32 %v3925, %v4576
  %v4776 = vmul.f32 %v3926, %v4580
  %v4777 = vmul.f32 %v3927, %v4564
  %v4778 = vmul.f32 %v3928, %v4568
  %v4779 = vmul.f32 %v3929, %v4572
  %v4780 = vmul.f32 %v3930, %v4576
  %v4781 = vmul.f32 %v3931, %v4580
  %v4782 = vmul.f32 %v3932, %v4564
  %v4783 = vmul.f32 %v3933, %v4568
  %v4784 = vmul.f32 %v3934, %v4572
  %v4785 = vmul.f32 %v3935, %v4576
  %v4786 = vmul.f32 %v3936, %v4580
  %v4787 = vmul.f32 %v3937, %v4564
  %v4788 = vmul.f32 %v3938, %v4568
  %v4789 = vmul.f32 %v3939, %v4572
  %v4790 = vmul.f32 %v3940, %v4576
  %v4791 = vmul.f32 %v3941, %v4580
  %v4792 = vmul.f32 %v3942, %v4564
  %v4793 = vmul.f32 %v3943, %v4568
  %v4794 = vmul.f32 %v3944, %v4572
  %v4795 = vmul.f32 %v3945, %v4576
  %v4796 = vmul.f32 %v3946, %v4580
  %v4798 = vlaneseq
  %v4799 = vshrl.u32 %v4798, 7
  %v4800 = vsub.s32 0, %v4799
  %v4801 = vrot.slane %v4636, %v4800
  %v4802 = vlaneseq
  %v4803 = vshrl.u32 %v4802, 7
  %v4804 = vsub.s32 1, %v4803
  %v4805 = vrot.slane %v4636, %v4804
  %v4806 = vlaneseq
  %v4807 = vshrl.u32 %v4806, 7
  %v4808 = vsub.s32 2, %v4807
  %v4809 = vrot.slane %v4636, %v4808
  %v4810 = vlaneseq
  %v4811 = vshrl.u32 %v4810, 7
  %v4812 = vsub.s32 3, %v4811
  %v4813 = vrot.slane %v4636, %v4812
  %v4814 = vlaneseq
  %v4815 = vshrl.u32 %v4814, 7
  %v4816 = vsub.s32 4, %v4815
  %v4817 = vrot.slane %v4636, %v4816
  %v4823 = vadd.f32 %v4637, %v4801
  %v4824 = vadd.f32 %v4638, %v4805
  %v4825 = vadd.f32 %v4639, %v4809
  %v4826 = vadd.f32 %v4640, %v4813
  %v4827 = vadd.f32 %v4641, %v4817
  %v4828 = vadd.f32 %v4642, %v4801
  %v4829 = vadd.f32 %v4643, %v4805
  %v4830 = vadd.f32 %v4644, %v4809
  %v4831 = vadd.f32 %v4645, %v4813
  %v4832 = vadd.f32 %v4646, %v4817
  %v4833 = vadd.f32 %v4647, %v4801
  %v4834 = vadd.f32 %v4648, %v4805
  %v4835 = vadd.f32 %v4649, %v4809
  %v4836 = vadd.f32 %v4650, %v4813
  %v4837 = vadd.f32 %v4651, %v4817
  %v4838 = vadd.f32 %v4652, %v4801
  %v4839 = vadd.f32 %v4653, %v4805
  %v4840 = vadd.f32 %v4654, %v4809
  %v4841 = vadd.f32 %v4655, %v4813
  %v4842 = vadd.f32 %v4656, %v4817
  %v4843 = vadd.f32 %v4657, %v4801
  %v4844 = vadd.f32 %v4658, %v4805
  %v4845 = vadd.f32 %v4659, %v4809
  %v4846 = vadd.f32 %v4660, %v4813
  %v4847 = vadd.f32 %v4661, %v4817
  %v4848 = vadd.f32 %v4662, %v4801
  %v4849 = vadd.f32 %v4663, %v4805
  %v4850 = vadd.f32 %v4664, %v4809
  %v4851 = vadd.f32 %v4665, %v4813
  %v4852 = vadd.f32 %v4666, %v4817
  %v4853 = vadd.f32 %v4667, %v4801
  %v4854 = vadd.f32 %v4668, %v4805
  %v4855 = vadd.f32 %v4669, %v4809
  %v4856 = vadd.f32 %v4670, %v4813
  %v4857 = vadd.f32 %v4671, %v4817
  %v4858 = vadd.f32 %v4672, %v4801
  %v4859 = vadd.f32 %v4673, %v4805
  %v4860 = vadd.f32 %v4674, %v4809
  %v4861 = vadd.f32 %v4675, %v4813
  %v4862 = vadd.f32 %v4676, %v4817
  %v4863 = vadd.f32 %v4677, %v4801
  %v4864 = vadd.f32 %v4678, %v4805
  %v4865 = vadd.f32 %v4679, %v4809
  %v4866 = vadd.f32 %v4680, %v4813
  %v4867 = vadd.f32 %v4681, %v4817
  %v4868 = vadd.f32 %v4682, %v4801
  %v4869 = vadd.f32 %v4683, %v4805
  %v4870 = vadd.f32 %v4684, %v4809
  %v4871 = vadd.f32 %v4685, %v4813
  %v4872 = vadd.f32 %v4686, %v4817
  %v4873 = vadd.f32 %v4687, %v4801
  %v4874 = vadd.f32 %v4688, %v4805
  %v4875 = vadd.f32 %v4689, %v4809
  %v4876 = vadd.f32 %v4690, %v4813
  %v4877 = vadd.f32 %v4691, %v4817
  %v4878 = vadd.f32 %v4692, %v4801
  %v4879 = vadd.f32 %v4693, %v4805
  %v4880 = vadd.f32 %v4694, %v4809
  %v4881 = vadd.f32 %v4695, %v4813
  %v4882 = vadd.f32 %v4696, %v4817
  %v4883 = vadd.f32 %v4697, %v4801
  %v4884 = vadd.f32 %v4698, %v4805
  %v4885 = vadd.f32 %v4699, %v4809
  %v4886 = vadd.f32 %v4700, %v4813
  %v4887 = vadd.f32 %v4701, %v4817
  %v4888 = vadd.f32 %v4702, %v4801
  %v4889 = vadd.f32 %v4703, %v4805
  %v4890 = vadd.f32 %v4704, %v4809
  %v4891 = vadd.f32 %v4705, %v4813
  %v4892 = vadd.f32 %v4706, %v4817
  %v4893 = vadd.f32 %v4707, %v4801
  %v4894 = vadd.f32 %v4708, %v4805
  %v4895 = vadd.f32 %v4709, %v4809
  %v4896 = vadd.f32 %v4710, %v4813
  %v4897 = vadd.f32 %v4711, %v4817
  %v4898 = vadd.f32 %v4712, %v4801
  %v4899 = vadd.f32 %v4713, %v4805
  %v4900 = vadd.f32 %v4714, %v4809
  %v4901 = vadd.f32 %v4715, %v4813
  %v4902 = vadd.f32 %v4716, %v4817
  %v4903 = vadd.f32 %v4717, %v4801
  %v4904 = vadd.f32 %v4718, %v4805
  %v4905 = vadd.f32 %v4719, %v4809
  %v4906 = vadd.f32 %v4720, %v4813
  %v4907 = vadd.f32 %v4721, %v4817
  %v4908 = vadd.f32 %v4722, %v4801
  %v4909 = vadd.f32 %v4723, %v4805
  %v4910 = vadd.f32 %v4724, %v4809
  %v4911 = vadd.f32 %v4725, %v4813
  %v4912 = vadd.f32 %v4726, %v4817
  %v4913 = vadd.f32 %v4727, %v4801
  %v4914 = vadd.f32 %v4728, %v4805
  %v4915 = vadd.f32 %v4729, %v4809
  %v4916 = vadd.f32 %v4730, %v4813
  %v4917 = vadd.f32 %v4731, %v4817
  %v4918 = vadd.f32 %v4732, %v4801
  %v4919 = vadd.f32 %v4733, %v4805
  %v4920 = vadd.f32 %v4734, %v4809
  %v4921 = vadd.f32 %v4735, %v4813
  %v4922 = vadd.f32 %v4736, %v4817
  %v4923 = vadd.f32 %v4737, %v4801
  %v4924 = vadd.f32 %v4738, %v4805
  %v4925 = vadd.f32 %v4739, %v4809
  %v4926 = vadd.f32 %v4740, %v4813
  %v4927 = vadd.f32 %v4741, %v4817
  %v4928 = vadd.f32 %v4742, %v4801
  %v4929 = vadd.f32 %v4743, %v4805
  %v4930 = vadd.f32 %v4744, %v4809
  %v4931 = vadd.f32 %v4745, %v4813
  %v4932 = vadd.f32 %v4746, %v4817
  %v4933 = vadd.f32 %v4747, %v4801
  %v4934 = vadd.f32 %v4748, %v4805
  %v4935 = vadd.f32 %v4749, %v4809
  %v4936 = vadd.f32 %v4750, %v4813
  %v4937 = vadd.f32 %v4751, %v4817
  %v4938 = vadd.f32 %v4752, %v4801
  %v4939 = vadd.f32 %v4753, %v4805
  %v4940 = vadd.f32 %v4754, %v4809
  %v4941 = vadd.f32 %v4755, %v4813
  %v4942 = vadd.f32 %v4756, %v4817
  %v4943 = vadd.f32 %v4757, %v4801
  %v4944 = vadd.f32 %v4758, %v4805
  %v4945 = vadd.f32 %v4759, %v4809
  %v4946 = vadd.f32 %v4760, %v4813
  %v4947 = vadd.f32 %v4761, %v4817
  %v4948 = vadd.f32 %v4762, %v4801
  %v4949 = vadd.f32 %v4763, %v4805
  %v4950 = vadd.f32 %v4764, %v4809
  %v4951 = vadd.f32 %v4765, %v4813
  %v4952 = vadd.f32 %v4766, %v4817
  %v4953 = vadd.f32 %v4767, %v4801
  %v4954 = vadd.f32 %v4768, %v4805
  %v4955 = vadd.f32 %v4769, %v4809
  %v4956 = vadd.f32 %v4770, %v4813
  %v4957 = vadd.f32 %v4771, %v4817
  %v4958 = vadd.f32 %v4772, %v4801
  %v4959 = vadd.f32 %v4773, %v4805
  %v4960 = vadd.f32 %v4774, %v4809
  %v4961 = vadd.f32 %v4775, %v4813
  %v4962 = vadd.f32 %v4776, %v4817
  %v4963 = vadd.f32 %v4777, %v4801
  %v4964 = vadd.f32 %v4778, %v4805
  %v4965 = vadd.f32 %v4779, %v4809
  %v4966 = vadd.f32 %v4780, %v4813
  %v4967 = vadd.f32 %v4781, %v4817
  %v4968 = vadd.f32 %v4782, %v4801
  %v4969 = vadd.f32 %v4783, %v4805
  %v4970 = vadd.f32 %v4784, %v4809
  %v4971 = vadd.f32 %v4785, %v4813
  %v4972 = vadd.f32 %v4786, %v4817
  %v4973 = vadd.f32 %v4787, %v4801
  %v4974 = vadd.f32 %v4788, %v4805
  %v4975 = vadd.f32 %v4789, %v4809
  %v4976 = vadd.f32 %v4790, %v4813
  %v4977 = vadd.f32 %v4791, %v4817
  %v4978 = vadd.f32 %v4792, %v4801
  %v4979 = vadd.f32 %v4793, %v4805
  %v4980 = vadd.f32 %v4794, %v4809
  %v4981 = vadd.f32 %v4795, %v4813
  %v4982 = vadd.f32 %v4796, %v4817
  %v4983 = vpack.c.bf16 %v4828, %v4823
  %v4984 = vpack.c.bf16 %v4829, %v4824
  %v4985 = vpack.c.bf16 %v4830, %v4825
  %v4986 = vpack.c.bf16 %v4831, %v4826
  %v4987 = vpack.c.bf16 %v4832, %v4827
  %v4988 = vpack.c.bf16 %v4838, %v4833
  %v4989 = vpack.c.bf16 %v4839, %v4834
  %v4990 = vpack.c.bf16 %v4840, %v4835
  %v4991 = vpack.c.bf16 %v4841, %v4836
  %v4992 = vpack.c.bf16 %v4842, %v4837
  %v4993 = vpack.c.bf16 %v4848, %v4843
  %v4994 = vpack.c.bf16 %v4849, %v4844
  %v4995 = vpack.c.bf16 %v4850, %v4845
  %v4996 = vpack.c.bf16 %v4851, %v4846
  %v4997 = vpack.c.bf16 %v4852, %v4847
  %v4998 = vpack.c.bf16 %v4858, %v4853
  %v4999 = vpack.c.bf16 %v4859, %v4854
  %v5000 = vpack.c.bf16 %v4860, %v4855
  %v5001 = vpack.c.bf16 %v4861, %v4856
  %v5002 = vpack.c.bf16 %v4862, %v4857
  %v5003 = vpack.c.bf16 %v4868, %v4863
  %v5004 = vpack.c.bf16 %v4869, %v4864
  %v5005 = vpack.c.bf16 %v4870, %v4865
  %v5006 = vpack.c.bf16 %v4871, %v4866
  %v5007 = vpack.c.bf16 %v4872, %v4867
  %v5008 = vpack.c.bf16 %v4878, %v4873
  %v5009 = vpack.c.bf16 %v4879, %v4874
  %v5010 = vpack.c.bf16 %v4880, %v4875
  %v5011 = vpack.c.bf16 %v4881, %v4876
  %v5012 = vpack.c.bf16 %v4882, %v4877
  %v5013 = vpack.c.bf16 %v4888, %v4883
  %v5014 = vpack.c.bf16 %v4889, %v4884
  %v5015 = vpack.c.bf16 %v4890, %v4885
  %v5016 = vpack.c.bf16 %v4891, %v4886
  %v5017 = vpack.c.bf16 %v4892, %v4887
  %v5018 = vpack.c.bf16 %v4898, %v4893
  %v5019 = vpack.c.bf16 %v4899, %v4894
  %v5020 = vpack.c.bf16 %v4900, %v4895
  %v5021 = vpack.c.bf16 %v4901, %v4896
  %v5022 = vpack.c.bf16 %v4902, %v4897
  %v5023 = vpack.c.bf16 %v4908, %v4903
  %v5024 = vpack.c.bf16 %v4909, %v4904
  %v5025 = vpack.c.bf16 %v4910, %v4905
  %v5026 = vpack.c.bf16 %v4911, %v4906
  %v5027 = vpack.c.bf16 %v4912, %v4907
  %v5028 = vpack.c.bf16 %v4918, %v4913
  %v5029 = vpack.c.bf16 %v4919, %v4914
  %v5030 = vpack.c.bf16 %v4920, %v4915
  %v5031 = vpack.c.bf16 %v4921, %v4916
  %v5032 = vpack.c.bf16 %v4922, %v4917
  %v5033 = vpack.c.bf16 %v4928, %v4923
  %v5034 = vpack.c.bf16 %v4929, %v4924
  %v5035 = vpack.c.bf16 %v4930, %v4925
  %v5036 = vpack.c.bf16 %v4931, %v4926
  %v5037 = vpack.c.bf16 %v4932, %v4927
  %v5038 = vpack.c.bf16 %v4938, %v4933
  %v5039 = vpack.c.bf16 %v4939, %v4934
  %v5040 = vpack.c.bf16 %v4940, %v4935
  %v5041 = vpack.c.bf16 %v4941, %v4936
  %v5042 = vpack.c.bf16 %v4942, %v4937
  %v5043 = vpack.c.bf16 %v4948, %v4943
  %v5044 = vpack.c.bf16 %v4949, %v4944
  %v5045 = vpack.c.bf16 %v4950, %v4945
  %v5046 = vpack.c.bf16 %v4951, %v4946
  %v5047 = vpack.c.bf16 %v4952, %v4947
  %v5048 = vpack.c.bf16 %v4958, %v4953
  %v5049 = vpack.c.bf16 %v4959, %v4954
  %v5050 = vpack.c.bf16 %v4960, %v4955
  %v5051 = vpack.c.bf16 %v4961, %v4956
  %v5052 = vpack.c.bf16 %v4962, %v4957
  %v5053 = vpack.c.bf16 %v4968, %v4963
  %v5054 = vpack.c.bf16 %v4969, %v4964
  %v5055 = vpack.c.bf16 %v4970, %v4965
  %v5056 = vpack.c.bf16 %v4971, %v4966
  %v5057 = vpack.c.bf16 %v4972, %v4967
  %v5058 = vpack.c.bf16 %v4978, %v4973
  %v5059 = vpack.c.bf16 %v4979, %v4974
  %v5060 = vpack.c.bf16 %v4980, %v4975
  %v5061 = vpack.c.bf16 %v4981, %v4976
  %v5062 = vpack.c.bf16 %v4982, %v4977
  %s5063 = smul.u32 4, 80
  %s5064 = smul.u32 %s5063, 3
  %s5065 = sshll.u32 %s5064, 4
  %5066 = dma.done [#allocation9], %s5065
  %s5067 = smul.u32 1, 3
  %s5068 = sshll.u32 %s5067, 4
  %5069 = dma.done %s1035, %s5068
  %s5070 = sshll.u32 %s5067, 4
  %5071 = dma.done %s1080, %s5070
  %s5072 = sshll.u32 %s5067, 4
  %5073 = dma.done %s1125, %s5072
  %v5074 = vld [vmem:[#allocation3] sm:$0xff]
  %v5075 = vld [vmem:[#allocation3 + $0x8] sm:$0xff]
  %v5076 = vld [vmem:[#allocation3 + $0x10] sm:$0xff]
  %v5077 = vld [vmem:[#allocation3 + $0x18] sm:$0xff]
  %v5078 = vld [vmem:[#allocation3 + $0x20] sm:$0xff]
  %v5079 = vld [vmem:[#allocation3 + $0x28] sm:$0xff]
  %v5080 = vld [vmem:[#allocation3 + $0x30] sm:$0xff]
  %v5081 = vld [vmem:[#allocation3 + $0x38] sm:$0xff]
  %v5082 = vld [vmem:[#allocation3 + $0x40] sm:$0xff]
  %v5083 = vld [vmem:[#allocation3 + $0x48] sm:$0xff]
  %v5084 = vld [vmem:[#allocation3 + $0x50] sm:$0xff]
  %v5085 = vld [vmem:[#allocation3 + $0x58] sm:$0xff]
  %v5086 = vld [vmem:[#allocation3 + $0x60] sm:$0xff]
  %v5087 = vld [vmem:[#allocation3 + $0x68] sm:$0xff]
  %v5088 = vld [vmem:[#allocation3 + $0x70] sm:$0xff]
  %v5089 = vld [vmem:[#allocation3 + $0x78] sm:$0xff]
  %v5090 = vld [vmem:[#allocation3 + $0x80] sm:$0xff]
  %v5091 = vld [vmem:[#allocation3 + $0x88] sm:$0xff]
  %v5092 = vld [vmem:[#allocation3 + $0x90] sm:$0xff]
  %v5093 = vld [vmem:[#allocation3 + $0x98] sm:$0xff]
  %v5094 = vld [vmem:[#allocation3 + $0xa0] sm:$0xff]
  %v5095 = vld [vmem:[#allocation3 + $0xa8] sm:$0xff]
  %v5096 = vld [vmem:[#allocation3 + $0xb0] sm:$0xff]
  %v5097 = vld [vmem:[#allocation3 + $0xb8] sm:$0xff]
  %v5098 = vld [vmem:[#allocation3 + $0xc0] sm:$0xff]
  %v5099 = vld [vmem:[#allocation3 + $0xc8] sm:$0xff]
  %v5100 = vld [vmem:[#allocation3 + $0xd0] sm:$0xff]
  %v5101 = vld [vmem:[#allocation3 + $0xd8] sm:$0xff]
  %v5102 = vld [vmem:[#allocation3 + $0xe0] sm:$0xff]
  %v5103 = vld [vmem:[#allocation3 + $0xe8] sm:$0xff]
  %v5104 = vld [vmem:[#allocation3 + $0xf0] sm:$0xff]
  %v5105 = vld [vmem:[#allocation3 + $0xf8] sm:$0xff]
  %v5106 = vld [vmem:[#allocation3 + $0x100] sm:$0xff]
  %v5107 = vld [vmem:[#allocation3 + $0x108] sm:$0xff]
  %v5108 = vld [vmem:[#allocation3 + $0x110] sm:$0xff]
  %v5109 = vld [vmem:[#allocation3 + $0x118] sm:$0xff]
  %v5110 = vld [vmem:[#allocation3 + $0x120] sm:$0xff]
  %v5111 = vld [vmem:[#allocation3 + $0x128] sm:$0xff]
  %v5112 = vld [vmem:[#allocation3 + $0x130] sm:$0xff]
  %v5113 = vld [vmem:[#allocation3 + $0x138] sm:$0xff]
  %v5114 = vld [vmem:[#allocation3 + $0x140] sm:$0xff]
  %v5115 = vld [vmem:[#allocation3 + $0x148] sm:$0xff]
  %v5116 = vld [vmem:[#allocation3 + $0x150] sm:$0xff]
  %v5117 = vld [vmem:[#allocation3 + $0x158] sm:$0xff]
  %v5118 = vld [vmem:[#allocation3 + $0x160] sm:$0xff]
  %v5119 = vld [vmem:[#allocation3 + $0x168] sm:$0xff]
  %v5120 = vld [vmem:[#allocation3 + $0x170] sm:$0xff]
  %v5121 = vld [vmem:[#allocation3 + $0x178] sm:$0xff]
  %v5122 = vld [vmem:[#allocation3 + $0x180] sm:$0xff]
  %v5123 = vld [vmem:[#allocation3 + $0x188] sm:$0xff]
  %v5124 = vld [vmem:[#allocation3 + $0x190] sm:$0xff]
  %v5125 = vld [vmem:[#allocation3 + $0x198] sm:$0xff]
  %v5126 = vld [vmem:[#allocation3 + $0x1a0] sm:$0xff]
  %v5127 = vld [vmem:[#allocation3 + $0x1a8] sm:$0xff]
  %v5128 = vld [vmem:[#allocation3 + $0x1b0] sm:$0xff]
  %v5129 = vld [vmem:[#allocation3 + $0x1b8] sm:$0xff]
  %v5130 = vld [vmem:[#allocation3 + $0x1c0] sm:$0xff]
  %v5131 = vld [vmem:[#allocation3 + $0x1c8] sm:$0xff]
  %v5132 = vld [vmem:[#allocation3 + $0x1d0] sm:$0xff]
  %v5133 = vld [vmem:[#allocation3 + $0x1d8] sm:$0xff]
  %v5134 = vld [vmem:[#allocation3 + $0x1e0] sm:$0xff]
  %v5135 = vld [vmem:[#allocation3 + $0x1e8] sm:$0xff]
  %v5136 = vld [vmem:[#allocation3 + $0x1f0] sm:$0xff]
  %v5137 = vld [vmem:[#allocation3 + $0x1f8] sm:$0xff]
  %v5138 = vld [vmem:[#allocation3 + $0x200] sm:$0xff]
  %v5139 = vld [vmem:[#allocation3 + $0x208] sm:$0xff]
  %v5140 = vld [vmem:[#allocation3 + $0x210] sm:$0xff]
  %v5141 = vld [vmem:[#allocation3 + $0x218] sm:$0xff]
  %v5142 = vld [vmem:[#allocation3 + $0x220] sm:$0xff]
  %v5143 = vld [vmem:[#allocation3 + $0x228] sm:$0xff]
  %v5144 = vld [vmem:[#allocation3 + $0x230] sm:$0xff]
  %v5145 = vld [vmem:[#allocation3 + $0x238] sm:$0xff]
  %v5146 = vld [vmem:[#allocation3 + $0x240] sm:$0xff]
  %v5147 = vld [vmem:[#allocation3 + $0x248] sm:$0xff]
  %v5148 = vld [vmem:[#allocation3 + $0x250] sm:$0xff]
  %v5149 = vld [vmem:[#allocation3 + $0x258] sm:$0xff]
  %v5150 = vld [vmem:[#allocation3 + $0x260] sm:$0xff]
  %v5151 = vld [vmem:[#allocation3 + $0x268] sm:$0xff]
  %v5152 = vld [vmem:[#allocation3 + $0x270] sm:$0xff]
  %v5153 = vld [vmem:[#allocation3 + $0x278] sm:$0xff]
  %v5154 = vld [vmem:[#allocation3 + $0x280] sm:$0xff]
  %v5155 = vld [vmem:[#allocation3 + $0x288] sm:$0xff]
  %v5156 = vld [vmem:[#allocation3 + $0x290] sm:$0xff]
  %v5157 = vld [vmem:[#allocation3 + $0x298] sm:$0xff]
  %v5158 = vld [vmem:[#allocation3 + $0x2a0] sm:$0xff]
  %v5159 = vld [vmem:[#allocation3 + $0x2a8] sm:$0xff]
  %v5160 = vld [vmem:[#allocation3 + $0x2b0] sm:$0xff]
  %v5161 = vld [vmem:[#allocation3 + $0x2b8] sm:$0xff]
  %v5162 = vld [vmem:[#allocation3 + $0x2c0] sm:$0xff]
  %v5163 = vld [vmem:[#allocation3 + $0x2c8] sm:$0xff]
  %v5164 = vld [vmem:[#allocation3 + $0x2d0] sm:$0xff]
  %v5165 = vld [vmem:[#allocation3 + $0x2d8] sm:$0xff]
  %v5166 = vld [vmem:[#allocation3 + $0x2e0] sm:$0xff]
  %v5167 = vld [vmem:[#allocation3 + $0x2e8] sm:$0xff]
  %v5168 = vld [vmem:[#allocation3 + $0x2f0] sm:$0xff]
  %v5169 = vld [vmem:[#allocation3 + $0x2f8] sm:$0xff]
  %v5170 = vld [vmem:[#allocation3 + $0x300] sm:$0xff]
  %v5171 = vld [vmem:[#allocation3 + $0x308] sm:$0xff]
  %v5172 = vld [vmem:[#allocation3 + $0x310] sm:$0xff]
  %v5173 = vld [vmem:[#allocation3 + $0x318] sm:$0xff]
  %v5174 = vld [vmem:[#allocation3 + $0x320] sm:$0xff]
  %v5175 = vld [vmem:[#allocation3 + $0x328] sm:$0xff]
  %v5176 = vld [vmem:[#allocation3 + $0x330] sm:$0xff]
  %v5177 = vld [vmem:[#allocation3 + $0x338] sm:$0xff]
  %v5178 = vld [vmem:[#allocation3 + $0x340] sm:$0xff]
  %v5179 = vld [vmem:[#allocation3 + $0x348] sm:$0xff]
  %v5180 = vld [vmem:[#allocation3 + $0x350] sm:$0xff]
  %v5181 = vld [vmem:[#allocation3 + $0x358] sm:$0xff]
  %v5182 = vld [vmem:[#allocation3 + $0x360] sm:$0xff]
  %v5183 = vld [vmem:[#allocation3 + $0x368] sm:$0xff]
  %v5184 = vld [vmem:[#allocation3 + $0x370] sm:$0xff]
  %v5185 = vld [vmem:[#allocation3 + $0x378] sm:$0xff]
  %v5186 = vld [vmem:[#allocation3 + $0x380] sm:$0xff]
  %v5187 = vld [vmem:[#allocation3 + $0x388] sm:$0xff]
  %v5188 = vld [vmem:[#allocation3 + $0x390] sm:$0xff]
  %v5189 = vld [vmem:[#allocation3 + $0x398] sm:$0xff]
  %v5190 = vld [vmem:[#allocation3 + $0x3a0] sm:$0xff]
  %v5191 = vld [vmem:[#allocation3 + $0x3a8] sm:$0xff]
  %v5192 = vld [vmem:[#allocation3 + $0x3b0] sm:$0xff]
  %v5193 = vld [vmem:[#allocation3 + $0x3b8] sm:$0xff]
  %v5194 = vld [vmem:[#allocation4] sm:$0x7]
  %v5196 = vlaneseq
  %v5197 = vshrl.u32 %v5196, 7
  %v5198 = vsub.s32 0, %v5197
  %v5199 = vrot.slane %v5194, %v5198
  %v5200 = vlaneseq
  %v5201 = vshrl.u32 %v5200, 7
  %v5202 = vsub.s32 1, %v5201
  %v5203 = vrot.slane %v5194, %v5202
  %v5204 = vlaneseq
  %v5205 = vshrl.u32 %v5204, 7
  %v5206 = vsub.s32 2, %v5205
  %v5207 = vrot.slane %v5194, %v5206
  %5211 = vmatprep.subr.bf16.mxu0 %v5075
  %5212 = vmatpush1.bf16.msra.mxu0 %v5074
  %5213 = vmatprep.subr.bf16.mxu0 %v5078
  %5214 = vmatpush1.bf16.msra.mxu0 %v5077
  %5215 = vmatprep.subr.bf16.mxu0 %v5081
  %5216 = vmatpush1.bf16.msra.mxu0 %v5080
  %5217 = vmatprep.subr.bf16.mxu0 %v5084
  %5218 = vmatpush1.bf16.msra.mxu0 %v5083
  %5219 = vmatprep.subr.bf16.mxu0 %v5087
  %5220 = vmatpush1.bf16.msra.mxu0 %v5086
  %5221 = vmatprep.subr.bf16.mxu0 %v5090
  %5222 = vmatpush1.bf16.msra.mxu0 %v5089
  %5223 = vmatprep.subr.bf16.mxu0 %v5093
  %5224 = vmatpush1.bf16.msra.mxu0 %v5092
  %5225 = vmatprep.subr.bf16.mxu0 %v5096
  %5226 = vmatpush1.bf16.msra.mxu0 %v5095
  %5227 = vmatprep.subr.bf16.mxu0 %v5099
  %5228 = vmatpush1.bf16.msra.mxu0 %v5098
  %5229 = vmatprep.subr.bf16.mxu0 %v5102
  %5230 = vmatpush1.bf16.msra.mxu0 %v5101
  %5231 = vmatprep.subr.bf16.mxu0 %v5105
  %5232 = vmatpush1.bf16.msra.mxu0 %v5104
  %5233 = vmatprep.subr.bf16.mxu0 %v5108
  %5234 = vmatpush1.bf16.msra.mxu0 %v5107
  %5235 = vmatprep.subr.bf16.mxu0 %v5111
  %5236 = vmatpush1.bf16.msra.mxu0 %v5110
  %5237 = vmatprep.subr.bf16.mxu0 %v5114
  %5238 = vmatpush1.bf16.msra.mxu0 %v5113
  %5239 = vmatprep.subr.bf16.mxu0 %v5117
  %5240 = vmatpush1.bf16.msra.mxu0 %v5116
  %5241 = vmatprep.subr.bf16.mxu0 %v5120
  %5242 = vmatpush1.bf16.msra.mxu0 %v5119
  %5243 = vmatprep.mubr.bf16.mxu0 %v4984
  %5244 = vmatmul.mubr.bf16.gmra.mrb[0].mxu0 %v4983
  %v5245 = vpop.f32.mrb[0].mxu0
  %v5246 = vadd.f32 %v5199, %v5245
  %v5247 = vpop.f32.mrb[0].mxu0
  %v5248 = vadd.f32 %v5203, %v5247
  %v5249 = vpop.f32.mrb[0].mxu0
  %v5250 = vadd.f32 %v5199, %v5249
  %v5251 = vpop.f32.mrb[0].mxu0
  %v5252 = vadd.f32 %v5203, %v5251
  %5253 = vmatprep.mubr.bf16.mxu0 %v4989
  %5254 = vmatmul.mubr.bf16.gmra.mrb[0].mxu0 %v4988
  %v5255 = vpop.f32.mrb[0].mxu0
  %v5256 = vadd.f32 %v5199, %v5255
  %v5257 = vpop.f32.mrb[0].mxu0
  %v5258 = vadd.f32 %v5203, %v5257
  %v5259 = vpop.f32.mrb[0].mxu0
  %v5260 = vadd.f32 %v5199, %v5259
  %v5261 = vpop.f32.mrb[0].mxu0
  %v5262 = vadd.f32 %v5203, %v5261
  %5263 = vmatprep.mubr.bf16.mxu0 %v4994
  %5264 = vmatmul.mubr.bf16.gmra.mrb[0].mxu0 %v4993
  %v5265 = vpop.f32.mrb[0].mxu0
  %v5266 = vadd.f32 %v5199, %v5265
  %v5267 = vpop.f32.mrb[0].mxu0
  %v5268 = vadd.f32 %v5203, %v5267
  %v5269 = vpop.f32.mrb[0].mxu0
  %v5270 = vadd.f32 %v5199, %v5269
  %v5271 = vpop.f32.mrb[0].mxu0
  %v5272 = vadd.f32 %v5203, %v5271
  %5273 = vmatprep.mubr.bf16.mxu0 %v4999
  %5274 = vmatmul.mubr.bf16.gmra.mrb[0].mxu0 %v4998
  %v5275 = vpop.f32.mrb[0].mxu0
  %v5276 = vadd.f32 %v5199, %v5275
  %v5277 = vpop.f32.mrb[0].mxu0
  %v5278 = vadd.f32 %v5203, %v5277
  %v5279 = vpop.f32.mrb[0].mxu0
  %v5280 = vadd.f32 %v5199, %v5279
  %v5281 = vpop.f32.mrb[0].mxu0
  %v5282 = vadd.f32 %v5203, %v5281
  %5283 = vmatprep.mubr.bf16.mxu0 %v5004
  %5284 = vmatmul.mubr.bf16.gmra.mrb[0].mxu0 %v5003
  %v5285 = vpop.f32.mrb[0].mxu0
  %v5286 = vadd.f32 %v5199, %v5285
  %v5287 = vpop.f32.mrb[0].mxu0
  %v5288 = vadd.f32 %v5203, %v5287
  %v5289 = vpop.f32.mrb[0].mxu0
  %v5290 = vadd.f32 %v5199, %v5289
  %v5291 = vpop.f32.mrb[0].mxu0
  %v5292 = vadd.f32 %v5203, %v5291
  %5293 = vmatprep.mubr.bf16.mxu0 %v5009
  %5294 = vmatmul.mubr.bf16.gmra.mrb[0].mxu0 %v5008
  %v5295 = vpop.f32.mrb[0].mxu0
  %v5296 = vadd.f32 %v5199, %v5295
  %v5297 = vpop.f32.mrb[0].mxu0
  %v5298 = vadd.f32 %v5203, %v5297
  %v5299 = vpop.f32.mrb[0].mxu0
  %v5300 = vadd.f32 %v5199, %v5299
  %v5301 = vpop.f32.mrb[0].mxu0
  %v5302 = vadd.f32 %v5203, %v5301
  %5303 = vmatprep.mubr.bf16.mxu0 %v5014
  %5304 = vmatmul.mubr.bf16.gmra.mrb[0].mxu0 %v5013
  %v5305 = vpop.f32.mrb[0].mxu0
  %v5306 = vadd.f32 %v5199, %v5305
  %v5307 = vpop.f32.mrb[0].mxu0
  %v5308 = vadd.f32 %v5203, %v5307
  %v5309 = vpop.f32.mrb[0].mxu0
  %v5310 = vadd.f32 %v5199, %v5309
  %v5311 = vpop.f32.mrb[0].mxu0
  %v5312 = vadd.f32 %v5203, %v5311
  %5313 = vmatprep.mubr.bf16.mxu0 %v5019
  %5314 = vmatmul.mubr.bf16.gmra.mrb[0].mxu0 %v5018
  %v5315 = vpop.f32.mrb[0].mxu0
  %v5316 = vadd.f32 %v5199, %v5315
  %v5317 = vpop.f32.mrb[0].mxu0
  %v5318 = vadd.f32 %v5203, %v5317
  %v5319 = vpop.f32.mrb[0].mxu0
  %v5320 = vadd.f32 %v5199, %v5319
  %v5321 = vpop.f32.mrb[0].mxu0
  %v5322 = vadd.f32 %v5203, %v5321
  %5323 = vmatprep.mubr.bf16.mxu0 %v5024
  %5324 = vmatmul.mubr.bf16.gmra.mrb[0].mxu0 %v5023
  %v5325 = vpop.f32.mrb[0].mxu0
  %v5326 = vadd.f32 %v5199, %v5325
  %v5327 = vpop.f32.mrb[0].mxu0
  %v5328 = vadd.f32 %v5203, %v5327
  %v5329 = vpop.f32.mrb[0].mxu0
  %v5330 = vadd.f32 %v5199, %v5329
  %v5331 = vpop.f32.mrb[0].mxu0
  %v5332 = vadd.f32 %v5203, %v5331
  %5333 = vmatprep.mubr.bf16.mxu0 %v5029
  %5334 = vmatmul.mubr.bf16.gmra.mrb[0].mxu0 %v5028
  %v5335 = vpop.f32.mrb[0].mxu0
  %v5336 = vadd.f32 %v5199, %v5335
  %v5337 = vpop.f32.mrb[0].mxu0
  %v5338 = vadd.f32 %v5203, %v5337
  %v5339 = vpop.f32.mrb[0].mxu0
  %v5340 = vadd.f32 %v5199, %v5339
  %v5341 = vpop.f32.mrb[0].mxu0
  %v5342 = vadd.f32 %v5203, %v5341
  %5343 = vmatprep.mubr.bf16.mxu0 %v5034
  %5344 = vmatmul.mubr.bf16.gmra.mrb[0].mxu0 %v5033
  %v5345 = vpop.f32.mrb[0].mxu0
  %v5346 = vadd.f32 %v5199, %v5345
  %v5347 = vpop.f32.mrb[0].mxu0
  %v5348 = vadd.f32 %v5203, %v5347
  %v5349 = vpop.f32.mrb[0].mxu0
  %v5350 = vadd.f32 %v5199, %v5349
  %v5351 = vpop.f32.mrb[0].mxu0
  %v5352 = vadd.f32 %v5203, %v5351
  %5353 = vmatprep.mubr.bf16.mxu0 %v5039
  %5354 = vmatmul.mubr.bf16.gmra.mrb[0].mxu0 %v5038
  %v5355 = vpop.f32.mrb[0].mxu0
  %v5356 = vadd.f32 %v5199, %v5355
  %v5357 = vpop.f32.mrb[0].mxu0
  %v5358 = vadd.f32 %v5203, %v5357
  %v5359 = vpop.f32.mrb[0].mxu0
  %v5360 = vadd.f32 %v5199, %v5359
  %v5361 = vpop.f32.mrb[0].mxu0
  %v5362 = vadd.f32 %v5203, %v5361
  %5363 = vmatprep.mubr.bf16.mxu0 %v5044
  %5364 = vmatmul.mubr.bf16.gmra.mrb[0].mxu0 %v5043
  %v5365 = vpop.f32.mrb[0].mxu0
  %v5366 = vadd.f32 %v5199, %v5365
  %v5367 = vpop.f32.mrb[0].mxu0
  %v5368 = vadd.f32 %v5203, %v5367
  %v5369 = vpop.f32.mrb[0].mxu0
  %v5370 = vadd.f32 %v5199, %v5369
  %v5371 = vpop.f32.mrb[0].mxu0
  %v5372 = vadd.f32 %v5203, %v5371
  %5373 = vmatprep.mubr.bf16.mxu0 %v5049
  %5374 = vmatmul.mubr.bf16.gmra.mrb[0].mxu0 %v5048
  %v5375 = vpop.f32.mrb[0].mxu0
  %v5376 = vadd.f32 %v5199, %v5375
  %v5377 = vpop.f32.mrb[0].mxu0
  %v5378 = vadd.f32 %v5203, %v5377
  %v5379 = vpop.f32.mrb[0].mxu0
  %v5380 = vadd.f32 %v5199, %v5379
  %v5381 = vpop.f32.mrb[0].mxu0
  %v5382 = vadd.f32 %v5203, %v5381
  %5383 = vmatprep.mubr.bf16.mxu0 %v5054
  %5384 = vmatmul.mubr.bf16.gmra.mrb[0].mxu0 %v5053
  %v5385 = vpop.f32.mrb[0].mxu0
  %v5386 = vadd.f32 %v5199, %v5385
  %v5387 = vpop.f32.mrb[0].mxu0
  %v5388 = vadd.f32 %v5203, %v5387
  %v5389 = vpop.f32.mrb[0].mxu0
  %v5390 = vadd.f32 %v5199, %v5389
  %v5391 = vpop.f32.mrb[0].mxu0
  %v5392 = vadd.f32 %v5203, %v5391
  %5393 = vmatprep.mubr.bf16.mxu0 %v5059
  %5394 = vmatmul.mubr.bf16.gmra.mrb[0].mxu0 %v5058
  %v5395 = vpop.f32.mrb[0].mxu0
  %v5396 = vadd.f32 %v5199, %v5395
  %v5397 = vpop.f32.mrb[0].mxu0
  %v5398 = vadd.f32 %v5203, %v5397
  %v5399 = vpop.f32.mrb[0].mxu0
  %v5400 = vadd.f32 %v5199, %v5399
  %v5401 = vpop.f32.mrb[0].mxu0
  %v5402 = vadd.f32 %v5203, %v5401
  %5403 = vdwg.mxu0
  %5404 = vmatprep.subr.bf16.mxu0 %v5123
  %5405 = vmatpush1.bf16.msra.mxu0 %v5122
  %5406 = vmatprep.subr.bf16.mxu0 %v5126
  %5407 = vmatpush1.bf16.msra.mxu0 %v5125
  %5408 = vmatprep.subr.bf16.mxu0 %v5129
  %5409 = vmatpush1.bf16.msra.mxu0 %v5128
  %5410 = vmatprep.subr.bf16.mxu0 %v5132
  %5411 = vmatpush1.bf16.msra.mxu0 %v5131
  %5412 = vmatprep.subr.bf16.mxu0 %v5135
  %5413 = vmatpush1.bf16.msra.mxu0 %v5134
  %5414 = vmatprep.subr.bf16.mxu0 %v5138
  %5415 = vmatpush1.bf16.msra.mxu0 %v5137
  %5416 = vmatprep.subr.bf16.mxu0 %v5141
  %5417 = vmatpush1.bf16.msra.mxu0 %v5140
  %5418 = vmatprep.subr.bf16.mxu0 %v5144
  %5419 = vmatpush1.bf16.msra.mxu0 %v5143
  %5420 = vmatprep.subr.bf16.mxu0 %v5147
  %5421 = vmatpush1.bf16.msra.mxu0 %v5146
  %5422 = vmatprep.subr.bf16.mxu0 %v5150
  %5423 = vmatpush1.bf16.msra.mxu0 %v5149
  %5424 = vmatprep.subr.bf16.mxu0 %v5153
  %5425 = vmatpush1.bf16.msra.mxu0 %v5152
  %5426 = vmatprep.subr.bf16.mxu0 %v5156
  %5427 = vmatpush1.bf16.msra.mxu0 %v5155
  %5428 = vmatprep.subr.bf16.mxu0 %v5159
  %5429 = vmatpush1.bf16.msra.mxu0 %v5158
  %5430 = vmatprep.subr.bf16.mxu0 %v5162
  %5431 = vmatpush1.bf16.msra.mxu0 %v5161
  %5432 = vmatprep.subr.bf16.mxu0 %v5165
  %5433 = vmatpush1.bf16.msra.mxu0 %v5164
  %5434 = vmatprep.subr.bf16.mxu0 %v5168
  %5435 = vmatpush1.bf16.msra.mxu0 %v5167
  %5436 = vmatprep.mubr.bf16.mxu0 %v4986
  %5437 = vmatmul.mubr.bf16.gmra.mrb[0].mxu0 %v4985
  %v5438 = vpop.f32.mrb[0].mxu0
  %v5439 = vadd.f32 %v5246, %v5438
  %v5440 = vpop.f32.mrb[0].mxu0
  %v5441 = vadd.f32 %v5248, %v5440
  %v5442 = vpop.f32.mrb[0].mxu0
  %v5443 = vadd.f32 %v5250, %v5442
  %v5444 = vpop.f32.mrb[0].mxu0
  %v5445 = vadd.f32 %v5252, %v5444
  %5446 = vmatprep.mubr.bf16.mxu0 %v4991
  %5447 = vmatmul.mubr.bf16.gmra.mrb[0].mxu0 %v4990
  %v5448 = vpop.f32.mrb[0].mxu0
  %v5449 = vadd.f32 %v5256, %v5448
  %v5450 = vpop.f32.mrb[0].mxu0
  %v5451 = vadd.f32 %v5258, %v5450
  %v5452 = vpop.f32.mrb[0].mxu0
  %v5453 = vadd.f32 %v5260, %v5452
  %v5454 = vpop.f32.mrb[0].mxu0
  %v5455 = vadd.f32 %v5262, %v5454
  %5456 = vmatprep.mubr.bf16.mxu0 %v4996
  %5457 = vmatmul.mubr.bf16.gmra.mrb[0].mxu0 %v4995
  %v5458 = vpop.f32.mrb[0].mxu0
  %v5459 = vadd.f32 %v5266, %v5458
  %v5460 = vpop.f32.mrb[0].mxu0
  %v5461 = vadd.f32 %v5268, %v5460
  %v5462 = vpop.f32.mrb[0].mxu0
  %v5463 = vadd.f32 %v5270, %v5462
  %v5464 = vpop.f32.mrb[0].mxu0
  %v5465 = vadd.f32 %v5272, %v5464
  %5466 = vmatprep.mubr.bf16.mxu0 %v5001
  %5467 = vmatmul.mubr.bf16.gmra.mrb[0].mxu0 %v5000
  %v5468 = vpop.f32.mrb[0].mxu0
  %v5469 = vadd.f32 %v5276, %v5468
  %v5470 = vpop.f32.mrb[0].mxu0
  %v5471 = vadd.f32 %v5278, %v5470
  %v5472 = vpop.f32.mrb[0].mxu0
  %v5473 = vadd.f32 %v5280, %v5472
  %v5474 = vpop.f32.mrb[0].mxu0
  %v5475 = vadd.f32 %v5282, %v5474
  %5476 = vmatprep.mubr.bf16.mxu0 %v5006
  %5477 = vmatmul.mubr.bf16.gmra.mrb[0].mxu0 %v5005
  %v5478 = vpop.f32.mrb[0].mxu0
  %v5479 = vadd.f32 %v5286, %v5478
  %v5480 = vpop.f32.mrb[0].mxu0
  %v5481 = vadd.f32 %v5288, %v5480
  %v5482 = vpop.f32.mrb[0].mxu0
  %v5483 = vadd.f32 %v5290, %v5482
  %v5484 = vpop.f32.mrb[0].mxu0
  %v5485 = vadd.f32 %v5292, %v5484
  %5486 = vmatprep.mubr.bf16.mxu0 %v5011
  %5487 = vmatmul.mubr.bf16.gmra.mrb[0].mxu0 %v5010
  %v5488 = vpop.f32.mrb[0].mxu0
  %v5489 = vadd.f32 %v5296, %v5488
  %v5490 = vpop.f32.mrb[0].mxu0
  %v5491 = vadd.f32 %v5298, %v5490
  %v5492 = vpop.f32.mrb[0].mxu0
  %v5493 = vadd.f32 %v5300, %v5492
  %v5494 = vpop.f32.mrb[0].mxu0
  %v5495 = vadd.f32 %v5302, %v5494
  %5496 = vmatprep.mubr.bf16.mxu0 %v5016
  %5497 = vmatmul.mubr.bf16.gmra.mrb[0].mxu0 %v5015
  %v5498 = vpop.f32.mrb[0].mxu0
  %v5499 = vadd.f32 %v5306, %v5498
  %v5500 = vpop.f32.mrb[0].mxu0
  %v5501 = vadd.f32 %v5308, %v5500
  %v5502 = vpop.f32.mrb[0].mxu0
  %v5503 = vadd.f32 %v5310, %v5502
  %v5504 = vpop.f32.mrb[0].mxu0
  %v5505 = vadd.f32 %v5312, %v5504
  %5506 = vmatprep.mubr.bf16.mxu0 %v5021
  %5507 = vmatmul.mubr.bf16.gmra.mrb[0].mxu0 %v5020
  %v5508 = vpop.f32.mrb[0].mxu0
  %v5509 = vadd.f32 %v5316, %v5508
  %v5510 = vpop.f32.mrb[0].mxu0
  %v5511 = vadd.f32 %v5318, %v5510
  %v5512 = vpop.f32.mrb[0].mxu0
  %v5513 = vadd.f32 %v5320, %v5512
  %v5514 = vpop.f32.mrb[0].mxu0
  %v5515 = vadd.f32 %v5322, %v5514
  %5516 = vmatprep.mubr.bf16.mxu0 %v5026
  %5517 = vmatmul.mubr.bf16.gmra.mrb[0].mxu0 %v5025
  %v5518 = vpop.f32.mrb[0].mxu0
  %v5519 = vadd.f32 %v5326, %v5518
  %v5520 = vpop.f32.mrb[0].mxu0
  %v5521 = vadd.f32 %v5328, %v5520
  %v5522 = vpop.f32.mrb[0].mxu0
  %v5523 = vadd.f32 %v5330, %v5522
  %v5524 = vpop.f32.mrb[0].mxu0
  %v5525 = vadd.f32 %v5332, %v5524
  %5526 = vmatprep.mubr.bf16.mxu0 %v5031
  %5527 = vmatmul.mubr.bf16.gmra.mrb[0].mxu0 %v5030
  %v5528 = vpop.f32.mrb[0].mxu0
  %v5529 = vadd.f32 %v5336, %v5528
  %v5530 = vpop.f32.mrb[0].mxu0
  %v5531 = vadd.f32 %v5338, %v5530
  %v5532 = vpop.f32.mrb[0].mxu0
  %v5533 = vadd.f32 %v5340, %v5532
  %v5534 = vpop.f32.mrb[0].mxu0
  %v5535 = vadd.f32 %v5342, %v5534
  %5536 = vmatprep.mubr.bf16.mxu0 %v5036
  %5537 = vmatmul.mubr.bf16.gmra.mrb[0].mxu0 %v5035
  %v5538 = vpop.f32.mrb[0].mxu0
  %v5539 = vadd.f32 %v5346, %v5538
  %v5540 = vpop.f32.mrb[0].mxu0
  %v5541 = vadd.f32 %v5348, %v5540
  %v5542 = vpop.f32.mrb[0].mxu0
  %v5543 = vadd.f32 %v5350, %v5542
  %v5544 = vpop.f32.mrb[0].mxu0
  %v5545 = vadd.f32 %v5352, %v5544
  %5546 = vmatprep.mubr.bf16.mxu0 %v5041
  %5547 = vmatmul.mubr.bf16.gmra.mrb[0].mxu0 %v5040
  %v5548 = vpop.f32.mrb[0].mxu0
  %v5549 = vadd.f32 %v5356, %v5548
  %v5550 = vpop.f32.mrb[0].mxu0
  %v5551 = vadd.f32 %v5358, %v5550
  %v5552 = vpop.f32.mrb[0].mxu0
  %v5553 = vadd.f32 %v5360, %v5552
  %v5554 = vpop.f32.mrb[0].mxu0
  %v5555 = vadd.f32 %v5362, %v5554
  %5556 = vmatprep.mubr.bf16.mxu0 %v5046
  %5557 = vmatmul.mubr.bf16.gmra.mrb[0].mxu0 %v5045
  %v5558 = vpop.f32.mrb[0].mxu0
  %v5559 = vadd.f32 %v5366, %v5558
  %v5560 = vpop.f32.mrb[0].mxu0
  %v5561 = vadd.f32 %v5368, %v5560
  %v5562 = vpop.f32.mrb[0].mxu0
  %v5563 = vadd.f32 %v5370, %v5562
  %v5564 = vpop.f32.mrb[0].mxu0
  %v5565 = vadd.f32 %v5372, %v5564
  %5566 = vmatprep.mubr.bf16.mxu0 %v5051
  %5567 = vmatmul.mubr.bf16.gmra.mrb[0].mxu0 %v5050
  %v5568 = vpop.f32.mrb[0].mxu0
  %v5569 = vadd.f32 %v5376, %v5568
  %v5570 = vpop.f32.mrb[0].mxu0
  %v5571 = vadd.f32 %v5378, %v5570
  %v5572 = vpop.f32.mrb[0].mxu0
  %v5573 = vadd.f32 %v5380, %v5572
  %v5574 = vpop.f32.mrb[0].mxu0
  %v5575 = vadd.f32 %v5382, %v5574
  %5576 = vmatprep.mubr.bf16.mxu0 %v5056
  %5577 = vmatmul.mubr.bf16.gmra.mrb[0].mxu0 %v5055
  %v5578 = vpop.f32.mrb[0].mxu0
  %v5579 = vadd.f32 %v5386, %v5578
  %v5580 = vpop.f32.mrb[0].mxu0
  %v5581 = vadd.f32 %v5388, %v5580
  %v5582 = vpop.f32.mrb[0].mxu0
  %v5583 = vadd.f32 %v5390, %v5582
  %v5584 = vpop.f32.mrb[0].mxu0
  %v5585 = vadd.f32 %v5392, %v5584
  %5586 = vmatprep.mubr.bf16.mxu0 %v5061
  %5587 = vmatmul.mubr.bf16.gmra.mrb[0].mxu0 %v5060
  %v5588 = vpop.f32.mrb[0].mxu0
  %v5589 = vadd.f32 %v5396, %v5588
  %v5590 = vpop.f32.mrb[0].mxu0
  %v5591 = vadd.f32 %v5398, %v5590
  %v5592 = vpop.f32.mrb[0].mxu0
  %v5593 = vadd.f32 %v5400, %v5592
  %v5594 = vpop.f32.mrb[0].mxu0
  %v5595 = vadd.f32 %v5402, %v5594
  %5596 = vdwg.mxu0
  %5597 = vmatprep.subr.bf16.mxu0 %v5171
  %5598 = vmatpush1.bf16.msra.mxu0 %v5170
  %5599 = vmatprep.subr.bf16.mxu0 %v5174
  %5600 = vmatpush1.bf16.msra.mxu0 %v5173
  %5601 = vmatprep.subr.bf16.mxu0 %v5177
  %5602 = vmatpush1.bf16.msra.mxu0 %v5176
  %5603 = vmatprep.subr.bf16.mxu0 %v5180
  %5604 = vmatpush1.bf16.msra.mxu0 %v5179
  %5605 = vmatprep.subr.bf16.mxu0 %v5183
  %5606 = vmatpush1.bf16.msra.mxu0 %v5182
  %5607 = vmatprep.subr.bf16.mxu0 %v5186
  %5608 = vmatpush1.bf16.msra.mxu0 %v5185
  %5609 = vmatprep.subr.bf16.mxu0 %v5189
  %5610 = vmatpush1.bf16.msra.mxu0 %v5188
  %5611 = vmatprep.subr.bf16.mxu0 %v5192
  %5612 = vmatpush1.bf16.msra.mxu0 %v5191
  %5613 = vmatprep.subr.bf16.mxu0 0
  %5614 = vmatpush1.bf16.msra.mxu0 0
  %5615 = vmatprep.subr.bf16.mxu0 0
  %5616 = vmatpush1.bf16.msra.mxu0 0
  %5617 = vmatprep.subr.bf16.mxu0 0
  %5618 = vmatpush1.bf16.msra.mxu0 0
  %5619 = vmatprep.subr.bf16.mxu0 0
  %5620 = vmatpush1.bf16.msra.mxu0 0
  %5621 = vmatprep.subr.bf16.mxu0 0
  %5622 = vmatpush1.bf16.msra.mxu0 0
  %5623 = vmatprep.subr.bf16.mxu0 0
  %5624 = vmatpush1.bf16.msra.mxu0 0
  %5625 = vmatprep.subr.bf16.mxu0 0
  %5626 = vmatpush1.bf16.msra.mxu0 0
  %5627 = vmatprep.subr.bf16.mxu0 0
  %5628 = vmatpush1.bf16.msra.mxu0 0
  %5629 = vmatprep.mubr.bf16.mxu0 0
  %5630 = vmatmul.mubr.bf16.gmra.mrb[0].mxu0 %v4987
  %v5631 = vpop.f32.mrb[0].mxu0
  %v5632 = vadd.f32 %v5439, %v5631
  %v5633 = vpop.f32.mrb[0].mxu0
  %v5634 = vadd.f32 %v5441, %v5633
  %v5635 = vpop.f32.mrb[0].mxu0
  %v5636 = vadd.f32 %v5443, %v5635
  %v5637 = vpop.f32.mrb[0].mxu0
  %v5638 = vadd.f32 %v5445, %v5637
  %5639 = vmatprep.mubr.bf16.mxu0 0
  %5640 = vmatmul.mubr.bf16.gmra.mrb[0].mxu0 %v4992
  %v5641 = vpop.f32.mrb[0].mxu0
  %v5642 = vadd.f32 %v5449, %v5641
  %v5643 = vpop.f32.mrb[0].mxu0
  %v5644 = vadd.f32 %v5451, %v5643
  %v5645 = vpop.f32.mrb[0].mxu0
  %v5646 = vadd.f32 %v5453, %v5645
  %v5647 = vpop.f32.mrb[0].mxu0
  %v5648 = vadd.f32 %v5455, %v5647
  %5649 = vmatprep.mubr.bf16.mxu0 0
  %5650 = vmatmul.mubr.bf16.gmra.mrb[0].mxu0 %v4997
  %v5651 = vpop.f32.mrb[0].mxu0
  %v5652 = vadd.f32 %v5459, %v5651
  %v5653 = vpop.f32.mrb[0].mxu0
  %v5654 = vadd.f32 %v5461, %v5653
  %v5655 = vpop.f32.mrb[0].mxu0
  %v5656 = vadd.f32 %v5463, %v5655
  %v5657 = vpop.f32.mrb[0].mxu0
  %v5658 = vadd.f32 %v5465, %v5657
  %5659 = vmatprep.mubr.bf16.mxu0 0
  %5660 = vmatmul.mubr.bf16.gmra.mrb[0].mxu0 %v5002
  %v5661 = vpop.f32.mrb[0].mxu0
  %v5662 = vadd.f32 %v5469, %v5661
  %v5663 = vpop.f32.mrb[0].mxu0
  %v5664 = vadd.f32 %v5471, %v5663
  %v5665 = vpop.f32.mrb[0].mxu0
  %v5666 = vadd.f32 %v5473, %v5665
  %v5667 = vpop.f32.mrb[0].mxu0
  %v5668 = vadd.f32 %v5475, %v5667
  %5669 = vmatprep.mubr.bf16.mxu0 0
  %5670 = vmatmul.mubr.bf16.gmra.mrb[0].mxu0 %v5007
  %v5671 = vpop.f32.mrb[0].mxu0
  %v5672 = vadd.f32 %v5479, %v5671
  %v5673 = vpop.f32.mrb[0].mxu0
  %v5674 = vadd.f32 %v5481, %v5673
  %v5675 = vpop.f32.mrb[0].mxu0
  %v5676 = vadd.f32 %v5483, %v5675
  %v5677 = vpop.f32.mrb[0].mxu0
  %v5678 = vadd.f32 %v5485, %v5677
  %5679 = vmatprep.mubr.bf16.mxu0 0
  %5680 = vmatmul.mubr.bf16.gmra.mrb[0].mxu0 %v5012
  %v5681 = vpop.f32.mrb[0].mxu0
  %v5682 = vadd.f32 %v5489, %v5681
  %v5683 = vpop.f32.mrb[0].mxu0
  %v5684 = vadd.f32 %v5491, %v5683
  %v5685 = vpop.f32.mrb[0].mxu0
  %v5686 = vadd.f32 %v5493, %v5685
  %v5687 = vpop.f32.mrb[0].mxu0
  %v5688 = vadd.f32 %v5495, %v5687
  %5689 = vmatprep.mubr.bf16.mxu0 0
  %5690 = vmatmul.mubr.bf16.gmra.mrb[0].mxu0 %v5017
  %v5691 = vpop.f32.mrb[0].mxu0
  %v5692 = vadd.f32 %v5499, %v5691
  %v5693 = vpop.f32.mrb[0].mxu0
  %v5694 = vadd.f32 %v5501, %v5693
  %v5695 = vpop.f32.mrb[0].mxu0
  %v5696 = vadd.f32 %v5503, %v5695
  %v5697 = vpop.f32.mrb[0].mxu0
  %v5698 = vadd.f32 %v5505, %v5697
  %5699 = vmatprep.mubr.bf16.mxu0 0
  %5700 = vmatmul.mubr.bf16.gmra.mrb[0].mxu0 %v5022
  %v5701 = vpop.f32.mrb[0].mxu0
  %v5702 = vadd.f32 %v5509, %v5701
  %v5703 = vpop.f32.mrb[0].mxu0
  %v5704 = vadd.f32 %v5511, %v5703
  %v5705 = vpop.f32.mrb[0].mxu0
  %v5706 = vadd.f32 %v5513, %v5705
  %v5707 = vpop.f32.mrb[0].mxu0
  %v5708 = vadd.f32 %v5515, %v5707
  %5709 = vmatprep.mubr.bf16.mxu0 0
  %5710 = vmatmul.mubr.bf16.gmra.mrb[0].mxu0 %v5027
  %v5711 = vpop.f32.mrb[0].mxu0
  %v5712 = vadd.f32 %v5519, %v5711
  %v5713 = vpop.f32.mrb[0].mxu0
  %v5714 = vadd.f32 %v5521, %v5713
  %v5715 = vpop.f32.mrb[0].mxu0
  %v5716 = vadd.f32 %v5523, %v5715
  %v5717 = vpop.f32.mrb[0].mxu0
  %v5718 = vadd.f32 %v5525, %v5717
  %5719 = vmatprep.mubr.bf16.mxu0 0
  %5720 = vmatmul.mubr.bf16.gmra.mrb[0].mxu0 %v5032
  %v5721 = vpop.f32.mrb[0].mxu0
  %v5722 = vadd.f32 %v5529, %v5721
  %v5723 = vpop.f32.mrb[0].mxu0
  %v5724 = vadd.f32 %v5531, %v5723
  %v5725 = vpop.f32.mrb[0].mxu0
  %v5726 = vadd.f32 %v5533, %v5725
  %v5727 = vpop.f32.mrb[0].mxu0
  %v5728 = vadd.f32 %v5535, %v5727
  %5729 = vmatprep.mubr.bf16.mxu0 0
  %5730 = vmatmul.mubr.bf16.gmra.mrb[0].mxu0 %v5037
  %v5731 = vpop.f32.mrb[0].mxu0
  %v5732 = vadd.f32 %v5539, %v5731
  %v5733 = vpop.f32.mrb[0].mxu0
  %v5734 = vadd.f32 %v5541, %v5733
  %v5735 = vpop.f32.mrb[0].mxu0
  %v5736 = vadd.f32 %v5543, %v5735
  %v5737 = vpop.f32.mrb[0].mxu0
  %v5738 = vadd.f32 %v5545, %v5737
  %5739 = vmatprep.mubr.bf16.mxu0 0
  %5740 = vmatmul.mubr.bf16.gmra.mrb[0].mxu0 %v5042
  %v5741 = vpop.f32.mrb[0].mxu0
  %v5742 = vadd.f32 %v5549, %v5741
  %v5743 = vpop.f32.mrb[0].mxu0
  %v5744 = vadd.f32 %v5551, %v5743
  %v5745 = vpop.f32.mrb[0].mxu0
  %v5746 = vadd.f32 %v5553, %v5745
  %v5747 = vpop.f32.mrb[0].mxu0
  %v5748 = vadd.f32 %v5555, %v5747
  %5749 = vmatprep.mubr.bf16.mxu0 0
  %5750 = vmatmul.mubr.bf16.gmra.mrb[0].mxu0 %v5047
  %v5751 = vpop.f32.mrb[0].mxu0
  %v5752 = vadd.f32 %v5559, %v5751
  %v5753 = vpop.f32.mrb[0].mxu0
  %v5754 = vadd.f32 %v5561, %v5753
  %v5755 = vpop.f32.mrb[0].mxu0
  %v5756 = vadd.f32 %v5563, %v5755
  %v5757 = vpop.f32.mrb[0].mxu0
  %v5758 = vadd.f32 %v5565, %v5757
  %5759 = vmatprep.mubr.bf16.mxu0 0
  %5760 = vmatmul.mubr.bf16.gmra.mrb[0].mxu0 %v5052
  %v5761 = vpop.f32.mrb[0].mxu0
  %v5762 = vadd.f32 %v5569, %v5761
  %v5763 = vpop.f32.mrb[0].mxu0
  %v5764 = vadd.f32 %v5571, %v5763
  %v5765 = vpop.f32.mrb[0].mxu0
  %v5766 = vadd.f32 %v5573, %v5765
  %v5767 = vpop.f32.mrb[0].mxu0
  %v5768 = vadd.f32 %v5575, %v5767
  %5769 = vmatprep.mubr.bf16.mxu0 0
  %5770 = vmatmul.mubr.bf16.gmra.mrb[0].mxu0 %v5057
  %v5771 = vpop.f32.mrb[0].mxu0
  %v5772 = vadd.f32 %v5579, %v5771
  %v5773 = vpop.f32.mrb[0].mxu0
  %v5774 = vadd.f32 %v5581, %v5773
  %v5775 = vpop.f32.mrb[0].mxu0
  %v5776 = vadd.f32 %v5583, %v5775
  %v5777 = vpop.f32.mrb[0].mxu0
  %v5778 = vadd.f32 %v5585, %v5777
  %5779 = vmatprep.mubr.bf16.mxu0 0
  %5780 = vmatmul.mubr.bf16.gmra.mrb[0].mxu0 %v5062
  %v5781 = vpop.f32.mrb[0].mxu0
  %v5782 = vadd.f32 %v5589, %v5781
  %v5783 = vpop.f32.mrb[0].mxu0
  %v5784 = vadd.f32 %v5591, %v5783
  %v5785 = vpop.f32.mrb[0].mxu0
  %v5786 = vadd.f32 %v5593, %v5785
  %v5787 = vpop.f32.mrb[0].mxu0
  %v5788 = vadd.f32 %v5595, %v5787
  %5789 = vdwg.mxu0
  %5790 = vmatprep.subr.bf16.mxu0 0
  %5791 = vmatpush1.bf16.msra.mxu0 %v5076
  %5792 = vmatprep.subr.bf16.mxu0 0
  %5793 = vmatpush1.bf16.msra.mxu0 %v5079
  %5794 = vmatprep.subr.bf16.mxu0 0
  %5795 = vmatpush1.bf16.msra.mxu0 %v5082
  %5796 = vmatprep.subr.bf16.mxu0 0
  %5797 = vmatpush1.bf16.msra.mxu0 %v5085
  %5798 = vmatprep.subr.bf16.mxu0 0
  %5799 = vmatpush1.bf16.msra.mxu0 %v5088
  %5800 = vmatprep.subr.bf16.mxu0 0
  %5801 = vmatpush1.bf16.msra.mxu0 %v5091
  %5802 = vmatprep.subr.bf16.mxu0 0
  %5803 = vmatpush1.bf16.msra.mxu0 %v5094
  %5804 = vmatprep.subr.bf16.mxu0 0
  %5805 = vmatpush1.bf16.msra.mxu0 %v5097
  %5806 = vmatprep.subr.bf16.mxu0 0
  %5807 = vmatpush1.bf16.msra.mxu0 %v5100
  %5808 = vmatprep.subr.bf16.mxu0 0
  %5809 = vmatpush1.bf16.msra.mxu0 %v5103
  %5810 = vmatprep.subr.bf16.mxu0 0
  %5811 = vmatpush1.bf16.msra.mxu0 %v5106
  %5812 = vmatprep.subr.bf16.mxu0 0
  %5813 = vmatpush1.bf16.msra.mxu0 %v5109
  %5814 = vmatprep.subr.bf16.mxu0 0
  %5815 = vmatpush1.bf16.msra.mxu0 %v5112
  %5816 = vmatprep.subr.bf16.mxu0 0
  %5817 = vmatpush1.bf16.msra.mxu0 %v5115
  %5818 = vmatprep.subr.bf16.mxu0 0
  %5819 = vmatpush1.bf16.msra.mxu0 %v5118
  %5820 = vmatprep.subr.bf16.mxu0 0
  %5821 = vmatpush1.bf16.msra.mxu0 %v5121
  %5822 = vmatprep.mubr.bf16.mxu0 %v4984
  %5823 = vmatmul.mubr.bf16.gmra.mrb[0].mxu0 %v4983
  %v5824 = vpop.f32.mrb[0].mxu0
  %v5825 = vadd.f32 %v5207, %v5824
  %v5826 = vpop.f32.mrb[0].mxu0
  %v5827 = vpop.f32.mrb[0].mxu0
  %v5828 = vadd.f32 %v5207, %v5827
  %v5829 = vpop.f32.mrb[0].mxu0
  %5830 = vmatprep.mubr.bf16.mxu0 %v4989
  %5831 = vmatmul.mubr.bf16.gmra.mrb[0].mxu0 %v4988
  %v5832 = vpop.f32.mrb[0].mxu0
  %v5833 = vadd.f32 %v5207, %v5832
  %v5834 = vpop.f32.mrb[0].mxu0
  %v5835 = vpop.f32.mrb[0].mxu0
  %v5836 = vadd.f32 %v5207, %v5835
  %v5837 = vpop.f32.mrb[0].mxu0
  %5838 = vmatprep.mubr.bf16.mxu0 %v4994
  %5839 = vmatmul.mubr.bf16.gmra.mrb[0].mxu0 %v4993
  %v5840 = vpop.f32.mrb[0].mxu0
  %v5841 = vadd.f32 %v5207, %v5840
  %v5842 = vpop.f32.mrb[0].mxu0
  %v5843 = vpop.f32.mrb[0].mxu0
  %v5844 = vadd.f32 %v5207, %v5843
  %v5845 = vpop.f32.mrb[0].mxu0
  %5846 = vmatprep.mubr.bf16.mxu0 %v4999
  %5847 = vmatmul.mubr.bf16.gmra.mrb[0].mxu0 %v4998
  %v5848 = vpop.f32.mrb[0].mxu0
  %v5849 = vadd.f32 %v5207, %v5848
  %v5850 = vpop.f32.mrb[0].mxu0
  %v5851 = vpop.f32.mrb[0].mxu0
  %v5852 = vadd.f32 %v5207, %v5851
  %v5853 = vpop.f32.mrb[0].mxu0
  %5854 = vmatprep.mubr.bf16.mxu0 %v5004
  %5855 = vmatmul.mubr.bf16.gmra.mrb[0].mxu0 %v5003
  %v5856 = vpop.f32.mrb[0].mxu0
  %v5857 = vadd.f32 %v5207, %v5856
  %v5858 = vpop.f32.mrb[0].mxu0
  %v5859 = vpop.f32.mrb[0].mxu0
  %v5860 = vadd.f32 %v5207, %v5859
  %v5861 = vpop.f32.mrb[0].mxu0
  %5862 = vmatprep.mubr.bf16.mxu0 %v5009
  %5863 = vmatmul.mubr.bf16.gmra.mrb[0].mxu0 %v5008
  %v5864 = vpop.f32.mrb[0].mxu0
  %v5865 = vadd.f32 %v5207, %v5864
  %v5866 = vpop.f32.mrb[0].mxu0
  %v5867 = vpop.f32.mrb[0].mxu0
  %v5868 = vadd.f32 %v5207, %v5867
  %v5869 = vpop.f32.mrb[0].mxu0
  %5870 = vmatprep.mubr.bf16.mxu0 %v5014
  %5871 = vmatmul.mubr.bf16.gmra.mrb[0].mxu0 %v5013
  %v5872 = vpop.f32.mrb[0].mxu0
  %v5873 = vadd.f32 %v5207, %v5872
  %v5874 = vpop.f32.mrb[0].mxu0
  %v5875 = vpop.f32.mrb[0].mxu0
  %v5876 = vadd.f32 %v5207, %v5875
  %v5877 = vpop.f32.mrb[0].mxu0
  %5878 = vmatprep.mubr.bf16.mxu0 %v5019
  %5879 = vmatmul.mubr.bf16.gmra.mrb[0].mxu0 %v5018
  %v5880 = vpop.f32.mrb[0].mxu0
  %v5881 = vadd.f32 %v5207, %v5880
  %v5882 = vpop.f32.mrb[0].mxu0
  %v5883 = vpop.f32.mrb[0].mxu0
  %v5884 = vadd.f32 %v5207, %v5883
  %v5885 = vpop.f32.mrb[0].mxu0
  %5886 = vmatprep.mubr.bf16.mxu0 %v5024
  %5887 = vmatmul.mubr.bf16.gmra.mrb[0].mxu0 %v5023
  %v5888 = vpop.f32.mrb[0].mxu0
  %v5889 = vadd.f32 %v5207, %v5888
  %v5890 = vpop.f32.mrb[0].mxu0
  %v5891 = vpop.f32.mrb[0].mxu0
  %v5892 = vadd.f32 %v5207, %v5891
  %v5893 = vpop.f32.mrb[0].mxu0
  %5894 = vmatprep.mubr.bf16.mxu0 %v5029
  %5895 = vmatmul.mubr.bf16.gmra.mrb[0].mxu0 %v5028
  %v5896 = vpop.f32.mrb[0].mxu0
  %v5897 = vadd.f32 %v5207, %v5896
  %v5898 = vpop.f32.mrb[0].mxu0
  %v5899 = vpop.f32.mrb[0].mxu0
  %v5900 = vadd.f32 %v5207, %v5899
  %v5901 = vpop.f32.mrb[0].mxu0
  %5902 = vmatprep.mubr.bf16.mxu0 %v5034
  %5903 = vmatmul.mubr.bf16.gmra.mrb[0].mxu0 %v5033
  %v5904 = vpop.f32.mrb[0].mxu0
  %v5905 = vadd.f32 %v5207, %v5904
  %v5906 = vpop.f32.mrb[0].mxu0
  %v5907 = vpop.f32.mrb[0].mxu0
  %v5908 = vadd.f32 %v5207, %v5907
  %v5909 = vpop.f32.mrb[0].mxu0
  %5910 = vmatprep.mubr.bf16.mxu0 %v5039
  %5911 = vmatmul.mubr.bf16.gmra.mrb[0].mxu0 %v5038
  %v5912 = vpop.f32.mrb[0].mxu0
  %v5913 = vadd.f32 %v5207, %v5912
  %v5914 = vpop.f32.mrb[0].mxu0
  %v5915 = vpop.f32.mrb[0].mxu0
  %v5916 = vadd.f32 %v5207, %v5915
  %v5917 = vpop.f32.mrb[0].mxu0
  %5918 = vmatprep.mubr.bf16.mxu0 %v5044
  %5919 = vmatmul.mubr.bf16.gmra.mrb[0].mxu0 %v5043
  %v5920 = vpop.f32.mrb[0].mxu0
  %v5921 = vadd.f32 %v5207, %v5920
  %v5922 = vpop.f32.mrb[0].mxu0
  %v5923 = vpop.f32.mrb[0].mxu0
  %v5924 = vadd.f32 %v5207, %v5923
  %v5925 = vpop.f32.mrb[0].mxu0
  %5926 = vmatprep.mubr.bf16.mxu0 %v5049
  %5927 = vmatmul.mubr.bf16.gmra.mrb[0].mxu0 %v5048
  %v5928 = vpop.f32.mrb[0].mxu0
  %v5929 = vadd.f32 %v5207, %v5928
  %v5930 = vpop.f32.mrb[0].mxu0
  %v5931 = vpop.f32.mrb[0].mxu0
  %v5932 = vadd.f32 %v5207, %v5931
  %v5933 = vpop.f32.mrb[0].mxu0
  %5934 = vmatprep.mubr.bf16.mxu0 %v5054
  %5935 = vmatmul.mubr.bf16.gmra.mrb[0].mxu0 %v5053
  %v5936 = vpop.f32.mrb[0].mxu0
  %v5937 = vadd.f32 %v5207, %v5936
  %v5938 = vpop.f32.mrb[0].mxu0
  %v5939 = vpop.f32.mrb[0].mxu0
  %v5940 = vadd.f32 %v5207, %v5939
  %v5941 = vpop.f32.mrb[0].mxu0
  %5942 = vmatprep.mubr.bf16.mxu0 %v5059
  %5943 = vmatmul.mubr.bf16.gmra.mrb[0].mxu0 %v5058
  %v5944 = vpop.f32.mrb[0].mxu0
  %v5945 = vadd.f32 %v5207, %v5944
  %v5946 = vpop.f32.mrb[0].mxu0
  %v5947 = vpop.f32.mrb[0].mxu0
  %v5948 = vadd.f32 %v5207, %v5947
  %v5949 = vpop.f32.mrb[0].mxu0
  %5950 = vdwg.mxu0
  %5951 = vmatprep.subr.bf16.mxu0 0
  %5952 = vmatpush1.bf16.msra.mxu0 %v5124
  %5953 = vmatprep.subr.bf16.mxu0 0
  %5954 = vmatpush1.bf16.msra.mxu0 %v5127
  %5955 = vmatprep.subr.bf16.mxu0 0
  %5956 = vmatpush1.bf16.msra.mxu0 %v5130
  %5957 = vmatprep.subr.bf16.mxu0 0
  %5958 = vmatpush1.bf16.msra.mxu0 %v5133
  %5959 = vmatprep.subr.bf16.mxu0 0
  %5960 = vmatpush1.bf16.msra.mxu0 %v5136
  %5961 = vmatprep.subr.bf16.mxu0 0
  %5962 = vmatpush1.bf16.msra.mxu0 %v5139
  %5963 = vmatprep.subr.bf16.mxu0 0
  %5964 = vmatpush1.bf16.msra.mxu0 %v5142
  %5965 = vmatprep.subr.bf16.mxu0 0
  %5966 = vmatpush1.bf16.msra.mxu0 %v5145
  %5967 = vmatprep.subr.bf16.mxu0 0
  %5968 = vmatpush1.bf16.msra.mxu0 %v5148
  %5969 = vmatprep.subr.bf16.mxu0 0
  %5970 = vmatpush1.bf16.msra.mxu0 %v5151
  %5971 = vmatprep.subr.bf16.mxu0 0
  %5972 = vmatpush1.bf16.msra.mxu0 %v5154
  %5973 = vmatprep.subr.bf16.mxu0 0
  %5974 = vmatpush1.bf16.msra.mxu0 %v5157
  %5975 = vmatprep.subr.bf16.mxu0 0
  %5976 = vmatpush1.bf16.msra.mxu0 %v5160
  %5977 = vmatprep.subr.bf16.mxu0 0
  %5978 = vmatpush1.bf16.msra.mxu0 %v5163
  %5979 = vmatprep.subr.bf16.mxu0 0
  %5980 = vmatpush1.bf16.msra.mxu0 %v5166
  %5981 = vmatprep.subr.bf16.mxu0 0
  %5982 = vmatpush1.bf16.msra.mxu0 %v5169
  %5983 = vmatprep.mubr.bf16.mxu0 %v4986
  %5984 = vmatmul.mubr.bf16.gmra.mrb[0].mxu0 %v4985
  %v5985 = vpop.f32.mrb[0].mxu0
  %v5986 = vadd.f32 %v5825, %v5985
  %v5987 = vpop.f32.mrb[0].mxu0
  %v5988 = vpop.f32.mrb[0].mxu0
  %v5989 = vadd.f32 %v5828, %v5988
  %v5990 = vpop.f32.mrb[0].mxu0
  %5991 = vmatprep.mubr.bf16.mxu0 %v4991
  %5992 = vmatmul.mubr.bf16.gmra.mrb[0].mxu0 %v4990
  %v5993 = vpop.f32.mrb[0].mxu0
  %v5994 = vadd.f32 %v5833, %v5993
  %v5995 = vpop.f32.mrb[0].mxu0
  %v5996 = vpop.f32.mrb[0].mxu0
  %v5997 = vadd.f32 %v5836, %v5996
  %v5998 = vpop.f32.mrb[0].mxu0
  %5999 = vmatprep.mubr.bf16.mxu0 %v4996
  %6000 = vmatmul.mubr.bf16.gmra.mrb[0].mxu0 %v4995
  %v6001 = vpop.f32.mrb[0].mxu0
  %v6002 = vadd.f32 %v5841, %v6001
  %v6003 = vpop.f32.mrb[0].mxu0
  %v6004 = vpop.f32.mrb[0].mxu0
  %v6005 = vadd.f32 %v5844, %v6004
  %v6006 = vpop.f32.mrb[0].mxu0
  %6007 = vmatprep.mubr.bf16.mxu0 %v5001
  %6008 = vmatmul.mubr.bf16.gmra.mrb[0].mxu0 %v5000
  %v6009 = vpop.f32.mrb[0].mxu0
  %v6010 = vadd.f32 %v5849, %v6009
  %v6011 = vpop.f32.mrb[0].mxu0
  %v6012 = vpop.f32.mrb[0].mxu0
  %v6013 = vadd.f32 %v5852, %v6012
  %v6014 = vpop.f32.mrb[0].mxu0
  %6015 = vmatprep.mubr.bf16.mxu0 %v5006
  %6016 = vmatmul.mubr.bf16.gmra.mrb[0].mxu0 %v5005
  %v6017 = vpop.f32.mrb[0].mxu0
  %v6018 = vadd.f32 %v5857, %v6017
  %v6019 = vpop.f32.mrb[0].mxu0
  %v6020 = vpop.f32.mrb[0].mxu0
  %v6021 = vadd.f32 %v5860, %v6020
  %v6022 = vpop.f32.mrb[0].mxu0
  %6023 = vmatprep.mubr.bf16.mxu0 %v5011
  %6024 = vmatmul.mubr.bf16.gmra.mrb[0].mxu0 %v5010
  %v6025 = vpop.f32.mrb[0].mxu0
  %v6026 = vadd.f32 %v5865, %v6025
  %v6027 = vpop.f32.mrb[0].mxu0
  %v6028 = vpop.f32.mrb[0].mxu0
  %v6029 = vadd.f32 %v5868, %v6028
  %v6030 = vpop.f32.mrb[0].mxu0
  %6031 = vmatprep.mubr.bf16.mxu0 %v5016
  %6032 = vmatmul.mubr.bf16.gmra.mrb[0].mxu0 %v5015
  %v6033 = vpop.f32.mrb[0].mxu0
  %v6034 = vadd.f32 %v5873, %v6033
  %v6035 = vpop.f32.mrb[0].mxu0
  %v6036 = vpop.f32.mrb[0].mxu0
  %v6037 = vadd.f32 %v5876, %v6036
  %v6038 = vpop.f32.mrb[0].mxu0
  %6039 = vmatprep.mubr.bf16.mxu0 %v5021
  %6040 = vmatmul.mubr.bf16.gmra.mrb[0].mxu0 %v5020
  %v6041 = vpop.f32.mrb[0].mxu0
  %v6042 = vadd.f32 %v5881, %v6041
  %v6043 = vpop.f32.mrb[0].mxu0
  %v6044 = vpop.f32.mrb[0].mxu0
  %v6045 = vadd.f32 %v5884, %v6044
  %v6046 = vpop.f32.mrb[0].mxu0
  %6047 = vmatprep.mubr.bf16.mxu0 %v5026
  %6048 = vmatmul.mubr.bf16.gmra.mrb[0].mxu0 %v5025
  %v6049 = vpop.f32.mrb[0].mxu0
  %v6050 = vadd.f32 %v5889, %v6049
  %v6051 = vpop.f32.mrb[0].mxu0
  %v6052 = vpop.f32.mrb[0].mxu0
  %v6053 = vadd.f32 %v5892, %v6052
  %v6054 = vpop.f32.mrb[0].mxu0
  %6055 = vmatprep.mubr.bf16.mxu0 %v5031
  %6056 = vmatmul.mubr.bf16.gmra.mrb[0].mxu0 %v5030
  %v6057 = vpop.f32.mrb[0].mxu0
  %v6058 = vadd.f32 %v5897, %v6057
  %v6059 = vpop.f32.mrb[0].mxu0
  %v6060 = vpop.f32.mrb[0].mxu0
  %v6061 = vadd.f32 %v5900, %v6060
  %v6062 = vpop.f32.mrb[0].mxu0
  %6063 = vmatprep.mubr.bf16.mxu0 %v5036
  %6064 = vmatmul.mubr.bf16.gmra.mrb[0].mxu0 %v5035
  %v6065 = vpop.f32.mrb[0].mxu0
  %v6066 = vadd.f32 %v5905, %v6065
  %v6067 = vpop.f32.mrb[0].mxu0
  %v6068 = vpop.f32.mrb[0].mxu0
  %v6069 = vadd.f32 %v5908, %v6068
  %v6070 = vpop.f32.mrb[0].mxu0
  %6071 = vmatprep.mubr.bf16.mxu0 %v5041
  %6072 = vmatmul.mubr.bf16.gmra.mrb[0].mxu0 %v5040
  %v6073 = vpop.f32.mrb[0].mxu0
  %v6074 = vadd.f32 %v5913, %v6073
  %v6075 = vpop.f32.mrb[0].mxu0
  %v6076 = vpop.f32.mrb[0].mxu0
  %v6077 = vadd.f32 %v5916, %v6076
  %v6078 = vpop.f32.mrb[0].mxu0
  %6079 = vmatprep.mubr.bf16.mxu0 %v5046
  %6080 = vmatmul.mubr.bf16.gmra.mrb[0].mxu0 %v5045
  %v6081 = vpop.f32.mrb[0].mxu0
  %v6082 = vadd.f32 %v5921, %v6081
  %v6083 = vpop.f32.mrb[0].mxu0
  %v6084 = vpop.f32.mrb[0].mxu0
  %v6085 = vadd.f32 %v5924, %v6084
  %v6086 = vpop.f32.mrb[0].mxu0
  %6087 = vmatprep.mubr.bf16.mxu0 %v5051
  %6088 = vmatmul.mubr.bf16.gmra.mrb[0].mxu0 %v5050
  %v6089 = vpop.f32.mrb[0].mxu0
  %v6090 = vadd.f32 %v5929, %v6089
  %v6091 = vpop.f32.mrb[0].mxu0
  %v6092 = vpop.f32.mrb[0].mxu0
  %v6093 = vadd.f32 %v5932, %v6092
  %v6094 = vpop.f32.mrb[0].mxu0
  %6095 = vmatprep.mubr.bf16.mxu0 %v5056
  %6096 = vmatmul.mubr.bf16.gmra.mrb[0].mxu0 %v5055
  %v6097 = vpop.f32.mrb[0].mxu0
  %v6098 = vadd.f32 %v5937, %v6097
  %v6099 = vpop.f32.mrb[0].mxu0
  %v6100 = vpop.f32.mrb[0].mxu0
  %v6101 = vadd.f32 %v5940, %v6100
  %v6102 = vpop.f32.mrb[0].mxu0
  %6103 = vmatprep.mubr.bf16.mxu0 %v5061
  %6104 = vmatmul.mubr.bf16.gmra.mrb[0].mxu0 %v5060
  %v6105 = vpop.f32.mrb[0].mxu0
  %v6106 = vadd.f32 %v5945, %v6105
  %v6107 = vpop.f32.mrb[0].mxu0
  %v6108 = vpop.f32.mrb[0].mxu0
  %v6109 = vadd.f32 %v5948, %v6108
  %v6110 = vpop.f32.mrb[0].mxu0
  %6111 = vdwg.mxu0
  %6112 = vmatprep.subr.bf16.mxu0 0
  %6113 = vmatpush1.bf16.msra.mxu0 %v5172
  %6114 = vmatprep.subr.bf16.mxu0 0
  %6115 = vmatpush1.bf16.msra.mxu0 %v5175
  %6116 = vmatprep.subr.bf16.mxu0 0
  %6117 = vmatpush1.bf16.msra.mxu0 %v5178
  %6118 = vmatprep.subr.bf16.mxu0 0
  %6119 = vmatpush1.bf16.msra.mxu0 %v5181
  %6120 = vmatprep.subr.bf16.mxu0 0
  %6121 = vmatpush1.bf16.msra.mxu0 %v5184
  %6122 = vmatprep.subr.bf16.mxu0 0
  %6123 = vmatpush1.bf16.msra.mxu0 %v5187
  %6124 = vmatprep.subr.bf16.mxu0 0
  %6125 = vmatpush1.bf16.msra.mxu0 %v5190
  %6126 = vmatprep.subr.bf16.mxu0 0
  %6127 = vmatpush1.bf16.msra.mxu0 %v5193
  %6128 = vmatprep.subr.bf16.mxu0 0
  %6129 = vmatpush1.bf16.msra.mxu0 0
  %6130 = vmatprep.subr.bf16.mxu0 0
  %6131 = vmatpush1.bf16.msra.mxu0 0
  %6132 = vmatprep.subr.bf16.mxu0 0
  %6133 = vmatpush1.bf16.msra.mxu0 0
  %6134 = vmatprep.subr.bf16.mxu0 0
  %6135 = vmatpush1.bf16.msra.mxu0 0
  %6136 = vmatprep.subr.bf16.mxu0 0
  %6137 = vmatpush1.bf16.msra.mxu0 0
  %6138 = vmatprep.subr.bf16.mxu0 0
  %6139 = vmatpush1.bf16.msra.mxu0 0
  %6140 = vmatprep.subr.bf16.mxu0 0
  %6141 = vmatpush1.bf16.msra.mxu0 0
  %6142 = vmatprep.subr.bf16.mxu0 0
  %6143 = vmatpush1.bf16.msra.mxu0 0
  %6144 = vmatprep.mubr.bf16.mxu0 0
  %6145 = vmatmul.mubr.bf16.gmra.mrb[0].mxu0 %v4987
  %v6146 = vpop.f32.mrb[0].mxu0
  %v6147 = vadd.f32 %v5986, %v6146
  %v6148 = vpop.f32.mrb[0].mxu0
  %v6149 = vpop.f32.mrb[0].mxu0
  %v6150 = vadd.f32 %v5989, %v6149
  %v6151 = vpop.f32.mrb[0].mxu0
  %6152 = vmatprep.mubr.bf16.mxu0 0
  %6153 = vmatmul.mubr.bf16.gmra.mrb[0].mxu0 %v4992
  %v6154 = vpop.f32.mrb[0].mxu0
  %v6155 = vadd.f32 %v5994, %v6154
  %v6156 = vpop.f32.mrb[0].mxu0
  %v6157 = vpop.f32.mrb[0].mxu0
  %v6158 = vadd.f32 %v5997, %v6157
  %v6159 = vpop.f32.mrb[0].mxu0
  %6160 = vmatprep.mubr.bf16.mxu0 0
  %6161 = vmatmul.mubr.bf16.gmra.mrb[0].mxu0 %v4997
  %v6162 = vpop.f32.mrb[0].mxu0
  %v6163 = vadd.f32 %v6002, %v6162
  %v6164 = vpop.f32.mrb[0].mxu0
  %v6165 = vpop.f32.mrb[0].mxu0
  %v6166 = vadd.f32 %v6005, %v6165
  %v6167 = vpop.f32.mrb[0].mxu0
  %6168 = vmatprep.mubr.bf16.mxu0 0
  %6169 = vmatmul.mubr.bf16.gmra.mrb[0].mxu0 %v5002
  %v6170 = vpop.f32.mrb[0].mxu0
  %v6171 = vadd.f32 %v6010, %v6170
  %v6172 = vpop.f32.mrb[0].mxu0
  %v6173 = vpop.f32.mrb[0].mxu0
  %v6174 = vadd.f32 %v6013, %v6173
  %v6175 = vpop.f32.mrb[0].mxu0
  %6176 = vmatprep.mubr.bf16.mxu0 0
  %6177 = vmatmul.mubr.bf16.gmra.mrb[0].mxu0 %v5007
  %v6178 = vpop.f32.mrb[0].mxu0
  %v6179 = vadd.f32 %v6018, %v6178
  %v6180 = vpop.f32.mrb[0].mxu0
  %v6181 = vpop.f32.mrb[0].mxu0
  %v6182 = vadd.f32 %v6021, %v6181
  %v6183 = vpop.f32.mrb[0].mxu0
  %6184 = vmatprep.mubr.bf16.mxu0 0
  %6185 = vmatmul.mubr.bf16.gmra.mrb[0].mxu0 %v5012
  %v6186 = vpop.f32.mrb[0].mxu0
  %v6187 = vadd.f32 %v6026, %v6186
  %v6188 = vpop.f32.mrb[0].mxu0
  %v6189 = vpop.f32.mrb[0].mxu0
  %v6190 = vadd.f32 %v6029, %v6189
  %v6191 = vpop.f32.mrb[0].mxu0
  %6192 = vmatprep.mubr.bf16.mxu0 0
  %6193 = vmatmul.mubr.bf16.gmra.mrb[0].mxu0 %v5017
  %v6194 = vpop.f32.mrb[0].mxu0
  %v6195 = vadd.f32 %v6034, %v6194
  %v6196 = vpop.f32.mrb[0].mxu0
  %v6197 = vpop.f32.mrb[0].mxu0
  %v6198 = vadd.f32 %v6037, %v6197
  %v6199 = vpop.f32.mrb[0].mxu0
  %6200 = vmatprep.mubr.bf16.mxu0 0
  %6201 = vmatmul.mubr.bf16.gmra.mrb[0].mxu0 %v5022
  %v6202 = vpop.f32.mrb[0].mxu0
  %v6203 = vadd.f32 %v6042, %v6202
  %v6204 = vpop.f32.mrb[0].mxu0
  %v6205 = vpop.f32.mrb[0].mxu0
  %v6206 = vadd.f32 %v6045, %v6205
  %v6207 = vpop.f32.mrb[0].mxu0
  %6208 = vmatprep.mubr.bf16.mxu0 0
  %6209 = vmatmul.mubr.bf16.gmra.mrb[0].mxu0 %v5027
  %v6210 = vpop.f32.mrb[0].mxu0
  %v6211 = vadd.f32 %v6050, %v6210
  %v6212 = vpop.f32.mrb[0].mxu0
  %v6213 = vpop.f32.mrb[0].mxu0
  %v6214 = vadd.f32 %v6053, %v6213
  %v6215 = vpop.f32.mrb[0].mxu0
  %6216 = vmatprep.mubr.bf16.mxu0 0
  %6217 = vmatmul.mubr.bf16.gmra.mrb[0].mxu0 %v5032
  %v6218 = vpop.f32.mrb[0].mxu0
  %v6219 = vadd.f32 %v6058, %v6218
  %v6220 = vpop.f32.mrb[0].mxu0
  %v6221 = vpop.f32.mrb[0].mxu0
  %v6222 = vadd.f32 %v6061, %v6221
  %v6223 = vpop.f32.mrb[0].mxu0
  %6224 = vmatprep.mubr.bf16.mxu0 0
  %6225 = vmatmul.mubr.bf16.gmra.mrb[0].mxu0 %v5037
  %v6226 = vpop.f32.mrb[0].mxu0
  %v6227 = vadd.f32 %v6066, %v6226
  %v6228 = vpop.f32.mrb[0].mxu0
  %v6229 = vpop.f32.mrb[0].mxu0
  %v6230 = vadd.f32 %v6069, %v6229
  %v6231 = vpop.f32.mrb[0].mxu0
  %6232 = vmatprep.mubr.bf16.mxu0 0
  %6233 = vmatmul.mubr.bf16.gmra.mrb[0].mxu0 %v5042
  %v6234 = vpop.f32.mrb[0].mxu0
  %v6235 = vadd.f32 %v6074, %v6234
  %v6236 = vpop.f32.mrb[0].mxu0
  %v6237 = vpop.f32.mrb[0].mxu0
  %v6238 = vadd.f32 %v6077, %v6237
  %v6239 = vpop.f32.mrb[0].mxu0
  %6240 = vmatprep.mubr.bf16.mxu0 0
  %6241 = vmatmul.mubr.bf16.gmra.mrb[0].mxu0 %v5047
  %v6242 = vpop.f32.mrb[0].mxu0
  %v6243 = vadd.f32 %v6082, %v6242
  %v6244 = vpop.f32.mrb[0].mxu0
  %v6245 = vpop.f32.mrb[0].mxu0
  %v6246 = vadd.f32 %v6085, %v6245
  %v6247 = vpop.f32.mrb[0].mxu0
  %6248 = vmatprep.mubr.bf16.mxu0 0
  %6249 = vmatmul.mubr.bf16.gmra.mrb[0].mxu0 %v5052
  %v6250 = vpop.f32.mrb[0].mxu0
  %v6251 = vadd.f32 %v6090, %v6250
  %v6252 = vpop.f32.mrb[0].mxu0
  %v6253 = vpop.f32.mrb[0].mxu0
  %v6254 = vadd.f32 %v6093, %v6253
  %v6255 = vpop.f32.mrb[0].mxu0
  %6256 = vmatprep.mubr.bf16.mxu0 0
  %6257 = vmatmul.mubr.bf16.gmra.mrb[0].mxu0 %v5057
  %v6258 = vpop.f32.mrb[0].mxu0
  %v6259 = vadd.f32 %v6098, %v6258
  %v6260 = vpop.f32.mrb[0].mxu0
  %v6261 = vpop.f32.mrb[0].mxu0
  %v6262 = vadd.f32 %v6101, %v6261
  %v6263 = vpop.f32.mrb[0].mxu0
  %6264 = vmatprep.mubr.bf16.mxu0 0
  %6265 = vmatmul.mubr.bf16.gmra.mrb[0].mxu0 %v5062
  %v6266 = vpop.f32.mrb[0].mxu0
  %v6267 = vadd.f32 %v6106, %v6266
  %v6268 = vpop.f32.mrb[0].mxu0
  %v6269 = vpop.f32.mrb[0].mxu0
  %v6270 = vadd.f32 %v6109, %v6269
  %v6271 = vpop.f32.mrb[0].mxu0
  %6272 = vdwg.mxu0
  %v6273 = vmax.f32 %v5632, 0.0
  %v6274 = vmax.f32 %v5634, 0.0
  %v6275 = vmax.f32 %v6147, 0.0
  %v6276 = vmax.f32 %v5636, 0.0
  %v6277 = vmax.f32 %v5638, 0.0
  %v6278 = vmax.f32 %v6150, 0.0
  %v6279 = vmax.f32 %v5642, 0.0
  %v6280 = vmax.f32 %v5644, 0.0
  %v6281 = vmax.f32 %v6155, 0.0
  %v6282 = vmax.f32 %v5646, 0.0
  %v6283 = vmax.f32 %v5648, 0.0
  %v6284 = vmax.f32 %v6158, 0.0
  %v6285 = vmax.f32 %v5652, 0.0
  %v6286 = vmax.f32 %v5654, 0.0
  %v6287 = vmax.f32 %v6163, 0.0
  %v6288 = vmax.f32 %v5656, 0.0
  %v6289 = vmax.f32 %v5658, 0.0
  %v6290 = vmax.f32 %v6166, 0.0
  %v6291 = vmax.f32 %v5662, 0.0
  %v6292 = vmax.f32 %v5664, 0.0
  %v6293 = vmax.f32 %v6171, 0.0
  %v6294 = vmax.f32 %v5666, 0.0
  %v6295 = vmax.f32 %v5668, 0.0
  %v6296 = vmax.f32 %v6174, 0.0
  %v6297 = vmax.f32 %v5672, 0.0
  %v6298 = vmax.f32 %v5674, 0.0
  %v6299 = vmax.f32 %v6179, 0.0
  %v6300 = vmax.f32 %v5676, 0.0
  %v6301 = vmax.f32 %v5678, 0.0
  %v6302 = vmax.f32 %v6182, 0.0
  %v6303 = vmax.f32 %v5682, 0.0
  %v6304 = vmax.f32 %v5684, 0.0
  %v6305 = vmax.f32 %v6187, 0.0
  %v6306 = vmax.f32 %v5686, 0.0
  %v6307 = vmax.f32 %v5688, 0.0
  %v6308 = vmax.f32 %v6190, 0.0
  %v6309 = vmax.f32 %v5692, 0.0
  %v6310 = vmax.f32 %v5694, 0.0
  %v6311 = vmax.f32 %v6195, 0.0
  %v6312 = vmax.f32 %v5696, 0.0
  %v6313 = vmax.f32 %v5698, 0.0
  %v6314 = vmax.f32 %v6198, 0.0
  %v6315 = vmax.f32 %v5702, 0.0
  %v6316 = vmax.f32 %v5704, 0.0
  %v6317 = vmax.f32 %v6203, 0.0
  %v6318 = vmax.f32 %v5706, 0.0
  %v6319 = vmax.f32 %v5708, 0.0
  %v6320 = vmax.f32 %v6206, 0.0
  %v6321 = vmax.f32 %v5712, 0.0
  %v6322 = vmax.f32 %v5714, 0.0
  %v6323 = vmax.f32 %v6211, 0.0
  %v6324 = vmax.f32 %v5716, 0.0
  %v6325 = vmax.f32 %v5718, 0.0
  %v6326 = vmax.f32 %v6214, 0.0
  %v6327 = vmax.f32 %v5722, 0.0
  %v6328 = vmax.f32 %v5724, 0.0
  %v6329 = vmax.f32 %v6219, 0.0
  %v6330 = vmax.f32 %v5726, 0.0
  %v6331 = vmax.f32 %v5728, 0.0
  %v6332 = vmax.f32 %v6222, 0.0
  %v6333 = vmax.f32 %v5732, 0.0
  %v6334 = vmax.f32 %v5734, 0.0
  %v6335 = vmax.f32 %v6227, 0.0
  %v6336 = vmax.f32 %v5736, 0.0
  %v6337 = vmax.f32 %v5738, 0.0
  %v6338 = vmax.f32 %v6230, 0.0
  %v6339 = vmax.f32 %v5742, 0.0
  %v6340 = vmax.f32 %v5744, 0.0
  %v6341 = vmax.f32 %v6235, 0.0
  %v6342 = vmax.f32 %v5746, 0.0
  %v6343 = vmax.f32 %v5748, 0.0
  %v6344 = vmax.f32 %v6238, 0.0
  %v6345 = vmax.f32 %v5752, 0.0
  %v6346 = vmax.f32 %v5754, 0.0
  %v6347 = vmax.f32 %v6243, 0.0
  %v6348 = vmax.f32 %v5756, 0.0
  %v6349 = vmax.f32 %v5758, 0.0
  %v6350 = vmax.f32 %v6246, 0.0
  %v6351 = vmax.f32 %v5762, 0.0
  %v6352 = vmax.f32 %v5764, 0.0
  %v6353 = vmax.f32 %v6251, 0.0
  %v6354 = vmax.f32 %v5766, 0.0
  %v6355 = vmax.f32 %v5768, 0.0
  %v6356 = vmax.f32 %v6254, 0.0
  %v6357 = vmax.f32 %v5772, 0.0
  %v6358 = vmax.f32 %v5774, 0.0
  %v6359 = vmax.f32 %v6259, 0.0
  %v6360 = vmax.f32 %v5776, 0.0
  %v6361 = vmax.f32 %v5778, 0.0
  %v6362 = vmax.f32 %v6262, 0.0
  %v6363 = vmax.f32 %v5782, 0.0
  %v6364 = vmax.f32 %v5784, 0.0
  %v6365 = vmax.f32 %v6267, 0.0
  %v6366 = vmax.f32 %v5786, 0.0
  %v6367 = vmax.f32 %v5788, 0.0
  %v6368 = vmax.f32 %v6270, 0.0
  %v6369 = vadd.f32 %v6273, %v6276
  %v6370 = vadd.f32 %v6369, %v6279
  %v6371 = vadd.f32 %v6370, %v6282
  %v6372 = vadd.f32 %v6371, %v6285
  %v6373 = vadd.f32 %v6372, %v6288
  %v6374 = vadd.f32 %v6373, %v6291
  %v6375 = vadd.f32 %v6374, %v6294
  %v6376 = vadd.f32 %v6375, %v6297
  %v6377 = vadd.f32 %v6376, %v6300
  %v6378 = vadd.f32 %v6377, %v6303
  %v6379 = vadd.f32 %v6378, %v6306
  %v6380 = vadd.f32 %v6379, %v6309
  %v6381 = vadd.f32 %v6380, %v6312
  %v6382 = vadd.f32 %v6381, %v6315
  %v6383 = vadd.f32 %v6382, %v6318
  %v6384 = vadd.f32 %v6383, %v6321
  %v6385 = vadd.f32 %v6384, %v6324
  %v6386 = vadd.f32 %v6385, %v6327
  %v6387 = vadd.f32 %v6386, %v6330
  %v6388 = vadd.f32 %v6387, %v6333
  %v6389 = vadd.f32 %v6388, %v6336
  %v6390 = vadd.f32 %v6389, %v6339
  %v6391 = vadd.f32 %v6390, %v6342
  %v6392 = vadd.f32 %v6391, %v6345
  %v6393 = vadd.f32 %v6392, %v6348
  %v6394 = vadd.f32 %v6393, %v6351
  %v6395 = vadd.f32 %v6394, %v6354
  %v6396 = vadd.f32 %v6395, %v6357
  %v6397 = vadd.f32 %v6396, %v6360
  %v6398 = vadd.f32 %v6397, %v6363
  %v6399 = vadd.f32 %v6398, %v6366
  %v6400 = vrot.slane %v6399, 4
  %v6401 = vadd.f32 %v6399, %v6400
  %v6402 = vrot.slane %v6401, 2
  %v6403 = vadd.f32 %v6401, %v6402
  %v6404 = vrot.slane %v6403, 1
  %v6405 = vadd.f32 %v6403, %v6404
  %v6406 = vadd.f32 %v6274, %v6277
  %v6407 = vadd.f32 %v6406, %v6280
  %v6408 = vadd.f32 %v6407, %v6283
  %v6409 = vadd.f32 %v6408, %v6286
  %v6410 = vadd.f32 %v6409, %v6289
  %v6411 = vadd.f32 %v6410, %v6292
  %v6412 = vadd.f32 %v6411, %v6295
  %v6413 = vadd.f32 %v6412, %v6298
  %v6414 = vadd.f32 %v6413, %v6301
  %v6415 = vadd.f32 %v6414, %v6304
  %v6416 = vadd.f32 %v6415, %v6307
  %v6417 = vadd.f32 %v6416, %v6310
  %v6418 = vadd.f32 %v6417, %v6313
  %v6419 = vadd.f32 %v6418, %v6316
  %v6420 = vadd.f32 %v6419, %v6319
  %v6421 = vadd.f32 %v6420, %v6322
  %v6422 = vadd.f32 %v6421, %v6325
  %v6423 = vadd.f32 %v6422, %v6328
  %v6424 = vadd.f32 %v6423, %v6331
  %v6425 = vadd.f32 %v6424, %v6334
  %v6426 = vadd.f32 %v6425, %v6337
  %v6427 = vadd.f32 %v6426, %v6340
  %v6428 = vadd.f32 %v6427, %v6343
  %v6429 = vadd.f32 %v6428, %v6346
  %v6430 = vadd.f32 %v6429, %v6349
  %v6431 = vadd.f32 %v6430, %v6352
  %v6432 = vadd.f32 %v6431, %v6355
  %v6433 = vadd.f32 %v6432, %v6358
  %v6434 = vadd.f32 %v6433, %v6361
  %v6435 = vadd.f32 %v6434, %v6364
  %v6436 = vadd.f32 %v6435, %v6367
  %v6437 = vrot.slane %v6436, 4
  %v6438 = vadd.f32 %v6436, %v6437
  %v6439 = vrot.slane %v6438, 2
  %v6440 = vadd.f32 %v6438, %v6439
  %v6441 = vrot.slane %v6440, 1
  %v6442 = vadd.f32 %v6440, %v6441
  %v6443 = vadd.f32 %v6275, %v6278
  %v6444 = vadd.f32 %v6443, %v6281
  %v6445 = vadd.f32 %v6444, %v6284
  %v6446 = vadd.f32 %v6445, %v6287
  %v6447 = vadd.f32 %v6446, %v6290
  %v6448 = vadd.f32 %v6447, %v6293
  %v6449 = vadd.f32 %v6448, %v6296
  %v6450 = vadd.f32 %v6449, %v6299
  %v6451 = vadd.f32 %v6450, %v6302
  %v6452 = vadd.f32 %v6451, %v6305
  %v6453 = vadd.f32 %v6452, %v6308
  %v6454 = vadd.f32 %v6453, %v6311
  %v6455 = vadd.f32 %v6454, %v6314
  %v6456 = vadd.f32 %v6455, %v6317
  %v6457 = vadd.f32 %v6456, %v6320
  %v6458 = vadd.f32 %v6457, %v6323
  %v6459 = vadd.f32 %v6458, %v6326
  %v6460 = vadd.f32 %v6459, %v6329
  %v6461 = vadd.f32 %v6460, %v6332
  %v6462 = vadd.f32 %v6461, %v6335
  %v6463 = vadd.f32 %v6462, %v6338
  %v6464 = vadd.f32 %v6463, %v6341
  %v6465 = vadd.f32 %v6464, %v6344
  %v6466 = vadd.f32 %v6465, %v6347
  %v6467 = vadd.f32 %v6466, %v6350
  %v6468 = vadd.f32 %v6467, %v6353
  %v6469 = vadd.f32 %v6468, %v6356
  %v6470 = vadd.f32 %v6469, %v6359
  %v6471 = vadd.f32 %v6470, %v6362
  %v6472 = vadd.f32 %v6471, %v6365
  %v6473 = vadd.f32 %v6472, %v6368
  %v6474 = vrot.slane %v6473, 4
  %v6475 = vadd.f32 %v6473, %v6474
  %v6476 = vrot.slane %v6475, 2
  %v6477 = vadd.f32 %v6475, %v6476
  %v6478 = vrot.slane %v6477, 1
  %v6479 = vadd.f32 %v6477, %v6478
  %v6480 = vmul.f32 %v6405, 0.00390625
  %v6481 = vmul.f32 %v6442, 0.00390625
  %v6482 = vmul.f32 %v6479, 0.00390625
  %v6483 = vmul.f32 %v6273, %v6273
  %v6484 = vmul.f32 %v6274, %v6274
  %v6485 = vmul.f32 %v6275, %v6275
  %v6486 = vmul.f32 %v6276, %v6276
  %v6487 = vmul.f32 %v6277, %v6277
  %v6488 = vmul.f32 %v6278, %v6278
  %v6489 = vmul.f32 %v6279, %v6279
  %v6490 = vmul.f32 %v6280, %v6280
  %v6491 = vmul.f32 %v6281, %v6281
  %v6492 = vmul.f32 %v6282, %v6282
  %v6493 = vmul.f32 %v6283, %v6283
  %v6494 = vmul.f32 %v6284, %v6284
  %v6495 = vmul.f32 %v6285, %v6285
  %v6496 = vmul.f32 %v6286, %v6286
  %v6497 = vmul.f32 %v6287, %v6287
  %v6498 = vmul.f32 %v6288, %v6288
  %v6499 = vmul.f32 %v6289, %v6289
  %v6500 = vmul.f32 %v6290, %v6290
  %v6501 = vmul.f32 %v6291, %v6291
  %v6502 = vmul.f32 %v6292, %v6292
  %v6503 = vmul.f32 %v6293, %v6293
  %v6504 = vmul.f32 %v6294, %v6294
  %v6505 = vmul.f32 %v6295, %v6295
  %v6506 = vmul.f32 %v6296, %v6296
  %v6507 = vmul.f32 %v6297, %v6297
  %v6508 = vmul.f32 %v6298, %v6298
  %v6509 = vmul.f32 %v6299, %v6299
  %v6510 = vmul.f32 %v6300, %v6300
  %v6511 = vmul.f32 %v6301, %v6301
  %v6512 = vmul.f32 %v6302, %v6302
  %v6513 = vmul.f32 %v6303, %v6303
  %v6514 = vmul.f32 %v6304, %v6304
  %v6515 = vmul.f32 %v6305, %v6305
  %v6516 = vmul.f32 %v6306, %v6306
  %v6517 = vmul.f32 %v6307, %v6307
  %v6518 = vmul.f32 %v6308, %v6308
  %v6519 = vmul.f32 %v6309, %v6309
  %v6520 = vmul.f32 %v6310, %v6310
  %v6521 = vmul.f32 %v6311, %v6311
  %v6522 = vmul.f32 %v6312, %v6312
  %v6523 = vmul.f32 %v6313, %v6313
  %v6524 = vmul.f32 %v6314, %v6314
  %v6525 = vmul.f32 %v6315, %v6315
  %v6526 = vmul.f32 %v6316, %v6316
  %v6527 = vmul.f32 %v6317, %v6317
  %v6528 = vmul.f32 %v6318, %v6318
  %v6529 = vmul.f32 %v6319, %v6319
  %v6530 = vmul.f32 %v6320, %v6320
  %v6531 = vmul.f32 %v6321, %v6321
  %v6532 = vmul.f32 %v6322, %v6322
  %v6533 = vmul.f32 %v6323, %v6323
  %v6534 = vmul.f32 %v6324, %v6324
  %v6535 = vmul.f32 %v6325, %v6325
  %v6536 = vmul.f32 %v6326, %v6326
  %v6537 = vmul.f32 %v6327, %v6327
  %v6538 = vmul.f32 %v6328, %v6328
  %v6539 = vmul.f32 %v6329, %v6329
  %v6540 = vmul.f32 %v6330, %v6330
  %v6541 = vmul.f32 %v6331, %v6331
  %v6542 = vmul.f32 %v6332, %v6332
  %v6543 = vmul.f32 %v6333, %v6333
  %v6544 = vmul.f32 %v6334, %v6334
  %v6545 = vmul.f32 %v6335, %v6335
  %v6546 = vmul.f32 %v6336, %v6336
  %v6547 = vmul.f32 %v6337, %v6337
  %v6548 = vmul.f32 %v6338, %v6338
  %v6549 = vmul.f32 %v6339, %v6339
  %v6550 = vmul.f32 %v6340, %v6340
  %v6551 = vmul.f32 %v6341, %v6341
  %v6552 = vmul.f32 %v6342, %v6342
  %v6553 = vmul.f32 %v6343, %v6343
  %v6554 = vmul.f32 %v6344, %v6344
  %v6555 = vmul.f32 %v6345, %v6345
  %v6556 = vmul.f32 %v6346, %v6346
  %v6557 = vmul.f32 %v6347, %v6347
  %v6558 = vmul.f32 %v6348, %v6348
  %v6559 = vmul.f32 %v6349, %v6349
  %v6560 = vmul.f32 %v6350, %v6350
  %v6561 = vmul.f32 %v6351, %v6351
  %v6562 = vmul.f32 %v6352, %v6352
  %v6563 = vmul.f32 %v6353, %v6353
  %v6564 = vmul.f32 %v6354, %v6354
  %v6565 = vmul.f32 %v6355, %v6355
  %v6566 = vmul.f32 %v6356, %v6356
  %v6567 = vmul.f32 %v6357, %v6357
  %v6568 = vmul.f32 %v6358, %v6358
  %v6569 = vmul.f32 %v6359, %v6359
  %v6570 = vmul.f32 %v6360, %v6360
  %v6571 = vmul.f32 %v6361, %v6361
  %v6572 = vmul.f32 %v6362, %v6362
  %v6573 = vmul.f32 %v6363, %v6363
  %v6574 = vmul.f32 %v6364, %v6364
  %v6575 = vmul.f32 %v6365, %v6365
  %v6576 = vmul.f32 %v6366, %v6366
  %v6577 = vmul.f32 %v6367, %v6367
  %v6578 = vmul.f32 %v6368, %v6368
  %v6579 = vadd.f32 %v6483, %v6486
  %v6580 = vadd.f32 %v6579, %v6489
  %v6581 = vadd.f32 %v6580, %v6492
  %v6582 = vadd.f32 %v6581, %v6495
  %v6583 = vadd.f32 %v6582, %v6498
  %v6584 = vadd.f32 %v6583, %v6501
  %v6585 = vadd.f32 %v6584, %v6504
  %v6586 = vadd.f32 %v6585, %v6507
  %v6587 = vadd.f32 %v6586, %v6510
  %v6588 = vadd.f32 %v6587, %v6513
  %v6589 = vadd.f32 %v6588, %v6516
  %v6590 = vadd.f32 %v6589, %v6519
  %v6591 = vadd.f32 %v6590, %v6522
  %v6592 = vadd.f32 %v6591, %v6525
  %v6593 = vadd.f32 %v6592, %v6528
  %v6594 = vadd.f32 %v6593, %v6531
  %v6595 = vadd.f32 %v6594, %v6534
  %v6596 = vadd.f32 %v6595, %v6537
  %v6597 = vadd.f32 %v6596, %v6540
  %v6598 = vadd.f32 %v6597, %v6543
  %v6599 = vadd.f32 %v6598, %v6546
  %v6600 = vadd.f32 %v6599, %v6549
  %v6601 = vadd.f32 %v6600, %v6552
  %v6602 = vadd.f32 %v6601, %v6555
  %v6603 = vadd.f32 %v6602, %v6558
  %v6604 = vadd.f32 %v6603, %v6561
  %v6605 = vadd.f32 %v6604, %v6564
  %v6606 = vadd.f32 %v6605, %v6567
  %v6607 = vadd.f32 %v6606, %v6570
  %v6608 = vadd.f32 %v6607, %v6573
  %v6609 = vadd.f32 %v6608, %v6576
  %v6610 = vrot.slane %v6609, 4
  %v6611 = vadd.f32 %v6609, %v6610
  %v6612 = vrot.slane %v6611, 2
  %v6613 = vadd.f32 %v6611, %v6612
  %v6614 = vrot.slane %v6613, 1
  %v6615 = vadd.f32 %v6613, %v6614
  %v6616 = vadd.f32 %v6484, %v6487
  %v6617 = vadd.f32 %v6616, %v6490
  %v6618 = vadd.f32 %v6617, %v6493
  %v6619 = vadd.f32 %v6618, %v6496
  %v6620 = vadd.f32 %v6619, %v6499
  %v6621 = vadd.f32 %v6620, %v6502
  %v6622 = vadd.f32 %v6621, %v6505
  %v6623 = vadd.f32 %v6622, %v6508
  %v6624 = vadd.f32 %v6623, %v6511
  %v6625 = vadd.f32 %v6624, %v6514
  %v6626 = vadd.f32 %v6625, %v6517
  %v6627 = vadd.f32 %v6626, %v6520
  %v6628 = vadd.f32 %v6627, %v6523
  %v6629 = vadd.f32 %v6628, %v6526
  %v6630 = vadd.f32 %v6629, %v6529
  %v6631 = vadd.f32 %v6630, %v6532
  %v6632 = vadd.f32 %v6631, %v6535
  %v6633 = vadd.f32 %v6632, %v6538
  %v6634 = vadd.f32 %v6633, %v6541
  %v6635 = vadd.f32 %v6634, %v6544
  %v6636 = vadd.f32 %v6635, %v6547
  %v6637 = vadd.f32 %v6636, %v6550
  %v6638 = vadd.f32 %v6637, %v6553
  %v6639 = vadd.f32 %v6638, %v6556
  %v6640 = vadd.f32 %v6639, %v6559
  %v6641 = vadd.f32 %v6640, %v6562
  %v6642 = vadd.f32 %v6641, %v6565
  %v6643 = vadd.f32 %v6642, %v6568
  %v6644 = vadd.f32 %v6643, %v6571
  %v6645 = vadd.f32 %v6644, %v6574
  %v6646 = vadd.f32 %v6645, %v6577
  %v6647 = vrot.slane %v6646, 4
  %v6648 = vadd.f32 %v6646, %v6647
  %v6649 = vrot.slane %v6648, 2
  %v6650 = vadd.f32 %v6648, %v6649
  %v6651 = vrot.slane %v6650, 1
  %v6652 = vadd.f32 %v6650, %v6651
  %v6653 = vadd.f32 %v6485, %v6488
  %v6654 = vadd.f32 %v6653, %v6491
  %v6655 = vadd.f32 %v6654, %v6494
  %v6656 = vadd.f32 %v6655, %v6497
  %v6657 = vadd.f32 %v6656, %v6500
  %v6658 = vadd.f32 %v6657, %v6503
  %v6659 = vadd.f32 %v6658, %v6506
  %v6660 = vadd.f32 %v6659, %v6509
  %v6661 = vadd.f32 %v6660, %v6512
  %v6662 = vadd.f32 %v6661, %v6515
  %v6663 = vadd.f32 %v6662, %v6518
  %v6664 = vadd.f32 %v6663, %v6521
  %v6665 = vadd.f32 %v6664, %v6524
  %v6666 = vadd.f32 %v6665, %v6527
  %v6667 = vadd.f32 %v6666, %v6530
  %v6668 = vadd.f32 %v6667, %v6533
  %v6669 = vadd.f32 %v6668, %v6536
  %v6670 = vadd.f32 %v6669, %v6539
  %v6671 = vadd.f32 %v6670, %v6542
  %v6672 = vadd.f32 %v6671, %v6545
  %v6673 = vadd.f32 %v6672, %v6548
  %v6674 = vadd.f32 %v6673, %v6551
  %v6675 = vadd.f32 %v6674, %v6554
  %v6676 = vadd.f32 %v6675, %v6557
  %v6677 = vadd.f32 %v6676, %v6560
  %v6678 = vadd.f32 %v6677, %v6563
  %v6679 = vadd.f32 %v6678, %v6566
  %v6680 = vadd.f32 %v6679, %v6569
  %v6681 = vadd.f32 %v6680, %v6572
  %v6682 = vadd.f32 %v6681, %v6575
  %v6683 = vadd.f32 %v6682, %v6578
  %v6684 = vrot.slane %v6683, 4
  %v6685 = vadd.f32 %v6683, %v6684
  %v6686 = vrot.slane %v6685, 2
  %v6687 = vadd.f32 %v6685, %v6686
  %v6688 = vrot.slane %v6687, 1
  %v6689 = vadd.f32 %v6687, %v6688
  %v6690 = vmul.f32 %v6615, 0.00390625
  %v6691 = vmul.f32 %v6652, 0.00390625
  %v6692 = vmul.f32 %v6689, 0.00390625
  %v6693 = vmul.f32 %v6480, %v6480
  %v6694 = vmul.f32 %v6481, %v6481
  %v6695 = vmul.f32 %v6482, %v6482
  %v6696 = vsub.f32 %v6690, %v6693
  %v6697 = vsub.f32 %v6691, %v6694
  %v6698 = vsub.f32 %v6692, %v6695
  %v6699 = vmax.f32 %v6696, 0.0
  %v6700 = vmax.f32 %v6697, 0.0
  %v6701 = vmax.f32 %v6698, 0.0
  %v6702 = vld [vmem:[#allocation5] sm:$0x7]
  %v6703 = vadd.f32 %v6699, 1e-05
  %v6704 = vadd.f32 %v6700, 1e-05
  %v6705 = vadd.f32 %v6701, 1e-05
  %v6706 = vrsqrt.pop %v6703
  %v6707 = vrsqrt.pop %v6704
  %v6708 = vrsqrt.pop %v6705
  %v6712 = vcombine.low %v6706, %v6707
  %v6714 = vunpack.c.l.s4 1966171168
  %v6715 = vunpack.c.0.s8 %v6714
  %v6716 = vlaneseq
  %v6717 = vshrl.u32 %v6716, 7
  %v6718 = vsub.s32 %v6715, %v6717
  %v6719 = vrot.slane %v6712, %v6718
  %v6721 = vunpack.c.l.s4 1966171168
  %v6722 = vunpack.c.0.s8 %v6721
  %v6723 = vlaneseq
  %v6724 = vshrl.u32 %v6723, 7
  %v6725 = vsub.s32 %v6722, %v6724
  %v6726 = vrot.slane %v6708, %v6725
  %v6727 = vcombine.low %v6719, %v6726
  %v6729 = vunpack.c.l.s4 1966171168
  %v6730 = vunpack.c.0.s8 %v6729
  %v6731 = vlaneseq
  %v6732 = vshrl.u32 %v6731, 7
  %v6733 = vsub.s32 %v6730, %v6732
  %v6734 = vrot.slane %v6727, %v6733
  %v6736 = vmul.f32 %v6702, %v6734
  %v6737 = vld [vmem:[#allocation6] sm:$0x7]
  %v6739 = vlaneseq
  %v6740 = vshrl.u32 %v6739, 7
  %v6741 = vsub.s32 0, %v6740
  %v6742 = vrot.slane %v6736, %v6741
  %v6743 = vlaneseq
  %v6744 = vshrl.u32 %v6743, 7
  %v6745 = vsub.s32 1, %v6744
  %v6746 = vrot.slane %v6736, %v6745
  %v6747 = vlaneseq
  %v6748 = vshrl.u32 %v6747, 7
  %v6749 = vsub.s32 2, %v6748
  %v6750 = vrot.slane %v6736, %v6749
  %v6754 = vmul.f32 %v6480, %v6742
  %v6755 = vmul.f32 %v6481, %v6746
  %v6756 = vmul.f32 %v6482, %v6750
  %v6760 = vcombine.low %v6754, %v6755
  %v6762 = vunpack.c.l.s4 1966171168
  %v6763 = vunpack.c.0.s8 %v6762
  %v6764 = vlaneseq
  %v6765 = vshrl.u32 %v6764, 7
  %v6766 = vsub.s32 %v6763, %v6765
  %v6767 = vrot.slane %v6760, %v6766
  %v6769 = vunpack.c.l.s4 1966171168
  %v6770 = vunpack.c.0.s8 %v6769
  %v6771 = vlaneseq
  %v6772 = vshrl.u32 %v6771, 7
  %v6773 = vsub.s32 %v6770, %v6772
  %v6774 = vrot.slane %v6756, %v6773
  %v6775 = vcombine.low %v6767, %v6774
  %v6777 = vunpack.c.l.s4 1966171168
  %v6778 = vunpack.c.0.s8 %v6777
  %v6779 = vlaneseq
  %v6780 = vshrl.u32 %v6779, 7
  %v6781 = vsub.s32 %v6778, %v6780
  %v6782 = vrot.slane %v6775, %v6781
  %v6784 = vsub.f32 %v6737, %v6782
  %v6785 = vmul.f32 %v6273, %v6742
  %v6786 = vmul.f32 %v6274, %v6746
  %v6787 = vmul.f32 %v6275, %v6750
  %v6788 = vmul.f32 %v6276, %v6742
  %v6789 = vmul.f32 %v6277, %v6746
  %v6790 = vmul.f32 %v6278, %v6750
  %v6791 = vmul.f32 %v6279, %v6742
  %v6792 = vmul.f32 %v6280, %v6746
  %v6793 = vmul.f32 %v6281, %v6750
  %v6794 = vmul.f32 %v6282, %v6742
  %v6795 = vmul.f32 %v6283, %v6746
  %v6796 = vmul.f32 %v6284, %v6750
  %v6797 = vmul.f32 %v6285, %v6742
  %v6798 = vmul.f32 %v6286, %v6746
  %v6799 = vmul.f32 %v6287, %v6750
  %v6800 = vmul.f32 %v6288, %v6742
  %v6801 = vmul.f32 %v6289, %v6746
  %v6802 = vmul.f32 %v6290, %v6750
  %v6803 = vmul.f32 %v6291, %v6742
  %v6804 = vmul.f32 %v6292, %v6746
  %v6805 = vmul.f32 %v6293, %v6750
  %v6806 = vmul.f32 %v6294, %v6742
  %v6807 = vmul.f32 %v6295, %v6746
  %v6808 = vmul.f32 %v6296, %v6750
  %v6809 = vmul.f32 %v6297, %v6742
  %v6810 = vmul.f32 %v6298, %v6746
  %v6811 = vmul.f32 %v6299, %v6750
  %v6812 = vmul.f32 %v6300, %v6742
  %v6813 = vmul.f32 %v6301, %v6746
  %v6814 = vmul.f32 %v6302, %v6750
  %v6815 = vmul.f32 %v6303, %v6742
  %v6816 = vmul.f32 %v6304, %v6746
  %v6817 = vmul.f32 %v6305, %v6750
  %v6818 = vmul.f32 %v6306, %v6742
  %v6819 = vmul.f32 %v6307, %v6746
  %v6820 = vmul.f32 %v6308, %v6750
  %v6821 = vmul.f32 %v6309, %v6742
  %v6822 = vmul.f32 %v6310, %v6746
  %v6823 = vmul.f32 %v6311, %v6750
  %v6824 = vmul.f32 %v6312, %v6742
  %v6825 = vmul.f32 %v6313, %v6746
  %v6826 = vmul.f32 %v6314, %v6750
  %v6827 = vmul.f32 %v6315, %v6742
  %v6828 = vmul.f32 %v6316, %v6746
  %v6829 = vmul.f32 %v6317, %v6750
  %v6830 = vmul.f32 %v6318, %v6742
  %v6831 = vmul.f32 %v6319, %v6746
  %v6832 = vmul.f32 %v6320, %v6750
  %v6833 = vmul.f32 %v6321, %v6742
  %v6834 = vmul.f32 %v6322, %v6746
  %v6835 = vmul.f32 %v6323, %v6750
  %v6836 = vmul.f32 %v6324, %v6742
  %v6837 = vmul.f32 %v6325, %v6746
  %v6838 = vmul.f32 %v6326, %v6750
  %v6839 = vmul.f32 %v6327, %v6742
  %v6840 = vmul.f32 %v6328, %v6746
  %v6841 = vmul.f32 %v6329, %v6750
  %v6842 = vmul.f32 %v6330, %v6742
  %v6843 = vmul.f32 %v6331, %v6746
  %v6844 = vmul.f32 %v6332, %v6750
  %v6845 = vmul.f32 %v6333, %v6742
  %v6846 = vmul.f32 %v6334, %v6746
  %v6847 = vmul.f32 %v6335, %v6750
  %v6848 = vmul.f32 %v6336, %v6742
  %v6849 = vmul.f32 %v6337, %v6746
  %v6850 = vmul.f32 %v6338, %v6750
  %v6851 = vmul.f32 %v6339, %v6742
  %v6852 = vmul.f32 %v6340, %v6746
  %v6853 = vmul.f32 %v6341, %v6750
  %v6854 = vmul.f32 %v6342, %v6742
  %v6855 = vmul.f32 %v6343, %v6746
  %v6856 = vmul.f32 %v6344, %v6750
  %v6857 = vmul.f32 %v6345, %v6742
  %v6858 = vmul.f32 %v6346, %v6746
  %v6859 = vmul.f32 %v6347, %v6750
  %v6860 = vmul.f32 %v6348, %v6742
  %v6861 = vmul.f32 %v6349, %v6746
  %v6862 = vmul.f32 %v6350, %v6750
  %v6863 = vmul.f32 %v6351, %v6742
  %v6864 = vmul.f32 %v6352, %v6746
  %v6865 = vmul.f32 %v6353, %v6750
  %v6866 = vmul.f32 %v6354, %v6742
  %v6867 = vmul.f32 %v6355, %v6746
  %v6868 = vmul.f32 %v6356, %v6750
  %v6869 = vmul.f32 %v6357, %v6742
  %v6870 = vmul.f32 %v6358, %v6746
  %v6871 = vmul.f32 %v6359, %v6750
  %v6872 = vmul.f32 %v6360, %v6742
  %v6873 = vmul.f32 %v6361, %v6746
  %v6874 = vmul.f32 %v6362, %v6750
  %v6875 = vmul.f32 %v6363, %v6742
  %v6876 = vmul.f32 %v6364, %v6746
  %v6877 = vmul.f32 %v6365, %v6750
  %v6878 = vmul.f32 %v6366, %v6742
  %v6879 = vmul.f32 %v6367, %v6746
  %v6880 = vmul.f32 %v6368, %v6750
  %v6882 = vlaneseq
  %v6883 = vshrl.u32 %v6882, 7
  %v6884 = vsub.s32 0, %v6883
  %v6885 = vrot.slane %v6784, %v6884
  %v6886 = vlaneseq
  %v6887 = vshrl.u32 %v6886, 7
  %v6888 = vsub.s32 1, %v6887
  %v6889 = vrot.slane %v6784, %v6888
  %v6890 = vlaneseq
  %v6891 = vshrl.u32 %v6890, 7
  %v6892 = vsub.s32 2, %v6891
  %v6893 = vrot.slane %v6784, %v6892
  %v6897 = vadd.f32 %v6785, %v6885
  %v6898 = vadd.f32 %v6786, %v6889
  %v6899 = vadd.f32 %v6787, %v6893
  %v6900 = vadd.f32 %v6788, %v6885
  %v6901 = vadd.f32 %v6789, %v6889
  %v6902 = vadd.f32 %v6790, %v6893
  %v6903 = vadd.f32 %v6791, %v6885
  %v6904 = vadd.f32 %v6792, %v6889
  %v6905 = vadd.f32 %v6793, %v6893
  %v6906 = vadd.f32 %v6794, %v6885
  %v6907 = vadd.f32 %v6795, %v6889
  %v6908 = vadd.f32 %v6796, %v6893
  %v6909 = vadd.f32 %v6797, %v6885
  %v6910 = vadd.f32 %v6798, %v6889
  %v6911 = vadd.f32 %v6799, %v6893
  %v6912 = vadd.f32 %v6800, %v6885
  %v6913 = vadd.f32 %v6801, %v6889
  %v6914 = vadd.f32 %v6802, %v6893
  %v6915 = vadd.f32 %v6803, %v6885
  %v6916 = vadd.f32 %v6804, %v6889
  %v6917 = vadd.f32 %v6805, %v6893
  %v6918 = vadd.f32 %v6806, %v6885
  %v6919 = vadd.f32 %v6807, %v6889
  %v6920 = vadd.f32 %v6808, %v6893
  %v6921 = vadd.f32 %v6809, %v6885
  %v6922 = vadd.f32 %v6810, %v6889
  %v6923 = vadd.f32 %v6811, %v6893
  %v6924 = vadd.f32 %v6812, %v6885
  %v6925 = vadd.f32 %v6813, %v6889
  %v6926 = vadd.f32 %v6814, %v6893
  %v6927 = vadd.f32 %v6815, %v6885
  %v6928 = vadd.f32 %v6816, %v6889
  %v6929 = vadd.f32 %v6817, %v6893
  %v6930 = vadd.f32 %v6818, %v6885
  %v6931 = vadd.f32 %v6819, %v6889
  %v6932 = vadd.f32 %v6820, %v6893
  %v6933 = vadd.f32 %v6821, %v6885
  %v6934 = vadd.f32 %v6822, %v6889
  %v6935 = vadd.f32 %v6823, %v6893
  %v6936 = vadd.f32 %v6824, %v6885
  %v6937 = vadd.f32 %v6825, %v6889
  %v6938 = vadd.f32 %v6826, %v6893
  %v6939 = vadd.f32 %v6827, %v6885
  %v6940 = vadd.f32 %v6828, %v6889
  %v6941 = vadd.f32 %v6829, %v6893
  %v6942 = vadd.f32 %v6830, %v6885
  %v6943 = vadd.f32 %v6831, %v6889
  %v6944 = vadd.f32 %v6832, %v6893
  %v6945 = vadd.f32 %v6833, %v6885
  %v6946 = vadd.f32 %v6834, %v6889
  %v6947 = vadd.f32 %v6835, %v6893
  %v6948 = vadd.f32 %v6836, %v6885
  %v6949 = vadd.f32 %v6837, %v6889
  %v6950 = vadd.f32 %v6838, %v6893
  %v6951 = vadd.f32 %v6839, %v6885
  %v6952 = vadd.f32 %v6840, %v6889
  %v6953 = vadd.f32 %v6841, %v6893
  %v6954 = vadd.f32 %v6842, %v6885
  %v6955 = vadd.f32 %v6843, %v6889
  %v6956 = vadd.f32 %v6844, %v6893
  %v6957 = vadd.f32 %v6845, %v6885
  %v6958 = vadd.f32 %v6846, %v6889
  %v6959 = vadd.f32 %v6847, %v6893
  %v6960 = vadd.f32 %v6848, %v6885
  %v6961 = vadd.f32 %v6849, %v6889
  %v6962 = vadd.f32 %v6850, %v6893
  %v6963 = vadd.f32 %v6851, %v6885
  %v6964 = vadd.f32 %v6852, %v6889
  %v6965 = vadd.f32 %v6853, %v6893
  %v6966 = vadd.f32 %v6854, %v6885
  %v6967 = vadd.f32 %v6855, %v6889
  %v6968 = vadd.f32 %v6856, %v6893
  %v6969 = vadd.f32 %v6857, %v6885
  %v6970 = vadd.f32 %v6858, %v6889
  %v6971 = vadd.f32 %v6859, %v6893
  %v6972 = vadd.f32 %v6860, %v6885
  %v6973 = vadd.f32 %v6861, %v6889
  %v6974 = vadd.f32 %v6862, %v6893
  %v6975 = vadd.f32 %v6863, %v6885
  %v6976 = vadd.f32 %v6864, %v6889
  %v6977 = vadd.f32 %v6865, %v6893
  %v6978 = vadd.f32 %v6866, %v6885
  %v6979 = vadd.f32 %v6867, %v6889
  %v6980 = vadd.f32 %v6868, %v6893
  %v6981 = vadd.f32 %v6869, %v6885
  %v6982 = vadd.f32 %v6870, %v6889
  %v6983 = vadd.f32 %v6871, %v6893
  %v6984 = vadd.f32 %v6872, %v6885
  %v6985 = vadd.f32 %v6873, %v6889
  %v6986 = vadd.f32 %v6874, %v6893
  %v6987 = vadd.f32 %v6875, %v6885
  %v6988 = vadd.f32 %v6876, %v6889
  %v6989 = vadd.f32 %v6877, %v6893
  %v6990 = vadd.f32 %v6878, %v6885
  %v6991 = vadd.f32 %v6879, %v6889
  %v6992 = vadd.f32 %v6880, %v6893
  %v6993 = vpack.c.bf16 %v6900, %v6897
  %v6994 = vpack.c.bf16 %v6901, %v6898
  %v6995 = vpack.c.bf16 %v6902, %v6899
  %v6996 = vpack.c.bf16 %v6906, %v6903
  %v6997 = vpack.c.bf16 %v6907, %v6904
  %v6998 = vpack.c.bf16 %v6908, %v6905
  %v6999 = vpack.c.bf16 %v6912, %v6909
  %v7000 = vpack.c.bf16 %v6913, %v6910
  %v7001 = vpack.c.bf16 %v6914, %v6911
  %v7002 = vpack.c.bf16 %v6918, %v6915
  %v7003 = vpack.c.bf16 %v6919, %v6916
  %v7004 = vpack.c.bf16 %v6920, %v6917
  %v7005 = vpack.c.bf16 %v6924, %v6921
  %v7006 = vpack.c.bf16 %v6925, %v6922
  %v7007 = vpack.c.bf16 %v6926, %v6923
  %v7008 = vpack.c.bf16 %v6930, %v6927
  %v7009 = vpack.c.bf16 %v6931, %v6928
  %v7010 = vpack.c.bf16 %v6932, %v6929
  %v7011 = vpack.c.bf16 %v6936, %v6933
  %v7012 = vpack.c.bf16 %v6937, %v6934
  %v7013 = vpack.c.bf16 %v6938, %v6935
  %v7014 = vpack.c.bf16 %v6942, %v6939
  %v7015 = vpack.c.bf16 %v6943, %v6940
  %v7016 = vpack.c.bf16 %v6944, %v6941
  %v7017 = vpack.c.bf16 %v6948, %v6945
  %v7018 = vpack.c.bf16 %v6949, %v6946
  %v7019 = vpack.c.bf16 %v6950, %v6947
  %v7020 = vpack.c.bf16 %v6954, %v6951
  %v7021 = vpack.c.bf16 %v6955, %v6952
  %v7022 = vpack.c.bf16 %v6956, %v6953
  %v7023 = vpack.c.bf16 %v6960, %v6957
  %v7024 = vpack.c.bf16 %v6961, %v6958
  %v7025 = vpack.c.bf16 %v6962, %v6959
  %v7026 = vpack.c.bf16 %v6966, %v6963
  %v7027 = vpack.c.bf16 %v6967, %v6964
  %v7028 = vpack.c.bf16 %v6968, %v6965
  %v7029 = vpack.c.bf16 %v6972, %v6969
  %v7030 = vpack.c.bf16 %v6973, %v6970
  %v7031 = vpack.c.bf16 %v6974, %v6971
  %v7032 = vpack.c.bf16 %v6978, %v6975
  %v7033 = vpack.c.bf16 %v6979, %v6976
  %v7034 = vpack.c.bf16 %v6980, %v6977
  %v7035 = vpack.c.bf16 %v6984, %v6981
  %v7036 = vpack.c.bf16 %v6985, %v6982
  %v7037 = vpack.c.bf16 %v6986, %v6983
  %v7038 = vpack.c.bf16 %v6990, %v6987
  %v7039 = vpack.c.bf16 %v6991, %v6988
  %v7040 = vpack.c.bf16 %v6992, %v6989
  %s7041 = smul.u32 4, 48
  %s7042 = smul.u32 %s7041, 1
  %s7043 = sshll.u32 %s7042, 4
  %7044 = dma.done %s1170, %s7043
  %s7045 = smul.u32 1, 1
  %s7046 = sshll.u32 %s7045, 4
  %7047 = dma.done %s1259, %s7046
  %v7048 = vld [vmem:[#allocation7] sm:$0xff]
  %v7049 = vld [vmem:[#allocation7 + $0x8] sm:$0xff]
  %v7050 = vld [vmem:[#allocation7 + $0x10] sm:$0xff]
  %v7051 = vld [vmem:[#allocation7 + $0x18] sm:$0xff]
  %v7052 = vld [vmem:[#allocation7 + $0x20] sm:$0xff]
  %v7053 = vld [vmem:[#allocation7 + $0x28] sm:$0xff]
  %v7054 = vld [vmem:[#allocation7 + $0x30] sm:$0xff]
  %v7055 = vld [vmem:[#allocation7 + $0x38] sm:$0xff]
  %v7056 = vld [vmem:[#allocation7 + $0x40] sm:$0xff]
  %v7057 = vld [vmem:[#allocation7 + $0x48] sm:$0xff]
  %v7058 = vld [vmem:[#allocation7 + $0x50] sm:$0xff]
  %v7059 = vld [vmem:[#allocation7 + $0x58] sm:$0xff]
  %v7060 = vld [vmem:[#allocation7 + $0x60] sm:$0xff]
  %v7061 = vld [vmem:[#allocation7 + $0x68] sm:$0xff]
  %v7062 = vld [vmem:[#allocation7 + $0x70] sm:$0xff]
  %v7063 = vld [vmem:[#allocation7 + $0x78] sm:$0xff]
  %v7064 = vld [vmem:[#allocation7 + $0x80] sm:$0xff]
  %v7065 = vld [vmem:[#allocation7 + $0x88] sm:$0xff]
  %v7066 = vld [vmem:[#allocation7 + $0x90] sm:$0xff]
  %v7067 = vld [vmem:[#allocation7 + $0x98] sm:$0xff]
  %v7068 = vld [vmem:[#allocation7 + $0xa0] sm:$0xff]
  %v7069 = vld [vmem:[#allocation7 + $0xa8] sm:$0xff]
  %v7070 = vld [vmem:[#allocation7 + $0xb0] sm:$0xff]
  %v7071 = vld [vmem:[#allocation7 + $0xb8] sm:$0xff]
  %v7072 = vld [vmem:[#allocation8] sm:$0x1]
  %v7074 = vlaneseq
  %v7075 = vshrl.u32 %v7074, 7
  %v7076 = vsub.s32 0, %v7075
  %v7077 = vrot.slane %v7072, %v7076
  %7079 = vmatprep.subr.bf16.mxu0 0
  %7080 = vmatpush1.bf16.msra.mxu0 %v7048
  %7081 = vmatprep.subr.bf16.mxu0 0
  %7082 = vmatpush1.bf16.msra.mxu0 %v7049
  %7083 = vmatprep.subr.bf16.mxu0 0
  %7084 = vmatpush1.bf16.msra.mxu0 %v7050
  %7085 = vmatprep.subr.bf16.mxu0 0
  %7086 = vmatpush1.bf16.msra.mxu0 %v7051
  %7087 = vmatprep.subr.bf16.mxu0 0
  %7088 = vmatpush1.bf16.msra.mxu0 %v7052
  %7089 = vmatprep.subr.bf16.mxu0 0
  %7090 = vmatpush1.bf16.msra.mxu0 %v7053
  %7091 = vmatprep.subr.bf16.mxu0 0
  %7092 = vmatpush1.bf16.msra.mxu0 %v7054
  %7093 = vmatprep.subr.bf16.mxu0 0
  %7094 = vmatpush1.bf16.msra.mxu0 %v7055
  %7095 = vmatprep.subr.bf16.mxu0 0
  %7096 = vmatpush1.bf16.msra.mxu0 %v7056
  %7097 = vmatprep.subr.bf16.mxu0 0
  %7098 = vmatpush1.bf16.msra.mxu0 %v7057
  %7099 = vmatprep.subr.bf16.mxu0 0
  %7100 = vmatpush1.bf16.msra.mxu0 %v7058
  %7101 = vmatprep.subr.bf16.mxu0 0
  %7102 = vmatpush1.bf16.msra.mxu0 %v7059
  %7103 = vmatprep.subr.bf16.mxu0 0
  %7104 = vmatpush1.bf16.msra.mxu0 %v7060
  %7105 = vmatprep.subr.bf16.mxu0 0
  %7106 = vmatpush1.bf16.msra.mxu0 %v7061
  %7107 = vmatprep.subr.bf16.mxu0 0
  %7108 = vmatpush1.bf16.msra.mxu0 %v7062
  %7109 = vmatprep.subr.bf16.mxu0 0
  %7110 = vmatpush1.bf16.msra.mxu0 %v7063
  %7111 = vmatprep.mubr.bf16.mxu0 %v6994
  %7112 = vmatmul.mubr.bf16.gmra.mrb[0].mxu0 %v6993
  %v7113 = vpop.f32.mrb[0].mxu0
  %v7114 = vadd.f32 %v7077, %v7113
  %v7115 = vpop.f32.mrb[0].mxu0
  %v7116 = vpop.f32.mrb[0].mxu0
  %v7117 = vadd.f32 %v7077, %v7116
  %v7118 = vpop.f32.mrb[0].mxu0
  %7119 = vmatprep.mubr.bf16.mxu0 %v6997
  %7120 = vmatmul.mubr.bf16.gmra.mrb[0].mxu0 %v6996
  %v7121 = vpop.f32.mrb[0].mxu0
  %v7122 = vadd.f32 %v7077, %v7121
  %v7123 = vpop.f32.mrb[0].mxu0
  %v7124 = vpop.f32.mrb[0].mxu0
  %v7125 = vadd.f32 %v7077, %v7124
  %v7126 = vpop.f32.mrb[0].mxu0
  %7127 = vmatprep.mubr.bf16.mxu0 %v7000
  %7128 = vmatmul.mubr.bf16.gmra.mrb[0].mxu0 %v6999
  %v7129 = vpop.f32.mrb[0].mxu0
  %v7130 = vadd.f32 %v7077, %v7129
  %v7131 = vpop.f32.mrb[0].mxu0
  %v7132 = vpop.f32.mrb[0].mxu0
  %v7133 = vadd.f32 %v7077, %v7132
  %v7134 = vpop.f32.mrb[0].mxu0
  %7135 = vmatprep.mubr.bf16.mxu0 %v7003
  %7136 = vmatmul.mubr.bf16.gmra.mrb[0].mxu0 %v7002
  %v7137 = vpop.f32.mrb[0].mxu0
  %v7138 = vadd.f32 %v7077, %v7137
  %v7139 = vpop.f32.mrb[0].mxu0
  %v7140 = vpop.f32.mrb[0].mxu0
  %v7141 = vadd.f32 %v7077, %v7140
  %v7142 = vpop.f32.mrb[0].mxu0
  %7143 = vmatprep.mubr.bf16.mxu0 %v7006
  %7144 = vmatmul.mubr.bf16.gmra.mrb[0].mxu0 %v7005
  %v7145 = vpop.f32.mrb[0].mxu0
  %v7146 = vadd.f32 %v7077, %v7145
  %v7147 = vpop.f32.mrb[0].mxu0
  %v7148 = vpop.f32.mrb[0].mxu0
  %v7149 = vadd.f32 %v7077, %v7148
  %v7150 = vpop.f32.mrb[0].mxu0
  %7151 = vmatprep.mubr.bf16.mxu0 %v7009
  %7152 = vmatmul.mubr.bf16.gmra.mrb[0].mxu0 %v7008
  %v7153 = vpop.f32.mrb[0].mxu0
  %v7154 = vadd.f32 %v7077, %v7153
  %v7155 = vpop.f32.mrb[0].mxu0
  %v7156 = vpop.f32.mrb[0].mxu0
  %v7157 = vadd.f32 %v7077, %v7156
  %v7158 = vpop.f32.mrb[0].mxu0
  %7159 = vmatprep.mubr.bf16.mxu0 %v7012
  %7160 = vmatmul.mubr.bf16.gmra.mrb[0].mxu0 %v7011
  %v7161 = vpop.f32.mrb[0].mxu0
  %v7162 = vadd.f32 %v7077, %v7161
  %v7163 = vpop.f32.mrb[0].mxu0
  %v7164 = vpop.f32.mrb[0].mxu0
  %v7165 = vadd.f32 %v7077, %v7164
  %v7166 = vpop.f32.mrb[0].mxu0
  %7167 = vmatprep.mubr.bf16.mxu0 %v7015
  %7168 = vmatmul.mubr.bf16.gmra.mrb[0].mxu0 %v7014
  %v7169 = vpop.f32.mrb[0].mxu0
  %v7170 = vadd.f32 %v7077, %v7169
  %v7171 = vpop.f32.mrb[0].mxu0
  %v7172 = vpop.f32.mrb[0].mxu0
  %v7173 = vadd.f32 %v7077, %v7172
  %v7174 = vpop.f32.mrb[0].mxu0
  %7175 = vmatprep.mubr.bf16.mxu0 %v7018
  %7176 = vmatmul.mubr.bf16.gmra.mrb[0].mxu0 %v7017
  %v7177 = vpop.f32.mrb[0].mxu0
  %v7178 = vadd.f32 %v7077, %v7177
  %v7179 = vpop.f32.mrb[0].mxu0
  %v7180 = vpop.f32.mrb[0].mxu0
  %v7181 = vadd.f32 %v7077, %v7180
  %v7182 = vpop.f32.mrb[0].mxu0
  %7183 = vmatprep.mubr.bf16.mxu0 %v7021
  %7184 = vmatmul.mubr.bf16.gmra.mrb[0].mxu0 %v7020
  %v7185 = vpop.f32.mrb[0].mxu0
  %v7186 = vadd.f32 %v7077, %v7185
  %v7187 = vpop.f32.mrb[0].mxu0
  %v7188 = vpop.f32.mrb[0].mxu0
  %v7189 = vadd.f32 %v7077, %v7188
  %v7190 = vpop.f32.mrb[0].mxu0
  %7191 = vmatprep.mubr.bf16.mxu0 %v7024
  %7192 = vmatmul.mubr.bf16.gmra.mrb[0].mxu0 %v7023
  %v7193 = vpop.f32.mrb[0].mxu0
  %v7194 = vadd.f32 %v7077, %v7193
  %v7195 = vpop.f32.mrb[0].mxu0
  %v7196 = vpop.f32.mrb[0].mxu0
  %v7197 = vadd.f32 %v7077, %v7196
  %v7198 = vpop.f32.mrb[0].mxu0
  %7199 = vmatprep.mubr.bf16.mxu0 %v7027
  %7200 = vmatmul.mubr.bf16.gmra.mrb[0].mxu0 %v7026
  %v7201 = vpop.f32.mrb[0].mxu0
  %v7202 = vadd.f32 %v7077, %v7201
  %v7203 = vpop.f32.mrb[0].mxu0
  %v7204 = vpop.f32.mrb[0].mxu0
  %v7205 = vadd.f32 %v7077, %v7204
  %v7206 = vpop.f32.mrb[0].mxu0
  %7207 = vmatprep.mubr.bf16.mxu0 %v7030
  %7208 = vmatmul.mubr.bf16.gmra.mrb[0].mxu0 %v7029
  %v7209 = vpop.f32.mrb[0].mxu0
  %v7210 = vadd.f32 %v7077, %v7209
  %v7211 = vpop.f32.mrb[0].mxu0
  %v7212 = vpop.f32.mrb[0].mxu0
  %v7213 = vadd.f32 %v7077, %v7212
  %v7214 = vpop.f32.mrb[0].mxu0
  %7215 = vmatprep.mubr.bf16.mxu0 %v7033
  %7216 = vmatmul.mubr.bf16.gmra.mrb[0].mxu0 %v7032
  %v7217 = vpop.f32.mrb[0].mxu0
  %v7218 = vadd.f32 %v7077, %v7217
  %v7219 = vpop.f32.mrb[0].mxu0
  %v7220 = vpop.f32.mrb[0].mxu0
  %v7221 = vadd.f32 %v7077, %v7220
  %v7222 = vpop.f32.mrb[0].mxu0
  %7223 = vmatprep.mubr.bf16.mxu0 %v7036
  %7224 = vmatmul.mubr.bf16.gmra.mrb[0].mxu0 %v7035
  %v7225 = vpop.f32.mrb[0].mxu0
  %v7226 = vadd.f32 %v7077, %v7225
  %v7227 = vpop.f32.mrb[0].mxu0
  %v7228 = vpop.f32.mrb[0].mxu0
  %v7229 = vadd.f32 %v7077, %v7228
  %v7230 = vpop.f32.mrb[0].mxu0
  %7231 = vmatprep.mubr.bf16.mxu0 %v7039
  %7232 = vmatmul.mubr.bf16.gmra.mrb[0].mxu0 %v7038
  %v7233 = vpop.f32.mrb[0].mxu0
  %v7234 = vadd.f32 %v7077, %v7233
  %v7235 = vpop.f32.mrb[0].mxu0
  %v7236 = vpop.f32.mrb[0].mxu0
  %v7237 = vadd.f32 %v7077, %v7236
  %v7238 = vpop.f32.mrb[0].mxu0
  %7239 = vdwg.mxu0
  %7240 = vmatprep.subr.bf16.mxu0 0
  %7241 = vmatpush1.bf16.msra.mxu0 %v7064
  %7242 = vmatprep.subr.bf16.mxu0 0
  %7243 = vmatpush1.bf16.msra.mxu0 %v7065
  %7244 = vmatprep.subr.bf16.mxu0 0
  %7245 = vmatpush1.bf16.msra.mxu0 %v7066
  %7246 = vmatprep.subr.bf16.mxu0 0
  %7247 = vmatpush1.bf16.msra.mxu0 %v7067
  %7248 = vmatprep.subr.bf16.mxu0 0
  %7249 = vmatpush1.bf16.msra.mxu0 %v7068
  %7250 = vmatprep.subr.bf16.mxu0 0
  %7251 = vmatpush1.bf16.msra.mxu0 %v7069
  %7252 = vmatprep.subr.bf16.mxu0 0
  %7253 = vmatpush1.bf16.msra.mxu0 %v7070
  %7254 = vmatprep.subr.bf16.mxu0 0
  %7255 = vmatpush1.bf16.msra.mxu0 %v7071
  %7256 = vmatprep.subr.bf16.mxu0 0
  %7257 = vmatpush1.bf16.msra.mxu0 0
  %7258 = vmatprep.subr.bf16.mxu0 0
  %7259 = vmatpush1.bf16.msra.mxu0 0
  %7260 = vmatprep.subr.bf16.mxu0 0
  %7261 = vmatpush1.bf16.msra.mxu0 0
  %7262 = vmatprep.subr.bf16.mxu0 0
  %7263 = vmatpush1.bf16.msra.mxu0 0
  %7264 = vmatprep.subr.bf16.mxu0 0
  %7265 = vmatpush1.bf16.msra.mxu0 0
  %7266 = vmatprep.subr.bf16.mxu0 0
  %7267 = vmatpush1.bf16.msra.mxu0 0
  %7268 = vmatprep.subr.bf16.mxu0 0
  %7269 = vmatpush1.bf16.msra.mxu0 0
  %7270 = vmatprep.subr.bf16.mxu0 0
  %7271 = vmatpush1.bf16.msra.mxu0 0
  %7272 = vmatprep.mubr.bf16.mxu0 0
  %7273 = vmatmul.mubr.bf16.gmra.mrb[0].mxu0 %v6995
  %v7274 = vpop.f32.mrb[0].mxu0
  %v7275 = vadd.f32 %v7114, %v7274
  %v7276 = vpop.f32.mrb[0].mxu0
  %v7277 = vpop.f32.mrb[0].mxu0
  %v7278 = vadd.f32 %v7117, %v7277
  %v7279 = vpop.f32.mrb[0].mxu0
  %7280 = vmatprep.mubr.bf16.mxu0 0
  %7281 = vmatmul.mubr.bf16.gmra.mrb[0].mxu0 %v6998
  %v7282 = vpop.f32.mrb[0].mxu0
  %v7283 = vadd.f32 %v7122, %v7282
  %v7284 = vpop.f32.mrb[0].mxu0
  %v7285 = vpop.f32.mrb[0].mxu0
  %v7286 = vadd.f32 %v7125, %v7285
  %v7287 = vpop.f32.mrb[0].mxu0
  %7288 = vmatprep.mubr.bf16.mxu0 0
  %7289 = vmatmul.mubr.bf16.gmra.mrb[0].mxu0 %v7001
  %v7290 = vpop.f32.mrb[0].mxu0
  %v7291 = vadd.f32 %v7130, %v7290
  %v7292 = vpop.f32.mrb[0].mxu0
  %v7293 = vpop.f32.mrb[0].mxu0
  %v7294 = vadd.f32 %v7133, %v7293
  %v7295 = vpop.f32.mrb[0].mxu0
  %7296 = vmatprep.mubr.bf16.mxu0 0
  %7297 = vmatmul.mubr.bf16.gmra.mrb[0].mxu0 %v7004
  %v7298 = vpop.f32.mrb[0].mxu0
  %v7299 = vadd.f32 %v7138, %v7298
  %v7300 = vpop.f32.mrb[0].mxu0
  %v7301 = vpop.f32.mrb[0].mxu0
  %v7302 = vadd.f32 %v7141, %v7301
  %v7303 = vpop.f32.mrb[0].mxu0
  %7304 = vmatprep.mubr.bf16.mxu0 0
  %7305 = vmatmul.mubr.bf16.gmra.mrb[0].mxu0 %v7007
  %v7306 = vpop.f32.mrb[0].mxu0
  %v7307 = vadd.f32 %v7146, %v7306
  %v7308 = vpop.f32.mrb[0].mxu0
  %v7309 = vpop.f32.mrb[0].mxu0
  %v7310 = vadd.f32 %v7149, %v7309
  %v7311 = vpop.f32.mrb[0].mxu0
  %7312 = vmatprep.mubr.bf16.mxu0 0
  %7313 = vmatmul.mubr.bf16.gmra.mrb[0].mxu0 %v7010
  %v7314 = vpop.f32.mrb[0].mxu0
  %v7315 = vadd.f32 %v7154, %v7314
  %v7316 = vpop.f32.mrb[0].mxu0
  %v7317 = vpop.f32.mrb[0].mxu0
  %v7318 = vadd.f32 %v7157, %v7317
  %v7319 = vpop.f32.mrb[0].mxu0
  %7320 = vmatprep.mubr.bf16.mxu0 0
  %7321 = vmatmul.mubr.bf16.gmra.mrb[0].mxu0 %v7013
  %v7322 = vpop.f32.mrb[0].mxu0
  %v7323 = vadd.f32 %v7162, %v7322
  %v7324 = vpop.f32.mrb[0].mxu0
  %v7325 = vpop.f32.mrb[0].mxu0
  %v7326 = vadd.f32 %v7165, %v7325
  %v7327 = vpop.f32.mrb[0].mxu0
  %7328 = vmatprep.mubr.bf16.mxu0 0
  %7329 = vmatmul.mubr.bf16.gmra.mrb[0].mxu0 %v7016
  %v7330 = vpop.f32.mrb[0].mxu0
  %v7331 = vadd.f32 %v7170, %v7330
  %v7332 = vpop.f32.mrb[0].mxu0
  %v7333 = vpop.f32.mrb[0].mxu0
  %v7334 = vadd.f32 %v7173, %v7333
  %v7335 = vpop.f32.mrb[0].mxu0
  %7336 = vmatprep.mubr.bf16.mxu0 0
  %7337 = vmatmul.mubr.bf16.gmra.mrb[0].mxu0 %v7019
  %v7338 = vpop.f32.mrb[0].mxu0
  %v7339 = vadd.f32 %v7178, %v7338
  %v7340 = vpop.f32.mrb[0].mxu0
  %v7341 = vpop.f32.mrb[0].mxu0
  %v7342 = vadd.f32 %v7181, %v7341
  %v7343 = vpop.f32.mrb[0].mxu0
  %7344 = vmatprep.mubr.bf16.mxu0 0
  %7345 = vmatmul.mubr.bf16.gmra.mrb[0].mxu0 %v7022
  %v7346 = vpop.f32.mrb[0].mxu0
  %v7347 = vadd.f32 %v7186, %v7346
  %v7348 = vpop.f32.mrb[0].mxu0
  %v7349 = vpop.f32.mrb[0].mxu0
  %v7350 = vadd.f32 %v7189, %v7349
  %v7351 = vpop.f32.mrb[0].mxu0
  %7352 = vmatprep.mubr.bf16.mxu0 0
  %7353 = vmatmul.mubr.bf16.gmra.mrb[0].mxu0 %v7025
  %v7354 = vpop.f32.mrb[0].mxu0
  %v7355 = vadd.f32 %v7194, %v7354
  %v7356 = vpop.f32.mrb[0].mxu0
  %v7357 = vpop.f32.mrb[0].mxu0
  %v7358 = vadd.f32 %v7197, %v7357
  %v7359 = vpop.f32.mrb[0].mxu0
  %7360 = vmatprep.mubr.bf16.mxu0 0
  %7361 = vmatmul.mubr.bf16.gmra.mrb[0].mxu0 %v7028
  %v7362 = vpop.f32.mrb[0].mxu0
  %v7363 = vadd.f32 %v7202, %v7362
  %v7364 = vpop.f32.mrb[0].mxu0
  %v7365 = vpop.f32.mrb[0].mxu0
  %v7366 = vadd.f32 %v7205, %v7365
  %v7367 = vpop.f32.mrb[0].mxu0
  %7368 = vmatprep.mubr.bf16.mxu0 0
  %7369 = vmatmul.mubr.bf16.gmra.mrb[0].mxu0 %v7031
  %v7370 = vpop.f32.mrb[0].mxu0
  %v7371 = vadd.f32 %v7210, %v7370
  %v7372 = vpop.f32.mrb[0].mxu0
  %v7373 = vpop.f32.mrb[0].mxu0
  %v7374 = vadd.f32 %v7213, %v7373
  %v7375 = vpop.f32.mrb[0].mxu0
  %7376 = vmatprep.mubr.bf16.mxu0 0
  %7377 = vmatmul.mubr.bf16.gmra.mrb[0].mxu0 %v7034
  %v7378 = vpop.f32.mrb[0].mxu0
  %v7379 = vadd.f32 %v7218, %v7378
  %v7380 = vpop.f32.mrb[0].mxu0
  %v7381 = vpop.f32.mrb[0].mxu0
  %v7382 = vadd.f32 %v7221, %v7381
  %v7383 = vpop.f32.mrb[0].mxu0
  %7384 = vmatprep.mubr.bf16.mxu0 0
  %7385 = vmatmul.mubr.bf16.gmra.mrb[0].mxu0 %v7037
  %v7386 = vpop.f32.mrb[0].mxu0
  %v7387 = vadd.f32 %v7226, %v7386
  %v7388 = vpop.f32.mrb[0].mxu0
  %v7389 = vpop.f32.mrb[0].mxu0
  %v7390 = vadd.f32 %v7229, %v7389
  %v7391 = vpop.f32.mrb[0].mxu0
  %7392 = vmatprep.mubr.bf16.mxu0 0
  %7393 = vmatmul.mubr.bf16.gmra.mrb[0].mxu0 %v7040
  %v7394 = vpop.f32.mrb[0].mxu0
  %v7395 = vadd.f32 %v7234, %v7394
  %v7396 = vpop.f32.mrb[0].mxu0
  %v7397 = vpop.f32.mrb[0].mxu0
  %v7398 = vadd.f32 %v7237, %v7397
  %v7399 = vpop.f32.mrb[0].mxu0
  %7400 = vdwg.mxu0
  %vm7401 = vcmask 64512
  %7402 = vst.msk [vmem:[%s11] sm:$0xff] %vm7401, %v7275
  %7403 = vst.msk [vmem:[%s11 + $0x8] sm:$0xff] %vm7401, %v7278
  %7404 = vst.msk [vmem:[%s11 + $0x10] sm:$0xff] %vm7401, %v7283
  %7405 = vst.msk [vmem:[%s11 + $0x18] sm:$0xff] %vm7401, %v7286
  %7406 = vst.msk [vmem:[%s11 + $0x20] sm:$0xff] %vm7401, %v7291
  %7407 = vst.msk [vmem:[%s11 + $0x28] sm:$0xff] %vm7401, %v7294
  %7408 = vst.msk [vmem:[%s11 + $0x30] sm:$0xff] %vm7401, %v7299
  %7409 = vst.msk [vmem:[%s11 + $0x38] sm:$0xff] %vm7401, %v7302
  %7410 = vst.msk [vmem:[%s11 + $0x40] sm:$0xff] %vm7401, %v7307
  %7411 = vst.msk [vmem:[%s11 + $0x48] sm:$0xff] %vm7401, %v7310
  %7412 = vst.msk [vmem:[%s11 + $0x50] sm:$0xff] %vm7401, %v7315
  %7413 = vst.msk [vmem:[%s11 + $0x58] sm:$0xff] %vm7401, %v7318
  %7414 = vst.msk [vmem:[%s11 + $0x60] sm:$0xff] %vm7401, %v7323
  %7415 = vst.msk [vmem:[%s11 + $0x68] sm:$0xff] %vm7401, %v7326
  %7416 = vst.msk [vmem:[%s11 + $0x70] sm:$0xff] %vm7401, %v7331
  %7417 = vst.msk [vmem:[%s11 + $0x78] sm:$0xff] %vm7401, %v7334
  %7418 = vst.msk [vmem:[%s11 + $0x80] sm:$0xff] %vm7401, %v7339
  %7419 = vst.msk [vmem:[%s11 + $0x88] sm:$0xff] %vm7401, %v7342
  %7420 = vst.msk [vmem:[%s11 + $0x90] sm:$0xff] %vm7401, %v7347
  %7421 = vst.msk [vmem:[%s11 + $0x98] sm:$0xff] %vm7401, %v7350
  %7422 = vst.msk [vmem:[%s11 + $0xa0] sm:$0xff] %vm7401, %v7355
  %7423 = vst.msk [vmem:[%s11 + $0xa8] sm:$0xff] %vm7401, %v7358
  %7424 = vst.msk [vmem:[%s11 + $0xb0] sm:$0xff] %vm7401, %v7363
  %7425 = vst.msk [vmem:[%s11 + $0xb8] sm:$0xff] %vm7401, %v7366
  %7426 = vst.msk [vmem:[%s11 + $0xc0] sm:$0xff] %vm7401, %v7371
  %7427 = vst.msk [vmem:[%s11 + $0xc8] sm:$0xff] %vm7401, %v7374
  %7428 = vst.msk [vmem:[%s11 + $0xd0] sm:$0xff] %vm7401, %v7379
  %7429 = vst.msk [vmem:[%s11 + $0xd8] sm:$0xff] %vm7401, %v7382
  %7430 = vst.msk [vmem:[%s11 + $0xe0] sm:$0xff] %vm7401, %v7387
  %7431 = vst.msk [vmem:[%s11 + $0xe8] sm:$0xff] %vm7401, %v7390
  %7432 = vst.msk [vmem:[%s11 + $0xf0] sm:$0xff] %vm7401, %v7395
  %7433 = vst.msk [vmem:[%s11 + $0xf8] sm:$0xff] %vm7401, %v7398
  // Predicated region
  $region213: #{network_forward.1} parent=0 // pred_check
    _
  $region214: #{network_forward.1} parent=0 // pred_check_branch
    %7435 = sbr.rel (0) target = $region216
  $region215: #{network_forward.1} parent=0 // pred_region
    _
  $region216: #{network_forward.1} parent=0 // pred_fallthru
    _
  // Predicated region
  $region217: #{network_forward.1} parent=0 // pred_check
    _
  $region218: #{network_forward.1} parent=0 // pred_check_branch
    %7437 = sbr.rel (0) target = $region220
  $region219: #{network_forward.1} parent=0 // pred_region
    _
  $region220: #{network_forward.1} parent=0 // pred_fallthru
    _
  %7438 = vsyncmov [#allocation9]
  %s7439 = vpop.sfrf %7438
  %p7440 = scmp.eq.s32.totalorder %s7439, 0
  %p7441 = pneg %p7440
  %7443 = shalt.err (%p7441)
  %s7444 = scalar_lea.sflag [#allocation9], 1
  %7445 = vsyncmov %s7444
  %s7446 = vpop.sfrf %7445
  %p7447 = scmp.eq.s32.totalorder %s7446, 0
  %p7448 = pneg %p7447
  %7450 = shalt.err (%p7448)
  %s7451 = scalar_lea.sflag [#allocation9], 2
  %7452 = vsyncmov %s7451
  %s7453 = vpop.sfrf %7452
  %p7454 = scmp.eq.s32.totalorder %s7453, 0
  %p7455 = pneg %p7454
  %7457 = shalt.err (%p7455)
  %s7458 = scalar_lea.sflag [#allocation9], 3
  %7459 = vsyncmov %s7458
  %s7460 = vpop.sfrf %7459
  %p7461 = scmp.eq.s32.totalorder %s7460, 0
  %p7462 = pneg %p7461
  %7464 = shalt.err (%p7462)
  %s7465 = scalar_lea.sflag [#allocation9], 4
  %7466 = vsyncmov %s7465
  %s7467 = vpop.sfrf %7466
  %p7468 = scmp.eq.s32.totalorder %s7467, 0
  %p7469 = pneg %p7468
  %7471 = shalt.err (%p7469)
  %s7472 = scalar_lea.sflag [#allocation9], 5
  %7473 = vsyncmov %s7472
  %s7474 = vpop.sfrf %7473
  %p7475 = scmp.eq.s32.totalorder %s7474, 0
  %p7476 = pneg %p7475
  %7478 = shalt.err (%p7476)

</llo_original>
